<compile_context>
chip_gen: v5e
topology: v5e:2x2
jax: 0.10.0
libtpu: 0.0.40
codegen_flags: <defaults>
</compile_context>

<pallas_src>
import jax
import jax.numpy as jnp
from jax import lax
from jax.experimental import pallas as pl
from jax.experimental.pallas import tpu as pltpu

C1 = 0.01 ** 2
C2 = 0.03 ** 2
WIN = 3
# 1/9 normalisation folded into the constants: both SSIM factors are scaled by
# 81 (= (WIN*WIN)**2 / (WIN*WIN) per factor pair), leaving the ratio unchanged.
A1 = 81.0 * C1
A2 = 81.0 * C2


def _reflect_box_matrix(n, side):
    """(n, n) matrix computing the reflect-padded 3-tap window SUM along one
    axis.  side='right' -> used as  a @ B  (window along the last axis of a);
    side='left'  -> used as  B @ a  (window along the first axis of a).
    The off-band 2 entries encode ReflectionPad2d(1)'s duplicated edge
    neighbours, so no padded array is ever materialised."""
    idx = jnp.arange(n)
    band = (jnp.abs(idx[:, None] - idx[None, :]) <= 1).astype(jnp.float32)
    if side == "right":
        band = band.at[1, 0].add(1.0).at[n - 2, n - 1].add(1.0)
    else:
        band = band.at[0, 1].add(1.0).at[n - 1, n - 2].add(1.0)
    return band


def _ssim_kernel(x_ref, y_ref, bh_ref, bv_ref, out_ref):
    # x_ref / y_ref / out_ref: (TP, H, W) blocks, natural layout
    # (W on lanes, H on sublanes, planes on the leading dim).
    # bh_ref: (W, W) right box matrix; bv_ref: (H, H) left box matrix.
    tp = x_ref.shape[0]
    bh = bh_ref[...]
    bv = bv_ref[...]
    hi = lax.Precision.HIGHEST  # keep the f32 band matmuls at full f32

    def one_plane(p, carry):
        x = x_ref[p].astype(jnp.float32)      # (H, W)
        y = y_ref[p].astype(jnp.float32)

        def box(a):
            # Reflect-padded 3x3 window SUM as two small MXU matmuls.  The
            # reflection boundary lives in the matrices, so there is no
            # wrapper-side pad and no shifted slices / copies in the kernel;
            # the MXU (otherwise idle in this op) does all the pooling work.
            h = jnp.dot(a, bh, precision=hi, preferred_element_type=jnp.float32)
            return jnp.dot(bv, h, precision=hi, preferred_element_type=jnp.float32)

        sx = box(x)
        sy = box(y)
        sxx = box(x * x)
        syy = box(y * y)
        sxy = box(x * y)

        # SSIM with the 1/9 normalisation folded into the constants:
        #   num = 81^2 * ssim_n,  den = 81^2 * ssim_d,  ratio unchanged.
        sxsy = sx * sy
        sq = sx * sx + sy * sy
        num = (2.0 * sxsy + A1) * (18.0 * sxy - 2.0 * sxsy + A2)
        den = (sq + A1) * (9.0 * (sxx + syy) - sq + A2)

        # EUP reciprocal seed + one Newton-Raphson step: ~1e-7 relative error
        # (well inside the 1e-5 check) and keeps the divide off the VALU chain.
        r = pl.reciprocal(den, approx=True)
        r = r * (2.0 - den * r)

        out = jnp.clip((1.0 - num * r) * 0.5, 0.0, 1.0)
        out_ref[p] = out.astype(out_ref.dtype)
        return carry

    # Per-plane loop bounds the live working set to ~7 (H, W) slabs; unroll
    # the short case so the scheduler sees across iterations.
    lax.fori_loop(0, tp, one_plane, 0, unroll=tp <= 4)


def _planes_per_step(P, H, W):
    """Planes per grid step: the largest divisor of P that keeps one input
    block under ~2 MiB and still leaves >= 2 grid steps, so both v7x
    TensorCores get work and the DMA pipeline has steps to overlap."""
    max_tp = max(1, min(256, (2 << 20) // (H * W * 4)))
    best = 1
    for tp in range(1, min(P, max_tp) + 1):
        if P % tp == 0 and P // tp >= 2:
            best = tp
    return best


def ssim_loss(src_img, tgt_img):
    """SSIMLoss.forward equivalent.  src_img, tgt_img: (N, C, H, W)."""
    N, C, H, W = src_img.shape
    P = N * C

    # Natural layout, metadata-only reshape: no pad / transpose / lane-pad
    # HBM passes around the kernel.
    x = src_img.reshape(P, H, W)
    y = tgt_img.reshape(P, H, W)

    bh = _reflect_box_matrix(W, "right")   # (W, W): horizontal window sum
    bv = _reflect_box_matrix(H, "left")    # (H, H): vertical   window sum

    tp = _planes_per_step(P, H, W)
    grid = (P // tp,)

    out = pl.pallas_call(
        _ssim_kernel,
        out_shape=jax.ShapeDtypeStruct((P, H, W), src_img.dtype),
        grid=grid,
        in_specs=[
            pl.BlockSpec((tp, H, W), lambda i: (i, 0, 0)),
            pl.BlockSpec((tp, H, W), lambda i: (i, 0, 0)),
            pl.BlockSpec((W, W), lambda i: (0, 0)),
            pl.BlockSpec((H, H), lambda i: (0, 0)),
        ],
        out_specs=pl.BlockSpec((tp, H, W), lambda i: (i, 0, 0)),
        compiler_params=pltpu.CompilerParams(
            dimension_semantics=("parallel",),
            # Input blocks are capped at ~2 MiB, so double-buffered inputs +
            # output stay far below 32 MiB on every generation (v7x physical
            # VMEM is 64 MiB).
            vmem_limit_bytes=32 << 20,
        ),
    )(x, y, bh, bv)

    return out.reshape(N, C, H, W)


def _ssim_reference(src_img, tgt_img):
    # Pure-JAX reference (reflect pad + reduce_window) for validation.
    def pool(a):
        s = jax.lax.reduce_window(
            a, 0.0, jax.lax.add,
            window_dimensions=(1, 1, WIN, WIN),
            window_strides=(1, 1, 1, 1),
            padding="VALID",
        )
        return s / (WIN * WIN)

    x = jnp.pad(src_img, ((0, 0), (0, 0), (1, 1), (1, 1)), mode="reflect")
    y = jnp.pad(tgt_img, ((0, 0), (0, 0), (1, 1), (1, 1)), mode="reflect")
    mu_x = pool(x)
    mu_y = pool(y)
    sigma_x = pool(x * x) - mu_x ** 2
    sigma_y = pool(y * y) - mu_y ** 2
    sigma_xy = pool(x * y) - mu_x * mu_y
    ssim_n = (2 * mu_x * mu_y + C1) * (2 * sigma_xy + C2)
    ssim_d = (mu_x ** 2 + mu_y ** 2 + C1) * (sigma_x + sigma_y + C2)
    return jnp.clip((1 - ssim_n / ssim_d) / 2, 0.0, 1.0)


if __name__ == "__main__":
    key = jax.random.PRNGKey(0)
    k1, k2 = jax.random.split(key)
    N, C, H, W = 2, 4, 16, 16
    src = jax.random.uniform(k1, (N, C, H, W), dtype=jnp.float32)
    tgt = jax.random.uniform(k2, (N, C, H, W), dtype=jnp.float32)

    out = jax.block_until_ready(ssim_loss(src, tgt))
    ref = jax.block_until_ready(_ssim_reference(src, tgt))

    assert out.shape == (N, C, H, W)
    assert jnp.allclose(out, ref, atol=1e-5, rtol=1e-5)

    print("KERNEL_OK")
</pallas_src>

<mosaic_0001>
module attributes {stable_mosaic.version = 11 : i64} {
  func.func @_ssim_kernel(%arg0: i32, %arg1: memref<4x16x16xf32, #tpu.memory_space<vmem>>, %arg2: memref<4x16x16xf32, #tpu.memory_space<vmem>>, %arg3: memref<16x16xf32, #tpu.memory_space<vmem>>, %arg4: memref<16x16xf32, #tpu.memory_space<vmem>>, %arg5: memref<4x16x16xf32, #tpu.memory_space<vmem>>) attributes {dimension_semantics = [#tpu.dimension_semantics<parallel>], iteration_bounds = array<i64: 2>, scalar_prefetch = 0 : i64, scratch_operands = 0 : i64, tpu.core_type = #tpu.core_type<tc>, window_params = [{transform_indices = @transform_0, window_bounds = array<i64: 4, 16, 16>}, {transform_indices = @transform_1, window_bounds = array<i64: 4, 16, 16>}, {pipeline_mode = #tpu.pipeline_mode<synchronous>, transform_indices = @transform_2, window_bounds = array<i64: 16, 16>}, {pipeline_mode = #tpu.pipeline_mode<synchronous>, transform_indices = @transform_3, window_bounds = array<i64: 16, 16>}, {transform_indices = @transform_4, window_bounds = array<i64: 4, 16, 16>}]} {
    %c0 = arith.constant 0 : index
    %c0_0 = arith.constant 0 : index
    %0 = vector.load %arg3[%c0, %c0_0] : memref<16x16xf32, #tpu.memory_space<vmem>>, vector<16x16xf32>
    %c0_1 = arith.constant 0 : index
    %c0_2 = arith.constant 0 : index
    %1 = vector.load %arg4[%c0_1, %c0_2] : memref<16x16xf32, #tpu.memory_space<vmem>>, vector<16x16xf32>
    %c0_i32 = arith.constant 0 : i32
    %2 = arith.index_cast %c0_i32 : i32 to index
    %c0_3 = arith.constant 0 : index
    %c0_4 = arith.constant 0 : index
    %3 = vector.load %arg1[%2, %c0_3, %c0_4] : memref<4x16x16xf32, #tpu.memory_space<vmem>>, vector<1x16x16xf32>
    %4 = vector.shape_cast %3 : vector<1x16x16xf32> to vector<16x16xf32>
    %5 = arith.index_cast %c0_i32 : i32 to index
    %c0_5 = arith.constant 0 : index
    %c0_6 = arith.constant 0 : index
    %6 = vector.load %arg2[%5, %c0_5, %c0_6] : memref<4x16x16xf32, #tpu.memory_space<vmem>>, vector<1x16x16xf32>
    %7 = vector.shape_cast %6 : vector<1x16x16xf32> to vector<16x16xf32>
    %cst = arith.constant dense<0.000000e+00> : vector<16x16xf32>
    %8 = tpu.matmul %4, %0, %cst {dimension_numbers = #tpu.dot_dimension_numbers<[1], [0], [0], [1], [0, 0, 1, 1], [], []>, precision = #tpu.contract_precision<fp32>} : vector<16x16xf32>, vector<16x16xf32>, vector<16x16xf32> -> vector<16x16xf32>
    %cst_7 = arith.constant dense<0.000000e+00> : vector<16x16xf32>
    %9 = tpu.matmul %1, %8, %cst_7 {dimension_numbers = #tpu.dot_dimension_numbers<[1], [0], [0], [1], [0, 0, 1, 1], [], []>, precision = #tpu.contract_precision<fp32>} : vector<16x16xf32>, vector<16x16xf32>, vector<16x16xf32> -> vector<16x16xf32>
    %cst_8 = arith.constant dense<0.000000e+00> : vector<16x16xf32>
    %10 = tpu.matmul %7, %0, %cst_8 {dimension_numbers = #tpu.dot_dimension_numbers<[1], [0], [0], [1], [0, 0, 1, 1], [], []>, precision = #tpu.contract_precision<fp32>} : vector<16x16xf32>, vector<16x16xf32>, vector<16x16xf32> -> vector<16x16xf32>
    %cst_9 = arith.constant dense<0.000000e+00> : vector<16x16xf32>
    %11 = tpu.matmul %1, %10, %cst_9 {dimension_numbers = #tpu.dot_dimension_numbers<[1], [0], [0], [1], [0, 0, 1, 1], [], []>, precision = #tpu.contract_precision<fp32>} : vector<16x16xf32>, vector<16x16xf32>, vector<16x16xf32> -> vector<16x16xf32>
    %12 = arith.mulf %4, %4 : vector<16x16xf32>
    %cst_10 = arith.constant dense<0.000000e+00> : vector<16x16xf32>
    %13 = tpu.matmul %12, %0, %cst_10 {dimension_numbers = #tpu.dot_dimension_numbers<[1], [0], [0], [1], [0, 0, 1, 1], [], []>, precision = #tpu.contract_precision<fp32>} : vector<16x16xf32>, vector<16x16xf32>, vector<16x16xf32> -> vector<16x16xf32>
    %cst_11 = arith.constant dense<0.000000e+00> : vector<16x16xf32>
    %14 = tpu.matmul %1, %13, %cst_11 {dimension_numbers = #tpu.dot_dimension_numbers<[1], [0], [0], [1], [0, 0, 1, 1], [], []>, precision = #tpu.contract_precision<fp32>} : vector<16x16xf32>, vector<16x16xf32>, vector<16x16xf32> -> vector<16x16xf32>
    %15 = arith.mulf %7, %7 : vector<16x16xf32>
    %cst_12 = arith.constant dense<0.000000e+00> : vector<16x16xf32>
    %16 = tpu.matmul %15, %0, %cst_12 {dimension_numbers = #tpu.dot_dimension_numbers<[1], [0], [0], [1], [0, 0, 1, 1], [], []>, precision = #tpu.contract_precision<fp32>} : vector<16x16xf32>, vector<16x16xf32>, vector<16x16xf32> -> vector<16x16xf32>
    %cst_13 = arith.constant dense<0.000000e+00> : vector<16x16xf32>
    %17 = tpu.matmul %1, %16, %cst_13 {dimension_numbers = #tpu.dot_dimension_numbers<[1], [0], [0], [1], [0, 0, 1, 1], [], []>, precision = #tpu.contract_precision<fp32>} : vector<16x16xf32>, vector<16x16xf32>, vector<16x16xf32> -> vector<16x16xf32>
    %18 = arith.mulf %4, %7 : vector<16x16xf32>
    %cst_14 = arith.constant dense<0.000000e+00> : vector<16x16xf32>
    %19 = tpu.matmul %18, %0, %cst_14 {dimension_numbers = #tpu.dot_dimension_numbers<[1], [0], [0], [1], [0, 0, 1, 1], [], []>, precision = #tpu.contract_precision<fp32>} : vector<16x16xf32>, vector<16x16xf32>, vector<16x16xf32> -> vector<16x16xf32>
    %cst_15 = arith.constant dense<0.000000e+00> : vector<16x16xf32>
    %20 = tpu.matmul %1, %19, %cst_15 {dimension_numbers = #tpu.dot_dimension_numbers<[1], [0], [0], [1], [0, 0, 1, 1], [], []>, precision = #tpu.contract_precision<fp32>} : vector<16x16xf32>, vector<16x16xf32>, vector<16x16xf32> -> vector<16x16xf32>
    %21 = arith.mulf %9, %11 : vector<16x16xf32>
    %22 = arith.mulf %9, %9 : vector<16x16xf32>
    %23 = arith.mulf %11, %11 : vector<16x16xf32>
    %24 = arith.addf %22, %23 : vector<16x16xf32>
    %cst_16 = arith.constant 2.000000e+00 : f32
    %25 = vector.broadcast %cst_16 : f32 to vector<16x16xf32>
    %26 = arith.mulf %25, %21 : vector<16x16xf32>
    %cst_17 = arith.constant 8.100000e-03 : f32
    %27 = vector.broadcast %cst_17 : f32 to vector<16x16xf32>
    %28 = arith.addf %26, %27 : vector<16x16xf32>
    %cst_18 = arith.constant 1.800000e+01 : f32
    %29 = vector.broadcast %cst_18 : f32 to vector<16x16xf32>
    %30 = arith.mulf %29, %20 : vector<16x16xf32>
    %cst_19 = arith.constant 2.000000e+00 : f32
    %31 = vector.broadcast %cst_19 : f32 to vector<16x16xf32>
    %32 = arith.mulf %31, %21 : vector<16x16xf32>
    %33 = arith.subf %30, %32 : vector<16x16xf32>
    %cst_20 = arith.constant 7.290000e-02 : f32
    %34 = vector.broadcast %cst_20 : f32 to vector<16x16xf32>
    %35 = arith.addf %33, %34 : vector<16x16xf32>
    %36 = arith.mulf %28, %35 : vector<16x16xf32>
    %cst_21 = arith.constant 8.100000e-03 : f32
    %37 = vector.broadcast %cst_21 : f32 to vector<16x16xf32>
    %38 = arith.addf %24, %37 : vector<16x16xf32>
    %39 = arith.addf %14, %17 : vector<16x16xf32>
    %cst_22 = arith.constant 9.000000e+00 : f32
    %40 = vector.broadcast %cst_22 : f32 to vector<16x16xf32>
    %41 = arith.mulf %40, %39 : vector<16x16xf32>
    %42 = arith.subf %41, %24 : vector<16x16xf32>
    %cst_23 = arith.constant 7.290000e-02 : f32
    %43 = vector.broadcast %cst_23 : f32 to vector<16x16xf32>
    %44 = arith.addf %42, %43 : vector<16x16xf32>
    %45 = arith.mulf %38, %44 : vector<16x16xf32>
    %46 = tpu.reciprocal %45 {approx = true} : vector<16x16xf32> -> vector<16x16xf32>
    %47 = arith.mulf %45, %46 : vector<16x16xf32>
    %cst_24 = arith.constant 2.000000e+00 : f32
    %48 = vector.broadcast %cst_24 : f32 to vector<16x16xf32>
    %49 = arith.subf %48, %47 : vector<16x16xf32>
    %50 = arith.mulf %46, %49 : vector<16x16xf32>
    %51 = arith.mulf %36, %50 : vector<16x16xf32>
    %cst_25 = arith.constant 1.000000e+00 : f32
    %52 = vector.broadcast %cst_25 : f32 to vector<16x16xf32>
    %53 = arith.subf %52, %51 : vector<16x16xf32>
    %cst_26 = arith.constant 5.000000e-01 : f32
    %54 = vector.broadcast %cst_26 : f32 to vector<16x16xf32>
    %55 = arith.mulf %53, %54 : vector<16x16xf32>
    %cst_27 = arith.constant 0.000000e+00 : f32
    %cst_28 = arith.constant 1.000000e+00 : f32
    %56 = vector.broadcast %cst_27 : f32 to vector<16x16xf32>
    %57 = arith.maximumf %56, %55 : vector<16x16xf32>
    %58 = vector.broadcast %cst_28 : f32 to vector<16x16xf32>
    %59 = arith.minimumf %58, %57 : vector<16x16xf32>
    %60 = arith.index_cast %c0_i32 : i32 to index
    %c0_29 = arith.constant 0 : index
    %c0_30 = arith.constant 0 : index
    %61 = vector.load %arg5[%60, %c0_29, %c0_30] : memref<4x16x16xf32, #tpu.memory_space<vmem>>, vector<1x16x16xf32>
    %62 = vector.shape_cast %61 : vector<1x16x16xf32> to vector<16x16xf32>
    %63 = vector.shape_cast %59 : vector<16x16xf32> to vector<1x16x16xf32>
    tpu.vector_store %arg5[%60, %c0_29, %c0_30], %63 {strides = array<i32>} : memref<4x16x16xf32, #tpu.memory_space<vmem>>, vector<1x16x16xf32>,
    %c1_i32 = arith.constant 1 : i32
    %64 = arith.index_cast %c1_i32 : i32 to index
    %c0_31 = arith.constant 0 : index
    %c0_32 = arith.constant 0 : index
    %65 = vector.load %arg1[%64, %c0_31, %c0_32] : memref<4x16x16xf32, #tpu.memory_space<vmem>>, vector<1x16x16xf32>
    %66 = vector.shape_cast %65 : vector<1x16x16xf32> to vector<16x16xf32>
    %67 = arith.index_cast %c1_i32 : i32 to index
    %c0_33 = arith.constant 0 : index
    %c0_34 = arith.constant 0 : index
    %68 = vector.load %arg2[%67, %c0_33, %c0_34] : memref<4x16x16xf32, #tpu.memory_space<vmem>>, vector<1x16x16xf32>
    %69 = vector.shape_cast %68 : vector<1x16x16xf32> to vector<16x16xf32>
    %cst_35 = arith.constant dense<0.000000e+00> : vector<16x16xf32>
    %70 = tpu.matmul %66, %0, %cst_35 {dimension_numbers = #tpu.dot_dimension_numbers<[1], [0], [0], [1], [0, 0, 1, 1], [], []>, precision = #tpu.contract_precision<fp32>} : vector<16x16xf32>, vector<16x16xf32>, vector<16x16xf32> -> vector<16x16xf32>
    %cst_36 = arith.constant dense<0.000000e+00> : vector<16x16xf32>
    %71 = tpu.matmul %1, %70, %cst_36 {dimension_numbers = #tpu.dot_dimension_numbers<[1], [0], [0], [1], [0, 0, 1, 1], [], []>, precision = #tpu.contract_precision<fp32>} : vector<16x16xf32>, vector<16x16xf32>, vector<16x16xf32> -> vector<16x16xf32>
    %cst_37 = arith.constant dense<0.000000e+00> : vector<16x16xf32>
    %72 = tpu.matmul %69, %0, %cst_37 {dimension_numbers = #tpu.dot_dimension_numbers<[1], [0], [0], [1], [0, 0, 1, 1], [], []>, precision = #tpu.contract_precision<fp32>} : vector<16x16xf32>, vector<16x16xf32>, vector<16x16xf32> -> vector<16x16xf32>
    %cst_38 = arith.constant dense<0.000000e+00> : vector<16x16xf32>
    %73 = tpu.matmul %1, %72, %cst_38 {dimension_numbers = #tpu.dot_dimension_numbers<[1], [0], [0], [1], [0, 0, 1, 1], [], []>, precision = #tpu.contract_precision<fp32>} : vector<16x16xf32>, vector<16x16xf32>, vector<16x16xf32> -> vector<16x16xf32>
    %74 = arith.mulf %66, %66 : vector<16x16xf32>
    %cst_39 = arith.constant dense<0.000000e+00> : vector<16x16xf32>
    %75 = tpu.matmul %74, %0, %cst_39 {dimension_numbers = #tpu.dot_dimension_numbers<[1], [0], [0], [1], [0, 0, 1, 1], [], []>, precision = #tpu.contract_precision<fp32>} : vector<16x16xf32>, vector<16x16xf32>, vector<16x16xf32> -> vector<16x16xf32>
    %cst_40 = arith.constant dense<0.000000e+00> : vector<16x16xf32>
    %76 = tpu.matmul %1, %75, %cst_40 {dimension_numbers = #tpu.dot_dimension_numbers<[1], [0], [0], [1], [0, 0, 1, 1], [], []>, precision = #tpu.contract_precision<fp32>} : vector<16x16xf32>, vector<16x16xf32>, vector<16x16xf32> -> vector<16x16xf32>
    %77 = arith.mulf %69, %69 : vector<16x16xf32>
    %cst_41 = arith.constant dense<0.000000e+00> : vector<16x16xf32>
    %78 = tpu.matmul %77, %0, %cst_41 {dimension_numbers = #tpu.dot_dimension_numbers<[1], [0], [0], [1], [0, 0, 1, 1], [], []>, precision = #tpu.contract_precision<fp32>} : vector<16x16xf32>, vector<16x16xf32>, vector<16x16xf32> -> vector<16x16xf32>
    %cst_42 = arith.constant dense<0.000000e+00> : vector<16x16xf32>
    %79 = tpu.matmul %1, %78, %cst_42 {dimension_numbers = #tpu.dot_dimension_numbers<[1], [0], [0], [1], [0, 0, 1, 1], [], []>, precision = #tpu.contract_precision<fp32>} : vector<16x16xf32>, vector<16x16xf32>, vector<16x16xf32> -> vector<16x16xf32>
    %80 = arith.mulf %66, %69 : vector<16x16xf32>
    %cst_43 = arith.constant dense<0.000000e+00> : vector<16x16xf32>
    %81 = tpu.matmul %80, %0, %cst_43 {dimension_numbers = #tpu.dot_dimension_numbers<[1], [0], [0], [1], [0, 0, 1, 1], [], []>, precision = #tpu.contract_precision<fp32>} : vector<16x16xf32>, vector<16x16xf32>, vector<16x16xf32> -> vector<16x16xf32>
    %cst_44 = arith.constant dense<0.000000e+00> : vector<16x16xf32>
    %82 = tpu.matmul %1, %81, %cst_44 {dimension_numbers = #tpu.dot_dimension_numbers<[1], [0], [0], [1], [0, 0, 1, 1], [], []>, precision = #tpu.contract_precision<fp32>} : vector<16x16xf32>, vector<16x16xf32>, vector<16x16xf32> -> vector<16x16xf32>
    %83 = arith.mulf %71, %73 : vector<16x16xf32>
    %84 = arith.mulf %71, %71 : vector<16x16xf32>
    %85 = arith.mulf %73, %73 : vector<16x16xf32>
    %86 = arith.addf %84, %85 : vector<16x16xf32>
    %cst_45 = arith.constant 2.000000e+00 : f32
    %87 = vector.broadcast %cst_45 : f32 to vector<16x16xf32>
    %88 = arith.mulf %87, %83 : vector<16x16xf32>
    %cst_46 = arith.constant 8.100000e-03 : f32
    %89 = vector.broadcast %cst_46 : f32 to vector<16x16xf32>
    %90 = arith.addf %88, %89 : vector<16x16xf32>
    %cst_47 = arith.constant 1.800000e+01 : f32
    %91 = vector.broadcast %cst_47 : f32 to vector<16x16xf32>
    %92 = arith.mulf %91, %82 : vector<16x16xf32>
    %cst_48 = arith.constant 2.000000e+00 : f32
    %93 = vector.broadcast %cst_48 : f32 to vector<16x16xf32>
    %94 = arith.mulf %93, %83 : vector<16x16xf32>
    %95 = arith.subf %92, %94 : vector<16x16xf32>
    %cst_49 = arith.constant 7.290000e-02 : f32
    %96 = vector.broadcast %cst_49 : f32 to vector<16x16xf32>
    %97 = arith.addf %95, %96 : vector<16x16xf32>
    %98 = arith.mulf %90, %97 : vector<16x16xf32>
    %cst_50 = arith.constant 8.100000e-03 : f32
    %99 = vector.broadcast %cst_50 : f32 to vector<16x16xf32>
    %100 = arith.addf %86, %99 : vector<16x16xf32>
    %101 = arith.addf %76, %79 : vector<16x16xf32>
    %cst_51 = arith.constant 9.000000e+00 : f32
    %102 = vector.broadcast %cst_51 : f32 to vector<16x16xf32>
    %103 = arith.mulf %102, %101 : vector<16x16xf32>
    %104 = arith.subf %103, %86 : vector<16x16xf32>
    %cst_52 = arith.constant 7.290000e-02 : f32
    %105 = vector.broadcast %cst_52 : f32 to vector<16x16xf32>
    %106 = arith.addf %104, %105 : vector<16x16xf32>
    %107 = arith.mulf %100, %106 : vector<16x16xf32>
    %108 = tpu.reciprocal %107 {approx = true} : vector<16x16xf32> -> vector<16x16xf32>
    %109 = arith.mulf %107, %108 : vector<16x16xf32>
    %cst_53 = arith.constant 2.000000e+00 : f32
    %110 = vector.broadcast %cst_53 : f32 to vector<16x16xf32>
    %111 = arith.subf %110, %109 : vector<16x16xf32>
    %112 = arith.mulf %108, %111 : vector<16x16xf32>
    %113 = arith.mulf %98, %112 : vector<16x16xf32>
    %cst_54 = arith.constant 1.000000e+00 : f32
    %114 = vector.broadcast %cst_54 : f32 to vector<16x16xf32>
    %115 = arith.subf %114, %113 : vector<16x16xf32>
    %cst_55 = arith.constant 5.000000e-01 : f32
    %116 = vector.broadcast %cst_55 : f32 to vector<16x16xf32>
    %117 = arith.mulf %115, %116 : vector<16x16xf32>
    %cst_56 = arith.constant 0.000000e+00 : f32
    %cst_57 = arith.constant 1.000000e+00 : f32
    %118 = vector.broadcast %cst_56 : f32 to vector<16x16xf32>
    %119 = arith.maximumf %118, %117 : vector<16x16xf32>
    %120 = vector.broadcast %cst_57 : f32 to vector<16x16xf32>
    %121 = arith.minimumf %120, %119 : vector<16x16xf32>
    %122 = arith.index_cast %c1_i32 : i32 to index
    %c0_58 = arith.constant 0 : index
    %c0_59 = arith.constant 0 : index
    %123 = vector.load %arg5[%122, %c0_58, %c0_59] : memref<4x16x16xf32, #tpu.memory_space<vmem>>, vector<1x16x16xf32>
    %124 = vector.shape_cast %123 : vector<1x16x16xf32> to vector<16x16xf32>
    %125 = vector.shape_cast %121 : vector<16x16xf32> to vector<1x16x16xf32>
    tpu.vector_store %arg5[%122, %c0_58, %c0_59], %125 {strides = array<i32>} : memref<4x16x16xf32, #tpu.memory_space<vmem>>, vector<1x16x16xf32>,
    %c2_i32 = arith.constant 2 : i32
    %126 = arith.index_cast %c2_i32 : i32 to index
    %c0_60 = arith.constant 0 : index
    %c0_61 = arith.constant 0 : index
    %127 = vector.load %arg1[%126, %c0_60, %c0_61] : memref<4x16x16xf32, #tpu.memory_space<vmem>>, vector<1x16x16xf32>
    %128 = vector.shape_cast %127 : vector<1x16x16xf32> to vector<16x16xf32>
    %129 = arith.index_cast %c2_i32 : i32 to index
    %c0_62 = arith.constant 0 : index
    %c0_63 = arith.constant 0 : index
    %130 = vector.load %arg2[%129, %c0_62, %c0_63] : memref<4x16x16xf32, #tpu.memory_space<vmem>>, vector<1x16x16xf32>
    %131 = vector.shape_cast %130 : vector<1x16x16xf32> to vector<16x16xf32>
    %cst_64 = arith.constant dense<0.000000e+00> : vector<16x16xf32>
    %132 = tpu.matmul %128, %0, %cst_64 {dimension_numbers = #tpu.dot_dimension_numbers<[1], [0], [0], [1], [0, 0, 1, 1], [], []>, precision = #tpu.contract_precision<fp32>} : vector<16x16xf32>, vector<16x16xf32>, vector<16x16xf32> -> vector<16x16xf32>
    %cst_65 = arith.constant dense<0.000000e+00> : vector<16x16xf32>
    %133 = tpu.matmul %1, %132, %cst_65 {dimension_numbers = #tpu.dot_dimension_numbers<[1], [0], [0], [1], [0, 0, 1, 1], [], []>, precision = #tpu.contract_precision<fp32>} : vector<16x16xf32>, vector<16x16xf32>, vector<16x16xf32> -> vector<16x16xf32>
    %cst_66 = arith.constant dense<0.000000e+00> : vector<16x16xf32>
    %134 = tpu.matmul %131, %0, %cst_66 {dimension_numbers = #tpu.dot_dimension_numbers<[1], [0], [0], [1], [0, 0, 1, 1], [], []>, precision = #tpu.contract_precision<fp32>} : vector<16x16xf32>, vector<16x16xf32>, vector<16x16xf32> -> vector<16x16xf32>
    %cst_67 = arith.constant dense<0.000000e+00> : vector<16x16xf32>
    %135 = tpu.matmul %1, %134, %cst_67 {dimension_numbers = #tpu.dot_dimension_numbers<[1], [0], [0], [1], [0, 0, 1, 1], [], []>, precision = #tpu.contract_precision<fp32>} : vector<16x16xf32>, vector<16x16xf32>, vector<16x16xf32> -> vector<16x16xf32>
    %136 = arith.mulf %128, %128 : vector<16x16xf32>
    %cst_68 = arith.constant dense<0.000000e+00> : vector<16x16xf32>
    %137 = tpu.matmul %136, %0, %cst_68 {dimension_numbers = #tpu.dot_dimension_numbers<[1], [0], [0], [1], [0, 0, 1, 1], [], []>, precision = #tpu.contract_precision<fp32>} : vector<16x16xf32>, vector<16x16xf32>, vector<16x16xf32> -> vector<16x16xf32>
    %cst_69 = arith.constant dense<0.000000e+00> : vector<16x16xf32>
    %138 = tpu.matmul %1, %137, %cst_69 {dimension_numbers = #tpu.dot_dimension_numbers<[1], [0], [0], [1], [0, 0, 1, 1], [], []>, precision = #tpu.contract_precision<fp32>} : vector<16x16xf32>, vector<16x16xf32>, vector<16x16xf32> -> vector<16x16xf32>
    %139 = arith.mulf %131, %131 : vector<16x16xf32>
    %cst_70 = arith.constant dense<0.000000e+00> : vector<16x16xf32>
    %140 = tpu.matmul %139, %0, %cst_70 {dimension_numbers = #tpu.dot_dimension_numbers<[1], [0], [0], [1], [0, 0, 1, 1], [], []>, precision = #tpu.contract_precision<fp32>} : vector<16x16xf32>, vector<16x16xf32>, vector<16x16xf32> -> vector<16x16xf32>
    %cst_71 = arith.constant dense<0.000000e+00> : vector<16x16xf32>
    %141 = tpu.matmul %1, %140, %cst_71 {dimension_numbers = #tpu.dot_dimension_numbers<[1], [0], [0], [1], [0, 0, 1, 1], [], []>, precision = #tpu.contract_precision<fp32>} : vector<16x16xf32>, vector<16x16xf32>, vector<16x16xf32> -> vector<16x16xf32>
    %142 = arith.mulf %128, %131 : vector<16x16xf32>
    %cst_72 = arith.constant dense<0.000000e+00> : vector<16x16xf32>
    %143 = tpu.matmul %142, %0, %cst_72 {dimension_numbers = #tpu.dot_dimension_numbers<[1], [0], [0], [1], [0, 0, 1, 1], [], []>, precision = #tpu.contract_precision<fp32>} : vector<16x16xf32>, vector<16x16xf32>, vector<16x16xf32> -> vector<16x16xf32>
    %cst_73 = arith.constant dense<0.000000e+00> : vector<16x16xf32>
    %144 = tpu.matmul %1, %143, %cst_73 {dimension_numbers = #tpu.dot_dimension_numbers<[1], [0], [0], [1], [0, 0, 1, 1], [], []>, precision = #tpu.contract_precision<fp32>} : vector<16x16xf32>, vector<16x16xf32>, vector<16x16xf32> -> vector<16x16xf32>
    %145 = arith.mulf %133, %135 : vector<16x16xf32>
    %146 = arith.mulf %133, %133 : vector<16x16xf32>
    %147 = arith.mulf %135, %135 : vector<16x16xf32>
    %148 = arith.addf %146, %147 : vector<16x16xf32>
    %cst_74 = arith.constant 2.000000e+00 : f32
    %149 = vector.broadcast %cst_74 : f32 to vector<16x16xf32>
    %150 = arith.mulf %149, %145 : vector<16x16xf32>
    %cst_75 = arith.constant 8.100000e-03 : f32
    %151 = vector.broadcast %cst_75 : f32 to vector<16x16xf32>
    %152 = arith.addf %150, %151 : vector<16x16xf32>
    %cst_76 = arith.constant 1.800000e+01 : f32
    %153 = vector.broadcast %cst_76 : f32 to vector<16x16xf32>
    %154 = arith.mulf %153, %144 : vector<16x16xf32>
    %cst_77 = arith.constant 2.000000e+00 : f32
    %155 = vector.broadcast %cst_77 : f32 to vector<16x16xf32>
    %156 = arith.mulf %155, %145 : vector<16x16xf32>
    %157 = arith.subf %154, %156 : vector<16x16xf32>
    %cst_78 = arith.constant 7.290000e-02 : f32
    %158 = vector.broadcast %cst_78 : f32 to vector<16x16xf32>
    %159 = arith.addf %157, %158 : vector<16x16xf32>
    %160 = arith.mulf %152, %159 : vector<16x16xf32>
    %cst_79 = arith.constant 8.100000e-03 : f32
    %161 = vector.broadcast %cst_79 : f32 to vector<16x16xf32>
    %162 = arith.addf %148, %161 : vector<16x16xf32>
    %163 = arith.addf %138, %141 : vector<16x16xf32>
    %cst_80 = arith.constant 9.000000e+00 : f32
    %164 = vector.broadcast %cst_80 : f32 to vector<16x16xf32>
    %165 = arith.mulf %164, %163 : vector<16x16xf32>
    %166 = arith.subf %165, %148 : vector<16x16xf32>
    %cst_81 = arith.constant 7.290000e-02 : f32
    %167 = vector.broadcast %cst_81 : f32 to vector<16x16xf32>
    %168 = arith.addf %166, %167 : vector<16x16xf32>
    %169 = arith.mulf %162, %168 : vector<16x16xf32>
    %170 = tpu.reciprocal %169 {approx = true} : vector<16x16xf32> -> vector<16x16xf32>
    %171 = arith.mulf %169, %170 : vector<16x16xf32>
    %cst_82 = arith.constant 2.000000e+00 : f32
    %172 = vector.broadcast %cst_82 : f32 to vector<16x16xf32>
    %173 = arith.subf %172, %171 : vector<16x16xf32>
    %174 = arith.mulf %170, %173 : vector<16x16xf32>
    %175 = arith.mulf %160, %174 : vector<16x16xf32>
    %cst_83 = arith.constant 1.000000e+00 : f32
    %176 = vector.broadcast %cst_83 : f32 to vector<16x16xf32>
    %177 = arith.subf %176, %175 : vector<16x16xf32>
    %cst_84 = arith.constant 5.000000e-01 : f32
    %178 = vector.broadcast %cst_84 : f32 to vector<16x16xf32>
    %179 = arith.mulf %177, %178 : vector<16x16xf32>
    %cst_85 = arith.constant 0.000000e+00 : f32
    %cst_86 = arith.constant 1.000000e+00 : f32
    %180 = vector.broadcast %cst_85 : f32 to vector<16x16xf32>
    %181 = arith.maximumf %180, %179 : vector<16x16xf32>
    %182 = vector.broadcast %cst_86 : f32 to vector<16x16xf32>
    %183 = arith.minimumf %182, %181 : vector<16x16xf32>
    %184 = arith.index_cast %c2_i32 : i32 to index
    %c0_87 = arith.constant 0 : index
    %c0_88 = arith.constant 0 : index
    %185 = vector.load %arg5[%184, %c0_87, %c0_88] : memref<4x16x16xf32, #tpu.memory_space<vmem>>, vector<1x16x16xf32>
    %186 = vector.shape_cast %185 : vector<1x16x16xf32> to vector<16x16xf32>
    %187 = vector.shape_cast %183 : vector<16x16xf32> to vector<1x16x16xf32>
    tpu.vector_store %arg5[%184, %c0_87, %c0_88], %187 {strides = array<i32>} : memref<4x16x16xf32, #tpu.memory_space<vmem>>, vector<1x16x16xf32>,
    %c3_i32 = arith.constant 3 : i32
    %188 = arith.index_cast %c3_i32 : i32 to index
    %c0_89 = arith.constant 0 : index
    %c0_90 = arith.constant 0 : index
    %189 = vector.load %arg1[%188, %c0_89, %c0_90] : memref<4x16x16xf32, #tpu.memory_space<vmem>>, vector<1x16x16xf32>
    %190 = vector.shape_cast %189 : vector<1x16x16xf32> to vector<16x16xf32>
    %191 = arith.index_cast %c3_i32 : i32 to index
    %c0_91 = arith.constant 0 : index
    %c0_92 = arith.constant 0 : index
    %192 = vector.load %arg2[%191, %c0_91, %c0_92] : memref<4x16x16xf32, #tpu.memory_space<vmem>>, vector<1x16x16xf32>
    %193 = vector.shape_cast %192 : vector<1x16x16xf32> to vector<16x16xf32>
    %cst_93 = arith.constant dense<0.000000e+00> : vector<16x16xf32>
    %194 = tpu.matmul %190, %0, %cst_93 {dimension_numbers = #tpu.dot_dimension_numbers<[1], [0], [0], [1], [0, 0, 1, 1], [], []>, precision = #tpu.contract_precision<fp32>} : vector<16x16xf32>, vector<16x16xf32>, vector<16x16xf32> -> vector<16x16xf32>
    %cst_94 = arith.constant dense<0.000000e+00> : vector<16x16xf32>
    %195 = tpu.matmul %1, %194, %cst_94 {dimension_numbers = #tpu.dot_dimension_numbers<[1], [0], [0], [1], [0, 0, 1, 1], [], []>, precision = #tpu.contract_precision<fp32>} : vector<16x16xf32>, vector<16x16xf32>, vector<16x16xf32> -> vector<16x16xf32>
    %cst_95 = arith.constant dense<0.000000e+00> : vector<16x16xf32>
    %196 = tpu.matmul %193, %0, %cst_95 {dimension_numbers = #tpu.dot_dimension_numbers<[1], [0], [0], [1], [0, 0, 1, 1], [], []>, precision = #tpu.contract_precision<fp32>} : vector<16x16xf32>, vector<16x16xf32>, vector<16x16xf32> -> vector<16x16xf32>
    %cst_96 = arith.constant dense<0.000000e+00> : vector<16x16xf32>
    %197 = tpu.matmul %1, %196, %cst_96 {dimension_numbers = #tpu.dot_dimension_numbers<[1], [0], [0], [1], [0, 0, 1, 1], [], []>, precision = #tpu.contract_precision<fp32>} : vector<16x16xf32>, vector<16x16xf32>, vector<16x16xf32> -> vector<16x16xf32>
    %198 = arith.mulf %190, %190 : vector<16x16xf32>
    %cst_97 = arith.constant dense<0.000000e+00> : vector<16x16xf32>
    %199 = tpu.matmul %198, %0, %cst_97 {dimension_numbers = #tpu.dot_dimension_numbers<[1], [0], [0], [1], [0, 0, 1, 1], [], []>, precision = #tpu.contract_precision<fp32>} : vector<16x16xf32>, vector<16x16xf32>, vector<16x16xf32> -> vector<16x16xf32>
    %cst_98 = arith.constant dense<0.000000e+00> : vector<16x16xf32>
    %200 = tpu.matmul %1, %199, %cst_98 {dimension_numbers = #tpu.dot_dimension_numbers<[1], [0], [0], [1], [0, 0, 1, 1], [], []>, precision = #tpu.contract_precision<fp32>} : vector<16x16xf32>, vector<16x16xf32>, vector<16x16xf32> -> vector<16x16xf32>
    %201 = arith.mulf %193, %193 : vector<16x16xf32>
    %cst_99 = arith.constant dense<0.000000e+00> : vector<16x16xf32>
    %202 = tpu.matmul %201, %0, %cst_99 {dimension_numbers = #tpu.dot_dimension_numbers<[1], [0], [0], [1], [0, 0, 1, 1], [], []>, precision = #tpu.contract_precision<fp32>} : vector<16x16xf32>, vector<16x16xf32>, vector<16x16xf32> -> vector<16x16xf32>
    %cst_100 = arith.constant dense<0.000000e+00> : vector<16x16xf32>
    %203 = tpu.matmul %1, %202, %cst_100 {dimension_numbers = #tpu.dot_dimension_numbers<[1], [0], [0], [1], [0, 0, 1, 1], [], []>, precision = #tpu.contract_precision<fp32>} : vector<16x16xf32>, vector<16x16xf32>, vector<16x16xf32> -> vector<16x16xf32>
    %204 = arith.mulf %190, %193 : vector<16x16xf32>
    %cst_101 = arith.constant dense<0.000000e+00> : vector<16x16xf32>
    %205 = tpu.matmul %204, %0, %cst_101 {dimension_numbers = #tpu.dot_dimension_numbers<[1], [0], [0], [1], [0, 0, 1, 1], [], []>, precision = #tpu.contract_precision<fp32>} : vector<16x16xf32>, vector<16x16xf32>, vector<16x16xf32> -> vector<16x16xf32>
    %cst_102 = arith.constant dense<0.000000e+00> : vector<16x16xf32>
    %206 = tpu.matmul %1, %205, %cst_102 {dimension_numbers = #tpu.dot_dimension_numbers<[1], [0], [0], [1], [0, 0, 1, 1], [], []>, precision = #tpu.contract_precision<fp32>} : vector<16x16xf32>, vector<16x16xf32>, vector<16x16xf32> -> vector<16x16xf32>
    %207 = arith.mulf %195, %197 : vector<16x16xf32>
    %208 = arith.mulf %195, %195 : vector<16x16xf32>
    %209 = arith.mulf %197, %197 : vector<16x16xf32>
    %210 = arith.addf %208, %209 : vector<16x16xf32>
    %cst_103 = arith.constant 2.000000e+00 : f32
    %211 = vector.broadcast %cst_103 : f32 to vector<16x16xf32>
    %212 = arith.mulf %211, %207 : vector<16x16xf32>
    %cst_104 = arith.constant 8.100000e-03 : f32
    %213 = vector.broadcast %cst_104 : f32 to vector<16x16xf32>
    %214 = arith.addf %212, %213 : vector<16x16xf32>
    %cst_105 = arith.constant 1.800000e+01 : f32
    %215 = vector.broadcast %cst_105 : f32 to vector<16x16xf32>
    %216 = arith.mulf %215, %206 : vector<16x16xf32>
    %cst_106 = arith.constant 2.000000e+00 : f32
    %217 = vector.broadcast %cst_106 : f32 to vector<16x16xf32>
    %218 = arith.mulf %217, %207 : vector<16x16xf32>
    %219 = arith.subf %216, %218 : vector<16x16xf32>
    %cst_107 = arith.constant 7.290000e-02 : f32
    %220 = vector.broadcast %cst_107 : f32 to vector<16x16xf32>
    %221 = arith.addf %219, %220 : vector<16x16xf32>
    %222 = arith.mulf %214, %221 : vector<16x16xf32>
    %cst_108 = arith.constant 8.100000e-03 : f32
    %223 = vector.broadcast %cst_108 : f32 to vector<16x16xf32>
    %224 = arith.addf %210, %223 : vector<16x16xf32>
    %225 = arith.addf %200, %203 : vector<16x16xf32>
    %cst_109 = arith.constant 9.000000e+00 : f32
    %226 = vector.broadcast %cst_109 : f32 to vector<16x16xf32>
    %227 = arith.mulf %226, %225 : vector<16x16xf32>
    %228 = arith.subf %227, %210 : vector<16x16xf32>
    %cst_110 = arith.constant 7.290000e-02 : f32
    %229 = vector.broadcast %cst_110 : f32 to vector<16x16xf32>
    %230 = arith.addf %228, %229 : vector<16x16xf32>
    %231 = arith.mulf %224, %230 : vector<16x16xf32>
    %232 = tpu.reciprocal %231 {approx = true} : vector<16x16xf32> -> vector<16x16xf32>
    %233 = arith.mulf %231, %232 : vector<16x16xf32>
    %cst_111 = arith.constant 2.000000e+00 : f32
    %234 = vector.broadcast %cst_111 : f32 to vector<16x16xf32>
    %235 = arith.subf %234, %233 : vector<16x16xf32>
    %236 = arith.mulf %232, %235 : vector<16x16xf32>
    %237 = arith.mulf %222, %236 : vector<16x16xf32>
    %cst_112 = arith.constant 1.000000e+00 : f32
    %238 = vector.broadcast %cst_112 : f32 to vector<16x16xf32>
    %239 = arith.subf %238, %237 : vector<16x16xf32>
    %cst_113 = arith.constant 5.000000e-01 : f32
    %240 = vector.broadcast %cst_113 : f32 to vector<16x16xf32>
    %241 = arith.mulf %239, %240 : vector<16x16xf32>
    %cst_114 = arith.constant 0.000000e+00 : f32
    %cst_115 = arith.constant 1.000000e+00 : f32
    %242 = vector.broadcast %cst_114 : f32 to vector<16x16xf32>
    %243 = arith.maximumf %242, %241 : vector<16x16xf32>
    %244 = vector.broadcast %cst_115 : f32 to vector<16x16xf32>
    %245 = arith.minimumf %244, %243 : vector<16x16xf32>
    %246 = arith.index_cast %c3_i32 : i32 to index
    %c0_116 = arith.constant 0 : index
    %c0_117 = arith.constant 0 : index
    %247 = vector.load %arg5[%246, %c0_116, %c0_117] : memref<4x16x16xf32, #tpu.memory_space<vmem>>, vector<1x16x16xf32>
    %248 = vector.shape_cast %247 : vector<1x16x16xf32> to vector<16x16xf32>
    %249 = vector.shape_cast %245 : vector<16x16xf32> to vector<1x16x16xf32>
    tpu.vector_store %arg5[%246, %c0_116, %c0_117], %249 {strides = array<i32>} : memref<4x16x16xf32, #tpu.memory_space<vmem>>, vector<1x16x16xf32>,
    %c4_i32 = arith.constant 4 : i32
    return
  }
  func.func @transform_0(%arg0: i32) -> (i32, i32, i32) {
    %c0_i32 = arith.constant 0 : i32
    %c0_i32_0 = arith.constant 0 : i32
    %c0_i32_1 = arith.constant 0 : i32
    return %arg0, %c0_i32, %c0_i32_0 : i32, i32, i32
  }
  func.func @transform_1(%arg0: i32) -> (i32, i32, i32) {
    %c0_i32 = arith.constant 0 : i32
    %c0_i32_0 = arith.constant 0 : i32
    %c0_i32_1 = arith.constant 0 : i32
    return %arg0, %c0_i32, %c0_i32_0 : i32, i32, i32
  }
  func.func @transform_2(%arg0: i32) -> (i32, i32) {
    %c0_i32 = arith.constant 0 : i32
    %c0_i32_0 = arith.constant 0 : i32
    %c0_i32_1 = arith.constant 0 : i32
    return %c0_i32, %c0_i32_0 : i32, i32
  }
  func.func @transform_3(%arg0: i32) -> (i32, i32) {
    %c0_i32 = arith.constant 0 : i32
    %c0_i32_0 = arith.constant 0 : i32
    %c0_i32_1 = arith.constant 0 : i32
    return %c0_i32, %c0_i32_0 : i32, i32
  }
  func.func @transform_4(%arg0: i32) -> (i32, i32, i32) {
    %c0_i32 = arith.constant 0 : i32
    %c0_i32_0 = arith.constant 0 : i32
    %c0_i32_1 = arith.constant 0 : i32
    return %arg0, %c0_i32, %c0_i32_0 : i32, i32, i32
  }
}

</mosaic_0001>

<llo_original>
// kernel: tpu_custom_call.1
$region0: #{tpu_custom_call.1}
  #allocation0 [shape = 'u32[]', space=smem, size = 0x4, offset = 0x4, fixed_abs, tag = 'smem constant byte address 0x4 - core index']
  #allocation1 [shape = 'u32[72,128]{1,0:T(1,128)}', space=vmem, size = 0x9000, scoped, tag = 'internal scratch']
  %s0 = inlined_call_operand.hbm [shape: f32[8,16,16], index: 0, kind: input, shape index: {}]
  %s1 = inlined_call_operand.hbm [shape: f32[8,16,16], index: 1, kind: input, shape index: {}]
  %s2 = inlined_call_operand.hbm [shape: f32[16,16], index: 2, kind: input, shape index: {}]
  %s3 = inlined_call_operand.hbm [shape: f32[16,16], index: 3, kind: input, shape index: {}]
  %s4 = inlined_call_operand.hbm [shape: f32[8,16,16], index: 4, kind: output, shape index: {}]
  %s5 = sld [smem:[#allocation0]]
  $region65: #{tpu_custom_call.1} parent=0
    _
  %s7 = ssub.s32 1, %s5
  %s8 = scalar_select 0, %s7, %s5
  $region1: #{tpu_custom_call.1} parent=0
    #allocation2 [shape = 'u8[65536]{0}', space=vmem, size = 0x10000, scoped, tag = 'input window, operand 0']
    #allocation3 [shape = 's32[2]{0}', space=sflag, size = 0x8, scoped, tag = 'scoped memory for tpu_custom_call.1']
    #allocation4 [shape = 's32[2]{0}', space=sflag, size = 0x8, scoped, tag = 'scoped memory for tpu_custom_call.1']
    #allocation5 [shape = 'u8[65536]{0}', space=vmem, size = 0x10000, scoped, tag = 'input window, operand 1']
    #allocation6 [shape = 's32[2]{0}', space=sflag, size = 0x8, scoped, tag = 'scoped memory for tpu_custom_call.1']
    #allocation7 [shape = 'u8[8192]{0}', space=vmem, size = 0x2000, scoped, tag = 'input window, operand 2, single buffered']
    #allocation8 [shape = 'u8[8192]{0}', space=vmem, size = 0x2000, scoped, tag = 'input window, operand 3, single buffered']
    #allocation9 [shape = 's32[1]{0}', space=sflag, size = 0x4, scoped, tag = 'scoped memory for tpu_custom_call.1']
    #allocation10 [shape = 'u8[65536]{0}', space=vmem, size = 0x10000, scoped, tag = 'output window, operand 0']
    %9 = vsyncpa [#allocation3], 0
    %s10 = scalar_lea.sflag [#allocation3], 1
    %11 = vsyncpa %s10, 0
    %12 = vsyncpa [#allocation6], 0
    %s13 = scalar_lea.sflag [#allocation6], 1
    %14 = vsyncpa %s13, 0
    %15 = vsyncpa [#allocation9], 0
    %16 = vsyncpa [#allocation4], 0
    %s17 = scalar_lea.sflag [#allocation4], 1
    %18 = vsyncpa %s17, 0
    loop: start=0, step=1, limit=4
    $region2: #{tpu_custom_call.1} parent=1 // loop_pre_header
      _
    $region3: #{tpu_custom_call.1} parent=1 // loop_header
      %s20 = sphi 0, %s24
      %p21 = scmp.ge.s32.totalorder %s20, 4
      %s30 = sphi 0, %s32
      %s33 = sphi 0, %s30
      %s34 = sphi 0, %s33
      %s50 = sphi 0, %s34
      %s56 = sphi 0, %s58
      %s59 = sphi 0, %s56
      %s60 = sphi 0, %s59
      %s76 = sphi 0, %s60
      %s80 = sphi 0, %s80
      %s82 = sphi 0, %s80
      %s83 = sphi 0, %s82
      %s97 = sphi 0, %s83
      %s101 = sphi 0, %s101
      %s103 = sphi 0, %s101
      %s104 = sphi 0, %s103
      %s118 = sphi 0, %s104
      %s124 = sphi 0, %s126
      %s127 = sphi 0, %s124
      %s128 = sphi 0, %s127
      %s144 = sphi 0, %s128
    $region4: #{tpu_custom_call.1} parent=1 // loop_header_branch
      %23 = sbr.rel (%p21) target = $region8
    $region5: #{tpu_custom_call.1} parent=1 // loop_body
      %s25 = ssub.s32 %s20, 1
      %s26 = ssub.s32 %s20, 2
      %s27 = sadd.s32 %s20, 1
      %s28 = ssub.s32 %s20, %s27
      %p29 = scmp.eq.s32.totalorder %s28, 0
      %s31 = sadd.s32 %s30, 1
      %s32 = scalar_select %p29, %s30, %s31
      %p35 = pneg %p29
      %p36 = scmp.eq.s32.totalorder %s20, 1
      %p37 = por %p35, %p36
      %p38 = scmp.ne.s32.totalorder %s30, %s33
      %p39 = scmp.eq.s32.totalorder %s20, 0
      %p40 = por %p38, %p39
      %p41 = scmp.ne.s32.totalorder %s30, %s33
      %p42 = scmp.eq.s32.totalorder %s25, 1
      %p43 = por %p41, %p42
      %p44 = scmp.ne.s32.totalorder %s33, %s34
      %p45 = scmp.eq.s32.totalorder %s25, 0
      %p46 = por %p44, %p45
      %p47 = scmp.ne.s32.totalorder %s33, %s34
      %p48 = scmp.eq.s32.totalorder %s26, 1
      %p49 = por %p47, %p48
      %p51 = scmp.ne.s32.totalorder %s34, %s50
      %p52 = scmp.eq.s32.totalorder %s26, 0
      %p53 = por %p51, %p52
      %s54 = ssub.s32 %s20, %s27
      %p55 = scmp.eq.s32.totalorder %s54, 0
      %s57 = sadd.s32 %s56, 1
      %s58 = scalar_select %p55, %s56, %s57
      %p61 = pneg %p55
      %p62 = scmp.eq.s32.totalorder %s20, 1
      %p63 = por %p61, %p62
      %p64 = scmp.ne.s32.totalorder %s56, %s59
      %p65 = scmp.eq.s32.totalorder %s20, 0
      %p66 = por %p64, %p65
      %p67 = scmp.ne.s32.totalorder %s56, %s59
      %p68 = scmp.eq.s32.totalorder %s25, 1
      %p69 = por %p67, %p68
      %p70 = scmp.ne.s32.totalorder %s59, %s60
      %p71 = scmp.eq.s32.totalorder %s25, 0
      %p72 = por %p70, %p71
      %p73 = scmp.ne.s32.totalorder %s59, %s60
      %p74 = scmp.eq.s32.totalorder %s26, 1
      %p75 = por %p73, %p74
      %p77 = scmp.ne.s32.totalorder %s60, %s76
      %p78 = scmp.eq.s32.totalorder %s26, 0
      %p79 = por %p77, %p78
      %s81 = sadd.s32 %s80, 1
      %p84 = scmp.eq.s32.totalorder %s20, 1
      %p85 = scmp.ne.s32.totalorder %s80, %s82
      %p86 = scmp.eq.s32.totalorder %s20, 0
      %p87 = por %p85, %p86
      %p88 = scmp.ne.s32.totalorder %s80, %s82
      %p89 = scmp.eq.s32.totalorder %s25, 1
      %p90 = por %p88, %p89
      %p91 = scmp.ne.s32.totalorder %s82, %s83
      %p92 = scmp.eq.s32.totalorder %s25, 0
      %p93 = por %p91, %p92
      %p94 = scmp.ne.s32.totalorder %s82, %s83
      %p95 = scmp.eq.s32.totalorder %s26, 1
      %p96 = por %p94, %p95
      %p98 = scmp.ne.s32.totalorder %s83, %s97
      %p99 = scmp.eq.s32.totalorder %s26, 0
      %p100 = por %p98, %p99
      %s102 = sadd.s32 %s101, 1
      %p105 = scmp.eq.s32.totalorder %s20, 1
      %p106 = scmp.ne.s32.totalorder %s101, %s103
      %p107 = scmp.eq.s32.totalorder %s20, 0
      %p108 = por %p106, %p107
      %p109 = scmp.ne.s32.totalorder %s101, %s103
      %p110 = scmp.eq.s32.totalorder %s25, 1
      %p111 = por %p109, %p110
      %p112 = scmp.ne.s32.totalorder %s103, %s104
      %p113 = scmp.eq.s32.totalorder %s25, 0
      %p114 = por %p112, %p113
      %p115 = scmp.ne.s32.totalorder %s103, %s104
      %p116 = scmp.eq.s32.totalorder %s26, 1
      %p117 = por %p115, %p116
      %p119 = scmp.ne.s32.totalorder %s104, %s118
      %p120 = scmp.eq.s32.totalorder %s26, 0
      %p121 = por %p119, %p120
      %s122 = ssub.s32 %s20, %s27
      %p123 = scmp.eq.s32.totalorder %s122, 0
      %s125 = sadd.s32 %s124, 1
      %s126 = scalar_select %p123, %s124, %s125
      %p129 = pneg %p123
      %p130 = scmp.eq.s32.totalorder %s20, 1
      %p131 = por %p129, %p130
      %p132 = scmp.ne.s32.totalorder %s124, %s127
      %p133 = scmp.eq.s32.totalorder %s20, 0
      %p134 = por %p132, %p133
      %p135 = scmp.ne.s32.totalorder %s124, %s127
      %p136 = scmp.eq.s32.totalorder %s25, 1
      %p137 = por %p135, %p136
      %p138 = scmp.ne.s32.totalorder %s127, %s128
      %p139 = scmp.eq.s32.totalorder %s25, 0
      %p140 = por %p138, %p139
      %p141 = scmp.ne.s32.totalorder %s127, %s128
      %p142 = scmp.eq.s32.totalorder %s26, 1
      %p143 = por %p141, %p142
      %p145 = scmp.ne.s32.totalorder %s128, %s144
      %p146 = scmp.eq.s32.totalorder %s26, 0
      %p147 = por %p145, %p146
      %p148 = scmp.le.s32.totalorder 1, %s20
      %p149 = scmp.lt.s32.totalorder %s20, 3
      %p150 = pnand %p148, %p149
      %p151 = pneg %p150
      // Predicated region
      $region9: #{tpu_custom_call.1} parent=5 // pred_check
        _
      $region10: #{tpu_custom_call.1} parent=5 // pred_check_branch
        %153 = sbr.rel (%p150) target = $region12
      $region11: #{tpu_custom_call.1} parent=5 // pred_region
        %s154 = ssub.s32 %s20, 1
        // Predicated region
        $region13: #{tpu_custom_call.1} parent=11 // pred_check
          %p155 = pneg %p93
        $region14: #{tpu_custom_call.1} parent=11 // pred_check_branch
          %157 = sbr.rel (%p155) target = $region16
        $region15: #{tpu_custom_call.1} parent=11 // pred_region
          %159 = vsyncadd [#allocation6], 0
          %s160 = sshll.u32 %s2, 4
          %s161 = int_to_ptr.hbm [resolvable:$true] %s160
          %s162 = sshll.u32 [#allocation7], 4
          %s163 = int_to_ptr.vmem [resolvable:$true] %s162
          %168 = dma.hbm_to_vmem [thread:$0]  %s161, 256, %s163, [#allocation6], 128, 128, 8
        $region16: #{tpu_custom_call.1} parent=11 // pred_fallthru
          _
        // Predicated region
        $region17: #{tpu_custom_call.1} parent=11 // pred_check
          %p169 = pneg %p114
        $region18: #{tpu_custom_call.1} parent=11 // pred_check_branch
          %171 = sbr.rel (%p169) target = $region20
        $region19: #{tpu_custom_call.1} parent=11 // pred_region
          %173 = vsyncadd [#allocation9], 0
          %s174 = sshll.u32 %s3, 4
          %s175 = int_to_ptr.hbm [resolvable:$true] %s174
          %s176 = sshll.u32 [#allocation8], 4
          %s177 = int_to_ptr.vmem [resolvable:$true] %s176
          %182 = dma.hbm_to_vmem [thread:$0]  %s175, 256, %s177, [#allocation9], 128, 128, 8
        $region20: #{tpu_custom_call.1} parent=11 // pred_fallthru
          _
      $region12: #{tpu_custom_call.1} parent=5 // pred_fallthru
        _
      %p183 = scmp.lt.s32.totalorder %s20, 2
      // Predicated region
      $region21: #{tpu_custom_call.1} parent=5 // pred_check
        %p184 = pneg %p183
      $region22: #{tpu_custom_call.1} parent=5 // pred_check_branch
        %186 = sbr.rel (%p184) target = $region24
      $region23: #{tpu_custom_call.1} parent=5 // pred_region
        // Predicated region
        $region25: #{tpu_custom_call.1} parent=23 // pred_check
          %p187 = pneg %p40
        $region26: #{tpu_custom_call.1} parent=23 // pred_check_branch
          %189 = sbr.rel (%p187) target = $region28
        $region27: #{tpu_custom_call.1} parent=23 // pred_region
          %s190 = sand.u32 %s30, 1
          %s191 = scalar_lea.sflag [#allocation3], %s190
          %s192 = sand.u32 %s30, 1
          %s193 = smul.addr %s192, 64
          %s194 = scalar_lea.vmem [#allocation2], %s193
          %s195 = smul.u32 4, %s20
          %197 = vsyncadd %s191, 0
          %s198 = smul.addr %s195, 2
          %s199 = smul.addr %s198, 8
          %s200 = scalar_lea.hbm %s0, %s199
          %s201 = sshll.u32 %s200, 4
          %s202 = int_to_ptr.hbm [resolvable:$true] %s201
          %s203 = sshll.u32 %s194, 4
          %s204 = int_to_ptr.vmem [resolvable:$true] %s203
          %209 = dma.hbm_to_vmem [thread:$0]  %s202, 1024, %s204, %s191, 128, 128, 8
        $region28: #{tpu_custom_call.1} parent=23 // pred_fallthru
          _
        // Predicated region
        $region29: #{tpu_custom_call.1} parent=23 // pred_check
          %p210 = pneg %p66
        $region30: #{tpu_custom_call.1} parent=23 // pred_check_branch
          %212 = sbr.rel (%p210) target = $region32
        $region31: #{tpu_custom_call.1} parent=23 // pred_region
          %s213 = sand.u32 %s20, 1
          %s214 = scalar_lea.sflag [#allocation6], %s213
          %s215 = sand.u32 %s56, 1
          %s216 = smul.addr %s215, 64
          %s217 = scalar_lea.vmem [#allocation5], %s216
          %s218 = smul.u32 4, %s20
          %220 = vsyncadd %s214, 0
          %s221 = smul.addr %s218, 2
          %s222 = smul.addr %s221, 8
          %s223 = scalar_lea.hbm %s1, %s222
          %s224 = sshll.u32 %s223, 4
          %s225 = int_to_ptr.hbm [resolvable:$true] %s224
          %s226 = sshll.u32 %s217, 4
          %s227 = int_to_ptr.vmem [resolvable:$true] %s226
          %232 = dma.hbm_to_vmem [thread:$0]  %s225, 1024, %s227, %s214, 128, 128, 8
        $region32: #{tpu_custom_call.1} parent=23 // pred_fallthru
          _
      $region24: #{tpu_custom_call.1} parent=5 // pred_fallthru
        _
      %p233 = scmp.le.s32.totalorder 1, %s20
      %p234 = scmp.lt.s32.totalorder %s20, 3
      %p235 = pnand %p233, %p234
      %p236 = pneg %p235
      // Predicated region
      $region33: #{tpu_custom_call.1} parent=5 // pred_check
        _
      $region34: #{tpu_custom_call.1} parent=5 // pred_check_branch
        %238 = sbr.rel (%p235) target = $region36
      $region35: #{tpu_custom_call.1} parent=5 // pred_region
        %s239 = ssub.s32 %s20, 1
        %s240 = sand.u32 %s33, 1
        %s241 = scalar_lea.sflag [#allocation3], %s240
        %s242 = sand.u32 %s33, 1
        %s243 = smul.addr %s242, 64
        %s244 = scalar_lea.vmem [#allocation2], %s243
        // Predicated region
        $region37: #{tpu_custom_call.1} parent=35 // pred_check
          %p245 = pneg %p46
        $region38: #{tpu_custom_call.1} parent=35 // pred_check_branch
          %247 = sbr.rel (%p245) target = $region40
        $region39: #{tpu_custom_call.1} parent=35 // pred_region
          %249 = dma.done %s241, 1024
        $region40: #{tpu_custom_call.1} parent=35 // pred_fallthru
          _
        %s250 = sand.u32 %s25, 1
        %s251 = scalar_lea.sflag [#allocation6], %s250
        %s252 = sand.u32 %s59, 1
        %s253 = smul.addr %s252, 64
        %s254 = scalar_lea.vmem [#allocation5], %s253
        // Predicated region
        $region41: #{tpu_custom_call.1} parent=35 // pred_check
          %p255 = pneg %p72
        $region42: #{tpu_custom_call.1} parent=35 // pred_check_branch
          %257 = sbr.rel (%p255) target = $region44
        $region43: #{tpu_custom_call.1} parent=35 // pred_region
          %259 = dma.done %s251, 1024
        $region44: #{tpu_custom_call.1} parent=35 // pred_fallthru
          _
        // Predicated region
        $region45: #{tpu_custom_call.1} parent=35 // pred_check
          %p260 = pneg %p93
        $region46: #{tpu_custom_call.1} parent=35 // pred_check_branch
          %262 = sbr.rel (%p260) target = $region48
        $region47: #{tpu_custom_call.1} parent=35 // pred_region
          %264 = dma.done [#allocation6], 256
        $region48: #{tpu_custom_call.1} parent=35 // pred_fallthru
          _
        // Predicated region
        $region49: #{tpu_custom_call.1} parent=35 // pred_check
          %p265 = pneg %p114
        $region50: #{tpu_custom_call.1} parent=35 // pred_check_branch
          %267 = sbr.rel (%p265) target = $region52
        $region51: #{tpu_custom_call.1} parent=35 // pred_region
          %269 = dma.done [#allocation9], 256
        $region52: #{tpu_custom_call.1} parent=35 // pred_fallthru
          _
        %s270 = sand.u32 %s33, 1
        %s271 = scalar_lea.sflag [#allocation3], %s270
        %s272 = sand.u32 %s33, 1
        %s273 = smul.addr %s272, 64
        %s274 = scalar_lea.vmem [#allocation2], %s273
        %p275 = pneg %p46
        %p276 = pneg %p43
        %s277 = sand.u32 %s25, 1
        %s278 = scalar_lea.sflag [#allocation6], %s277
        %s279 = sand.u32 %s59, 1
        %s280 = smul.addr %s279, 64
        %s281 = scalar_lea.vmem [#allocation5], %s280
        %p282 = pneg %p72
        %p283 = pneg %p69
        %p284 = pneg %p93
        %p285 = pneg %p90
        %p286 = pneg %p114
        %p287 = pneg %p111
        %p288 = pneg %p140
        %p289 = pneg %p137
        %s290 = sand.u32 %s127, 1
        %s291 = scalar_lea.sflag [#allocation4], %s290
        %s292 = sand.u32 %s127, 1
        %s293 = smul.addr %s292, 64
        %s294 = scalar_lea.vmem [#allocation10], %s293
        %s295 = smul.u32 4, %s25
        %s296 = smul.u32 4, %s25
        %s297 = smul.u32 4, %s25
        %v298 = vld [vmem:[#allocation7] sm:$0xff]
        %v299 = vld [vmem:[#allocation7 + $0x8] sm:$0xff]
        %v300 = vld [vmem:[#allocation8] sm:$0xff]
        %v301 = vld [vmem:[#allocation8 + $0x8] sm:$0xff]
        %v302 = vld [vmem:[%s244] sm:$0xff]
        %v303 = vld [vmem:[%s244 + $0x8] sm:$0xff]
        %v304 = vld [vmem:[%s254] sm:$0xff]
        %v305 = vld [vmem:[%s254 + $0x8] sm:$0xff]
        %vm306 = vcmask 130048
        %v308 = vsel %vm306, %v302, 0
        %v311 = vsel %vm306, %v303, 0
        %313 = vmatpush.msra.mxu0 0.0
        %314 = vmatpush.msra.mxu0 0.0
        %315 = vmatpush.msra.mxu0 0.0
        %316 = vmatpush.msra.mxu0 0.0
        %317 = vmatpush.msra.mxu0 0.0
        %318 = vmatpush.msra.mxu0 0.0
        %319 = vmatpush.msra.mxu0 0.0
        %320 = vmatpush.msra.mxu0 0.0
        %321 = vmatpush.msra.mxu0 0.0
        %322 = vmatpush.msra.mxu0 0.0
        %323 = vmatpush.msra.mxu0 0.0
        %324 = vmatpush.msra.mxu0 0.0
        %325 = vmatpush.msra.mxu0 0.0
        %326 = vmatpush.msra.mxu0 0.0
        %v327 = vand.u32 %v299, 4294901760
        %328 = vmatpush.msra.mxu0 %v327
        %v329 = vand.u32 %v298, 4294901760
        %330 = vmatpush.msra.mxu0 %v329
        %v331 = vand.u32 %v308, 4294901760
        %v332 = vsub.f32 %v308, %v331
        %v333 = vand.u32 %v332, 4294901760
        %v334 = vsub.f32 %v332, %v333
        %v335 = vand.u32 %v334, 4294901760
        %336 = vmatmul.f32.gmra.mxu0 %v335
        %v337 = vpop.f32.mrf.mxu0
        %v338 = vadd.f32 0.0, %v337
        %v339 = vand.u32 %v311, 4294901760
        %v340 = vsub.f32 %v311, %v339
        %v341 = vand.u32 %v340, 4294901760
        %v342 = vsub.f32 %v340, %v341
        %v343 = vand.u32 %v342, 4294901760
        %344 = vmatmul.f32.gmra.mxu0 %v343
        %v345 = vpop.f32.mrf.mxu0
        %v346 = vadd.f32 0.0, %v345
        %347 = vdwg.mxu0
        %348 = vmatpush.msra.mxu0 0.0
        %349 = vmatpush.msra.mxu0 0.0
        %350 = vmatpush.msra.mxu0 0.0
        %351 = vmatpush.msra.mxu0 0.0
        %352 = vmatpush.msra.mxu0 0.0
        %353 = vmatpush.msra.mxu0 0.0
        %354 = vmatpush.msra.mxu0 0.0
        %355 = vmatpush.msra.mxu0 0.0
        %356 = vmatpush.msra.mxu0 0.0
        %357 = vmatpush.msra.mxu0 0.0
        %358 = vmatpush.msra.mxu0 0.0
        %359 = vmatpush.msra.mxu0 0.0
        %360 = vmatpush.msra.mxu0 0.0
        %361 = vmatpush.msra.mxu0 0.0
        %v362 = vand.u32 %v299, 4294901760
        %v363 = vsub.f32 %v299, %v362
        %v364 = vand.u32 %v363, 4294901760
        %v365 = vsub.f32 %v363, %v364
        %v366 = vand.u32 %v365, 4294901760
        %367 = vmatpush.msra.mxu0 %v366
        %v368 = vand.u32 %v298, 4294901760
        %v369 = vsub.f32 %v298, %v368
        %v370 = vand.u32 %v369, 4294901760
        %v371 = vsub.f32 %v369, %v370
        %v372 = vand.u32 %v371, 4294901760
        %373 = vmatpush.msra.mxu0 %v372
        %v374 = vand.u32 %v308, 4294901760
        %375 = vmatmul.f32.gmra.mxu0 %v374
        %v376 = vpop.f32.mrf.mxu0
        %v377 = vadd.f32 %v338, %v376
        %v378 = vand.u32 %v311, 4294901760
        %379 = vmatmul.f32.gmra.mxu0 %v378
        %v380 = vpop.f32.mrf.mxu0
        %v381 = vadd.f32 %v346, %v380
        %382 = vdwg.mxu0
        %383 = vmatpush.msra.mxu0 0.0
        %384 = vmatpush.msra.mxu0 0.0
        %385 = vmatpush.msra.mxu0 0.0
        %386 = vmatpush.msra.mxu0 0.0
        %387 = vmatpush.msra.mxu0 0.0
        %388 = vmatpush.msra.mxu0 0.0
        %389 = vmatpush.msra.mxu0 0.0
        %390 = vmatpush.msra.mxu0 0.0
        %391 = vmatpush.msra.mxu0 0.0
        %392 = vmatpush.msra.mxu0 0.0
        %393 = vmatpush.msra.mxu0 0.0
        %394 = vmatpush.msra.mxu0 0.0
        %395 = vmatpush.msra.mxu0 0.0
        %396 = vmatpush.msra.mxu0 0.0
        %v397 = vand.u32 %v299, 4294901760
        %v398 = vsub.f32 %v299, %v397
        %399 = vmatpush.msra.mxu0 %v398
        %v400 = vand.u32 %v298, 4294901760
        %v401 = vsub.f32 %v298, %v400
        %402 = vmatpush.msra.mxu0 %v401
        %v403 = vand.u32 %v308, 4294901760
        %v404 = vsub.f32 %v308, %v403
        %405 = vmatmul.f32.gmra.mxu0 %v404
        %v406 = vpop.f32.mrf.mxu0
        %v407 = vadd.f32 %v377, %v406
        %v408 = vand.u32 %v311, 4294901760
        %v409 = vsub.f32 %v311, %v408
        %410 = vmatmul.f32.gmra.mxu0 %v409
        %v411 = vpop.f32.mrf.mxu0
        %v412 = vadd.f32 %v381, %v411
        %413 = vdwg.mxu0
        %414 = vmatpush.msra.mxu0 0.0
        %415 = vmatpush.msra.mxu0 0.0
        %416 = vmatpush.msra.mxu0 0.0
        %417 = vmatpush.msra.mxu0 0.0
        %418 = vmatpush.msra.mxu0 0.0
        %419 = vmatpush.msra.mxu0 0.0
        %420 = vmatpush.msra.mxu0 0.0
        %421 = vmatpush.msra.mxu0 0.0
        %422 = vmatpush.msra.mxu0 0.0
        %423 = vmatpush.msra.mxu0 0.0
        %424 = vmatpush.msra.mxu0 0.0
        %425 = vmatpush.msra.mxu0 0.0
        %426 = vmatpush.msra.mxu0 0.0
        %427 = vmatpush.msra.mxu0 0.0
        %v428 = vand.u32 %v299, 4294901760
        %429 = vmatpush.msra.mxu0 %v428
        %v430 = vand.u32 %v298, 4294901760
        %431 = vmatpush.msra.mxu0 %v430
        %v432 = vand.u32 %v308, 4294901760
        %v433 = vsub.f32 %v308, %v432
        %v434 = vand.u32 %v433, 4294901760
        %435 = vmatmul.f32.gmra.mxu0 %v434
        %v436 = vpop.f32.mrf.mxu0
        %v437 = vadd.f32 %v407, %v436
        %v438 = vand.u32 %v311, 4294901760
        %v439 = vsub.f32 %v311, %v438
        %v440 = vand.u32 %v439, 4294901760
        %441 = vmatmul.f32.gmra.mxu0 %v440
        %v442 = vpop.f32.mrf.mxu0
        %v443 = vadd.f32 %v412, %v442
        %444 = vdwg.mxu0
        %445 = vmatpush.msra.mxu0 0.0
        %446 = vmatpush.msra.mxu0 0.0
        %447 = vmatpush.msra.mxu0 0.0
        %448 = vmatpush.msra.mxu0 0.0
        %449 = vmatpush.msra.mxu0 0.0
        %450 = vmatpush.msra.mxu0 0.0
        %451 = vmatpush.msra.mxu0 0.0
        %452 = vmatpush.msra.mxu0 0.0
        %453 = vmatpush.msra.mxu0 0.0
        %454 = vmatpush.msra.mxu0 0.0
        %455 = vmatpush.msra.mxu0 0.0
        %456 = vmatpush.msra.mxu0 0.0
        %457 = vmatpush.msra.mxu0 0.0
        %458 = vmatpush.msra.mxu0 0.0
        %v459 = vand.u32 %v299, 4294901760
        %v460 = vsub.f32 %v299, %v459
        %v461 = vand.u32 %v460, 4294901760
        %462 = vmatpush.msra.mxu0 %v461
        %v463 = vand.u32 %v298, 4294901760
        %v464 = vsub.f32 %v298, %v463
        %v465 = vand.u32 %v464, 4294901760
        %466 = vmatpush.msra.mxu0 %v465
        %v467 = vand.u32 %v308, 4294901760
        %468 = vmatmul.f32.gmra.mxu0 %v467
        %v469 = vpop.f32.mrf.mxu0
        %v470 = vadd.f32 %v437, %v469
        %v471 = vand.u32 %v311, 4294901760
        %472 = vmatmul.f32.gmra.mxu0 %v471
        %v473 = vpop.f32.mrf.mxu0
        %v474 = vadd.f32 %v443, %v473
        %475 = vdwg.mxu0
        %476 = vmatpush.msra.mxu0 0.0
        %477 = vmatpush.msra.mxu0 0.0
        %478 = vmatpush.msra.mxu0 0.0
        %479 = vmatpush.msra.mxu0 0.0
        %480 = vmatpush.msra.mxu0 0.0
        %481 = vmatpush.msra.mxu0 0.0
        %482 = vmatpush.msra.mxu0 0.0
        %483 = vmatpush.msra.mxu0 0.0
        %484 = vmatpush.msra.mxu0 0.0
        %485 = vmatpush.msra.mxu0 0.0
        %486 = vmatpush.msra.mxu0 0.0
        %487 = vmatpush.msra.mxu0 0.0
        %488 = vmatpush.msra.mxu0 0.0
        %489 = vmatpush.msra.mxu0 0.0
        %v490 = vand.u32 %v299, 4294901760
        %491 = vmatpush.msra.mxu0 %v490
        %v492 = vand.u32 %v298, 4294901760
        %493 = vmatpush.msra.mxu0 %v492
        %v494 = vand.u32 %v308, 4294901760
        %495 = vmatmul.f32.gmra.mxu0 %v494
        %v496 = vpop.f32.mrf.mxu0
        %v497 = vadd.f32 %v470, %v496
        %v498 = vand.u32 %v311, 4294901760
        %499 = vmatmul.f32.gmra.mxu0 %v498
        %v500 = vpop.f32.mrf.mxu0
        %v501 = vadd.f32 %v474, %v500
        %502 = vdwg.mxu0
        %v504 = vsel %vm306, %v300, 0
        %v507 = vsel %vm306, %v301, 0
        %509 = vmatpush.msra.mxu0 0.0
        %510 = vmatpush.msra.mxu0 0.0
        %511 = vmatpush.msra.mxu0 0.0
        %512 = vmatpush.msra.mxu0 0.0
        %513 = vmatpush.msra.mxu0 0.0
        %514 = vmatpush.msra.mxu0 0.0
        %515 = vmatpush.msra.mxu0 0.0
        %516 = vmatpush.msra.mxu0 0.0
        %517 = vmatpush.msra.mxu0 0.0
        %518 = vmatpush.msra.mxu0 0.0
        %519 = vmatpush.msra.mxu0 0.0
        %520 = vmatpush.msra.mxu0 0.0
        %521 = vmatpush.msra.mxu0 0.0
        %522 = vmatpush.msra.mxu0 0.0
        %v523 = vand.u32 %v501, 4294901760
        %524 = vmatpush.msra.mxu0 %v523
        %v525 = vand.u32 %v497, 4294901760
        %526 = vmatpush.msra.mxu0 %v525
        %v527 = vand.u32 %v504, 4294901760
        %v528 = vsub.f32 %v504, %v527
        %v529 = vand.u32 %v528, 4294901760
        %v530 = vsub.f32 %v528, %v529
        %v531 = vand.u32 %v530, 4294901760
        %532 = vmatmul.f32.gmra.mxu0 %v531
        %v533 = vpop.f32.mrf.mxu0
        %v534 = vadd.f32 0.0, %v533
        %v535 = vand.u32 %v507, 4294901760
        %v536 = vsub.f32 %v507, %v535
        %v537 = vand.u32 %v536, 4294901760
        %v538 = vsub.f32 %v536, %v537
        %v539 = vand.u32 %v538, 4294901760
        %540 = vmatmul.f32.gmra.mxu0 %v539
        %v541 = vpop.f32.mrf.mxu0
        %v542 = vadd.f32 0.0, %v541
        %543 = vdwg.mxu0
        %544 = vmatpush.msra.mxu0 0.0
        %545 = vmatpush.msra.mxu0 0.0
        %546 = vmatpush.msra.mxu0 0.0
        %547 = vmatpush.msra.mxu0 0.0
        %548 = vmatpush.msra.mxu0 0.0
        %549 = vmatpush.msra.mxu0 0.0
        %550 = vmatpush.msra.mxu0 0.0
        %551 = vmatpush.msra.mxu0 0.0
        %552 = vmatpush.msra.mxu0 0.0
        %553 = vmatpush.msra.mxu0 0.0
        %554 = vmatpush.msra.mxu0 0.0
        %555 = vmatpush.msra.mxu0 0.0
        %556 = vmatpush.msra.mxu0 0.0
        %557 = vmatpush.msra.mxu0 0.0
        %v558 = vand.u32 %v501, 4294901760
        %v559 = vsub.f32 %v501, %v558
        %v560 = vand.u32 %v559, 4294901760
        %v561 = vsub.f32 %v559, %v560
        %v562 = vand.u32 %v561, 4294901760
        %563 = vmatpush.msra.mxu0 %v562
        %v564 = vand.u32 %v497, 4294901760
        %v565 = vsub.f32 %v497, %v564
        %v566 = vand.u32 %v565, 4294901760
        %v567 = vsub.f32 %v565, %v566
        %v568 = vand.u32 %v567, 4294901760
        %569 = vmatpush.msra.mxu0 %v568
        %v570 = vand.u32 %v504, 4294901760
        %571 = vmatmul.f32.gmra.mxu0 %v570
        %v572 = vpop.f32.mrf.mxu0
        %v573 = vadd.f32 %v534, %v572
        %v574 = vand.u32 %v507, 4294901760
        %575 = vmatmul.f32.gmra.mxu0 %v574
        %v576 = vpop.f32.mrf.mxu0
        %v577 = vadd.f32 %v542, %v576
        %578 = vdwg.mxu0
        %579 = vmatpush.msra.mxu0 0.0
        %580 = vmatpush.msra.mxu0 0.0
        %581 = vmatpush.msra.mxu0 0.0
        %582 = vmatpush.msra.mxu0 0.0
        %583 = vmatpush.msra.mxu0 0.0
        %584 = vmatpush.msra.mxu0 0.0
        %585 = vmatpush.msra.mxu0 0.0
        %586 = vmatpush.msra.mxu0 0.0
        %587 = vmatpush.msra.mxu0 0.0
        %588 = vmatpush.msra.mxu0 0.0
        %589 = vmatpush.msra.mxu0 0.0
        %590 = vmatpush.msra.mxu0 0.0
        %591 = vmatpush.msra.mxu0 0.0
        %592 = vmatpush.msra.mxu0 0.0
        %v593 = vand.u32 %v501, 4294901760
        %v594 = vsub.f32 %v501, %v593
        %595 = vmatpush.msra.mxu0 %v594
        %v596 = vand.u32 %v497, 4294901760
        %v597 = vsub.f32 %v497, %v596
        %598 = vmatpush.msra.mxu0 %v597
        %v599 = vand.u32 %v504, 4294901760
        %v600 = vsub.f32 %v504, %v599
        %601 = vmatmul.f32.gmra.mxu0 %v600
        %v602 = vpop.f32.mrf.mxu0
        %v603 = vadd.f32 %v573, %v602
        %v604 = vand.u32 %v507, 4294901760
        %v605 = vsub.f32 %v507, %v604
        %606 = vmatmul.f32.gmra.mxu0 %v605
        %v607 = vpop.f32.mrf.mxu0
        %v608 = vadd.f32 %v577, %v607
        %609 = vdwg.mxu0
        %610 = vmatpush.msra.mxu0 0.0
        %611 = vmatpush.msra.mxu0 0.0
        %612 = vmatpush.msra.mxu0 0.0
        %613 = vmatpush.msra.mxu0 0.0
        %614 = vmatpush.msra.mxu0 0.0
        %615 = vmatpush.msra.mxu0 0.0
        %616 = vmatpush.msra.mxu0 0.0
        %617 = vmatpush.msra.mxu0 0.0
        %618 = vmatpush.msra.mxu0 0.0
        %619 = vmatpush.msra.mxu0 0.0
        %620 = vmatpush.msra.mxu0 0.0
        %621 = vmatpush.msra.mxu0 0.0
        %622 = vmatpush.msra.mxu0 0.0
        %623 = vmatpush.msra.mxu0 0.0
        %v624 = vand.u32 %v501, 4294901760
        %625 = vmatpush.msra.mxu0 %v624
        %v626 = vand.u32 %v497, 4294901760
        %627 = vmatpush.msra.mxu0 %v626
        %v628 = vand.u32 %v504, 4294901760
        %v629 = vsub.f32 %v504, %v628
        %v630 = vand.u32 %v629, 4294901760
        %631 = vmatmul.f32.gmra.mxu0 %v630
        %v632 = vpop.f32.mrf.mxu0
        %v633 = vadd.f32 %v603, %v632
        %v634 = vand.u32 %v507, 4294901760
        %v635 = vsub.f32 %v507, %v634
        %v636 = vand.u32 %v635, 4294901760
        %637 = vmatmul.f32.gmra.mxu0 %v636
        %v638 = vpop.f32.mrf.mxu0
        %v639 = vadd.f32 %v608, %v638
        %640 = vdwg.mxu0
        %641 = vmatpush.msra.mxu0 0.0
        %642 = vmatpush.msra.mxu0 0.0
        %643 = vmatpush.msra.mxu0 0.0
        %644 = vmatpush.msra.mxu0 0.0
        %645 = vmatpush.msra.mxu0 0.0
        %646 = vmatpush.msra.mxu0 0.0
        %647 = vmatpush.msra.mxu0 0.0
        %648 = vmatpush.msra.mxu0 0.0
        %649 = vmatpush.msra.mxu0 0.0
        %650 = vmatpush.msra.mxu0 0.0
        %651 = vmatpush.msra.mxu0 0.0
        %652 = vmatpush.msra.mxu0 0.0
        %653 = vmatpush.msra.mxu0 0.0
        %654 = vmatpush.msra.mxu0 0.0
        %v655 = vand.u32 %v501, 4294901760
        %v656 = vsub.f32 %v501, %v655
        %v657 = vand.u32 %v656, 4294901760
        %658 = vmatpush.msra.mxu0 %v657
        %v659 = vand.u32 %v497, 4294901760
        %v660 = vsub.f32 %v497, %v659
        %v661 = vand.u32 %v660, 4294901760
        %662 = vmatpush.msra.mxu0 %v661
        %v663 = vand.u32 %v504, 4294901760
        %664 = vmatmul.f32.gmra.mxu0 %v663
        %v665 = vpop.f32.mrf.mxu0
        %v666 = vadd.f32 %v633, %v665
        %v667 = vand.u32 %v507, 4294901760
        %668 = vmatmul.f32.gmra.mxu0 %v667
        %v669 = vpop.f32.mrf.mxu0
        %v670 = vadd.f32 %v639, %v669
        %671 = vdwg.mxu0
        %672 = vmatpush.msra.mxu0 0.0
        %673 = vmatpush.msra.mxu0 0.0
        %674 = vmatpush.msra.mxu0 0.0
        %675 = vmatpush.msra.mxu0 0.0
        %676 = vmatpush.msra.mxu0 0.0
        %677 = vmatpush.msra.mxu0 0.0
        %678 = vmatpush.msra.mxu0 0.0
        %679 = vmatpush.msra.mxu0 0.0
        %680 = vmatpush.msra.mxu0 0.0
        %681 = vmatpush.msra.mxu0 0.0
        %682 = vmatpush.msra.mxu0 0.0
        %683 = vmatpush.msra.mxu0 0.0
        %684 = vmatpush.msra.mxu0 0.0
        %685 = vmatpush.msra.mxu0 0.0
        %v686 = vand.u32 %v501, 4294901760
        %687 = vmatpush.msra.mxu0 %v686
        %v688 = vand.u32 %v497, 4294901760
        %689 = vmatpush.msra.mxu0 %v688
        %v690 = vand.u32 %v504, 4294901760
        %691 = vmatmul.f32.gmra.mxu0 %v690
        %v692 = vpop.f32.mrf.mxu0
        %v693 = vadd.f32 %v666, %v692
        %v694 = vand.u32 %v507, 4294901760
        %695 = vmatmul.f32.gmra.mxu0 %v694
        %v696 = vpop.f32.mrf.mxu0
        %v697 = vadd.f32 %v670, %v696
        %698 = vdwg.mxu0
        %v700 = vsel %vm306, %v304, 0
        %v703 = vsel %vm306, %v305, 0
        %705 = vmatpush.msra.mxu0 0.0
        %706 = vmatpush.msra.mxu0 0.0
        %707 = vmatpush.msra.mxu0 0.0
        %708 = vmatpush.msra.mxu0 0.0
        %709 = vmatpush.msra.mxu0 0.0
        %710 = vmatpush.msra.mxu0 0.0
        %711 = vmatpush.msra.mxu0 0.0
        %712 = vmatpush.msra.mxu0 0.0
        %713 = vmatpush.msra.mxu0 0.0
        %714 = vmatpush.msra.mxu0 0.0
        %715 = vmatpush.msra.mxu0 0.0
        %716 = vmatpush.msra.mxu0 0.0
        %717 = vmatpush.msra.mxu0 0.0
        %718 = vmatpush.msra.mxu0 0.0
        %v719 = vand.u32 %v299, 4294901760
        %720 = vmatpush.msra.mxu0 %v719
        %v721 = vand.u32 %v298, 4294901760
        %722 = vmatpush.msra.mxu0 %v721
        %v723 = vand.u32 %v700, 4294901760
        %v724 = vsub.f32 %v700, %v723
        %v725 = vand.u32 %v724, 4294901760
        %v726 = vsub.f32 %v724, %v725
        %v727 = vand.u32 %v726, 4294901760
        %728 = vmatmul.f32.gmra.mxu0 %v727
        %v729 = vpop.f32.mrf.mxu0
        %v730 = vadd.f32 0.0, %v729
        %v731 = vand.u32 %v703, 4294901760
        %v732 = vsub.f32 %v703, %v731
        %v733 = vand.u32 %v732, 4294901760
        %v734 = vsub.f32 %v732, %v733
        %v735 = vand.u32 %v734, 4294901760
        %736 = vmatmul.f32.gmra.mxu0 %v735
        %v737 = vpop.f32.mrf.mxu0
        %v738 = vadd.f32 0.0, %v737
        %739 = vdwg.mxu0
        %740 = vmatpush.msra.mxu0 0.0
        %741 = vmatpush.msra.mxu0 0.0
        %742 = vmatpush.msra.mxu0 0.0
        %743 = vmatpush.msra.mxu0 0.0
        %744 = vmatpush.msra.mxu0 0.0
        %745 = vmatpush.msra.mxu0 0.0
        %746 = vmatpush.msra.mxu0 0.0
        %747 = vmatpush.msra.mxu0 0.0
        %748 = vmatpush.msra.mxu0 0.0
        %749 = vmatpush.msra.mxu0 0.0
        %750 = vmatpush.msra.mxu0 0.0
        %751 = vmatpush.msra.mxu0 0.0
        %752 = vmatpush.msra.mxu0 0.0
        %753 = vmatpush.msra.mxu0 0.0
        %v754 = vand.u32 %v299, 4294901760
        %v755 = vsub.f32 %v299, %v754
        %v756 = vand.u32 %v755, 4294901760
        %v757 = vsub.f32 %v755, %v756
        %v758 = vand.u32 %v757, 4294901760
        %759 = vmatpush.msra.mxu0 %v758
        %v760 = vand.u32 %v298, 4294901760
        %v761 = vsub.f32 %v298, %v760
        %v762 = vand.u32 %v761, 4294901760
        %v763 = vsub.f32 %v761, %v762
        %v764 = vand.u32 %v763, 4294901760
        %765 = vmatpush.msra.mxu0 %v764
        %v766 = vand.u32 %v700, 4294901760
        %767 = vmatmul.f32.gmra.mxu0 %v766
        %v768 = vpop.f32.mrf.mxu0
        %v769 = vadd.f32 %v730, %v768
        %v770 = vand.u32 %v703, 4294901760
        %771 = vmatmul.f32.gmra.mxu0 %v770
        %v772 = vpop.f32.mrf.mxu0
        %v773 = vadd.f32 %v738, %v772
        %774 = vdwg.mxu0
        %775 = vmatpush.msra.mxu0 0.0
        %776 = vmatpush.msra.mxu0 0.0
        %777 = vmatpush.msra.mxu0 0.0
        %778 = vmatpush.msra.mxu0 0.0
        %779 = vmatpush.msra.mxu0 0.0
        %780 = vmatpush.msra.mxu0 0.0
        %781 = vmatpush.msra.mxu0 0.0
        %782 = vmatpush.msra.mxu0 0.0
        %783 = vmatpush.msra.mxu0 0.0
        %784 = vmatpush.msra.mxu0 0.0
        %785 = vmatpush.msra.mxu0 0.0
        %786 = vmatpush.msra.mxu0 0.0
        %787 = vmatpush.msra.mxu0 0.0
        %788 = vmatpush.msra.mxu0 0.0
        %v789 = vand.u32 %v299, 4294901760
        %v790 = vsub.f32 %v299, %v789
        %791 = vmatpush.msra.mxu0 %v790
        %v792 = vand.u32 %v298, 4294901760
        %v793 = vsub.f32 %v298, %v792
        %794 = vmatpush.msra.mxu0 %v793
        %v795 = vand.u32 %v700, 4294901760
        %v796 = vsub.f32 %v700, %v795
        %797 = vmatmul.f32.gmra.mxu0 %v796
        %v798 = vpop.f32.mrf.mxu0
        %v799 = vadd.f32 %v769, %v798
        %v800 = vand.u32 %v703, 4294901760
        %v801 = vsub.f32 %v703, %v800
        %802 = vmatmul.f32.gmra.mxu0 %v801
        %v803 = vpop.f32.mrf.mxu0
        %v804 = vadd.f32 %v773, %v803
        %805 = vdwg.mxu0
        %806 = vmatpush.msra.mxu0 0.0
        %807 = vmatpush.msra.mxu0 0.0
        %808 = vmatpush.msra.mxu0 0.0
        %809 = vmatpush.msra.mxu0 0.0
        %810 = vmatpush.msra.mxu0 0.0
        %811 = vmatpush.msra.mxu0 0.0
        %812 = vmatpush.msra.mxu0 0.0
        %813 = vmatpush.msra.mxu0 0.0
        %814 = vmatpush.msra.mxu0 0.0
        %815 = vmatpush.msra.mxu0 0.0
        %816 = vmatpush.msra.mxu0 0.0
        %817 = vmatpush.msra.mxu0 0.0
        %818 = vmatpush.msra.mxu0 0.0
        %819 = vmatpush.msra.mxu0 0.0
        %v820 = vand.u32 %v299, 4294901760
        %821 = vmatpush.msra.mxu0 %v820
        %v822 = vand.u32 %v298, 4294901760
        %823 = vmatpush.msra.mxu0 %v822
        %v824 = vand.u32 %v700, 4294901760
        %v825 = vsub.f32 %v700, %v824
        %v826 = vand.u32 %v825, 4294901760
        %827 = vmatmul.f32.gmra.mxu0 %v826
        %v828 = vpop.f32.mrf.mxu0
        %v829 = vadd.f32 %v799, %v828
        %v830 = vand.u32 %v703, 4294901760
        %v831 = vsub.f32 %v703, %v830
        %v832 = vand.u32 %v831, 4294901760
        %833 = vmatmul.f32.gmra.mxu0 %v832
        %v834 = vpop.f32.mrf.mxu0
        %v835 = vadd.f32 %v804, %v834
        %836 = vdwg.mxu0
        %837 = vmatpush.msra.mxu0 0.0
        %838 = vmatpush.msra.mxu0 0.0
        %839 = vmatpush.msra.mxu0 0.0
        %840 = vmatpush.msra.mxu0 0.0
        %841 = vmatpush.msra.mxu0 0.0
        %842 = vmatpush.msra.mxu0 0.0
        %843 = vmatpush.msra.mxu0 0.0
        %844 = vmatpush.msra.mxu0 0.0
        %845 = vmatpush.msra.mxu0 0.0
        %846 = vmatpush.msra.mxu0 0.0
        %847 = vmatpush.msra.mxu0 0.0
        %848 = vmatpush.msra.mxu0 0.0
        %849 = vmatpush.msra.mxu0 0.0
        %850 = vmatpush.msra.mxu0 0.0
        %v851 = vand.u32 %v299, 4294901760
        %v852 = vsub.f32 %v299, %v851
        %v853 = vand.u32 %v852, 4294901760
        %854 = vmatpush.msra.mxu0 %v853
        %v855 = vand.u32 %v298, 4294901760
        %v856 = vsub.f32 %v298, %v855
        %v857 = vand.u32 %v856, 4294901760
        %858 = vmatpush.msra.mxu0 %v857
        %v859 = vand.u32 %v700, 4294901760
        %860 = vmatmul.f32.gmra.mxu0 %v859
        %v861 = vpop.f32.mrf.mxu0
        %v862 = vadd.f32 %v829, %v861
        %v863 = vand.u32 %v703, 4294901760
        %864 = vmatmul.f32.gmra.mxu0 %v863
        %v865 = vpop.f32.mrf.mxu0
        %v866 = vadd.f32 %v835, %v865
        %867 = vdwg.mxu0
        %868 = vmatpush.msra.mxu0 0.0
        %869 = vmatpush.msra.mxu0 0.0
        %870 = vmatpush.msra.mxu0 0.0
        %871 = vmatpush.msra.mxu0 0.0
        %872 = vmatpush.msra.mxu0 0.0
        %873 = vmatpush.msra.mxu0 0.0
        %874 = vmatpush.msra.mxu0 0.0
        %875 = vmatpush.msra.mxu0 0.0
        %876 = vmatpush.msra.mxu0 0.0
        %877 = vmatpush.msra.mxu0 0.0
        %878 = vmatpush.msra.mxu0 0.0
        %879 = vmatpush.msra.mxu0 0.0
        %880 = vmatpush.msra.mxu0 0.0
        %881 = vmatpush.msra.mxu0 0.0
        %v882 = vand.u32 %v299, 4294901760
        %883 = vmatpush.msra.mxu0 %v882
        %v884 = vand.u32 %v298, 4294901760
        %885 = vmatpush.msra.mxu0 %v884
        %v886 = vand.u32 %v700, 4294901760
        %887 = vmatmul.f32.gmra.mxu0 %v886
        %v888 = vpop.f32.mrf.mxu0
        %v889 = vadd.f32 %v862, %v888
        %v890 = vand.u32 %v703, 4294901760
        %891 = vmatmul.f32.gmra.mxu0 %v890
        %v892 = vpop.f32.mrf.mxu0
        %v893 = vadd.f32 %v866, %v892
        %894 = vdwg.mxu0
        %895 = vmatpush.msra.mxu0 0.0
        %896 = vmatpush.msra.mxu0 0.0
        %897 = vmatpush.msra.mxu0 0.0
        %898 = vmatpush.msra.mxu0 0.0
        %899 = vmatpush.msra.mxu0 0.0
        %900 = vmatpush.msra.mxu0 0.0
        %901 = vmatpush.msra.mxu0 0.0
        %902 = vmatpush.msra.mxu0 0.0
        %903 = vmatpush.msra.mxu0 0.0
        %904 = vmatpush.msra.mxu0 0.0
        %905 = vmatpush.msra.mxu0 0.0
        %906 = vmatpush.msra.mxu0 0.0
        %907 = vmatpush.msra.mxu0 0.0
        %908 = vmatpush.msra.mxu0 0.0
        %v909 = vand.u32 %v893, 4294901760
        %910 = vmatpush.msra.mxu0 %v909
        %v911 = vand.u32 %v889, 4294901760
        %912 = vmatpush.msra.mxu0 %v911
        %v913 = vand.u32 %v504, 4294901760
        %v914 = vsub.f32 %v504, %v913
        %v915 = vand.u32 %v914, 4294901760
        %v916 = vsub.f32 %v914, %v915
        %v917 = vand.u32 %v916, 4294901760
        %918 = vmatmul.f32.gmra.mxu0 %v917
        %v919 = vpop.f32.mrf.mxu0
        %v920 = vadd.f32 0.0, %v919
        %v921 = vand.u32 %v507, 4294901760
        %v922 = vsub.f32 %v507, %v921
        %v923 = vand.u32 %v922, 4294901760
        %v924 = vsub.f32 %v922, %v923
        %v925 = vand.u32 %v924, 4294901760
        %926 = vmatmul.f32.gmra.mxu0 %v925
        %v927 = vpop.f32.mrf.mxu0
        %v928 = vadd.f32 0.0, %v927
        %929 = vdwg.mxu0
        %930 = vmatpush.msra.mxu0 0.0
        %931 = vmatpush.msra.mxu0 0.0
        %932 = vmatpush.msra.mxu0 0.0
        %933 = vmatpush.msra.mxu0 0.0
        %934 = vmatpush.msra.mxu0 0.0
        %935 = vmatpush.msra.mxu0 0.0
        %936 = vmatpush.msra.mxu0 0.0
        %937 = vmatpush.msra.mxu0 0.0
        %938 = vmatpush.msra.mxu0 0.0
        %939 = vmatpush.msra.mxu0 0.0
        %940 = vmatpush.msra.mxu0 0.0
        %941 = vmatpush.msra.mxu0 0.0
        %942 = vmatpush.msra.mxu0 0.0
        %943 = vmatpush.msra.mxu0 0.0
        %v944 = vand.u32 %v893, 4294901760
        %v945 = vsub.f32 %v893, %v944
        %v946 = vand.u32 %v945, 4294901760
        %v947 = vsub.f32 %v945, %v946
        %v948 = vand.u32 %v947, 4294901760
        %949 = vmatpush.msra.mxu0 %v948
        %v950 = vand.u32 %v889, 4294901760
        %v951 = vsub.f32 %v889, %v950
        %v952 = vand.u32 %v951, 4294901760
        %v953 = vsub.f32 %v951, %v952
        %v954 = vand.u32 %v953, 4294901760
        %955 = vmatpush.msra.mxu0 %v954
        %v956 = vand.u32 %v504, 4294901760
        %957 = vmatmul.f32.gmra.mxu0 %v956
        %v958 = vpop.f32.mrf.mxu0
        %v959 = vadd.f32 %v920, %v958
        %v960 = vand.u32 %v507, 4294901760
        %961 = vmatmul.f32.gmra.mxu0 %v960
        %v962 = vpop.f32.mrf.mxu0
        %v963 = vadd.f32 %v928, %v962
        %964 = vdwg.mxu0
        %965 = vmatpush.msra.mxu0 0.0
        %966 = vmatpush.msra.mxu0 0.0
        %967 = vmatpush.msra.mxu0 0.0
        %968 = vmatpush.msra.mxu0 0.0
        %969 = vmatpush.msra.mxu0 0.0
        %970 = vmatpush.msra.mxu0 0.0
        %971 = vmatpush.msra.mxu0 0.0
        %972 = vmatpush.msra.mxu0 0.0
        %973 = vmatpush.msra.mxu0 0.0
        %974 = vmatpush.msra.mxu0 0.0
        %975 = vmatpush.msra.mxu0 0.0
        %976 = vmatpush.msra.mxu0 0.0
        %977 = vmatpush.msra.mxu0 0.0
        %978 = vmatpush.msra.mxu0 0.0
        %v979 = vand.u32 %v893, 4294901760
        %v980 = vsub.f32 %v893, %v979
        %981 = vmatpush.msra.mxu0 %v980
        %v982 = vand.u32 %v889, 4294901760
        %v983 = vsub.f32 %v889, %v982
        %984 = vmatpush.msra.mxu0 %v983
        %v985 = vand.u32 %v504, 4294901760
        %v986 = vsub.f32 %v504, %v985
        %987 = vmatmul.f32.gmra.mxu0 %v986
        %v988 = vpop.f32.mrf.mxu0
        %v989 = vadd.f32 %v959, %v988
        %v990 = vand.u32 %v507, 4294901760
        %v991 = vsub.f32 %v507, %v990
        %992 = vmatmul.f32.gmra.mxu0 %v991
        %v993 = vpop.f32.mrf.mxu0
        %v994 = vadd.f32 %v963, %v993
        %995 = vdwg.mxu0
        %996 = vmatpush.msra.mxu0 0.0
        %997 = vmatpush.msra.mxu0 0.0
        %998 = vmatpush.msra.mxu0 0.0
        %999 = vmatpush.msra.mxu0 0.0
        %1000 = vmatpush.msra.mxu0 0.0
        %1001 = vmatpush.msra.mxu0 0.0
        %1002 = vmatpush.msra.mxu0 0.0
        %1003 = vmatpush.msra.mxu0 0.0
        %1004 = vmatpush.msra.mxu0 0.0
        %1005 = vmatpush.msra.mxu0 0.0
        %1006 = vmatpush.msra.mxu0 0.0
        %1007 = vmatpush.msra.mxu0 0.0
        %1008 = vmatpush.msra.mxu0 0.0
        %1009 = vmatpush.msra.mxu0 0.0
        %v1010 = vand.u32 %v893, 4294901760
        %1011 = vmatpush.msra.mxu0 %v1010
        %v1012 = vand.u32 %v889, 4294901760
        %1013 = vmatpush.msra.mxu0 %v1012
        %v1014 = vand.u32 %v504, 4294901760
        %v1015 = vsub.f32 %v504, %v1014
        %v1016 = vand.u32 %v1015, 4294901760
        %1017 = vmatmul.f32.gmra.mxu0 %v1016
        %v1018 = vpop.f32.mrf.mxu0
        %v1019 = vadd.f32 %v989, %v1018
        %v1020 = vand.u32 %v507, 4294901760
        %v1021 = vsub.f32 %v507, %v1020
        %v1022 = vand.u32 %v1021, 4294901760
        %1023 = vmatmul.f32.gmra.mxu0 %v1022
        %v1024 = vpop.f32.mrf.mxu0
        %v1025 = vadd.f32 %v994, %v1024
        %1026 = vdwg.mxu0
        %1027 = vmatpush.msra.mxu0 0.0
        %1028 = vmatpush.msra.mxu0 0.0
        %1029 = vmatpush.msra.mxu0 0.0
        %1030 = vmatpush.msra.mxu0 0.0
        %1031 = vmatpush.msra.mxu0 0.0
        %1032 = vmatpush.msra.mxu0 0.0
        %1033 = vmatpush.msra.mxu0 0.0
        %1034 = vmatpush.msra.mxu0 0.0
        %1035 = vmatpush.msra.mxu0 0.0
        %1036 = vmatpush.msra.mxu0 0.0
        %1037 = vmatpush.msra.mxu0 0.0
        %1038 = vmatpush.msra.mxu0 0.0
        %1039 = vmatpush.msra.mxu0 0.0
        %1040 = vmatpush.msra.mxu0 0.0
        %v1041 = vand.u32 %v893, 4294901760
        %v1042 = vsub.f32 %v893, %v1041
        %v1043 = vand.u32 %v1042, 4294901760
        %1044 = vmatpush.msra.mxu0 %v1043
        %v1045 = vand.u32 %v889, 4294901760
        %v1046 = vsub.f32 %v889, %v1045
        %v1047 = vand.u32 %v1046, 4294901760
        %1048 = vmatpush.msra.mxu0 %v1047
        %v1049 = vand.u32 %v504, 4294901760
        %1050 = vmatmul.f32.gmra.mxu0 %v1049
        %v1051 = vpop.f32.mrf.mxu0
        %v1052 = vadd.f32 %v1019, %v1051
        %v1053 = vand.u32 %v507, 4294901760
        %1054 = vmatmul.f32.gmra.mxu0 %v1053
        %v1055 = vpop.f32.mrf.mxu0
        %v1056 = vadd.f32 %v1025, %v1055
        %1057 = vdwg.mxu0
        %1058 = vmatpush.msra.mxu0 0.0
        %1059 = vmatpush.msra.mxu0 0.0
        %1060 = vmatpush.msra.mxu0 0.0
        %1061 = vmatpush.msra.mxu0 0.0
        %1062 = vmatpush.msra.mxu0 0.0
        %1063 = vmatpush.msra.mxu0 0.0
        %1064 = vmatpush.msra.mxu0 0.0
        %1065 = vmatpush.msra.mxu0 0.0
        %1066 = vmatpush.msra.mxu0 0.0
        %1067 = vmatpush.msra.mxu0 0.0
        %1068 = vmatpush.msra.mxu0 0.0
        %1069 = vmatpush.msra.mxu0 0.0
        %1070 = vmatpush.msra.mxu0 0.0
        %1071 = vmatpush.msra.mxu0 0.0
        %v1072 = vand.u32 %v893, 4294901760
        %1073 = vmatpush.msra.mxu0 %v1072
        %v1074 = vand.u32 %v889, 4294901760
        %1075 = vmatpush.msra.mxu0 %v1074
        %v1076 = vand.u32 %v504, 4294901760
        %1077 = vmatmul.f32.gmra.mxu0 %v1076
        %v1078 = vpop.f32.mrf.mxu0
        %v1079 = vadd.f32 %v1052, %v1078
        %v1080 = vand.u32 %v507, 4294901760
        %1081 = vmatmul.f32.gmra.mxu0 %v1080
        %v1082 = vpop.f32.mrf.mxu0
        %v1083 = vadd.f32 %v1056, %v1082
        %1084 = vdwg.mxu0
        %v1085 = vmul.f32 %v302, %v302
        %v1086 = vmul.f32 %v303, %v303
        %v1088 = vsel %vm306, %v1085, 0
        %v1091 = vsel %vm306, %v1086, 0
        %1093 = vmatpush.msra.mxu0 0.0
        %1094 = vmatpush.msra.mxu0 0.0
        %1095 = vmatpush.msra.mxu0 0.0
        %1096 = vmatpush.msra.mxu0 0.0
        %1097 = vmatpush.msra.mxu0 0.0
        %1098 = vmatpush.msra.mxu0 0.0
        %1099 = vmatpush.msra.mxu0 0.0
        %1100 = vmatpush.msra.mxu0 0.0
        %1101 = vmatpush.msra.mxu0 0.0
        %1102 = vmatpush.msra.mxu0 0.0
        %1103 = vmatpush.msra.mxu0 0.0
        %1104 = vmatpush.msra.mxu0 0.0
        %1105 = vmatpush.msra.mxu0 0.0
        %1106 = vmatpush.msra.mxu0 0.0
        %v1107 = vand.u32 %v299, 4294901760
        %1108 = vmatpush.msra.mxu0 %v1107
        %v1109 = vand.u32 %v298, 4294901760
        %1110 = vmatpush.msra.mxu0 %v1109
        %v1111 = vand.u32 %v1088, 4294901760
        %v1112 = vsub.f32 %v1088, %v1111
        %v1113 = vand.u32 %v1112, 4294901760
        %v1114 = vsub.f32 %v1112, %v1113
        %v1115 = vand.u32 %v1114, 4294901760
        %1116 = vmatmul.f32.gmra.mxu0 %v1115
        %v1117 = vpop.f32.mrf.mxu0
        %v1118 = vadd.f32 0.0, %v1117
        %v1119 = vand.u32 %v1091, 4294901760
        %v1120 = vsub.f32 %v1091, %v1119
        %v1121 = vand.u32 %v1120, 4294901760
        %v1122 = vsub.f32 %v1120, %v1121
        %v1123 = vand.u32 %v1122, 4294901760
        %1124 = vmatmul.f32.gmra.mxu0 %v1123
        %v1125 = vpop.f32.mrf.mxu0
        %v1126 = vadd.f32 0.0, %v1125
        %1127 = vdwg.mxu0
        %1128 = vmatpush.msra.mxu0 0.0
        %1129 = vmatpush.msra.mxu0 0.0
        %1130 = vmatpush.msra.mxu0 0.0
        %1131 = vmatpush.msra.mxu0 0.0
        %1132 = vmatpush.msra.mxu0 0.0
        %1133 = vmatpush.msra.mxu0 0.0
        %1134 = vmatpush.msra.mxu0 0.0
        %1135 = vmatpush.msra.mxu0 0.0
        %1136 = vmatpush.msra.mxu0 0.0
        %1137 = vmatpush.msra.mxu0 0.0
        %1138 = vmatpush.msra.mxu0 0.0
        %1139 = vmatpush.msra.mxu0 0.0
        %1140 = vmatpush.msra.mxu0 0.0
        %1141 = vmatpush.msra.mxu0 0.0
        %v1142 = vand.u32 %v299, 4294901760
        %v1143 = vsub.f32 %v299, %v1142
        %v1144 = vand.u32 %v1143, 4294901760
        %v1145 = vsub.f32 %v1143, %v1144
        %v1146 = vand.u32 %v1145, 4294901760
        %1147 = vmatpush.msra.mxu0 %v1146
        %v1148 = vand.u32 %v298, 4294901760
        %v1149 = vsub.f32 %v298, %v1148
        %v1150 = vand.u32 %v1149, 4294901760
        %v1151 = vsub.f32 %v1149, %v1150
        %v1152 = vand.u32 %v1151, 4294901760
        %1153 = vmatpush.msra.mxu0 %v1152
        %v1154 = vand.u32 %v1088, 4294901760
        %1155 = vmatmul.f32.gmra.mxu0 %v1154
        %v1156 = vpop.f32.mrf.mxu0
        %v1157 = vadd.f32 %v1118, %v1156
        %v1158 = vand.u32 %v1091, 4294901760
        %1159 = vmatmul.f32.gmra.mxu0 %v1158
        %v1160 = vpop.f32.mrf.mxu0
        %v1161 = vadd.f32 %v1126, %v1160
        %1162 = vdwg.mxu0
        %1163 = vmatpush.msra.mxu0 0.0
        %1164 = vmatpush.msra.mxu0 0.0
        %1165 = vmatpush.msra.mxu0 0.0
        %1166 = vmatpush.msra.mxu0 0.0
        %1167 = vmatpush.msra.mxu0 0.0
        %1168 = vmatpush.msra.mxu0 0.0
        %1169 = vmatpush.msra.mxu0 0.0
        %1170 = vmatpush.msra.mxu0 0.0
        %1171 = vmatpush.msra.mxu0 0.0
        %1172 = vmatpush.msra.mxu0 0.0
        %1173 = vmatpush.msra.mxu0 0.0
        %1174 = vmatpush.msra.mxu0 0.0
        %1175 = vmatpush.msra.mxu0 0.0
        %1176 = vmatpush.msra.mxu0 0.0
        %v1177 = vand.u32 %v299, 4294901760
        %v1178 = vsub.f32 %v299, %v1177
        %1179 = vmatpush.msra.mxu0 %v1178
        %v1180 = vand.u32 %v298, 4294901760
        %v1181 = vsub.f32 %v298, %v1180
        %1182 = vmatpush.msra.mxu0 %v1181
        %v1183 = vand.u32 %v1088, 4294901760
        %v1184 = vsub.f32 %v1088, %v1183
        %1185 = vmatmul.f32.gmra.mxu0 %v1184
        %v1186 = vpop.f32.mrf.mxu0
        %v1187 = vadd.f32 %v1157, %v1186
        %v1188 = vand.u32 %v1091, 4294901760
        %v1189 = vsub.f32 %v1091, %v1188
        %1190 = vmatmul.f32.gmra.mxu0 %v1189
        %v1191 = vpop.f32.mrf.mxu0
        %v1192 = vadd.f32 %v1161, %v1191
        %1193 = vdwg.mxu0
        %1194 = vmatpush.msra.mxu0 0.0
        %1195 = vmatpush.msra.mxu0 0.0
        %1196 = vmatpush.msra.mxu0 0.0
        %1197 = vmatpush.msra.mxu0 0.0
        %1198 = vmatpush.msra.mxu0 0.0
        %1199 = vmatpush.msra.mxu0 0.0
        %1200 = vmatpush.msra.mxu0 0.0
        %1201 = vmatpush.msra.mxu0 0.0
        %1202 = vmatpush.msra.mxu0 0.0
        %1203 = vmatpush.msra.mxu0 0.0
        %1204 = vmatpush.msra.mxu0 0.0
        %1205 = vmatpush.msra.mxu0 0.0
        %1206 = vmatpush.msra.mxu0 0.0
        %1207 = vmatpush.msra.mxu0 0.0
        %v1208 = vand.u32 %v299, 4294901760
        %1209 = vmatpush.msra.mxu0 %v1208
        %v1210 = vand.u32 %v298, 4294901760
        %1211 = vmatpush.msra.mxu0 %v1210
        %v1212 = vand.u32 %v1088, 4294901760
        %v1213 = vsub.f32 %v1088, %v1212
        %v1214 = vand.u32 %v1213, 4294901760
        %1215 = vmatmul.f32.gmra.mxu0 %v1214
        %v1216 = vpop.f32.mrf.mxu0
        %v1217 = vadd.f32 %v1187, %v1216
        %v1218 = vand.u32 %v1091, 4294901760
        %v1219 = vsub.f32 %v1091, %v1218
        %v1220 = vand.u32 %v1219, 4294901760
        %1221 = vmatmul.f32.gmra.mxu0 %v1220
        %v1222 = vpop.f32.mrf.mxu0
        %v1223 = vadd.f32 %v1192, %v1222
        %1224 = vdwg.mxu0
        %1225 = vmatpush.msra.mxu0 0.0
        %1226 = vmatpush.msra.mxu0 0.0
        %1227 = vmatpush.msra.mxu0 0.0
        %1228 = vmatpush.msra.mxu0 0.0
        %1229 = vmatpush.msra.mxu0 0.0
        %1230 = vmatpush.msra.mxu0 0.0
        %1231 = vmatpush.msra.mxu0 0.0
        %1232 = vmatpush.msra.mxu0 0.0
        %1233 = vmatpush.msra.mxu0 0.0
        %1234 = vmatpush.msra.mxu0 0.0
        %1235 = vmatpush.msra.mxu0 0.0
        %1236 = vmatpush.msra.mxu0 0.0
        %1237 = vmatpush.msra.mxu0 0.0
        %1238 = vmatpush.msra.mxu0 0.0
        %v1239 = vand.u32 %v299, 4294901760
        %v1240 = vsub.f32 %v299, %v1239
        %v1241 = vand.u32 %v1240, 4294901760
        %1242 = vmatpush.msra.mxu0 %v1241
        %v1243 = vand.u32 %v298, 4294901760
        %v1244 = vsub.f32 %v298, %v1243
        %v1245 = vand.u32 %v1244, 4294901760
        %1246 = vmatpush.msra.mxu0 %v1245
        %v1247 = vand.u32 %v1088, 4294901760
        %1248 = vmatmul.f32.gmra.mxu0 %v1247
        %v1249 = vpop.f32.mrf.mxu0
        %v1250 = vadd.f32 %v1217, %v1249
        %v1251 = vand.u32 %v1091, 4294901760
        %1252 = vmatmul.f32.gmra.mxu0 %v1251
        %v1253 = vpop.f32.mrf.mxu0
        %v1254 = vadd.f32 %v1223, %v1253
        %1255 = vdwg.mxu0
        %1256 = vmatpush.msra.mxu0 0.0
        %1257 = vmatpush.msra.mxu0 0.0
        %1258 = vmatpush.msra.mxu0 0.0
        %1259 = vmatpush.msra.mxu0 0.0
        %1260 = vmatpush.msra.mxu0 0.0
        %1261 = vmatpush.msra.mxu0 0.0
        %1262 = vmatpush.msra.mxu0 0.0
        %1263 = vmatpush.msra.mxu0 0.0
        %1264 = vmatpush.msra.mxu0 0.0
        %1265 = vmatpush.msra.mxu0 0.0
        %1266 = vmatpush.msra.mxu0 0.0
        %1267 = vmatpush.msra.mxu0 0.0
        %1268 = vmatpush.msra.mxu0 0.0
        %1269 = vmatpush.msra.mxu0 0.0
        %v1270 = vand.u32 %v299, 4294901760
        %1271 = vmatpush.msra.mxu0 %v1270
        %v1272 = vand.u32 %v298, 4294901760
        %1273 = vmatpush.msra.mxu0 %v1272
        %v1274 = vand.u32 %v1088, 4294901760
        %1275 = vmatmul.f32.gmra.mxu0 %v1274
        %v1276 = vpop.f32.mrf.mxu0
        %v1277 = vadd.f32 %v1250, %v1276
        %v1278 = vand.u32 %v1091, 4294901760
        %1279 = vmatmul.f32.gmra.mxu0 %v1278
        %v1280 = vpop.f32.mrf.mxu0
        %v1281 = vadd.f32 %v1254, %v1280
        %1282 = vdwg.mxu0
        %v1283 = vmul.f32 %v304, %v304
        %v1284 = vmul.f32 %v305, %v305
        %v1286 = vsel %vm306, %v1283, 0
        %v1289 = vsel %vm306, %v1284, 0
        %1291 = vmatpush.msra.mxu0 0.0
        %1292 = vmatpush.msra.mxu0 0.0
        %1293 = vmatpush.msra.mxu0 0.0
        %1294 = vmatpush.msra.mxu0 0.0
        %1295 = vmatpush.msra.mxu0 0.0
        %1296 = vmatpush.msra.mxu0 0.0
        %1297 = vmatpush.msra.mxu0 0.0
        %1298 = vmatpush.msra.mxu0 0.0
        %1299 = vmatpush.msra.mxu0 0.0
        %1300 = vmatpush.msra.mxu0 0.0
        %1301 = vmatpush.msra.mxu0 0.0
        %1302 = vmatpush.msra.mxu0 0.0
        %1303 = vmatpush.msra.mxu0 0.0
        %1304 = vmatpush.msra.mxu0 0.0
        %v1305 = vand.u32 %v299, 4294901760
        %1306 = vmatpush.msra.mxu0 %v1305
        %v1307 = vand.u32 %v298, 4294901760
        %1308 = vmatpush.msra.mxu0 %v1307
        %v1309 = vand.u32 %v1286, 4294901760
        %v1310 = vsub.f32 %v1286, %v1309
        %v1311 = vand.u32 %v1310, 4294901760
        %v1312 = vsub.f32 %v1310, %v1311
        %v1313 = vand.u32 %v1312, 4294901760
        %1314 = vmatmul.f32.gmra.mxu0 %v1313
        %v1315 = vpop.f32.mrf.mxu0
        %v1316 = vadd.f32 0.0, %v1315
        %v1317 = vand.u32 %v1289, 4294901760
        %v1318 = vsub.f32 %v1289, %v1317
        %v1319 = vand.u32 %v1318, 4294901760
        %v1320 = vsub.f32 %v1318, %v1319
        %v1321 = vand.u32 %v1320, 4294901760
        %1322 = vmatmul.f32.gmra.mxu0 %v1321
        %v1323 = vpop.f32.mrf.mxu0
        %v1324 = vadd.f32 0.0, %v1323
        %1325 = vdwg.mxu0
        %1326 = vmatpush.msra.mxu0 0.0
        %1327 = vmatpush.msra.mxu0 0.0
        %1328 = vmatpush.msra.mxu0 0.0
        %1329 = vmatpush.msra.mxu0 0.0
        %1330 = vmatpush.msra.mxu0 0.0
        %1331 = vmatpush.msra.mxu0 0.0
        %1332 = vmatpush.msra.mxu0 0.0
        %1333 = vmatpush.msra.mxu0 0.0
        %1334 = vmatpush.msra.mxu0 0.0
        %1335 = vmatpush.msra.mxu0 0.0
        %1336 = vmatpush.msra.mxu0 0.0
        %1337 = vmatpush.msra.mxu0 0.0
        %1338 = vmatpush.msra.mxu0 0.0
        %1339 = vmatpush.msra.mxu0 0.0
        %v1340 = vand.u32 %v299, 4294901760
        %v1341 = vsub.f32 %v299, %v1340
        %v1342 = vand.u32 %v1341, 4294901760
        %v1343 = vsub.f32 %v1341, %v1342
        %v1344 = vand.u32 %v1343, 4294901760
        %1345 = vmatpush.msra.mxu0 %v1344
        %v1346 = vand.u32 %v298, 4294901760
        %v1347 = vsub.f32 %v298, %v1346
        %v1348 = vand.u32 %v1347, 4294901760
        %v1349 = vsub.f32 %v1347, %v1348
        %v1350 = vand.u32 %v1349, 4294901760
        %1351 = vmatpush.msra.mxu0 %v1350
        %v1352 = vand.u32 %v1286, 4294901760
        %1353 = vmatmul.f32.gmra.mxu0 %v1352
        %v1354 = vpop.f32.mrf.mxu0
        %v1355 = vadd.f32 %v1316, %v1354
        %v1356 = vand.u32 %v1289, 4294901760
        %1357 = vmatmul.f32.gmra.mxu0 %v1356
        %v1358 = vpop.f32.mrf.mxu0
        %v1359 = vadd.f32 %v1324, %v1358
        %1360 = vdwg.mxu0
        %1361 = vmatpush.msra.mxu0 0.0
        %1362 = vmatpush.msra.mxu0 0.0
        %1363 = vmatpush.msra.mxu0 0.0
        %1364 = vmatpush.msra.mxu0 0.0
        %1365 = vmatpush.msra.mxu0 0.0
        %1366 = vmatpush.msra.mxu0 0.0
        %1367 = vmatpush.msra.mxu0 0.0
        %1368 = vmatpush.msra.mxu0 0.0
        %1369 = vmatpush.msra.mxu0 0.0
        %1370 = vmatpush.msra.mxu0 0.0
        %1371 = vmatpush.msra.mxu0 0.0
        %1372 = vmatpush.msra.mxu0 0.0
        %1373 = vmatpush.msra.mxu0 0.0
        %1374 = vmatpush.msra.mxu0 0.0
        %v1375 = vand.u32 %v299, 4294901760
        %v1376 = vsub.f32 %v299, %v1375
        %1377 = vmatpush.msra.mxu0 %v1376
        %v1378 = vand.u32 %v298, 4294901760
        %v1379 = vsub.f32 %v298, %v1378
        %1380 = vmatpush.msra.mxu0 %v1379
        %v1381 = vand.u32 %v1286, 4294901760
        %v1382 = vsub.f32 %v1286, %v1381
        %1383 = vmatmul.f32.gmra.mxu0 %v1382
        %v1384 = vpop.f32.mrf.mxu0
        %v1385 = vadd.f32 %v1355, %v1384
        %v1386 = vand.u32 %v1289, 4294901760
        %v1387 = vsub.f32 %v1289, %v1386
        %1388 = vmatmul.f32.gmra.mxu0 %v1387
        %v1389 = vpop.f32.mrf.mxu0
        %v1390 = vadd.f32 %v1359, %v1389
        %1391 = vdwg.mxu0
        %1392 = vmatpush.msra.mxu0 0.0
        %1393 = vmatpush.msra.mxu0 0.0
        %1394 = vmatpush.msra.mxu0 0.0
        %1395 = vmatpush.msra.mxu0 0.0
        %1396 = vmatpush.msra.mxu0 0.0
        %1397 = vmatpush.msra.mxu0 0.0
        %1398 = vmatpush.msra.mxu0 0.0
        %1399 = vmatpush.msra.mxu0 0.0
        %1400 = vmatpush.msra.mxu0 0.0
        %1401 = vmatpush.msra.mxu0 0.0
        %1402 = vmatpush.msra.mxu0 0.0
        %1403 = vmatpush.msra.mxu0 0.0
        %1404 = vmatpush.msra.mxu0 0.0
        %1405 = vmatpush.msra.mxu0 0.0
        %v1406 = vand.u32 %v299, 4294901760
        %1407 = vmatpush.msra.mxu0 %v1406
        %v1408 = vand.u32 %v298, 4294901760
        %1409 = vmatpush.msra.mxu0 %v1408
        %v1410 = vand.u32 %v1286, 4294901760
        %v1411 = vsub.f32 %v1286, %v1410
        %v1412 = vand.u32 %v1411, 4294901760
        %1413 = vmatmul.f32.gmra.mxu0 %v1412
        %v1414 = vpop.f32.mrf.mxu0
        %v1415 = vadd.f32 %v1385, %v1414
        %v1416 = vand.u32 %v1289, 4294901760
        %v1417 = vsub.f32 %v1289, %v1416
        %v1418 = vand.u32 %v1417, 4294901760
        %1419 = vmatmul.f32.gmra.mxu0 %v1418
        %v1420 = vpop.f32.mrf.mxu0
        %v1421 = vadd.f32 %v1390, %v1420
        %1422 = vdwg.mxu0
        %1423 = vmatpush.msra.mxu0 0.0
        %1424 = vmatpush.msra.mxu0 0.0
        %1425 = vmatpush.msra.mxu0 0.0
        %1426 = vmatpush.msra.mxu0 0.0
        %1427 = vmatpush.msra.mxu0 0.0
        %1428 = vmatpush.msra.mxu0 0.0
        %1429 = vmatpush.msra.mxu0 0.0
        %1430 = vmatpush.msra.mxu0 0.0
        %1431 = vmatpush.msra.mxu0 0.0
        %1432 = vmatpush.msra.mxu0 0.0
        %1433 = vmatpush.msra.mxu0 0.0
        %1434 = vmatpush.msra.mxu0 0.0
        %1435 = vmatpush.msra.mxu0 0.0
        %1436 = vmatpush.msra.mxu0 0.0
        %v1437 = vand.u32 %v299, 4294901760
        %v1438 = vsub.f32 %v299, %v1437
        %v1439 = vand.u32 %v1438, 4294901760
        %1440 = vmatpush.msra.mxu0 %v1439
        %v1441 = vand.u32 %v298, 4294901760
        %v1442 = vsub.f32 %v298, %v1441
        %v1443 = vand.u32 %v1442, 4294901760
        %1444 = vmatpush.msra.mxu0 %v1443
        %v1445 = vand.u32 %v1286, 4294901760
        %1446 = vmatmul.f32.gmra.mxu0 %v1445
        %v1447 = vpop.f32.mrf.mxu0
        %v1448 = vadd.f32 %v1415, %v1447
        %v1449 = vand.u32 %v1289, 4294901760
        %1450 = vmatmul.f32.gmra.mxu0 %v1449
        %v1451 = vpop.f32.mrf.mxu0
        %v1452 = vadd.f32 %v1421, %v1451
        %1453 = vdwg.mxu0
        %1454 = vmatpush.msra.mxu0 0.0
        %1455 = vmatpush.msra.mxu0 0.0
        %1456 = vmatpush.msra.mxu0 0.0
        %1457 = vmatpush.msra.mxu0 0.0
        %1458 = vmatpush.msra.mxu0 0.0
        %1459 = vmatpush.msra.mxu0 0.0
        %1460 = vmatpush.msra.mxu0 0.0
        %1461 = vmatpush.msra.mxu0 0.0
        %1462 = vmatpush.msra.mxu0 0.0
        %1463 = vmatpush.msra.mxu0 0.0
        %1464 = vmatpush.msra.mxu0 0.0
        %1465 = vmatpush.msra.mxu0 0.0
        %1466 = vmatpush.msra.mxu0 0.0
        %1467 = vmatpush.msra.mxu0 0.0
        %v1468 = vand.u32 %v299, 4294901760
        %1469 = vmatpush.msra.mxu0 %v1468
        %v1470 = vand.u32 %v298, 4294901760
        %1471 = vmatpush.msra.mxu0 %v1470
        %v1472 = vand.u32 %v1286, 4294901760
        %1473 = vmatmul.f32.gmra.mxu0 %v1472
        %v1474 = vpop.f32.mrf.mxu0
        %v1475 = vadd.f32 %v1448, %v1474
        %v1476 = vand.u32 %v1289, 4294901760
        %1477 = vmatmul.f32.gmra.mxu0 %v1476
        %v1478 = vpop.f32.mrf.mxu0
        %v1479 = vadd.f32 %v1452, %v1478
        %1480 = vdwg.mxu0
        %1481 = vmatpush.msra.mxu0 0.0
        %1482 = vmatpush.msra.mxu0 0.0
        %1483 = vmatpush.msra.mxu0 0.0
        %1484 = vmatpush.msra.mxu0 0.0
        %1485 = vmatpush.msra.mxu0 0.0
        %1486 = vmatpush.msra.mxu0 0.0
        %1487 = vmatpush.msra.mxu0 0.0
        %1488 = vmatpush.msra.mxu0 0.0
        %1489 = vmatpush.msra.mxu0 0.0
        %1490 = vmatpush.msra.mxu0 0.0
        %1491 = vmatpush.msra.mxu0 0.0
        %1492 = vmatpush.msra.mxu0 0.0
        %1493 = vmatpush.msra.mxu0 0.0
        %1494 = vmatpush.msra.mxu0 0.0
        %v1495 = vand.u32 %v1479, 4294901760
        %1496 = vmatpush.msra.mxu0 %v1495
        %v1497 = vand.u32 %v1475, 4294901760
        %1498 = vmatpush.msra.mxu0 %v1497
        %v1499 = vand.u32 %v504, 4294901760
        %v1500 = vsub.f32 %v504, %v1499
        %v1501 = vand.u32 %v1500, 4294901760
        %v1502 = vsub.f32 %v1500, %v1501
        %v1503 = vand.u32 %v1502, 4294901760
        %1504 = vmatmul.f32.gmra.mxu0 %v1503
        %v1505 = vpop.f32.mrf.mxu0
        %v1506 = vadd.f32 0.0, %v1505
        %v1507 = vand.u32 %v507, 4294901760
        %v1508 = vsub.f32 %v507, %v1507
        %v1509 = vand.u32 %v1508, 4294901760
        %v1510 = vsub.f32 %v1508, %v1509
        %v1511 = vand.u32 %v1510, 4294901760
        %1512 = vmatmul.f32.gmra.mxu0 %v1511
        %v1513 = vpop.f32.mrf.mxu0
        %v1514 = vadd.f32 0.0, %v1513
        %1515 = vdwg.mxu0
        %1516 = vmatpush.msra.mxu0 0.0
        %1517 = vmatpush.msra.mxu0 0.0
        %1518 = vmatpush.msra.mxu0 0.0
        %1519 = vmatpush.msra.mxu0 0.0
        %1520 = vmatpush.msra.mxu0 0.0
        %1521 = vmatpush.msra.mxu0 0.0
        %1522 = vmatpush.msra.mxu0 0.0
        %1523 = vmatpush.msra.mxu0 0.0
        %1524 = vmatpush.msra.mxu0 0.0
        %1525 = vmatpush.msra.mxu0 0.0
        %1526 = vmatpush.msra.mxu0 0.0
        %1527 = vmatpush.msra.mxu0 0.0
        %1528 = vmatpush.msra.mxu0 0.0
        %1529 = vmatpush.msra.mxu0 0.0
        %v1530 = vand.u32 %v1479, 4294901760
        %v1531 = vsub.f32 %v1479, %v1530
        %v1532 = vand.u32 %v1531, 4294901760
        %v1533 = vsub.f32 %v1531, %v1532
        %v1534 = vand.u32 %v1533, 4294901760
        %1535 = vmatpush.msra.mxu0 %v1534
        %v1536 = vand.u32 %v1475, 4294901760
        %v1537 = vsub.f32 %v1475, %v1536
        %v1538 = vand.u32 %v1537, 4294901760
        %v1539 = vsub.f32 %v1537, %v1538
        %v1540 = vand.u32 %v1539, 4294901760
        %1541 = vmatpush.msra.mxu0 %v1540
        %v1542 = vand.u32 %v504, 4294901760
        %1543 = vmatmul.f32.gmra.mxu0 %v1542
        %v1544 = vpop.f32.mrf.mxu0
        %v1545 = vadd.f32 %v1506, %v1544
        %v1546 = vand.u32 %v507, 4294901760
        %1547 = vmatmul.f32.gmra.mxu0 %v1546
        %v1548 = vpop.f32.mrf.mxu0
        %v1549 = vadd.f32 %v1514, %v1548
        %1550 = vdwg.mxu0
        %1551 = vmatpush.msra.mxu0 0.0
        %1552 = vmatpush.msra.mxu0 0.0
        %1553 = vmatpush.msra.mxu0 0.0
        %1554 = vmatpush.msra.mxu0 0.0
        %1555 = vmatpush.msra.mxu0 0.0
        %1556 = vmatpush.msra.mxu0 0.0
        %1557 = vmatpush.msra.mxu0 0.0
        %1558 = vmatpush.msra.mxu0 0.0
        %1559 = vmatpush.msra.mxu0 0.0
        %1560 = vmatpush.msra.mxu0 0.0
        %1561 = vmatpush.msra.mxu0 0.0
        %1562 = vmatpush.msra.mxu0 0.0
        %1563 = vmatpush.msra.mxu0 0.0
        %1564 = vmatpush.msra.mxu0 0.0
        %v1565 = vand.u32 %v1479, 4294901760
        %v1566 = vsub.f32 %v1479, %v1565
        %1567 = vmatpush.msra.mxu0 %v1566
        %v1568 = vand.u32 %v1475, 4294901760
        %v1569 = vsub.f32 %v1475, %v1568
        %1570 = vmatpush.msra.mxu0 %v1569
        %v1571 = vand.u32 %v504, 4294901760
        %v1572 = vsub.f32 %v504, %v1571
        %1573 = vmatmul.f32.gmra.mxu0 %v1572
        %v1574 = vpop.f32.mrf.mxu0
        %v1575 = vadd.f32 %v1545, %v1574
        %v1576 = vand.u32 %v507, 4294901760
        %v1577 = vsub.f32 %v507, %v1576
        %1578 = vmatmul.f32.gmra.mxu0 %v1577
        %v1579 = vpop.f32.mrf.mxu0
        %v1580 = vadd.f32 %v1549, %v1579
        %1581 = vdwg.mxu0
        %1582 = vmatpush.msra.mxu0 0.0
        %1583 = vmatpush.msra.mxu0 0.0
        %1584 = vmatpush.msra.mxu0 0.0
        %1585 = vmatpush.msra.mxu0 0.0
        %1586 = vmatpush.msra.mxu0 0.0
        %1587 = vmatpush.msra.mxu0 0.0
        %1588 = vmatpush.msra.mxu0 0.0
        %1589 = vmatpush.msra.mxu0 0.0
        %1590 = vmatpush.msra.mxu0 0.0
        %1591 = vmatpush.msra.mxu0 0.0
        %1592 = vmatpush.msra.mxu0 0.0
        %1593 = vmatpush.msra.mxu0 0.0
        %1594 = vmatpush.msra.mxu0 0.0
        %1595 = vmatpush.msra.mxu0 0.0
        %v1596 = vand.u32 %v1479, 4294901760
        %1597 = vmatpush.msra.mxu0 %v1596
        %v1598 = vand.u32 %v1475, 4294901760
        %1599 = vmatpush.msra.mxu0 %v1598
        %v1600 = vand.u32 %v504, 4294901760
        %v1601 = vsub.f32 %v504, %v1600
        %v1602 = vand.u32 %v1601, 4294901760
        %1603 = vmatmul.f32.gmra.mxu0 %v1602
        %v1604 = vpop.f32.mrf.mxu0
        %v1605 = vadd.f32 %v1575, %v1604
        %v1606 = vand.u32 %v507, 4294901760
        %v1607 = vsub.f32 %v507, %v1606
        %v1608 = vand.u32 %v1607, 4294901760
        %1609 = vmatmul.f32.gmra.mxu0 %v1608
        %v1610 = vpop.f32.mrf.mxu0
        %v1611 = vadd.f32 %v1580, %v1610
        %1612 = vdwg.mxu0
        %1613 = vmatpush.msra.mxu0 0.0
        %1614 = vmatpush.msra.mxu0 0.0
        %1615 = vmatpush.msra.mxu0 0.0
        %1616 = vmatpush.msra.mxu0 0.0
        %1617 = vmatpush.msra.mxu0 0.0
        %1618 = vmatpush.msra.mxu0 0.0
        %1619 = vmatpush.msra.mxu0 0.0
        %1620 = vmatpush.msra.mxu0 0.0
        %1621 = vmatpush.msra.mxu0 0.0
        %1622 = vmatpush.msra.mxu0 0.0
        %1623 = vmatpush.msra.mxu0 0.0
        %1624 = vmatpush.msra.mxu0 0.0
        %1625 = vmatpush.msra.mxu0 0.0
        %1626 = vmatpush.msra.mxu0 0.0
        %v1627 = vand.u32 %v1479, 4294901760
        %v1628 = vsub.f32 %v1479, %v1627
        %v1629 = vand.u32 %v1628, 4294901760
        %1630 = vmatpush.msra.mxu0 %v1629
        %v1631 = vand.u32 %v1475, 4294901760
        %v1632 = vsub.f32 %v1475, %v1631
        %v1633 = vand.u32 %v1632, 4294901760
        %1634 = vmatpush.msra.mxu0 %v1633
        %v1635 = vand.u32 %v504, 4294901760
        %1636 = vmatmul.f32.gmra.mxu0 %v1635
        %v1637 = vpop.f32.mrf.mxu0
        %v1638 = vadd.f32 %v1605, %v1637
        %v1639 = vand.u32 %v507, 4294901760
        %1640 = vmatmul.f32.gmra.mxu0 %v1639
        %v1641 = vpop.f32.mrf.mxu0
        %v1642 = vadd.f32 %v1611, %v1641
        %1643 = vdwg.mxu0
        %1644 = vmatpush.msra.mxu0 0.0
        %1645 = vmatpush.msra.mxu0 0.0
        %1646 = vmatpush.msra.mxu0 0.0
        %1647 = vmatpush.msra.mxu0 0.0
        %1648 = vmatpush.msra.mxu0 0.0
        %1649 = vmatpush.msra.mxu0 0.0
        %1650 = vmatpush.msra.mxu0 0.0
        %1651 = vmatpush.msra.mxu0 0.0
        %1652 = vmatpush.msra.mxu0 0.0
        %1653 = vmatpush.msra.mxu0 0.0
        %1654 = vmatpush.msra.mxu0 0.0
        %1655 = vmatpush.msra.mxu0 0.0
        %1656 = vmatpush.msra.mxu0 0.0
        %1657 = vmatpush.msra.mxu0 0.0
        %v1658 = vand.u32 %v1479, 4294901760
        %1659 = vmatpush.msra.mxu0 %v1658
        %v1660 = vand.u32 %v1475, 4294901760
        %1661 = vmatpush.msra.mxu0 %v1660
        %v1662 = vand.u32 %v504, 4294901760
        %1663 = vmatmul.f32.gmra.mxu0 %v1662
        %v1664 = vpop.f32.mrf.mxu0
        %v1665 = vadd.f32 %v1638, %v1664
        %v1666 = vand.u32 %v507, 4294901760
        %1667 = vmatmul.f32.gmra.mxu0 %v1666
        %v1668 = vpop.f32.mrf.mxu0
        %v1669 = vadd.f32 %v1642, %v1668
        %1670 = vdwg.mxu0
        %v1671 = vmul.f32 %v302, %v304
        %v1672 = vmul.f32 %v303, %v305
        %v1674 = vsel %vm306, %v1671, 0
        %v1677 = vsel %vm306, %v1672, 0
        %1679 = vmatpush.msra.mxu0 0.0
        %1680 = vmatpush.msra.mxu0 0.0
        %1681 = vmatpush.msra.mxu0 0.0
        %1682 = vmatpush.msra.mxu0 0.0
        %1683 = vmatpush.msra.mxu0 0.0
        %1684 = vmatpush.msra.mxu0 0.0
        %1685 = vmatpush.msra.mxu0 0.0
        %1686 = vmatpush.msra.mxu0 0.0
        %1687 = vmatpush.msra.mxu0 0.0
        %1688 = vmatpush.msra.mxu0 0.0
        %1689 = vmatpush.msra.mxu0 0.0
        %1690 = vmatpush.msra.mxu0 0.0
        %1691 = vmatpush.msra.mxu0 0.0
        %1692 = vmatpush.msra.mxu0 0.0
        %v1693 = vand.u32 %v299, 4294901760
        %1694 = vmatpush.msra.mxu0 %v1693
        %v1695 = vand.u32 %v298, 4294901760
        %1696 = vmatpush.msra.mxu0 %v1695
        %v1697 = vand.u32 %v1674, 4294901760
        %v1698 = vsub.f32 %v1674, %v1697
        %v1699 = vand.u32 %v1698, 4294901760
        %v1700 = vsub.f32 %v1698, %v1699
        %v1701 = vand.u32 %v1700, 4294901760
        %1702 = vmatmul.f32.gmra.mxu0 %v1701
        %v1703 = vpop.f32.mrf.mxu0
        %v1704 = vadd.f32 0.0, %v1703
        %v1705 = vand.u32 %v1677, 4294901760
        %v1706 = vsub.f32 %v1677, %v1705
        %v1707 = vand.u32 %v1706, 4294901760
        %v1708 = vsub.f32 %v1706, %v1707
        %v1709 = vand.u32 %v1708, 4294901760
        %1710 = vmatmul.f32.gmra.mxu0 %v1709
        %v1711 = vpop.f32.mrf.mxu0
        %v1712 = vadd.f32 0.0, %v1711
        %1713 = vdwg.mxu0
        %1714 = vmatpush.msra.mxu0 0.0
        %1715 = vmatpush.msra.mxu0 0.0
        %1716 = vmatpush.msra.mxu0 0.0
        %1717 = vmatpush.msra.mxu0 0.0
        %1718 = vmatpush.msra.mxu0 0.0
        %1719 = vmatpush.msra.mxu0 0.0
        %1720 = vmatpush.msra.mxu0 0.0
        %1721 = vmatpush.msra.mxu0 0.0
        %1722 = vmatpush.msra.mxu0 0.0
        %1723 = vmatpush.msra.mxu0 0.0
        %1724 = vmatpush.msra.mxu0 0.0
        %1725 = vmatpush.msra.mxu0 0.0
        %1726 = vmatpush.msra.mxu0 0.0
        %1727 = vmatpush.msra.mxu0 0.0
        %v1728 = vand.u32 %v299, 4294901760
        %v1729 = vsub.f32 %v299, %v1728
        %v1730 = vand.u32 %v1729, 4294901760
        %v1731 = vsub.f32 %v1729, %v1730
        %v1732 = vand.u32 %v1731, 4294901760
        %1733 = vmatpush.msra.mxu0 %v1732
        %v1734 = vand.u32 %v298, 4294901760
        %v1735 = vsub.f32 %v298, %v1734
        %v1736 = vand.u32 %v1735, 4294901760
        %v1737 = vsub.f32 %v1735, %v1736
        %v1738 = vand.u32 %v1737, 4294901760
        %1739 = vmatpush.msra.mxu0 %v1738
        %v1740 = vand.u32 %v1674, 4294901760
        %1741 = vmatmul.f32.gmra.mxu0 %v1740
        %v1742 = vpop.f32.mrf.mxu0
        %v1743 = vadd.f32 %v1704, %v1742
        %v1744 = vand.u32 %v1677, 4294901760
        %1745 = vmatmul.f32.gmra.mxu0 %v1744
        %v1746 = vpop.f32.mrf.mxu0
        %v1747 = vadd.f32 %v1712, %v1746
        %1748 = vdwg.mxu0
        %1749 = vmatpush.msra.mxu0 0.0
        %1750 = vmatpush.msra.mxu0 0.0
        %1751 = vmatpush.msra.mxu0 0.0
        %1752 = vmatpush.msra.mxu0 0.0
        %1753 = vmatpush.msra.mxu0 0.0
        %1754 = vmatpush.msra.mxu0 0.0
        %1755 = vmatpush.msra.mxu0 0.0
        %1756 = vmatpush.msra.mxu0 0.0
        %1757 = vmatpush.msra.mxu0 0.0
        %1758 = vmatpush.msra.mxu0 0.0
        %1759 = vmatpush.msra.mxu0 0.0
        %1760 = vmatpush.msra.mxu0 0.0
        %1761 = vmatpush.msra.mxu0 0.0
        %1762 = vmatpush.msra.mxu0 0.0
        %v1763 = vand.u32 %v299, 4294901760
        %v1764 = vsub.f32 %v299, %v1763
        %1765 = vmatpush.msra.mxu0 %v1764
        %v1766 = vand.u32 %v298, 4294901760
        %v1767 = vsub.f32 %v298, %v1766
        %1768 = vmatpush.msra.mxu0 %v1767
        %v1769 = vand.u32 %v1674, 4294901760
        %v1770 = vsub.f32 %v1674, %v1769
        %1771 = vmatmul.f32.gmra.mxu0 %v1770
        %v1772 = vpop.f32.mrf.mxu0
        %v1773 = vadd.f32 %v1743, %v1772
        %v1774 = vand.u32 %v1677, 4294901760
        %v1775 = vsub.f32 %v1677, %v1774
        %1776 = vmatmul.f32.gmra.mxu0 %v1775
        %v1777 = vpop.f32.mrf.mxu0
        %v1778 = vadd.f32 %v1747, %v1777
        %1779 = vdwg.mxu0
        %1780 = vmatpush.msra.mxu0 0.0
        %1781 = vmatpush.msra.mxu0 0.0
        %1782 = vmatpush.msra.mxu0 0.0
        %1783 = vmatpush.msra.mxu0 0.0
        %1784 = vmatpush.msra.mxu0 0.0
        %1785 = vmatpush.msra.mxu0 0.0
        %1786 = vmatpush.msra.mxu0 0.0
        %1787 = vmatpush.msra.mxu0 0.0
        %1788 = vmatpush.msra.mxu0 0.0
        %1789 = vmatpush.msra.mxu0 0.0
        %1790 = vmatpush.msra.mxu0 0.0
        %1791 = vmatpush.msra.mxu0 0.0
        %1792 = vmatpush.msra.mxu0 0.0
        %1793 = vmatpush.msra.mxu0 0.0
        %v1794 = vand.u32 %v299, 4294901760
        %1795 = vmatpush.msra.mxu0 %v1794
        %v1796 = vand.u32 %v298, 4294901760
        %1797 = vmatpush.msra.mxu0 %v1796
        %v1798 = vand.u32 %v1674, 4294901760
        %v1799 = vsub.f32 %v1674, %v1798
        %v1800 = vand.u32 %v1799, 4294901760
        %1801 = vmatmul.f32.gmra.mxu0 %v1800
        %v1802 = vpop.f32.mrf.mxu0
        %v1803 = vadd.f32 %v1773, %v1802
        %v1804 = vand.u32 %v1677, 4294901760
        %v1805 = vsub.f32 %v1677, %v1804
        %v1806 = vand.u32 %v1805, 4294901760
        %1807 = vmatmul.f32.gmra.mxu0 %v1806
        %v1808 = vpop.f32.mrf.mxu0
        %v1809 = vadd.f32 %v1778, %v1808
        %1810 = vdwg.mxu0
        %1811 = vmatpush.msra.mxu0 0.0
        %1812 = vmatpush.msra.mxu0 0.0
        %1813 = vmatpush.msra.mxu0 0.0
        %1814 = vmatpush.msra.mxu0 0.0
        %1815 = vmatpush.msra.mxu0 0.0
        %1816 = vmatpush.msra.mxu0 0.0
        %1817 = vmatpush.msra.mxu0 0.0
        %1818 = vmatpush.msra.mxu0 0.0
        %1819 = vmatpush.msra.mxu0 0.0
        %1820 = vmatpush.msra.mxu0 0.0
        %1821 = vmatpush.msra.mxu0 0.0
        %1822 = vmatpush.msra.mxu0 0.0
        %1823 = vmatpush.msra.mxu0 0.0
        %1824 = vmatpush.msra.mxu0 0.0
        %v1825 = vand.u32 %v299, 4294901760
        %v1826 = vsub.f32 %v299, %v1825
        %v1827 = vand.u32 %v1826, 4294901760
        %1828 = vmatpush.msra.mxu0 %v1827
        %v1829 = vand.u32 %v298, 4294901760
        %v1830 = vsub.f32 %v298, %v1829
        %v1831 = vand.u32 %v1830, 4294901760
        %1832 = vmatpush.msra.mxu0 %v1831
        %v1833 = vand.u32 %v1674, 4294901760
        %1834 = vmatmul.f32.gmra.mxu0 %v1833
        %v1835 = vpop.f32.mrf.mxu0
        %v1836 = vadd.f32 %v1803, %v1835
        %v1837 = vand.u32 %v1677, 4294901760
        %1838 = vmatmul.f32.gmra.mxu0 %v1837
        %v1839 = vpop.f32.mrf.mxu0
        %v1840 = vadd.f32 %v1809, %v1839
        %1841 = vdwg.mxu0
        %1842 = vmatpush.msra.mxu0 0.0
        %1843 = vmatpush.msra.mxu0 0.0
        %1844 = vmatpush.msra.mxu0 0.0
        %1845 = vmatpush.msra.mxu0 0.0
        %1846 = vmatpush.msra.mxu0 0.0
        %1847 = vmatpush.msra.mxu0 0.0
        %1848 = vmatpush.msra.mxu0 0.0
        %1849 = vmatpush.msra.mxu0 0.0
        %1850 = vmatpush.msra.mxu0 0.0
        %1851 = vmatpush.msra.mxu0 0.0
        %1852 = vmatpush.msra.mxu0 0.0
        %1853 = vmatpush.msra.mxu0 0.0
        %1854 = vmatpush.msra.mxu0 0.0
        %1855 = vmatpush.msra.mxu0 0.0
        %v1856 = vand.u32 %v299, 4294901760
        %1857 = vmatpush.msra.mxu0 %v1856
        %v1858 = vand.u32 %v298, 4294901760
        %1859 = vmatpush.msra.mxu0 %v1858
        %v1860 = vand.u32 %v1674, 4294901760
        %1861 = vmatmul.f32.gmra.mxu0 %v1860
        %v1862 = vpop.f32.mrf.mxu0
        %v1863 = vadd.f32 %v1836, %v1862
        %v1864 = vand.u32 %v1677, 4294901760
        %1865 = vmatmul.f32.gmra.mxu0 %v1864
        %v1866 = vpop.f32.mrf.mxu0
        %v1867 = vadd.f32 %v1840, %v1866
        %1868 = vdwg.mxu0
        %1869 = vmatpush.msra.mxu0 0.0
        %1870 = vmatpush.msra.mxu0 0.0
        %1871 = vmatpush.msra.mxu0 0.0
        %1872 = vmatpush.msra.mxu0 0.0
        %1873 = vmatpush.msra.mxu0 0.0
        %1874 = vmatpush.msra.mxu0 0.0
        %1875 = vmatpush.msra.mxu0 0.0
        %1876 = vmatpush.msra.mxu0 0.0
        %1877 = vmatpush.msra.mxu0 0.0
        %1878 = vmatpush.msra.mxu0 0.0
        %1879 = vmatpush.msra.mxu0 0.0
        %1880 = vmatpush.msra.mxu0 0.0
        %1881 = vmatpush.msra.mxu0 0.0
        %1882 = vmatpush.msra.mxu0 0.0
        %v1883 = vand.u32 %v1867, 4294901760
        %1884 = vmatpush.msra.mxu0 %v1883
        %v1885 = vand.u32 %v1863, 4294901760
        %1886 = vmatpush.msra.mxu0 %v1885
        %v1887 = vand.u32 %v504, 4294901760
        %v1888 = vsub.f32 %v504, %v1887
        %v1889 = vand.u32 %v1888, 4294901760
        %v1890 = vsub.f32 %v1888, %v1889
        %v1891 = vand.u32 %v1890, 4294901760
        %1892 = vmatmul.f32.gmra.mxu0 %v1891
        %v1893 = vpop.f32.mrf.mxu0
        %v1894 = vadd.f32 0.0, %v1893
        %v1895 = vand.u32 %v507, 4294901760
        %v1896 = vsub.f32 %v507, %v1895
        %v1897 = vand.u32 %v1896, 4294901760
        %v1898 = vsub.f32 %v1896, %v1897
        %v1899 = vand.u32 %v1898, 4294901760
        %1900 = vmatmul.f32.gmra.mxu0 %v1899
        %v1901 = vpop.f32.mrf.mxu0
        %v1902 = vadd.f32 0.0, %v1901
        %1903 = vdwg.mxu0
        %1904 = vmatpush.msra.mxu0 0.0
        %1905 = vmatpush.msra.mxu0 0.0
        %1906 = vmatpush.msra.mxu0 0.0
        %1907 = vmatpush.msra.mxu0 0.0
        %1908 = vmatpush.msra.mxu0 0.0
        %1909 = vmatpush.msra.mxu0 0.0
        %1910 = vmatpush.msra.mxu0 0.0
        %1911 = vmatpush.msra.mxu0 0.0
        %1912 = vmatpush.msra.mxu0 0.0
        %1913 = vmatpush.msra.mxu0 0.0
        %1914 = vmatpush.msra.mxu0 0.0
        %1915 = vmatpush.msra.mxu0 0.0
        %1916 = vmatpush.msra.mxu0 0.0
        %1917 = vmatpush.msra.mxu0 0.0
        %v1918 = vand.u32 %v1867, 4294901760
        %v1919 = vsub.f32 %v1867, %v1918
        %v1920 = vand.u32 %v1919, 4294901760
        %v1921 = vsub.f32 %v1919, %v1920
        %v1922 = vand.u32 %v1921, 4294901760
        %1923 = vmatpush.msra.mxu0 %v1922
        %v1924 = vand.u32 %v1863, 4294901760
        %v1925 = vsub.f32 %v1863, %v1924
        %v1926 = vand.u32 %v1925, 4294901760
        %v1927 = vsub.f32 %v1925, %v1926
        %v1928 = vand.u32 %v1927, 4294901760
        %1929 = vmatpush.msra.mxu0 %v1928
        %v1930 = vand.u32 %v504, 4294901760
        %1931 = vmatmul.f32.gmra.mxu0 %v1930
        %v1932 = vpop.f32.mrf.mxu0
        %v1933 = vadd.f32 %v1894, %v1932
        %v1934 = vand.u32 %v507, 4294901760
        %1935 = vmatmul.f32.gmra.mxu0 %v1934
        %v1936 = vpop.f32.mrf.mxu0
        %v1937 = vadd.f32 %v1902, %v1936
        %1938 = vdwg.mxu0
        %1939 = vmatpush.msra.mxu0 0.0
        %1940 = vmatpush.msra.mxu0 0.0
        %1941 = vmatpush.msra.mxu0 0.0
        %1942 = vmatpush.msra.mxu0 0.0
        %1943 = vmatpush.msra.mxu0 0.0
        %1944 = vmatpush.msra.mxu0 0.0
        %1945 = vmatpush.msra.mxu0 0.0
        %1946 = vmatpush.msra.mxu0 0.0
        %1947 = vmatpush.msra.mxu0 0.0
        %1948 = vmatpush.msra.mxu0 0.0
        %1949 = vmatpush.msra.mxu0 0.0
        %1950 = vmatpush.msra.mxu0 0.0
        %1951 = vmatpush.msra.mxu0 0.0
        %1952 = vmatpush.msra.mxu0 0.0
        %v1953 = vand.u32 %v1867, 4294901760
        %v1954 = vsub.f32 %v1867, %v1953
        %1955 = vmatpush.msra.mxu0 %v1954
        %v1956 = vand.u32 %v1863, 4294901760
        %v1957 = vsub.f32 %v1863, %v1956
        %1958 = vmatpush.msra.mxu0 %v1957
        %v1959 = vand.u32 %v504, 4294901760
        %v1960 = vsub.f32 %v504, %v1959
        %1961 = vmatmul.f32.gmra.mxu0 %v1960
        %v1962 = vpop.f32.mrf.mxu0
        %v1963 = vadd.f32 %v1933, %v1962
        %v1964 = vand.u32 %v507, 4294901760
        %v1965 = vsub.f32 %v507, %v1964
        %1966 = vmatmul.f32.gmra.mxu0 %v1965
        %v1967 = vpop.f32.mrf.mxu0
        %v1968 = vadd.f32 %v1937, %v1967
        %1969 = vdwg.mxu0
        %1970 = vmatpush.msra.mxu0 0.0
        %1971 = vmatpush.msra.mxu0 0.0
        %1972 = vmatpush.msra.mxu0 0.0
        %1973 = vmatpush.msra.mxu0 0.0
        %1974 = vmatpush.msra.mxu0 0.0
        %1975 = vmatpush.msra.mxu0 0.0
        %1976 = vmatpush.msra.mxu0 0.0
        %1977 = vmatpush.msra.mxu0 0.0
        %1978 = vmatpush.msra.mxu0 0.0
        %1979 = vmatpush.msra.mxu0 0.0
        %1980 = vmatpush.msra.mxu0 0.0
        %1981 = vmatpush.msra.mxu0 0.0
        %1982 = vmatpush.msra.mxu0 0.0
        %1983 = vmatpush.msra.mxu0 0.0
        %v1984 = vand.u32 %v1867, 4294901760
        %1985 = vmatpush.msra.mxu0 %v1984
        %v1986 = vand.u32 %v1863, 4294901760
        %1987 = vmatpush.msra.mxu0 %v1986
        %v1988 = vand.u32 %v504, 4294901760
        %v1989 = vsub.f32 %v504, %v1988
        %v1990 = vand.u32 %v1989, 4294901760
        %1991 = vmatmul.f32.gmra.mxu0 %v1990
        %v1992 = vpop.f32.mrf.mxu0
        %v1993 = vadd.f32 %v1963, %v1992
        %v1994 = vand.u32 %v507, 4294901760
        %v1995 = vsub.f32 %v507, %v1994
        %v1996 = vand.u32 %v1995, 4294901760
        %1997 = vmatmul.f32.gmra.mxu0 %v1996
        %v1998 = vpop.f32.mrf.mxu0
        %v1999 = vadd.f32 %v1968, %v1998
        %2000 = vdwg.mxu0
        %2001 = vmatpush.msra.mxu0 0.0
        %2002 = vmatpush.msra.mxu0 0.0
        %2003 = vmatpush.msra.mxu0 0.0
        %2004 = vmatpush.msra.mxu0 0.0
        %2005 = vmatpush.msra.mxu0 0.0
        %2006 = vmatpush.msra.mxu0 0.0
        %2007 = vmatpush.msra.mxu0 0.0
        %2008 = vmatpush.msra.mxu0 0.0
        %2009 = vmatpush.msra.mxu0 0.0
        %2010 = vmatpush.msra.mxu0 0.0
        %2011 = vmatpush.msra.mxu0 0.0
        %2012 = vmatpush.msra.mxu0 0.0
        %2013 = vmatpush.msra.mxu0 0.0
        %2014 = vmatpush.msra.mxu0 0.0
        %v2015 = vand.u32 %v1867, 4294901760
        %v2016 = vsub.f32 %v1867, %v2015
        %v2017 = vand.u32 %v2016, 4294901760
        %2018 = vmatpush.msra.mxu0 %v2017
        %v2019 = vand.u32 %v1863, 4294901760
        %v2020 = vsub.f32 %v1863, %v2019
        %v2021 = vand.u32 %v2020, 4294901760
        %2022 = vmatpush.msra.mxu0 %v2021
        %v2023 = vand.u32 %v504, 4294901760
        %2024 = vmatmul.f32.gmra.mxu0 %v2023
        %v2025 = vpop.f32.mrf.mxu0
        %v2026 = vadd.f32 %v1993, %v2025
        %v2027 = vand.u32 %v507, 4294901760
        %2028 = vmatmul.f32.gmra.mxu0 %v2027
        %v2029 = vpop.f32.mrf.mxu0
        %v2030 = vadd.f32 %v1999, %v2029
        %2031 = vdwg.mxu0
        %2032 = vmatpush.msra.mxu0 0.0
        %2033 = vmatpush.msra.mxu0 0.0
        %2034 = vmatpush.msra.mxu0 0.0
        %2035 = vmatpush.msra.mxu0 0.0
        %2036 = vmatpush.msra.mxu0 0.0
        %2037 = vmatpush.msra.mxu0 0.0
        %2038 = vmatpush.msra.mxu0 0.0
        %2039 = vmatpush.msra.mxu0 0.0
        %2040 = vmatpush.msra.mxu0 0.0
        %2041 = vmatpush.msra.mxu0 0.0
        %2042 = vmatpush.msra.mxu0 0.0
        %2043 = vmatpush.msra.mxu0 0.0
        %2044 = vmatpush.msra.mxu0 0.0
        %2045 = vmatpush.msra.mxu0 0.0
        %v2046 = vand.u32 %v1867, 4294901760
        %2047 = vmatpush.msra.mxu0 %v2046
        %v2048 = vand.u32 %v1863, 4294901760
        %2049 = vmatpush.msra.mxu0 %v2048
        %v2050 = vand.u32 %v504, 4294901760
        %2051 = vmatmul.f32.gmra.mxu0 %v2050
        %v2052 = vpop.f32.mrf.mxu0
        %v2053 = vadd.f32 %v2026, %v2052
        %v2054 = vand.u32 %v507, 4294901760
        %2055 = vmatmul.f32.gmra.mxu0 %v2054
        %v2056 = vpop.f32.mrf.mxu0
        %v2057 = vadd.f32 %v2030, %v2056
        %2058 = vdwg.mxu0
        %v2059 = vmul.f32 %v693, %v1079
        %v2060 = vmul.f32 %v697, %v1083
        %v2061 = vmul.f32 %v693, %v693
        %v2062 = vmul.f32 %v697, %v697
        %v2063 = vmul.f32 %v1079, %v1079
        %v2064 = vmul.f32 %v1083, %v1083
        %v2065 = vadd.f32 %v2061, %v2063
        %v2066 = vadd.f32 %v2062, %v2064
        %v2067 = vmul.f32 %v2059, 2.0
        %v2068 = vmul.f32 %v2060, 2.0
        %v2069 = vadd.f32 %v2067, 0.0081
        %v2070 = vadd.f32 %v2068, 0.0081
        %v2071 = vmul.f32 %v2053, 18.0
        %v2072 = vmul.f32 %v2057, 18.0
        %v2073 = vsub.f32 %v2071, %v2067
        %v2074 = vsub.f32 %v2072, %v2068
        %v2075 = vadd.f32 %v2073, 0.0729
        %v2076 = vadd.f32 %v2074, 0.0729
        %v2077 = vmul.f32 %v2069, %v2075
        %v2078 = vmul.f32 %v2070, %v2076
        %v2079 = vadd.f32 %v2065, 0.0081
        %v2080 = vadd.f32 %v2066, 0.0081
        %2081 = vmatpush.msra.mxu0 0.0
        %2082 = vmatpush.msra.mxu0 0.0
        %2083 = vmatpush.msra.mxu0 0.0
        %2084 = vmatpush.msra.mxu0 0.0
        %2085 = vmatpush.msra.mxu0 0.0
        %2086 = vmatpush.msra.mxu0 0.0
        %2087 = vmatpush.msra.mxu0 0.0
        %2088 = vmatpush.msra.mxu0 0.0
        %2089 = vmatpush.msra.mxu0 0.0
        %2090 = vmatpush.msra.mxu0 0.0
        %2091 = vmatpush.msra.mxu0 0.0
        %2092 = vmatpush.msra.mxu0 0.0
        %2093 = vmatpush.msra.mxu0 0.0
        %2094 = vmatpush.msra.mxu0 0.0
        %v2095 = vand.u32 %v1281, 4294901760
        %2096 = vmatpush.msra.mxu0 %v2095
        %v2097 = vand.u32 %v1277, 4294901760
        %2098 = vmatpush.msra.mxu0 %v2097
        %v2099 = vand.u32 %v504, 4294901760
        %v2100 = vsub.f32 %v504, %v2099
        %v2101 = vand.u32 %v2100, 4294901760
        %v2102 = vsub.f32 %v2100, %v2101
        %v2103 = vand.u32 %v2102, 4294901760
        %2104 = vmatmul.f32.gmra.mxu0 %v2103
        %v2105 = vpop.f32.mrf.mxu0
        %v2106 = vadd.f32 %v1665, %v2105
        %v2107 = vand.u32 %v507, 4294901760
        %v2108 = vsub.f32 %v507, %v2107
        %v2109 = vand.u32 %v2108, 4294901760
        %v2110 = vsub.f32 %v2108, %v2109
        %v2111 = vand.u32 %v2110, 4294901760
        %2112 = vmatmul.f32.gmra.mxu0 %v2111
        %v2113 = vpop.f32.mrf.mxu0
        %v2114 = vadd.f32 %v1669, %v2113
        %2115 = vdwg.mxu0
        %2116 = vmatpush.msra.mxu0 0.0
        %2117 = vmatpush.msra.mxu0 0.0
        %2118 = vmatpush.msra.mxu0 0.0
        %2119 = vmatpush.msra.mxu0 0.0
        %2120 = vmatpush.msra.mxu0 0.0
        %2121 = vmatpush.msra.mxu0 0.0
        %2122 = vmatpush.msra.mxu0 0.0
        %2123 = vmatpush.msra.mxu0 0.0
        %2124 = vmatpush.msra.mxu0 0.0
        %2125 = vmatpush.msra.mxu0 0.0
        %2126 = vmatpush.msra.mxu0 0.0
        %2127 = vmatpush.msra.mxu0 0.0
        %2128 = vmatpush.msra.mxu0 0.0
        %2129 = vmatpush.msra.mxu0 0.0
        %v2130 = vand.u32 %v1281, 4294901760
        %v2131 = vsub.f32 %v1281, %v2130
        %v2132 = vand.u32 %v2131, 4294901760
        %v2133 = vsub.f32 %v2131, %v2132
        %v2134 = vand.u32 %v2133, 4294901760
        %2135 = vmatpush.msra.mxu0 %v2134
        %v2136 = vand.u32 %v1277, 4294901760
        %v2137 = vsub.f32 %v1277, %v2136
        %v2138 = vand.u32 %v2137, 4294901760
        %v2139 = vsub.f32 %v2137, %v2138
        %v2140 = vand.u32 %v2139, 4294901760
        %2141 = vmatpush.msra.mxu0 %v2140
        %v2142 = vand.u32 %v504, 4294901760
        %2143 = vmatmul.f32.gmra.mxu0 %v2142
        %v2144 = vpop.f32.mrf.mxu0
        %v2145 = vadd.f32 %v2106, %v2144
        %v2146 = vand.u32 %v507, 4294901760
        %2147 = vmatmul.f32.gmra.mxu0 %v2146
        %v2148 = vpop.f32.mrf.mxu0
        %v2149 = vadd.f32 %v2114, %v2148
        %2150 = vdwg.mxu0
        %2151 = vmatpush.msra.mxu0 0.0
        %2152 = vmatpush.msra.mxu0 0.0
        %2153 = vmatpush.msra.mxu0 0.0
        %2154 = vmatpush.msra.mxu0 0.0
        %2155 = vmatpush.msra.mxu0 0.0
        %2156 = vmatpush.msra.mxu0 0.0
        %2157 = vmatpush.msra.mxu0 0.0
        %2158 = vmatpush.msra.mxu0 0.0
        %2159 = vmatpush.msra.mxu0 0.0
        %2160 = vmatpush.msra.mxu0 0.0
        %2161 = vmatpush.msra.mxu0 0.0
        %2162 = vmatpush.msra.mxu0 0.0
        %2163 = vmatpush.msra.mxu0 0.0
        %2164 = vmatpush.msra.mxu0 0.0
        %v2165 = vand.u32 %v1281, 4294901760
        %v2166 = vsub.f32 %v1281, %v2165
        %2167 = vmatpush.msra.mxu0 %v2166
        %v2168 = vand.u32 %v1277, 4294901760
        %v2169 = vsub.f32 %v1277, %v2168
        %2170 = vmatpush.msra.mxu0 %v2169
        %v2171 = vand.u32 %v504, 4294901760
        %v2172 = vsub.f32 %v504, %v2171
        %2173 = vmatmul.f32.gmra.mxu0 %v2172
        %v2174 = vpop.f32.mrf.mxu0
        %v2175 = vadd.f32 %v2145, %v2174
        %v2176 = vand.u32 %v507, 4294901760
        %v2177 = vsub.f32 %v507, %v2176
        %2178 = vmatmul.f32.gmra.mxu0 %v2177
        %v2179 = vpop.f32.mrf.mxu0
        %v2180 = vadd.f32 %v2149, %v2179
        %2181 = vdwg.mxu0
        %2182 = vmatpush.msra.mxu0 0.0
        %2183 = vmatpush.msra.mxu0 0.0
        %2184 = vmatpush.msra.mxu0 0.0
        %2185 = vmatpush.msra.mxu0 0.0
        %2186 = vmatpush.msra.mxu0 0.0
        %2187 = vmatpush.msra.mxu0 0.0
        %2188 = vmatpush.msra.mxu0 0.0
        %2189 = vmatpush.msra.mxu0 0.0
        %2190 = vmatpush.msra.mxu0 0.0
        %2191 = vmatpush.msra.mxu0 0.0
        %2192 = vmatpush.msra.mxu0 0.0
        %2193 = vmatpush.msra.mxu0 0.0
        %2194 = vmatpush.msra.mxu0 0.0
        %2195 = vmatpush.msra.mxu0 0.0
        %v2196 = vand.u32 %v1281, 4294901760
        %2197 = vmatpush.msra.mxu0 %v2196
        %v2198 = vand.u32 %v1277, 4294901760
        %2199 = vmatpush.msra.mxu0 %v2198
        %v2200 = vand.u32 %v504, 4294901760
        %v2201 = vsub.f32 %v504, %v2200
        %v2202 = vand.u32 %v2201, 4294901760
        %2203 = vmatmul.f32.gmra.mxu0 %v2202
        %v2204 = vpop.f32.mrf.mxu0
        %v2205 = vadd.f32 %v2175, %v2204
        %v2206 = vand.u32 %v507, 4294901760
        %v2207 = vsub.f32 %v507, %v2206
        %v2208 = vand.u32 %v2207, 4294901760
        %2209 = vmatmul.f32.gmra.mxu0 %v2208
        %v2210 = vpop.f32.mrf.mxu0
        %v2211 = vadd.f32 %v2180, %v2210
        %2212 = vdwg.mxu0
        %2213 = vmatpush.msra.mxu0 0.0
        %2214 = vmatpush.msra.mxu0 0.0
        %2215 = vmatpush.msra.mxu0 0.0
        %2216 = vmatpush.msra.mxu0 0.0
        %2217 = vmatpush.msra.mxu0 0.0
        %2218 = vmatpush.msra.mxu0 0.0
        %2219 = vmatpush.msra.mxu0 0.0
        %2220 = vmatpush.msra.mxu0 0.0
        %2221 = vmatpush.msra.mxu0 0.0
        %2222 = vmatpush.msra.mxu0 0.0
        %2223 = vmatpush.msra.mxu0 0.0
        %2224 = vmatpush.msra.mxu0 0.0
        %2225 = vmatpush.msra.mxu0 0.0
        %2226 = vmatpush.msra.mxu0 0.0
        %v2227 = vand.u32 %v1281, 4294901760
        %v2228 = vsub.f32 %v1281, %v2227
        %v2229 = vand.u32 %v2228, 4294901760
        %2230 = vmatpush.msra.mxu0 %v2229
        %v2231 = vand.u32 %v1277, 4294901760
        %v2232 = vsub.f32 %v1277, %v2231
        %v2233 = vand.u32 %v2232, 4294901760
        %2234 = vmatpush.msra.mxu0 %v2233
        %v2235 = vand.u32 %v504, 4294901760
        %2236 = vmatmul.f32.gmra.mxu0 %v2235
        %v2237 = vpop.f32.mrf.mxu0
        %v2238 = vadd.f32 %v2205, %v2237
        %v2239 = vand.u32 %v507, 4294901760
        %2240 = vmatmul.f32.gmra.mxu0 %v2239
        %v2241 = vpop.f32.mrf.mxu0
        %v2242 = vadd.f32 %v2211, %v2241
        %2243 = vdwg.mxu0
        %2244 = vmatpush.msra.mxu0 0.0
        %2245 = vmatpush.msra.mxu0 0.0
        %2246 = vmatpush.msra.mxu0 0.0
        %2247 = vmatpush.msra.mxu0 0.0
        %2248 = vmatpush.msra.mxu0 0.0
        %2249 = vmatpush.msra.mxu0 0.0
        %2250 = vmatpush.msra.mxu0 0.0
        %2251 = vmatpush.msra.mxu0 0.0
        %2252 = vmatpush.msra.mxu0 0.0
        %2253 = vmatpush.msra.mxu0 0.0
        %2254 = vmatpush.msra.mxu0 0.0
        %2255 = vmatpush.msra.mxu0 0.0
        %2256 = vmatpush.msra.mxu0 0.0
        %2257 = vmatpush.msra.mxu0 0.0
        %v2258 = vand.u32 %v1281, 4294901760
        %2259 = vmatpush.msra.mxu0 %v2258
        %v2260 = vand.u32 %v1277, 4294901760
        %2261 = vmatpush.msra.mxu0 %v2260
        %v2262 = vand.u32 %v504, 4294901760
        %2263 = vmatmul.f32.gmra.mxu0 %v2262
        %v2264 = vpop.f32.mrf.mxu0
        %v2265 = vadd.f32 %v2238, %v2264
        %v2266 = vand.u32 %v507, 4294901760
        %2267 = vmatmul.f32.gmra.mxu0 %v2266
        %v2268 = vpop.f32.mrf.mxu0
        %v2269 = vadd.f32 %v2242, %v2268
        %2270 = vdwg.mxu0
        %v2271 = vmul.f32 %v2265, 9.0
        %v2272 = vmul.f32 %v2269, 9.0
        %v2273 = vsub.f32 %v2271, %v2065
        %v2274 = vsub.f32 %v2272, %v2066
        %v2275 = vadd.f32 %v2273, 0.0729
        %v2276 = vadd.f32 %v2274, 0.0729
        %v2277 = vmul.f32 %v2079, %v2275
        %v2278 = vmul.f32 %v2080, %v2276
        %v2279 = vrcp.pop %v2277
        %v2280 = vrcp.pop %v2278
        %v2281 = vmul.f32 %v2277, %v2279
        %v2282 = vmul.f32 %v2278, %v2280
        %v2283 = vsub.f32 2.0, %v2281
        %v2284 = vsub.f32 2.0, %v2282
        %v2285 = vmul.f32 %v2279, %v2283
        %v2286 = vmul.f32 %v2280, %v2284
        %v2287 = vmul.f32 %v2077, %v2285
        %v2288 = vmul.f32 %v2078, %v2286
        %v2289 = vsub.f32 1.0, %v2287
        %v2290 = vsub.f32 1.0, %v2288
        %v2291 = vmul.f32 %v2289, 0.5
        %v2292 = vmul.f32 %v2290, 0.5
        %v2293 = vmax.f32 %v2291, 0.0
        %v2294 = vmax.f32 %v2292, 0.0
        %v2295 = vmin.f32 %v2293, 1.0
        %v2296 = vmin.f32 %v2294, 1.0
        %2297 = vst.msk [vmem:[%s294] sm:$0xff] %vm306, %v2295
        %2298 = vst.msk [vmem:[%s294 + $0x8] sm:$0xff] %vm306, %v2296
        %s2299 = scalar_lea.vmem %s244, 16 [#allocation2]
        %v2300 = vld [vmem:[%s2299] sm:$0xff]
        %v2301 = vld [vmem:[%s2299 + $0x8] sm:$0xff]
        %s2302 = scalar_lea.vmem %s254, 16 [#allocation5]
        %v2303 = vld [vmem:[%s2302] sm:$0xff]
        %v2304 = vld [vmem:[%s2302 + $0x8] sm:$0xff]
        %v2306 = vsel %vm306, %v2300, 0
        %v2309 = vsel %vm306, %v2301, 0
        %2311 = vmatpush.msra.mxu0 0.0
        %2312 = vmatpush.msra.mxu0 0.0
        %2313 = vmatpush.msra.mxu0 0.0
        %2314 = vmatpush.msra.mxu0 0.0
        %2315 = vmatpush.msra.mxu0 0.0
        %2316 = vmatpush.msra.mxu0 0.0
        %2317 = vmatpush.msra.mxu0 0.0
        %2318 = vmatpush.msra.mxu0 0.0
        %2319 = vmatpush.msra.mxu0 0.0
        %2320 = vmatpush.msra.mxu0 0.0
        %2321 = vmatpush.msra.mxu0 0.0
        %2322 = vmatpush.msra.mxu0 0.0
        %2323 = vmatpush.msra.mxu0 0.0
        %2324 = vmatpush.msra.mxu0 0.0
        %v2325 = vand.u32 %v299, 4294901760
        %2326 = vmatpush.msra.mxu0 %v2325
        %v2327 = vand.u32 %v298, 4294901760
        %2328 = vmatpush.msra.mxu0 %v2327
        %v2329 = vand.u32 %v2306, 4294901760
        %v2330 = vsub.f32 %v2306, %v2329
        %v2331 = vand.u32 %v2330, 4294901760
        %v2332 = vsub.f32 %v2330, %v2331
        %v2333 = vand.u32 %v2332, 4294901760
        %2334 = vmatmul.f32.gmra.mxu0 %v2333
        %v2335 = vpop.f32.mrf.mxu0
        %v2336 = vadd.f32 0.0, %v2335
        %v2337 = vand.u32 %v2309, 4294901760
        %v2338 = vsub.f32 %v2309, %v2337
        %v2339 = vand.u32 %v2338, 4294901760
        %v2340 = vsub.f32 %v2338, %v2339
        %v2341 = vand.u32 %v2340, 4294901760
        %2342 = vmatmul.f32.gmra.mxu0 %v2341
        %v2343 = vpop.f32.mrf.mxu0
        %v2344 = vadd.f32 0.0, %v2343
        %2345 = vdwg.mxu0
        %2346 = vmatpush.msra.mxu0 0.0
        %2347 = vmatpush.msra.mxu0 0.0
        %2348 = vmatpush.msra.mxu0 0.0
        %2349 = vmatpush.msra.mxu0 0.0
        %2350 = vmatpush.msra.mxu0 0.0
        %2351 = vmatpush.msra.mxu0 0.0
        %2352 = vmatpush.msra.mxu0 0.0
        %2353 = vmatpush.msra.mxu0 0.0
        %2354 = vmatpush.msra.mxu0 0.0
        %2355 = vmatpush.msra.mxu0 0.0
        %2356 = vmatpush.msra.mxu0 0.0
        %2357 = vmatpush.msra.mxu0 0.0
        %2358 = vmatpush.msra.mxu0 0.0
        %2359 = vmatpush.msra.mxu0 0.0
        %v2360 = vand.u32 %v299, 4294901760
        %v2361 = vsub.f32 %v299, %v2360
        %v2362 = vand.u32 %v2361, 4294901760
        %v2363 = vsub.f32 %v2361, %v2362
        %v2364 = vand.u32 %v2363, 4294901760
        %2365 = vmatpush.msra.mxu0 %v2364
        %v2366 = vand.u32 %v298, 4294901760
        %v2367 = vsub.f32 %v298, %v2366
        %v2368 = vand.u32 %v2367, 4294901760
        %v2369 = vsub.f32 %v2367, %v2368
        %v2370 = vand.u32 %v2369, 4294901760
        %2371 = vmatpush.msra.mxu0 %v2370
        %v2372 = vand.u32 %v2306, 4294901760
        %2373 = vmatmul.f32.gmra.mxu0 %v2372
        %v2374 = vpop.f32.mrf.mxu0
        %v2375 = vadd.f32 %v2336, %v2374
        %v2376 = vand.u32 %v2309, 4294901760
        %2377 = vmatmul.f32.gmra.mxu0 %v2376
        %v2378 = vpop.f32.mrf.mxu0
        %v2379 = vadd.f32 %v2344, %v2378
        %2380 = vdwg.mxu0
        %2381 = vmatpush.msra.mxu0 0.0
        %2382 = vmatpush.msra.mxu0 0.0
        %2383 = vmatpush.msra.mxu0 0.0
        %2384 = vmatpush.msra.mxu0 0.0
        %2385 = vmatpush.msra.mxu0 0.0
        %2386 = vmatpush.msra.mxu0 0.0
        %2387 = vmatpush.msra.mxu0 0.0
        %2388 = vmatpush.msra.mxu0 0.0
        %2389 = vmatpush.msra.mxu0 0.0
        %2390 = vmatpush.msra.mxu0 0.0
        %2391 = vmatpush.msra.mxu0 0.0
        %2392 = vmatpush.msra.mxu0 0.0
        %2393 = vmatpush.msra.mxu0 0.0
        %2394 = vmatpush.msra.mxu0 0.0
        %v2395 = vand.u32 %v299, 4294901760
        %v2396 = vsub.f32 %v299, %v2395
        %2397 = vmatpush.msra.mxu0 %v2396
        %v2398 = vand.u32 %v298, 4294901760
        %v2399 = vsub.f32 %v298, %v2398
        %2400 = vmatpush.msra.mxu0 %v2399
        %v2401 = vand.u32 %v2306, 4294901760
        %v2402 = vsub.f32 %v2306, %v2401
        %2403 = vmatmul.f32.gmra.mxu0 %v2402
        %v2404 = vpop.f32.mrf.mxu0
        %v2405 = vadd.f32 %v2375, %v2404
        %v2406 = vand.u32 %v2309, 4294901760
        %v2407 = vsub.f32 %v2309, %v2406
        %2408 = vmatmul.f32.gmra.mxu0 %v2407
        %v2409 = vpop.f32.mrf.mxu0
        %v2410 = vadd.f32 %v2379, %v2409
        %2411 = vdwg.mxu0
        %2412 = vmatpush.msra.mxu0 0.0
        %2413 = vmatpush.msra.mxu0 0.0
        %2414 = vmatpush.msra.mxu0 0.0
        %2415 = vmatpush.msra.mxu0 0.0
        %2416 = vmatpush.msra.mxu0 0.0
        %2417 = vmatpush.msra.mxu0 0.0
        %2418 = vmatpush.msra.mxu0 0.0
        %2419 = vmatpush.msra.mxu0 0.0
        %2420 = vmatpush.msra.mxu0 0.0
        %2421 = vmatpush.msra.mxu0 0.0
        %2422 = vmatpush.msra.mxu0 0.0
        %2423 = vmatpush.msra.mxu0 0.0
        %2424 = vmatpush.msra.mxu0 0.0
        %2425 = vmatpush.msra.mxu0 0.0
        %v2426 = vand.u32 %v299, 4294901760
        %2427 = vmatpush.msra.mxu0 %v2426
        %v2428 = vand.u32 %v298, 4294901760
        %2429 = vmatpush.msra.mxu0 %v2428
        %v2430 = vand.u32 %v2306, 4294901760
        %v2431 = vsub.f32 %v2306, %v2430
        %v2432 = vand.u32 %v2431, 4294901760
        %2433 = vmatmul.f32.gmra.mxu0 %v2432
        %v2434 = vpop.f32.mrf.mxu0
        %v2435 = vadd.f32 %v2405, %v2434
        %v2436 = vand.u32 %v2309, 4294901760
        %v2437 = vsub.f32 %v2309, %v2436
        %v2438 = vand.u32 %v2437, 4294901760
        %2439 = vmatmul.f32.gmra.mxu0 %v2438
        %v2440 = vpop.f32.mrf.mxu0
        %v2441 = vadd.f32 %v2410, %v2440
        %2442 = vdwg.mxu0
        %2443 = vmatpush.msra.mxu0 0.0
        %2444 = vmatpush.msra.mxu0 0.0
        %2445 = vmatpush.msra.mxu0 0.0
        %2446 = vmatpush.msra.mxu0 0.0
        %2447 = vmatpush.msra.mxu0 0.0
        %2448 = vmatpush.msra.mxu0 0.0
        %2449 = vmatpush.msra.mxu0 0.0
        %2450 = vmatpush.msra.mxu0 0.0
        %2451 = vmatpush.msra.mxu0 0.0
        %2452 = vmatpush.msra.mxu0 0.0
        %2453 = vmatpush.msra.mxu0 0.0
        %2454 = vmatpush.msra.mxu0 0.0
        %2455 = vmatpush.msra.mxu0 0.0
        %2456 = vmatpush.msra.mxu0 0.0
        %v2457 = vand.u32 %v299, 4294901760
        %v2458 = vsub.f32 %v299, %v2457
        %v2459 = vand.u32 %v2458, 4294901760
        %2460 = vmatpush.msra.mxu0 %v2459
        %v2461 = vand.u32 %v298, 4294901760
        %v2462 = vsub.f32 %v298, %v2461
        %v2463 = vand.u32 %v2462, 4294901760
        %2464 = vmatpush.msra.mxu0 %v2463
        %v2465 = vand.u32 %v2306, 4294901760
        %2466 = vmatmul.f32.gmra.mxu0 %v2465
        %v2467 = vpop.f32.mrf.mxu0
        %v2468 = vadd.f32 %v2435, %v2467
        %v2469 = vand.u32 %v2309, 4294901760
        %2470 = vmatmul.f32.gmra.mxu0 %v2469
        %v2471 = vpop.f32.mrf.mxu0
        %v2472 = vadd.f32 %v2441, %v2471
        %2473 = vdwg.mxu0
        %2474 = vmatpush.msra.mxu0 0.0
        %2475 = vmatpush.msra.mxu0 0.0
        %2476 = vmatpush.msra.mxu0 0.0
        %2477 = vmatpush.msra.mxu0 0.0
        %2478 = vmatpush.msra.mxu0 0.0
        %2479 = vmatpush.msra.mxu0 0.0
        %2480 = vmatpush.msra.mxu0 0.0
        %2481 = vmatpush.msra.mxu0 0.0
        %2482 = vmatpush.msra.mxu0 0.0
        %2483 = vmatpush.msra.mxu0 0.0
        %2484 = vmatpush.msra.mxu0 0.0
        %2485 = vmatpush.msra.mxu0 0.0
        %2486 = vmatpush.msra.mxu0 0.0
        %2487 = vmatpush.msra.mxu0 0.0
        %v2488 = vand.u32 %v299, 4294901760
        %2489 = vmatpush.msra.mxu0 %v2488
        %v2490 = vand.u32 %v298, 4294901760
        %2491 = vmatpush.msra.mxu0 %v2490
        %v2492 = vand.u32 %v2306, 4294901760
        %2493 = vmatmul.f32.gmra.mxu0 %v2492
        %v2494 = vpop.f32.mrf.mxu0
        %v2495 = vadd.f32 %v2468, %v2494
        %v2496 = vand.u32 %v2309, 4294901760
        %2497 = vmatmul.f32.gmra.mxu0 %v2496
        %v2498 = vpop.f32.mrf.mxu0
        %v2499 = vadd.f32 %v2472, %v2498
        %2500 = vdwg.mxu0
        %2501 = vmatpush.msra.mxu0 0.0
        %2502 = vmatpush.msra.mxu0 0.0
        %2503 = vmatpush.msra.mxu0 0.0
        %2504 = vmatpush.msra.mxu0 0.0
        %2505 = vmatpush.msra.mxu0 0.0
        %2506 = vmatpush.msra.mxu0 0.0
        %2507 = vmatpush.msra.mxu0 0.0
        %2508 = vmatpush.msra.mxu0 0.0
        %2509 = vmatpush.msra.mxu0 0.0
        %2510 = vmatpush.msra.mxu0 0.0
        %2511 = vmatpush.msra.mxu0 0.0
        %2512 = vmatpush.msra.mxu0 0.0
        %2513 = vmatpush.msra.mxu0 0.0
        %2514 = vmatpush.msra.mxu0 0.0
        %v2515 = vand.u32 %v2499, 4294901760
        %2516 = vmatpush.msra.mxu0 %v2515
        %v2517 = vand.u32 %v2495, 4294901760
        %2518 = vmatpush.msra.mxu0 %v2517
        %v2519 = vand.u32 %v504, 4294901760
        %v2520 = vsub.f32 %v504, %v2519
        %v2521 = vand.u32 %v2520, 4294901760
        %v2522 = vsub.f32 %v2520, %v2521
        %v2523 = vand.u32 %v2522, 4294901760
        %2524 = vmatmul.f32.gmra.mxu0 %v2523
        %v2525 = vpop.f32.mrf.mxu0
        %v2526 = vadd.f32 0.0, %v2525
        %v2527 = vand.u32 %v507, 4294901760
        %v2528 = vsub.f32 %v507, %v2527
        %v2529 = vand.u32 %v2528, 4294901760
        %v2530 = vsub.f32 %v2528, %v2529
        %v2531 = vand.u32 %v2530, 4294901760
        %2532 = vmatmul.f32.gmra.mxu0 %v2531
        %v2533 = vpop.f32.mrf.mxu0
        %v2534 = vadd.f32 0.0, %v2533
        %2535 = vdwg.mxu0
        %2536 = vmatpush.msra.mxu0 0.0
        %2537 = vmatpush.msra.mxu0 0.0
        %2538 = vmatpush.msra.mxu0 0.0
        %2539 = vmatpush.msra.mxu0 0.0
        %2540 = vmatpush.msra.mxu0 0.0
        %2541 = vmatpush.msra.mxu0 0.0
        %2542 = vmatpush.msra.mxu0 0.0
        %2543 = vmatpush.msra.mxu0 0.0
        %2544 = vmatpush.msra.mxu0 0.0
        %2545 = vmatpush.msra.mxu0 0.0
        %2546 = vmatpush.msra.mxu0 0.0
        %2547 = vmatpush.msra.mxu0 0.0
        %2548 = vmatpush.msra.mxu0 0.0
        %2549 = vmatpush.msra.mxu0 0.0
        %v2550 = vand.u32 %v2499, 4294901760
        %v2551 = vsub.f32 %v2499, %v2550
        %v2552 = vand.u32 %v2551, 4294901760
        %v2553 = vsub.f32 %v2551, %v2552
        %v2554 = vand.u32 %v2553, 4294901760
        %2555 = vmatpush.msra.mxu0 %v2554
        %v2556 = vand.u32 %v2495, 4294901760
        %v2557 = vsub.f32 %v2495, %v2556
        %v2558 = vand.u32 %v2557, 4294901760
        %v2559 = vsub.f32 %v2557, %v2558
        %v2560 = vand.u32 %v2559, 4294901760
        %2561 = vmatpush.msra.mxu0 %v2560
        %v2562 = vand.u32 %v504, 4294901760
        %2563 = vmatmul.f32.gmra.mxu0 %v2562
        %v2564 = vpop.f32.mrf.mxu0
        %v2565 = vadd.f32 %v2526, %v2564
        %v2566 = vand.u32 %v507, 4294901760
        %2567 = vmatmul.f32.gmra.mxu0 %v2566
        %v2568 = vpop.f32.mrf.mxu0
        %v2569 = vadd.f32 %v2534, %v2568
        %2570 = vdwg.mxu0
        %2571 = vmatpush.msra.mxu0 0.0
        %2572 = vmatpush.msra.mxu0 0.0
        %2573 = vmatpush.msra.mxu0 0.0
        %2574 = vmatpush.msra.mxu0 0.0
        %2575 = vmatpush.msra.mxu0 0.0
        %2576 = vmatpush.msra.mxu0 0.0
        %2577 = vmatpush.msra.mxu0 0.0
        %2578 = vmatpush.msra.mxu0 0.0
        %2579 = vmatpush.msra.mxu0 0.0
        %2580 = vmatpush.msra.mxu0 0.0
        %2581 = vmatpush.msra.mxu0 0.0
        %2582 = vmatpush.msra.mxu0 0.0
        %2583 = vmatpush.msra.mxu0 0.0
        %2584 = vmatpush.msra.mxu0 0.0
        %v2585 = vand.u32 %v2499, 4294901760
        %v2586 = vsub.f32 %v2499, %v2585
        %2587 = vmatpush.msra.mxu0 %v2586
        %v2588 = vand.u32 %v2495, 4294901760
        %v2589 = vsub.f32 %v2495, %v2588
        %2590 = vmatpush.msra.mxu0 %v2589
        %v2591 = vand.u32 %v504, 4294901760
        %v2592 = vsub.f32 %v504, %v2591
        %2593 = vmatmul.f32.gmra.mxu0 %v2592
        %v2594 = vpop.f32.mrf.mxu0
        %v2595 = vadd.f32 %v2565, %v2594
        %v2596 = vand.u32 %v507, 4294901760
        %v2597 = vsub.f32 %v507, %v2596
        %2598 = vmatmul.f32.gmra.mxu0 %v2597
        %v2599 = vpop.f32.mrf.mxu0
        %v2600 = vadd.f32 %v2569, %v2599
        %2601 = vdwg.mxu0
        %2602 = vmatpush.msra.mxu0 0.0
        %2603 = vmatpush.msra.mxu0 0.0
        %2604 = vmatpush.msra.mxu0 0.0
        %2605 = vmatpush.msra.mxu0 0.0
        %2606 = vmatpush.msra.mxu0 0.0
        %2607 = vmatpush.msra.mxu0 0.0
        %2608 = vmatpush.msra.mxu0 0.0
        %2609 = vmatpush.msra.mxu0 0.0
        %2610 = vmatpush.msra.mxu0 0.0
        %2611 = vmatpush.msra.mxu0 0.0
        %2612 = vmatpush.msra.mxu0 0.0
        %2613 = vmatpush.msra.mxu0 0.0
        %2614 = vmatpush.msra.mxu0 0.0
        %2615 = vmatpush.msra.mxu0 0.0
        %v2616 = vand.u32 %v2499, 4294901760
        %2617 = vmatpush.msra.mxu0 %v2616
        %v2618 = vand.u32 %v2495, 4294901760
        %2619 = vmatpush.msra.mxu0 %v2618
        %v2620 = vand.u32 %v504, 4294901760
        %v2621 = vsub.f32 %v504, %v2620
        %v2622 = vand.u32 %v2621, 4294901760
        %2623 = vmatmul.f32.gmra.mxu0 %v2622
        %v2624 = vpop.f32.mrf.mxu0
        %v2625 = vadd.f32 %v2595, %v2624
        %v2626 = vand.u32 %v507, 4294901760
        %v2627 = vsub.f32 %v507, %v2626
        %v2628 = vand.u32 %v2627, 4294901760
        %2629 = vmatmul.f32.gmra.mxu0 %v2628
        %v2630 = vpop.f32.mrf.mxu0
        %v2631 = vadd.f32 %v2600, %v2630
        %2632 = vdwg.mxu0
        %2633 = vmatpush.msra.mxu0 0.0
        %2634 = vmatpush.msra.mxu0 0.0
        %2635 = vmatpush.msra.mxu0 0.0
        %2636 = vmatpush.msra.mxu0 0.0
        %2637 = vmatpush.msra.mxu0 0.0
        %2638 = vmatpush.msra.mxu0 0.0
        %2639 = vmatpush.msra.mxu0 0.0
        %2640 = vmatpush.msra.mxu0 0.0
        %2641 = vmatpush.msra.mxu0 0.0
        %2642 = vmatpush.msra.mxu0 0.0
        %2643 = vmatpush.msra.mxu0 0.0
        %2644 = vmatpush.msra.mxu0 0.0
        %2645 = vmatpush.msra.mxu0 0.0
        %2646 = vmatpush.msra.mxu0 0.0
        %v2647 = vand.u32 %v2499, 4294901760
        %v2648 = vsub.f32 %v2499, %v2647
        %v2649 = vand.u32 %v2648, 4294901760
        %2650 = vmatpush.msra.mxu0 %v2649
        %v2651 = vand.u32 %v2495, 4294901760
        %v2652 = vsub.f32 %v2495, %v2651
        %v2653 = vand.u32 %v2652, 4294901760
        %2654 = vmatpush.msra.mxu0 %v2653
        %v2655 = vand.u32 %v504, 4294901760
        %2656 = vmatmul.f32.gmra.mxu0 %v2655
        %v2657 = vpop.f32.mrf.mxu0
        %v2658 = vadd.f32 %v2625, %v2657
        %v2659 = vand.u32 %v507, 4294901760
        %2660 = vmatmul.f32.gmra.mxu0 %v2659
        %v2661 = vpop.f32.mrf.mxu0
        %v2662 = vadd.f32 %v2631, %v2661
        %2663 = vdwg.mxu0
        %2664 = vmatpush.msra.mxu0 0.0
        %2665 = vmatpush.msra.mxu0 0.0
        %2666 = vmatpush.msra.mxu0 0.0
        %2667 = vmatpush.msra.mxu0 0.0
        %2668 = vmatpush.msra.mxu0 0.0
        %2669 = vmatpush.msra.mxu0 0.0
        %2670 = vmatpush.msra.mxu0 0.0
        %2671 = vmatpush.msra.mxu0 0.0
        %2672 = vmatpush.msra.mxu0 0.0
        %2673 = vmatpush.msra.mxu0 0.0
        %2674 = vmatpush.msra.mxu0 0.0
        %2675 = vmatpush.msra.mxu0 0.0
        %2676 = vmatpush.msra.mxu0 0.0
        %2677 = vmatpush.msra.mxu0 0.0
        %v2678 = vand.u32 %v2499, 4294901760
        %2679 = vmatpush.msra.mxu0 %v2678
        %v2680 = vand.u32 %v2495, 4294901760
        %2681 = vmatpush.msra.mxu0 %v2680
        %v2682 = vand.u32 %v504, 4294901760
        %2683 = vmatmul.f32.gmra.mxu0 %v2682
        %v2684 = vpop.f32.mrf.mxu0
        %v2685 = vadd.f32 %v2658, %v2684
        %v2686 = vand.u32 %v507, 4294901760
        %2687 = vmatmul.f32.gmra.mxu0 %v2686
        %v2688 = vpop.f32.mrf.mxu0
        %v2689 = vadd.f32 %v2662, %v2688
        %2690 = vdwg.mxu0
        %v2692 = vsel %vm306, %v2303, 0
        %v2695 = vsel %vm306, %v2304, 0
        %2697 = vmatpush.msra.mxu0 0.0
        %2698 = vmatpush.msra.mxu0 0.0
        %2699 = vmatpush.msra.mxu0 0.0
        %2700 = vmatpush.msra.mxu0 0.0
        %2701 = vmatpush.msra.mxu0 0.0
        %2702 = vmatpush.msra.mxu0 0.0
        %2703 = vmatpush.msra.mxu0 0.0
        %2704 = vmatpush.msra.mxu0 0.0
        %2705 = vmatpush.msra.mxu0 0.0
        %2706 = vmatpush.msra.mxu0 0.0
        %2707 = vmatpush.msra.mxu0 0.0
        %2708 = vmatpush.msra.mxu0 0.0
        %2709 = vmatpush.msra.mxu0 0.0
        %2710 = vmatpush.msra.mxu0 0.0
        %v2711 = vand.u32 %v299, 4294901760
        %2712 = vmatpush.msra.mxu0 %v2711
        %v2713 = vand.u32 %v298, 4294901760
        %2714 = vmatpush.msra.mxu0 %v2713
        %v2715 = vand.u32 %v2692, 4294901760
        %v2716 = vsub.f32 %v2692, %v2715
        %v2717 = vand.u32 %v2716, 4294901760
        %v2718 = vsub.f32 %v2716, %v2717
        %v2719 = vand.u32 %v2718, 4294901760
        %2720 = vmatmul.f32.gmra.mxu0 %v2719
        %v2721 = vpop.f32.mrf.mxu0
        %v2722 = vadd.f32 0.0, %v2721
        %v2723 = vand.u32 %v2695, 4294901760
        %v2724 = vsub.f32 %v2695, %v2723
        %v2725 = vand.u32 %v2724, 4294901760
        %v2726 = vsub.f32 %v2724, %v2725
        %v2727 = vand.u32 %v2726, 4294901760
        %2728 = vmatmul.f32.gmra.mxu0 %v2727
        %v2729 = vpop.f32.mrf.mxu0
        %v2730 = vadd.f32 0.0, %v2729
        %2731 = vdwg.mxu0
        %2732 = vmatpush.msra.mxu0 0.0
        %2733 = vmatpush.msra.mxu0 0.0
        %2734 = vmatpush.msra.mxu0 0.0
        %2735 = vmatpush.msra.mxu0 0.0
        %2736 = vmatpush.msra.mxu0 0.0
        %2737 = vmatpush.msra.mxu0 0.0
        %2738 = vmatpush.msra.mxu0 0.0
        %2739 = vmatpush.msra.mxu0 0.0
        %2740 = vmatpush.msra.mxu0 0.0
        %2741 = vmatpush.msra.mxu0 0.0
        %2742 = vmatpush.msra.mxu0 0.0
        %2743 = vmatpush.msra.mxu0 0.0
        %2744 = vmatpush.msra.mxu0 0.0
        %2745 = vmatpush.msra.mxu0 0.0
        %v2746 = vand.u32 %v299, 4294901760
        %v2747 = vsub.f32 %v299, %v2746
        %v2748 = vand.u32 %v2747, 4294901760
        %v2749 = vsub.f32 %v2747, %v2748
        %v2750 = vand.u32 %v2749, 4294901760
        %2751 = vmatpush.msra.mxu0 %v2750
        %v2752 = vand.u32 %v298, 4294901760
        %v2753 = vsub.f32 %v298, %v2752
        %v2754 = vand.u32 %v2753, 4294901760
        %v2755 = vsub.f32 %v2753, %v2754
        %v2756 = vand.u32 %v2755, 4294901760
        %2757 = vmatpush.msra.mxu0 %v2756
        %v2758 = vand.u32 %v2692, 4294901760
        %2759 = vmatmul.f32.gmra.mxu0 %v2758
        %v2760 = vpop.f32.mrf.mxu0
        %v2761 = vadd.f32 %v2722, %v2760
        %v2762 = vand.u32 %v2695, 4294901760
        %2763 = vmatmul.f32.gmra.mxu0 %v2762
        %v2764 = vpop.f32.mrf.mxu0
        %v2765 = vadd.f32 %v2730, %v2764
        %2766 = vdwg.mxu0
        %2767 = vmatpush.msra.mxu0 0.0
        %2768 = vmatpush.msra.mxu0 0.0
        %2769 = vmatpush.msra.mxu0 0.0
        %2770 = vmatpush.msra.mxu0 0.0
        %2771 = vmatpush.msra.mxu0 0.0
        %2772 = vmatpush.msra.mxu0 0.0
        %2773 = vmatpush.msra.mxu0 0.0
        %2774 = vmatpush.msra.mxu0 0.0
        %2775 = vmatpush.msra.mxu0 0.0
        %2776 = vmatpush.msra.mxu0 0.0
        %2777 = vmatpush.msra.mxu0 0.0
        %2778 = vmatpush.msra.mxu0 0.0
        %2779 = vmatpush.msra.mxu0 0.0
        %2780 = vmatpush.msra.mxu0 0.0
        %v2781 = vand.u32 %v299, 4294901760
        %v2782 = vsub.f32 %v299, %v2781
        %2783 = vmatpush.msra.mxu0 %v2782
        %v2784 = vand.u32 %v298, 4294901760
        %v2785 = vsub.f32 %v298, %v2784
        %2786 = vmatpush.msra.mxu0 %v2785
        %v2787 = vand.u32 %v2692, 4294901760
        %v2788 = vsub.f32 %v2692, %v2787
        %2789 = vmatmul.f32.gmra.mxu0 %v2788
        %v2790 = vpop.f32.mrf.mxu0
        %v2791 = vadd.f32 %v2761, %v2790
        %v2792 = vand.u32 %v2695, 4294901760
        %v2793 = vsub.f32 %v2695, %v2792
        %2794 = vmatmul.f32.gmra.mxu0 %v2793
        %v2795 = vpop.f32.mrf.mxu0
        %v2796 = vadd.f32 %v2765, %v2795
        %2797 = vdwg.mxu0
        %2798 = vmatpush.msra.mxu0 0.0
        %2799 = vmatpush.msra.mxu0 0.0
        %2800 = vmatpush.msra.mxu0 0.0
        %2801 = vmatpush.msra.mxu0 0.0
        %2802 = vmatpush.msra.mxu0 0.0
        %2803 = vmatpush.msra.mxu0 0.0
        %2804 = vmatpush.msra.mxu0 0.0
        %2805 = vmatpush.msra.mxu0 0.0
        %2806 = vmatpush.msra.mxu0 0.0
        %2807 = vmatpush.msra.mxu0 0.0
        %2808 = vmatpush.msra.mxu0 0.0
        %2809 = vmatpush.msra.mxu0 0.0
        %2810 = vmatpush.msra.mxu0 0.0
        %2811 = vmatpush.msra.mxu0 0.0
        %v2812 = vand.u32 %v299, 4294901760
        %2813 = vmatpush.msra.mxu0 %v2812
        %v2814 = vand.u32 %v298, 4294901760
        %2815 = vmatpush.msra.mxu0 %v2814
        %v2816 = vand.u32 %v2692, 4294901760
        %v2817 = vsub.f32 %v2692, %v2816
        %v2818 = vand.u32 %v2817, 4294901760
        %2819 = vmatmul.f32.gmra.mxu0 %v2818
        %v2820 = vpop.f32.mrf.mxu0
        %v2821 = vadd.f32 %v2791, %v2820
        %v2822 = vand.u32 %v2695, 4294901760
        %v2823 = vsub.f32 %v2695, %v2822
        %v2824 = vand.u32 %v2823, 4294901760
        %2825 = vmatmul.f32.gmra.mxu0 %v2824
        %v2826 = vpop.f32.mrf.mxu0
        %v2827 = vadd.f32 %v2796, %v2826
        %2828 = vdwg.mxu0
        %2829 = vmatpush.msra.mxu0 0.0
        %2830 = vmatpush.msra.mxu0 0.0
        %2831 = vmatpush.msra.mxu0 0.0
        %2832 = vmatpush.msra.mxu0 0.0
        %2833 = vmatpush.msra.mxu0 0.0
        %2834 = vmatpush.msra.mxu0 0.0
        %2835 = vmatpush.msra.mxu0 0.0
        %2836 = vmatpush.msra.mxu0 0.0
        %2837 = vmatpush.msra.mxu0 0.0
        %2838 = vmatpush.msra.mxu0 0.0
        %2839 = vmatpush.msra.mxu0 0.0
        %2840 = vmatpush.msra.mxu0 0.0
        %2841 = vmatpush.msra.mxu0 0.0
        %2842 = vmatpush.msra.mxu0 0.0
        %v2843 = vand.u32 %v299, 4294901760
        %v2844 = vsub.f32 %v299, %v2843
        %v2845 = vand.u32 %v2844, 4294901760
        %2846 = vmatpush.msra.mxu0 %v2845
        %v2847 = vand.u32 %v298, 4294901760
        %v2848 = vsub.f32 %v298, %v2847
        %v2849 = vand.u32 %v2848, 4294901760
        %2850 = vmatpush.msra.mxu0 %v2849
        %v2851 = vand.u32 %v2692, 4294901760
        %2852 = vmatmul.f32.gmra.mxu0 %v2851
        %v2853 = vpop.f32.mrf.mxu0
        %v2854 = vadd.f32 %v2821, %v2853
        %v2855 = vand.u32 %v2695, 4294901760
        %2856 = vmatmul.f32.gmra.mxu0 %v2855
        %v2857 = vpop.f32.mrf.mxu0
        %v2858 = vadd.f32 %v2827, %v2857
        %2859 = vdwg.mxu0
        %2860 = vmatpush.msra.mxu0 0.0
        %2861 = vmatpush.msra.mxu0 0.0
        %2862 = vmatpush.msra.mxu0 0.0
        %2863 = vmatpush.msra.mxu0 0.0
        %2864 = vmatpush.msra.mxu0 0.0
        %2865 = vmatpush.msra.mxu0 0.0
        %2866 = vmatpush.msra.mxu0 0.0
        %2867 = vmatpush.msra.mxu0 0.0
        %2868 = vmatpush.msra.mxu0 0.0
        %2869 = vmatpush.msra.mxu0 0.0
        %2870 = vmatpush.msra.mxu0 0.0
        %2871 = vmatpush.msra.mxu0 0.0
        %2872 = vmatpush.msra.mxu0 0.0
        %2873 = vmatpush.msra.mxu0 0.0
        %v2874 = vand.u32 %v299, 4294901760
        %2875 = vmatpush.msra.mxu0 %v2874
        %v2876 = vand.u32 %v298, 4294901760
        %2877 = vmatpush.msra.mxu0 %v2876
        %v2878 = vand.u32 %v2692, 4294901760
        %2879 = vmatmul.f32.gmra.mxu0 %v2878
        %v2880 = vpop.f32.mrf.mxu0
        %v2881 = vadd.f32 %v2854, %v2880
        %v2882 = vand.u32 %v2695, 4294901760
        %2883 = vmatmul.f32.gmra.mxu0 %v2882
        %v2884 = vpop.f32.mrf.mxu0
        %v2885 = vadd.f32 %v2858, %v2884
        %2886 = vdwg.mxu0
        %2887 = vmatpush.msra.mxu0 0.0
        %2888 = vmatpush.msra.mxu0 0.0
        %2889 = vmatpush.msra.mxu0 0.0
        %2890 = vmatpush.msra.mxu0 0.0
        %2891 = vmatpush.msra.mxu0 0.0
        %2892 = vmatpush.msra.mxu0 0.0
        %2893 = vmatpush.msra.mxu0 0.0
        %2894 = vmatpush.msra.mxu0 0.0
        %2895 = vmatpush.msra.mxu0 0.0
        %2896 = vmatpush.msra.mxu0 0.0
        %2897 = vmatpush.msra.mxu0 0.0
        %2898 = vmatpush.msra.mxu0 0.0
        %2899 = vmatpush.msra.mxu0 0.0
        %2900 = vmatpush.msra.mxu0 0.0
        %v2901 = vand.u32 %v2885, 4294901760
        %2902 = vmatpush.msra.mxu0 %v2901
        %v2903 = vand.u32 %v2881, 4294901760
        %2904 = vmatpush.msra.mxu0 %v2903
        %v2905 = vand.u32 %v504, 4294901760
        %v2906 = vsub.f32 %v504, %v2905
        %v2907 = vand.u32 %v2906, 4294901760
        %v2908 = vsub.f32 %v2906, %v2907
        %v2909 = vand.u32 %v2908, 4294901760
        %2910 = vmatmul.f32.gmra.mxu0 %v2909
        %v2911 = vpop.f32.mrf.mxu0
        %v2912 = vadd.f32 0.0, %v2911
        %v2913 = vand.u32 %v507, 4294901760
        %v2914 = vsub.f32 %v507, %v2913
        %v2915 = vand.u32 %v2914, 4294901760
        %v2916 = vsub.f32 %v2914, %v2915
        %v2917 = vand.u32 %v2916, 4294901760
        %2918 = vmatmul.f32.gmra.mxu0 %v2917
        %v2919 = vpop.f32.mrf.mxu0
        %v2920 = vadd.f32 0.0, %v2919
        %2921 = vdwg.mxu0
        %2922 = vmatpush.msra.mxu0 0.0
        %2923 = vmatpush.msra.mxu0 0.0
        %2924 = vmatpush.msra.mxu0 0.0
        %2925 = vmatpush.msra.mxu0 0.0
        %2926 = vmatpush.msra.mxu0 0.0
        %2927 = vmatpush.msra.mxu0 0.0
        %2928 = vmatpush.msra.mxu0 0.0
        %2929 = vmatpush.msra.mxu0 0.0
        %2930 = vmatpush.msra.mxu0 0.0
        %2931 = vmatpush.msra.mxu0 0.0
        %2932 = vmatpush.msra.mxu0 0.0
        %2933 = vmatpush.msra.mxu0 0.0
        %2934 = vmatpush.msra.mxu0 0.0
        %2935 = vmatpush.msra.mxu0 0.0
        %v2936 = vand.u32 %v2885, 4294901760
        %v2937 = vsub.f32 %v2885, %v2936
        %v2938 = vand.u32 %v2937, 4294901760
        %v2939 = vsub.f32 %v2937, %v2938
        %v2940 = vand.u32 %v2939, 4294901760
        %2941 = vmatpush.msra.mxu0 %v2940
        %v2942 = vand.u32 %v2881, 4294901760
        %v2943 = vsub.f32 %v2881, %v2942
        %v2944 = vand.u32 %v2943, 4294901760
        %v2945 = vsub.f32 %v2943, %v2944
        %v2946 = vand.u32 %v2945, 4294901760
        %2947 = vmatpush.msra.mxu0 %v2946
        %v2948 = vand.u32 %v504, 4294901760
        %2949 = vmatmul.f32.gmra.mxu0 %v2948
        %v2950 = vpop.f32.mrf.mxu0
        %v2951 = vadd.f32 %v2912, %v2950
        %v2952 = vand.u32 %v507, 4294901760
        %2953 = vmatmul.f32.gmra.mxu0 %v2952
        %v2954 = vpop.f32.mrf.mxu0
        %v2955 = vadd.f32 %v2920, %v2954
        %2956 = vdwg.mxu0
        %2957 = vmatpush.msra.mxu0 0.0
        %2958 = vmatpush.msra.mxu0 0.0
        %2959 = vmatpush.msra.mxu0 0.0
        %2960 = vmatpush.msra.mxu0 0.0
        %2961 = vmatpush.msra.mxu0 0.0
        %2962 = vmatpush.msra.mxu0 0.0
        %2963 = vmatpush.msra.mxu0 0.0
        %2964 = vmatpush.msra.mxu0 0.0
        %2965 = vmatpush.msra.mxu0 0.0
        %2966 = vmatpush.msra.mxu0 0.0
        %2967 = vmatpush.msra.mxu0 0.0
        %2968 = vmatpush.msra.mxu0 0.0
        %2969 = vmatpush.msra.mxu0 0.0
        %2970 = vmatpush.msra.mxu0 0.0
        %v2971 = vand.u32 %v2885, 4294901760
        %v2972 = vsub.f32 %v2885, %v2971
        %2973 = vmatpush.msra.mxu0 %v2972
        %v2974 = vand.u32 %v2881, 4294901760
        %v2975 = vsub.f32 %v2881, %v2974
        %2976 = vmatpush.msra.mxu0 %v2975
        %v2977 = vand.u32 %v504, 4294901760
        %v2978 = vsub.f32 %v504, %v2977
        %2979 = vmatmul.f32.gmra.mxu0 %v2978
        %v2980 = vpop.f32.mrf.mxu0
        %v2981 = vadd.f32 %v2951, %v2980
        %v2982 = vand.u32 %v507, 4294901760
        %v2983 = vsub.f32 %v507, %v2982
        %2984 = vmatmul.f32.gmra.mxu0 %v2983
        %v2985 = vpop.f32.mrf.mxu0
        %v2986 = vadd.f32 %v2955, %v2985
        %2987 = vdwg.mxu0
        %2988 = vmatpush.msra.mxu0 0.0
        %2989 = vmatpush.msra.mxu0 0.0
        %2990 = vmatpush.msra.mxu0 0.0
        %2991 = vmatpush.msra.mxu0 0.0
        %2992 = vmatpush.msra.mxu0 0.0
        %2993 = vmatpush.msra.mxu0 0.0
        %2994 = vmatpush.msra.mxu0 0.0
        %2995 = vmatpush.msra.mxu0 0.0
        %2996 = vmatpush.msra.mxu0 0.0
        %2997 = vmatpush.msra.mxu0 0.0
        %2998 = vmatpush.msra.mxu0 0.0
        %2999 = vmatpush.msra.mxu0 0.0
        %3000 = vmatpush.msra.mxu0 0.0
        %3001 = vmatpush.msra.mxu0 0.0
        %v3002 = vand.u32 %v2885, 4294901760
        %3003 = vmatpush.msra.mxu0 %v3002
        %v3004 = vand.u32 %v2881, 4294901760
        %3005 = vmatpush.msra.mxu0 %v3004
        %v3006 = vand.u32 %v504, 4294901760
        %v3007 = vsub.f32 %v504, %v3006
        %v3008 = vand.u32 %v3007, 4294901760
        %3009 = vmatmul.f32.gmra.mxu0 %v3008
        %v3010 = vpop.f32.mrf.mxu0
        %v3011 = vadd.f32 %v2981, %v3010
        %v3012 = vand.u32 %v507, 4294901760
        %v3013 = vsub.f32 %v507, %v3012
        %v3014 = vand.u32 %v3013, 4294901760
        %3015 = vmatmul.f32.gmra.mxu0 %v3014
        %v3016 = vpop.f32.mrf.mxu0
        %v3017 = vadd.f32 %v2986, %v3016
        %3018 = vdwg.mxu0
        %3019 = vmatpush.msra.mxu0 0.0
        %3020 = vmatpush.msra.mxu0 0.0
        %3021 = vmatpush.msra.mxu0 0.0
        %3022 = vmatpush.msra.mxu0 0.0
        %3023 = vmatpush.msra.mxu0 0.0
        %3024 = vmatpush.msra.mxu0 0.0
        %3025 = vmatpush.msra.mxu0 0.0
        %3026 = vmatpush.msra.mxu0 0.0
        %3027 = vmatpush.msra.mxu0 0.0
        %3028 = vmatpush.msra.mxu0 0.0
        %3029 = vmatpush.msra.mxu0 0.0
        %3030 = vmatpush.msra.mxu0 0.0
        %3031 = vmatpush.msra.mxu0 0.0
        %3032 = vmatpush.msra.mxu0 0.0
        %v3033 = vand.u32 %v2885, 4294901760
        %v3034 = vsub.f32 %v2885, %v3033
        %v3035 = vand.u32 %v3034, 4294901760
        %3036 = vmatpush.msra.mxu0 %v3035
        %v3037 = vand.u32 %v2881, 4294901760
        %v3038 = vsub.f32 %v2881, %v3037
        %v3039 = vand.u32 %v3038, 4294901760
        %3040 = vmatpush.msra.mxu0 %v3039
        %v3041 = vand.u32 %v504, 4294901760
        %3042 = vmatmul.f32.gmra.mxu0 %v3041
        %v3043 = vpop.f32.mrf.mxu0
        %v3044 = vadd.f32 %v3011, %v3043
        %v3045 = vand.u32 %v507, 4294901760
        %3046 = vmatmul.f32.gmra.mxu0 %v3045
        %v3047 = vpop.f32.mrf.mxu0
        %v3048 = vadd.f32 %v3017, %v3047
        %3049 = vdwg.mxu0
        %3050 = vmatpush.msra.mxu0 0.0
        %3051 = vmatpush.msra.mxu0 0.0
        %3052 = vmatpush.msra.mxu0 0.0
        %3053 = vmatpush.msra.mxu0 0.0
        %3054 = vmatpush.msra.mxu0 0.0
        %3055 = vmatpush.msra.mxu0 0.0
        %3056 = vmatpush.msra.mxu0 0.0
        %3057 = vmatpush.msra.mxu0 0.0
        %3058 = vmatpush.msra.mxu0 0.0
        %3059 = vmatpush.msra.mxu0 0.0
        %3060 = vmatpush.msra.mxu0 0.0
        %3061 = vmatpush.msra.mxu0 0.0
        %3062 = vmatpush.msra.mxu0 0.0
        %3063 = vmatpush.msra.mxu0 0.0
        %v3064 = vand.u32 %v2885, 4294901760
        %3065 = vmatpush.msra.mxu0 %v3064
        %v3066 = vand.u32 %v2881, 4294901760
        %3067 = vmatpush.msra.mxu0 %v3066
        %v3068 = vand.u32 %v504, 4294901760
        %3069 = vmatmul.f32.gmra.mxu0 %v3068
        %v3070 = vpop.f32.mrf.mxu0
        %v3071 = vadd.f32 %v3044, %v3070
        %v3072 = vand.u32 %v507, 4294901760
        %3073 = vmatmul.f32.gmra.mxu0 %v3072
        %v3074 = vpop.f32.mrf.mxu0
        %v3075 = vadd.f32 %v3048, %v3074
        %3076 = vdwg.mxu0
        %v3077 = vmul.f32 %v2300, %v2300
        %v3078 = vmul.f32 %v2301, %v2301
        %v3080 = vsel %vm306, %v3077, 0
        %v3083 = vsel %vm306, %v3078, 0
        %3085 = vmatpush.msra.mxu0 0.0
        %3086 = vmatpush.msra.mxu0 0.0
        %3087 = vmatpush.msra.mxu0 0.0
        %3088 = vmatpush.msra.mxu0 0.0
        %3089 = vmatpush.msra.mxu0 0.0
        %3090 = vmatpush.msra.mxu0 0.0
        %3091 = vmatpush.msra.mxu0 0.0
        %3092 = vmatpush.msra.mxu0 0.0
        %3093 = vmatpush.msra.mxu0 0.0
        %3094 = vmatpush.msra.mxu0 0.0
        %3095 = vmatpush.msra.mxu0 0.0
        %3096 = vmatpush.msra.mxu0 0.0
        %3097 = vmatpush.msra.mxu0 0.0
        %3098 = vmatpush.msra.mxu0 0.0
        %v3099 = vand.u32 %v299, 4294901760
        %3100 = vmatpush.msra.mxu0 %v3099
        %v3101 = vand.u32 %v298, 4294901760
        %3102 = vmatpush.msra.mxu0 %v3101
        %v3103 = vand.u32 %v3080, 4294901760
        %v3104 = vsub.f32 %v3080, %v3103
        %v3105 = vand.u32 %v3104, 4294901760
        %v3106 = vsub.f32 %v3104, %v3105
        %v3107 = vand.u32 %v3106, 4294901760
        %3108 = vmatmul.f32.gmra.mxu0 %v3107
        %v3109 = vpop.f32.mrf.mxu0
        %v3110 = vadd.f32 0.0, %v3109
        %v3111 = vand.u32 %v3083, 4294901760
        %v3112 = vsub.f32 %v3083, %v3111
        %v3113 = vand.u32 %v3112, 4294901760
        %v3114 = vsub.f32 %v3112, %v3113
        %v3115 = vand.u32 %v3114, 4294901760
        %3116 = vmatmul.f32.gmra.mxu0 %v3115
        %v3117 = vpop.f32.mrf.mxu0
        %v3118 = vadd.f32 0.0, %v3117
        %3119 = vdwg.mxu0
        %3120 = vmatpush.msra.mxu0 0.0
        %3121 = vmatpush.msra.mxu0 0.0
        %3122 = vmatpush.msra.mxu0 0.0
        %3123 = vmatpush.msra.mxu0 0.0
        %3124 = vmatpush.msra.mxu0 0.0
        %3125 = vmatpush.msra.mxu0 0.0
        %3126 = vmatpush.msra.mxu0 0.0
        %3127 = vmatpush.msra.mxu0 0.0
        %3128 = vmatpush.msra.mxu0 0.0
        %3129 = vmatpush.msra.mxu0 0.0
        %3130 = vmatpush.msra.mxu0 0.0
        %3131 = vmatpush.msra.mxu0 0.0
        %3132 = vmatpush.msra.mxu0 0.0
        %3133 = vmatpush.msra.mxu0 0.0
        %v3134 = vand.u32 %v299, 4294901760
        %v3135 = vsub.f32 %v299, %v3134
        %v3136 = vand.u32 %v3135, 4294901760
        %v3137 = vsub.f32 %v3135, %v3136
        %v3138 = vand.u32 %v3137, 4294901760
        %3139 = vmatpush.msra.mxu0 %v3138
        %v3140 = vand.u32 %v298, 4294901760
        %v3141 = vsub.f32 %v298, %v3140
        %v3142 = vand.u32 %v3141, 4294901760
        %v3143 = vsub.f32 %v3141, %v3142
        %v3144 = vand.u32 %v3143, 4294901760
        %3145 = vmatpush.msra.mxu0 %v3144
        %v3146 = vand.u32 %v3080, 4294901760
        %3147 = vmatmul.f32.gmra.mxu0 %v3146
        %v3148 = vpop.f32.mrf.mxu0
        %v3149 = vadd.f32 %v3110, %v3148
        %v3150 = vand.u32 %v3083, 4294901760
        %3151 = vmatmul.f32.gmra.mxu0 %v3150
        %v3152 = vpop.f32.mrf.mxu0
        %v3153 = vadd.f32 %v3118, %v3152
        %3154 = vdwg.mxu0
        %3155 = vmatpush.msra.mxu0 0.0
        %3156 = vmatpush.msra.mxu0 0.0
        %3157 = vmatpush.msra.mxu0 0.0
        %3158 = vmatpush.msra.mxu0 0.0
        %3159 = vmatpush.msra.mxu0 0.0
        %3160 = vmatpush.msra.mxu0 0.0
        %3161 = vmatpush.msra.mxu0 0.0
        %3162 = vmatpush.msra.mxu0 0.0
        %3163 = vmatpush.msra.mxu0 0.0
        %3164 = vmatpush.msra.mxu0 0.0
        %3165 = vmatpush.msra.mxu0 0.0
        %3166 = vmatpush.msra.mxu0 0.0
        %3167 = vmatpush.msra.mxu0 0.0
        %3168 = vmatpush.msra.mxu0 0.0
        %v3169 = vand.u32 %v299, 4294901760
        %v3170 = vsub.f32 %v299, %v3169
        %3171 = vmatpush.msra.mxu0 %v3170
        %v3172 = vand.u32 %v298, 4294901760
        %v3173 = vsub.f32 %v298, %v3172
        %3174 = vmatpush.msra.mxu0 %v3173
        %v3175 = vand.u32 %v3080, 4294901760
        %v3176 = vsub.f32 %v3080, %v3175
        %3177 = vmatmul.f32.gmra.mxu0 %v3176
        %v3178 = vpop.f32.mrf.mxu0
        %v3179 = vadd.f32 %v3149, %v3178
        %v3180 = vand.u32 %v3083, 4294901760
        %v3181 = vsub.f32 %v3083, %v3180
        %3182 = vmatmul.f32.gmra.mxu0 %v3181
        %v3183 = vpop.f32.mrf.mxu0
        %v3184 = vadd.f32 %v3153, %v3183
        %3185 = vdwg.mxu0
        %3186 = vmatpush.msra.mxu0 0.0
        %3187 = vmatpush.msra.mxu0 0.0
        %3188 = vmatpush.msra.mxu0 0.0
        %3189 = vmatpush.msra.mxu0 0.0
        %3190 = vmatpush.msra.mxu0 0.0
        %3191 = vmatpush.msra.mxu0 0.0
        %3192 = vmatpush.msra.mxu0 0.0
        %3193 = vmatpush.msra.mxu0 0.0
        %3194 = vmatpush.msra.mxu0 0.0
        %3195 = vmatpush.msra.mxu0 0.0
        %3196 = vmatpush.msra.mxu0 0.0
        %3197 = vmatpush.msra.mxu0 0.0
        %3198 = vmatpush.msra.mxu0 0.0
        %3199 = vmatpush.msra.mxu0 0.0
        %v3200 = vand.u32 %v299, 4294901760
        %3201 = vmatpush.msra.mxu0 %v3200
        %v3202 = vand.u32 %v298, 4294901760
        %3203 = vmatpush.msra.mxu0 %v3202
        %v3204 = vand.u32 %v3080, 4294901760
        %v3205 = vsub.f32 %v3080, %v3204
        %v3206 = vand.u32 %v3205, 4294901760
        %3207 = vmatmul.f32.gmra.mxu0 %v3206
        %v3208 = vpop.f32.mrf.mxu0
        %v3209 = vadd.f32 %v3179, %v3208
        %v3210 = vand.u32 %v3083, 4294901760
        %v3211 = vsub.f32 %v3083, %v3210
        %v3212 = vand.u32 %v3211, 4294901760
        %3213 = vmatmul.f32.gmra.mxu0 %v3212
        %v3214 = vpop.f32.mrf.mxu0
        %v3215 = vadd.f32 %v3184, %v3214
        %3216 = vdwg.mxu0
        %3217 = vmatpush.msra.mxu0 0.0
        %3218 = vmatpush.msra.mxu0 0.0
        %3219 = vmatpush.msra.mxu0 0.0
        %3220 = vmatpush.msra.mxu0 0.0
        %3221 = vmatpush.msra.mxu0 0.0
        %3222 = vmatpush.msra.mxu0 0.0
        %3223 = vmatpush.msra.mxu0 0.0
        %3224 = vmatpush.msra.mxu0 0.0
        %3225 = vmatpush.msra.mxu0 0.0
        %3226 = vmatpush.msra.mxu0 0.0
        %3227 = vmatpush.msra.mxu0 0.0
        %3228 = vmatpush.msra.mxu0 0.0
        %3229 = vmatpush.msra.mxu0 0.0
        %3230 = vmatpush.msra.mxu0 0.0
        %v3231 = vand.u32 %v299, 4294901760
        %v3232 = vsub.f32 %v299, %v3231
        %v3233 = vand.u32 %v3232, 4294901760
        %3234 = vmatpush.msra.mxu0 %v3233
        %v3235 = vand.u32 %v298, 4294901760
        %v3236 = vsub.f32 %v298, %v3235
        %v3237 = vand.u32 %v3236, 4294901760
        %3238 = vmatpush.msra.mxu0 %v3237
        %v3239 = vand.u32 %v3080, 4294901760
        %3240 = vmatmul.f32.gmra.mxu0 %v3239
        %v3241 = vpop.f32.mrf.mxu0
        %v3242 = vadd.f32 %v3209, %v3241
        %v3243 = vand.u32 %v3083, 4294901760
        %3244 = vmatmul.f32.gmra.mxu0 %v3243
        %v3245 = vpop.f32.mrf.mxu0
        %v3246 = vadd.f32 %v3215, %v3245
        %3247 = vdwg.mxu0
        %3248 = vmatpush.msra.mxu0 0.0
        %3249 = vmatpush.msra.mxu0 0.0
        %3250 = vmatpush.msra.mxu0 0.0
        %3251 = vmatpush.msra.mxu0 0.0
        %3252 = vmatpush.msra.mxu0 0.0
        %3253 = vmatpush.msra.mxu0 0.0
        %3254 = vmatpush.msra.mxu0 0.0
        %3255 = vmatpush.msra.mxu0 0.0
        %3256 = vmatpush.msra.mxu0 0.0
        %3257 = vmatpush.msra.mxu0 0.0
        %3258 = vmatpush.msra.mxu0 0.0
        %3259 = vmatpush.msra.mxu0 0.0
        %3260 = vmatpush.msra.mxu0 0.0
        %3261 = vmatpush.msra.mxu0 0.0
        %v3262 = vand.u32 %v299, 4294901760
        %3263 = vmatpush.msra.mxu0 %v3262
        %v3264 = vand.u32 %v298, 4294901760
        %3265 = vmatpush.msra.mxu0 %v3264
        %v3266 = vand.u32 %v3080, 4294901760
        %3267 = vmatmul.f32.gmra.mxu0 %v3266
        %v3268 = vpop.f32.mrf.mxu0
        %v3269 = vadd.f32 %v3242, %v3268
        %v3270 = vand.u32 %v3083, 4294901760
        %3271 = vmatmul.f32.gmra.mxu0 %v3270
        %v3272 = vpop.f32.mrf.mxu0
        %v3273 = vadd.f32 %v3246, %v3272
        %3274 = vdwg.mxu0
        %v3275 = vmul.f32 %v2303, %v2303
        %v3276 = vmul.f32 %v2304, %v2304
        %v3278 = vsel %vm306, %v3275, 0
        %v3281 = vsel %vm306, %v3276, 0
        %3283 = vmatpush.msra.mxu0 0.0
        %3284 = vmatpush.msra.mxu0 0.0
        %3285 = vmatpush.msra.mxu0 0.0
        %3286 = vmatpush.msra.mxu0 0.0
        %3287 = vmatpush.msra.mxu0 0.0
        %3288 = vmatpush.msra.mxu0 0.0
        %3289 = vmatpush.msra.mxu0 0.0
        %3290 = vmatpush.msra.mxu0 0.0
        %3291 = vmatpush.msra.mxu0 0.0
        %3292 = vmatpush.msra.mxu0 0.0
        %3293 = vmatpush.msra.mxu0 0.0
        %3294 = vmatpush.msra.mxu0 0.0
        %3295 = vmatpush.msra.mxu0 0.0
        %3296 = vmatpush.msra.mxu0 0.0
        %v3297 = vand.u32 %v299, 4294901760
        %3298 = vmatpush.msra.mxu0 %v3297
        %v3299 = vand.u32 %v298, 4294901760
        %3300 = vmatpush.msra.mxu0 %v3299
        %v3301 = vand.u32 %v3278, 4294901760
        %v3302 = vsub.f32 %v3278, %v3301
        %v3303 = vand.u32 %v3302, 4294901760
        %v3304 = vsub.f32 %v3302, %v3303
        %v3305 = vand.u32 %v3304, 4294901760
        %3306 = vmatmul.f32.gmra.mxu0 %v3305
        %v3307 = vpop.f32.mrf.mxu0
        %v3308 = vadd.f32 0.0, %v3307
        %v3309 = vand.u32 %v3281, 4294901760
        %v3310 = vsub.f32 %v3281, %v3309
        %v3311 = vand.u32 %v3310, 4294901760
        %v3312 = vsub.f32 %v3310, %v3311
        %v3313 = vand.u32 %v3312, 4294901760
        %3314 = vmatmul.f32.gmra.mxu0 %v3313
        %v3315 = vpop.f32.mrf.mxu0
        %v3316 = vadd.f32 0.0, %v3315
        %3317 = vdwg.mxu0
        %3318 = vmatpush.msra.mxu0 0.0
        %3319 = vmatpush.msra.mxu0 0.0
        %3320 = vmatpush.msra.mxu0 0.0
        %3321 = vmatpush.msra.mxu0 0.0
        %3322 = vmatpush.msra.mxu0 0.0
        %3323 = vmatpush.msra.mxu0 0.0
        %3324 = vmatpush.msra.mxu0 0.0
        %3325 = vmatpush.msra.mxu0 0.0
        %3326 = vmatpush.msra.mxu0 0.0
        %3327 = vmatpush.msra.mxu0 0.0
        %3328 = vmatpush.msra.mxu0 0.0
        %3329 = vmatpush.msra.mxu0 0.0
        %3330 = vmatpush.msra.mxu0 0.0
        %3331 = vmatpush.msra.mxu0 0.0
        %v3332 = vand.u32 %v299, 4294901760
        %v3333 = vsub.f32 %v299, %v3332
        %v3334 = vand.u32 %v3333, 4294901760
        %v3335 = vsub.f32 %v3333, %v3334
        %v3336 = vand.u32 %v3335, 4294901760
        %3337 = vmatpush.msra.mxu0 %v3336
        %v3338 = vand.u32 %v298, 4294901760
        %v3339 = vsub.f32 %v298, %v3338
        %v3340 = vand.u32 %v3339, 4294901760
        %v3341 = vsub.f32 %v3339, %v3340
        %v3342 = vand.u32 %v3341, 4294901760
        %3343 = vmatpush.msra.mxu0 %v3342
        %v3344 = vand.u32 %v3278, 4294901760
        %3345 = vmatmul.f32.gmra.mxu0 %v3344
        %v3346 = vpop.f32.mrf.mxu0
        %v3347 = vadd.f32 %v3308, %v3346
        %v3348 = vand.u32 %v3281, 4294901760
        %3349 = vmatmul.f32.gmra.mxu0 %v3348
        %v3350 = vpop.f32.mrf.mxu0
        %v3351 = vadd.f32 %v3316, %v3350
        %3352 = vdwg.mxu0
        %3353 = vmatpush.msra.mxu0 0.0
        %3354 = vmatpush.msra.mxu0 0.0
        %3355 = vmatpush.msra.mxu0 0.0
        %3356 = vmatpush.msra.mxu0 0.0
        %3357 = vmatpush.msra.mxu0 0.0
        %3358 = vmatpush.msra.mxu0 0.0
        %3359 = vmatpush.msra.mxu0 0.0
        %3360 = vmatpush.msra.mxu0 0.0
        %3361 = vmatpush.msra.mxu0 0.0
        %3362 = vmatpush.msra.mxu0 0.0
        %3363 = vmatpush.msra.mxu0 0.0
        %3364 = vmatpush.msra.mxu0 0.0
        %3365 = vmatpush.msra.mxu0 0.0
        %3366 = vmatpush.msra.mxu0 0.0
        %v3367 = vand.u32 %v299, 4294901760
        %v3368 = vsub.f32 %v299, %v3367
        %3369 = vmatpush.msra.mxu0 %v3368
        %v3370 = vand.u32 %v298, 4294901760
        %v3371 = vsub.f32 %v298, %v3370
        %3372 = vmatpush.msra.mxu0 %v3371
        %v3373 = vand.u32 %v3278, 4294901760
        %v3374 = vsub.f32 %v3278, %v3373
        %3375 = vmatmul.f32.gmra.mxu0 %v3374
        %v3376 = vpop.f32.mrf.mxu0
        %v3377 = vadd.f32 %v3347, %v3376
        %v3378 = vand.u32 %v3281, 4294901760
        %v3379 = vsub.f32 %v3281, %v3378
        %3380 = vmatmul.f32.gmra.mxu0 %v3379
        %v3381 = vpop.f32.mrf.mxu0
        %v3382 = vadd.f32 %v3351, %v3381
        %3383 = vdwg.mxu0
        %3384 = vmatpush.msra.mxu0 0.0
        %3385 = vmatpush.msra.mxu0 0.0
        %3386 = vmatpush.msra.mxu0 0.0
        %3387 = vmatpush.msra.mxu0 0.0
        %3388 = vmatpush.msra.mxu0 0.0
        %3389 = vmatpush.msra.mxu0 0.0
        %3390 = vmatpush.msra.mxu0 0.0
        %3391 = vmatpush.msra.mxu0 0.0
        %3392 = vmatpush.msra.mxu0 0.0
        %3393 = vmatpush.msra.mxu0 0.0
        %3394 = vmatpush.msra.mxu0 0.0
        %3395 = vmatpush.msra.mxu0 0.0
        %3396 = vmatpush.msra.mxu0 0.0
        %3397 = vmatpush.msra.mxu0 0.0
        %v3398 = vand.u32 %v299, 4294901760
        %3399 = vmatpush.msra.mxu0 %v3398
        %v3400 = vand.u32 %v298, 4294901760
        %3401 = vmatpush.msra.mxu0 %v3400
        %v3402 = vand.u32 %v3278, 4294901760
        %v3403 = vsub.f32 %v3278, %v3402
        %v3404 = vand.u32 %v3403, 4294901760
        %3405 = vmatmul.f32.gmra.mxu0 %v3404
        %v3406 = vpop.f32.mrf.mxu0
        %v3407 = vadd.f32 %v3377, %v3406
        %v3408 = vand.u32 %v3281, 4294901760
        %v3409 = vsub.f32 %v3281, %v3408
        %v3410 = vand.u32 %v3409, 4294901760
        %3411 = vmatmul.f32.gmra.mxu0 %v3410
        %v3412 = vpop.f32.mrf.mxu0
        %v3413 = vadd.f32 %v3382, %v3412
        %3414 = vdwg.mxu0
        %3415 = vmatpush.msra.mxu0 0.0
        %3416 = vmatpush.msra.mxu0 0.0
        %3417 = vmatpush.msra.mxu0 0.0
        %3418 = vmatpush.msra.mxu0 0.0
        %3419 = vmatpush.msra.mxu0 0.0
        %3420 = vmatpush.msra.mxu0 0.0
        %3421 = vmatpush.msra.mxu0 0.0
        %3422 = vmatpush.msra.mxu0 0.0
        %3423 = vmatpush.msra.mxu0 0.0
        %3424 = vmatpush.msra.mxu0 0.0
        %3425 = vmatpush.msra.mxu0 0.0
        %3426 = vmatpush.msra.mxu0 0.0
        %3427 = vmatpush.msra.mxu0 0.0
        %3428 = vmatpush.msra.mxu0 0.0
        %v3429 = vand.u32 %v299, 4294901760
        %v3430 = vsub.f32 %v299, %v3429
        %v3431 = vand.u32 %v3430, 4294901760
        %3432 = vmatpush.msra.mxu0 %v3431
        %v3433 = vand.u32 %v298, 4294901760
        %v3434 = vsub.f32 %v298, %v3433
        %v3435 = vand.u32 %v3434, 4294901760
        %3436 = vmatpush.msra.mxu0 %v3435
        %v3437 = vand.u32 %v3278, 4294901760
        %3438 = vmatmul.f32.gmra.mxu0 %v3437
        %v3439 = vpop.f32.mrf.mxu0
        %v3440 = vadd.f32 %v3407, %v3439
        %v3441 = vand.u32 %v3281, 4294901760
        %3442 = vmatmul.f32.gmra.mxu0 %v3441
        %v3443 = vpop.f32.mrf.mxu0
        %v3444 = vadd.f32 %v3413, %v3443
        %3445 = vdwg.mxu0
        %3446 = vmatpush.msra.mxu0 0.0
        %3447 = vmatpush.msra.mxu0 0.0
        %3448 = vmatpush.msra.mxu0 0.0
        %3449 = vmatpush.msra.mxu0 0.0
        %3450 = vmatpush.msra.mxu0 0.0
        %3451 = vmatpush.msra.mxu0 0.0
        %3452 = vmatpush.msra.mxu0 0.0
        %3453 = vmatpush.msra.mxu0 0.0
        %3454 = vmatpush.msra.mxu0 0.0
        %3455 = vmatpush.msra.mxu0 0.0
        %3456 = vmatpush.msra.mxu0 0.0
        %3457 = vmatpush.msra.mxu0 0.0
        %3458 = vmatpush.msra.mxu0 0.0
        %3459 = vmatpush.msra.mxu0 0.0
        %v3460 = vand.u32 %v299, 4294901760
        %3461 = vmatpush.msra.mxu0 %v3460
        %v3462 = vand.u32 %v298, 4294901760
        %3463 = vmatpush.msra.mxu0 %v3462
        %v3464 = vand.u32 %v3278, 4294901760
        %3465 = vmatmul.f32.gmra.mxu0 %v3464
        %v3466 = vpop.f32.mrf.mxu0
        %v3467 = vadd.f32 %v3440, %v3466
        %v3468 = vand.u32 %v3281, 4294901760
        %3469 = vmatmul.f32.gmra.mxu0 %v3468
        %v3470 = vpop.f32.mrf.mxu0
        %v3471 = vadd.f32 %v3444, %v3470
        %3472 = vdwg.mxu0
        %3473 = vmatpush.msra.mxu0 0.0
        %3474 = vmatpush.msra.mxu0 0.0
        %3475 = vmatpush.msra.mxu0 0.0
        %3476 = vmatpush.msra.mxu0 0.0
        %3477 = vmatpush.msra.mxu0 0.0
        %3478 = vmatpush.msra.mxu0 0.0
        %3479 = vmatpush.msra.mxu0 0.0
        %3480 = vmatpush.msra.mxu0 0.0
        %3481 = vmatpush.msra.mxu0 0.0
        %3482 = vmatpush.msra.mxu0 0.0
        %3483 = vmatpush.msra.mxu0 0.0
        %3484 = vmatpush.msra.mxu0 0.0
        %3485 = vmatpush.msra.mxu0 0.0
        %3486 = vmatpush.msra.mxu0 0.0
        %v3487 = vand.u32 %v3471, 4294901760
        %3488 = vmatpush.msra.mxu0 %v3487
        %v3489 = vand.u32 %v3467, 4294901760
        %3490 = vmatpush.msra.mxu0 %v3489
        %v3491 = vand.u32 %v504, 4294901760
        %v3492 = vsub.f32 %v504, %v3491
        %v3493 = vand.u32 %v3492, 4294901760
        %v3494 = vsub.f32 %v3492, %v3493
        %v3495 = vand.u32 %v3494, 4294901760
        %3496 = vmatmul.f32.gmra.mxu0 %v3495
        %v3497 = vpop.f32.mrf.mxu0
        %v3498 = vadd.f32 0.0, %v3497
        %v3499 = vand.u32 %v507, 4294901760
        %v3500 = vsub.f32 %v507, %v3499
        %v3501 = vand.u32 %v3500, 4294901760
        %v3502 = vsub.f32 %v3500, %v3501
        %v3503 = vand.u32 %v3502, 4294901760
        %3504 = vmatmul.f32.gmra.mxu0 %v3503
        %v3505 = vpop.f32.mrf.mxu0
        %v3506 = vadd.f32 0.0, %v3505
        %3507 = vdwg.mxu0
        %3508 = vmatpush.msra.mxu0 0.0
        %3509 = vmatpush.msra.mxu0 0.0
        %3510 = vmatpush.msra.mxu0 0.0
        %3511 = vmatpush.msra.mxu0 0.0
        %3512 = vmatpush.msra.mxu0 0.0
        %3513 = vmatpush.msra.mxu0 0.0
        %3514 = vmatpush.msra.mxu0 0.0
        %3515 = vmatpush.msra.mxu0 0.0
        %3516 = vmatpush.msra.mxu0 0.0
        %3517 = vmatpush.msra.mxu0 0.0
        %3518 = vmatpush.msra.mxu0 0.0
        %3519 = vmatpush.msra.mxu0 0.0
        %3520 = vmatpush.msra.mxu0 0.0
        %3521 = vmatpush.msra.mxu0 0.0
        %v3522 = vand.u32 %v3471, 4294901760
        %v3523 = vsub.f32 %v3471, %v3522
        %v3524 = vand.u32 %v3523, 4294901760
        %v3525 = vsub.f32 %v3523, %v3524
        %v3526 = vand.u32 %v3525, 4294901760
        %3527 = vmatpush.msra.mxu0 %v3526
        %v3528 = vand.u32 %v3467, 4294901760
        %v3529 = vsub.f32 %v3467, %v3528
        %v3530 = vand.u32 %v3529, 4294901760
        %v3531 = vsub.f32 %v3529, %v3530
        %v3532 = vand.u32 %v3531, 4294901760
        %3533 = vmatpush.msra.mxu0 %v3532
        %v3534 = vand.u32 %v504, 4294901760
        %3535 = vmatmul.f32.gmra.mxu0 %v3534
        %v3536 = vpop.f32.mrf.mxu0
        %v3537 = vadd.f32 %v3498, %v3536
        %v3538 = vand.u32 %v507, 4294901760
        %3539 = vmatmul.f32.gmra.mxu0 %v3538
        %v3540 = vpop.f32.mrf.mxu0
        %v3541 = vadd.f32 %v3506, %v3540
        %3542 = vdwg.mxu0
        %3543 = vmatpush.msra.mxu0 0.0
        %3544 = vmatpush.msra.mxu0 0.0
        %3545 = vmatpush.msra.mxu0 0.0
        %3546 = vmatpush.msra.mxu0 0.0
        %3547 = vmatpush.msra.mxu0 0.0
        %3548 = vmatpush.msra.mxu0 0.0
        %3549 = vmatpush.msra.mxu0 0.0
        %3550 = vmatpush.msra.mxu0 0.0
        %3551 = vmatpush.msra.mxu0 0.0
        %3552 = vmatpush.msra.mxu0 0.0
        %3553 = vmatpush.msra.mxu0 0.0
        %3554 = vmatpush.msra.mxu0 0.0
        %3555 = vmatpush.msra.mxu0 0.0
        %3556 = vmatpush.msra.mxu0 0.0
        %v3557 = vand.u32 %v3471, 4294901760
        %v3558 = vsub.f32 %v3471, %v3557
        %3559 = vmatpush.msra.mxu0 %v3558
        %v3560 = vand.u32 %v3467, 4294901760
        %v3561 = vsub.f32 %v3467, %v3560
        %3562 = vmatpush.msra.mxu0 %v3561
        %v3563 = vand.u32 %v504, 4294901760
        %v3564 = vsub.f32 %v504, %v3563
        %3565 = vmatmul.f32.gmra.mxu0 %v3564
        %v3566 = vpop.f32.mrf.mxu0
        %v3567 = vadd.f32 %v3537, %v3566
        %v3568 = vand.u32 %v507, 4294901760
        %v3569 = vsub.f32 %v507, %v3568
        %3570 = vmatmul.f32.gmra.mxu0 %v3569
        %v3571 = vpop.f32.mrf.mxu0
        %v3572 = vadd.f32 %v3541, %v3571
        %3573 = vdwg.mxu0
        %3574 = vmatpush.msra.mxu0 0.0
        %3575 = vmatpush.msra.mxu0 0.0
        %3576 = vmatpush.msra.mxu0 0.0
        %3577 = vmatpush.msra.mxu0 0.0
        %3578 = vmatpush.msra.mxu0 0.0
        %3579 = vmatpush.msra.mxu0 0.0
        %3580 = vmatpush.msra.mxu0 0.0
        %3581 = vmatpush.msra.mxu0 0.0
        %3582 = vmatpush.msra.mxu0 0.0
        %3583 = vmatpush.msra.mxu0 0.0
        %3584 = vmatpush.msra.mxu0 0.0
        %3585 = vmatpush.msra.mxu0 0.0
        %3586 = vmatpush.msra.mxu0 0.0
        %3587 = vmatpush.msra.mxu0 0.0
        %v3588 = vand.u32 %v3471, 4294901760
        %3589 = vmatpush.msra.mxu0 %v3588
        %v3590 = vand.u32 %v3467, 4294901760
        %3591 = vmatpush.msra.mxu0 %v3590
        %v3592 = vand.u32 %v504, 4294901760
        %v3593 = vsub.f32 %v504, %v3592
        %v3594 = vand.u32 %v3593, 4294901760
        %3595 = vmatmul.f32.gmra.mxu0 %v3594
        %v3596 = vpop.f32.mrf.mxu0
        %v3597 = vadd.f32 %v3567, %v3596
        %v3598 = vand.u32 %v507, 4294901760
        %v3599 = vsub.f32 %v507, %v3598
        %v3600 = vand.u32 %v3599, 4294901760
        %3601 = vmatmul.f32.gmra.mxu0 %v3600
        %v3602 = vpop.f32.mrf.mxu0
        %v3603 = vadd.f32 %v3572, %v3602
        %3604 = vdwg.mxu0
        %3605 = vmatpush.msra.mxu0 0.0
        %3606 = vmatpush.msra.mxu0 0.0
        %3607 = vmatpush.msra.mxu0 0.0
        %3608 = vmatpush.msra.mxu0 0.0
        %3609 = vmatpush.msra.mxu0 0.0
        %3610 = vmatpush.msra.mxu0 0.0
        %3611 = vmatpush.msra.mxu0 0.0
        %3612 = vmatpush.msra.mxu0 0.0
        %3613 = vmatpush.msra.mxu0 0.0
        %3614 = vmatpush.msra.mxu0 0.0
        %3615 = vmatpush.msra.mxu0 0.0
        %3616 = vmatpush.msra.mxu0 0.0
        %3617 = vmatpush.msra.mxu0 0.0
        %3618 = vmatpush.msra.mxu0 0.0
        %v3619 = vand.u32 %v3471, 4294901760
        %v3620 = vsub.f32 %v3471, %v3619
        %v3621 = vand.u32 %v3620, 4294901760
        %3622 = vmatpush.msra.mxu0 %v3621
        %v3623 = vand.u32 %v3467, 4294901760
        %v3624 = vsub.f32 %v3467, %v3623
        %v3625 = vand.u32 %v3624, 4294901760
        %3626 = vmatpush.msra.mxu0 %v3625
        %v3627 = vand.u32 %v504, 4294901760
        %3628 = vmatmul.f32.gmra.mxu0 %v3627
        %v3629 = vpop.f32.mrf.mxu0
        %v3630 = vadd.f32 %v3597, %v3629
        %v3631 = vand.u32 %v507, 4294901760
        %3632 = vmatmul.f32.gmra.mxu0 %v3631
        %v3633 = vpop.f32.mrf.mxu0
        %v3634 = vadd.f32 %v3603, %v3633
        %3635 = vdwg.mxu0
        %3636 = vmatpush.msra.mxu0 0.0
        %3637 = vmatpush.msra.mxu0 0.0
        %3638 = vmatpush.msra.mxu0 0.0
        %3639 = vmatpush.msra.mxu0 0.0
        %3640 = vmatpush.msra.mxu0 0.0
        %3641 = vmatpush.msra.mxu0 0.0
        %3642 = vmatpush.msra.mxu0 0.0
        %3643 = vmatpush.msra.mxu0 0.0
        %3644 = vmatpush.msra.mxu0 0.0
        %3645 = vmatpush.msra.mxu0 0.0
        %3646 = vmatpush.msra.mxu0 0.0
        %3647 = vmatpush.msra.mxu0 0.0
        %3648 = vmatpush.msra.mxu0 0.0
        %3649 = vmatpush.msra.mxu0 0.0
        %v3650 = vand.u32 %v3471, 4294901760
        %3651 = vmatpush.msra.mxu0 %v3650
        %v3652 = vand.u32 %v3467, 4294901760
        %3653 = vmatpush.msra.mxu0 %v3652
        %v3654 = vand.u32 %v504, 4294901760
        %3655 = vmatmul.f32.gmra.mxu0 %v3654
        %v3656 = vpop.f32.mrf.mxu0
        %v3657 = vadd.f32 %v3630, %v3656
        %v3658 = vand.u32 %v507, 4294901760
        %3659 = vmatmul.f32.gmra.mxu0 %v3658
        %v3660 = vpop.f32.mrf.mxu0
        %v3661 = vadd.f32 %v3634, %v3660
        %3662 = vdwg.mxu0
        %v3663 = vmul.f32 %v2300, %v2303
        %v3664 = vmul.f32 %v2301, %v2304
        %v3666 = vsel %vm306, %v3663, 0
        %v3669 = vsel %vm306, %v3664, 0
        %3671 = vmatpush.msra.mxu0 0.0
        %3672 = vmatpush.msra.mxu0 0.0
        %3673 = vmatpush.msra.mxu0 0.0
        %3674 = vmatpush.msra.mxu0 0.0
        %3675 = vmatpush.msra.mxu0 0.0
        %3676 = vmatpush.msra.mxu0 0.0
        %3677 = vmatpush.msra.mxu0 0.0
        %3678 = vmatpush.msra.mxu0 0.0
        %3679 = vmatpush.msra.mxu0 0.0
        %3680 = vmatpush.msra.mxu0 0.0
        %3681 = vmatpush.msra.mxu0 0.0
        %3682 = vmatpush.msra.mxu0 0.0
        %3683 = vmatpush.msra.mxu0 0.0
        %3684 = vmatpush.msra.mxu0 0.0
        %v3685 = vand.u32 %v299, 4294901760
        %3686 = vmatpush.msra.mxu0 %v3685
        %v3687 = vand.u32 %v298, 4294901760
        %3688 = vmatpush.msra.mxu0 %v3687
        %v3689 = vand.u32 %v3666, 4294901760
        %v3690 = vsub.f32 %v3666, %v3689
        %v3691 = vand.u32 %v3690, 4294901760
        %v3692 = vsub.f32 %v3690, %v3691
        %v3693 = vand.u32 %v3692, 4294901760
        %3694 = vmatmul.f32.gmra.mxu0 %v3693
        %v3695 = vpop.f32.mrf.mxu0
        %v3696 = vadd.f32 0.0, %v3695
        %v3697 = vand.u32 %v3669, 4294901760
        %v3698 = vsub.f32 %v3669, %v3697
        %v3699 = vand.u32 %v3698, 4294901760
        %v3700 = vsub.f32 %v3698, %v3699
        %v3701 = vand.u32 %v3700, 4294901760
        %3702 = vmatmul.f32.gmra.mxu0 %v3701
        %v3703 = vpop.f32.mrf.mxu0
        %v3704 = vadd.f32 0.0, %v3703
        %3705 = vdwg.mxu0
        %3706 = vmatpush.msra.mxu0 0.0
        %3707 = vmatpush.msra.mxu0 0.0
        %3708 = vmatpush.msra.mxu0 0.0
        %3709 = vmatpush.msra.mxu0 0.0
        %3710 = vmatpush.msra.mxu0 0.0
        %3711 = vmatpush.msra.mxu0 0.0
        %3712 = vmatpush.msra.mxu0 0.0
        %3713 = vmatpush.msra.mxu0 0.0
        %3714 = vmatpush.msra.mxu0 0.0
        %3715 = vmatpush.msra.mxu0 0.0
        %3716 = vmatpush.msra.mxu0 0.0
        %3717 = vmatpush.msra.mxu0 0.0
        %3718 = vmatpush.msra.mxu0 0.0
        %3719 = vmatpush.msra.mxu0 0.0
        %v3720 = vand.u32 %v299, 4294901760
        %v3721 = vsub.f32 %v299, %v3720
        %v3722 = vand.u32 %v3721, 4294901760
        %v3723 = vsub.f32 %v3721, %v3722
        %v3724 = vand.u32 %v3723, 4294901760
        %3725 = vmatpush.msra.mxu0 %v3724
        %v3726 = vand.u32 %v298, 4294901760
        %v3727 = vsub.f32 %v298, %v3726
        %v3728 = vand.u32 %v3727, 4294901760
        %v3729 = vsub.f32 %v3727, %v3728
        %v3730 = vand.u32 %v3729, 4294901760
        %3731 = vmatpush.msra.mxu0 %v3730
        %v3732 = vand.u32 %v3666, 4294901760
        %3733 = vmatmul.f32.gmra.mxu0 %v3732
        %v3734 = vpop.f32.mrf.mxu0
        %v3735 = vadd.f32 %v3696, %v3734
        %v3736 = vand.u32 %v3669, 4294901760
        %3737 = vmatmul.f32.gmra.mxu0 %v3736
        %v3738 = vpop.f32.mrf.mxu0
        %v3739 = vadd.f32 %v3704, %v3738
        %3740 = vdwg.mxu0
        %3741 = vmatpush.msra.mxu0 0.0
        %3742 = vmatpush.msra.mxu0 0.0
        %3743 = vmatpush.msra.mxu0 0.0
        %3744 = vmatpush.msra.mxu0 0.0
        %3745 = vmatpush.msra.mxu0 0.0
        %3746 = vmatpush.msra.mxu0 0.0
        %3747 = vmatpush.msra.mxu0 0.0
        %3748 = vmatpush.msra.mxu0 0.0
        %3749 = vmatpush.msra.mxu0 0.0
        %3750 = vmatpush.msra.mxu0 0.0
        %3751 = vmatpush.msra.mxu0 0.0
        %3752 = vmatpush.msra.mxu0 0.0
        %3753 = vmatpush.msra.mxu0 0.0
        %3754 = vmatpush.msra.mxu0 0.0
        %v3755 = vand.u32 %v299, 4294901760
        %v3756 = vsub.f32 %v299, %v3755
        %3757 = vmatpush.msra.mxu0 %v3756
        %v3758 = vand.u32 %v298, 4294901760
        %v3759 = vsub.f32 %v298, %v3758
        %3760 = vmatpush.msra.mxu0 %v3759
        %v3761 = vand.u32 %v3666, 4294901760
        %v3762 = vsub.f32 %v3666, %v3761
        %3763 = vmatmul.f32.gmra.mxu0 %v3762
        %v3764 = vpop.f32.mrf.mxu0
        %v3765 = vadd.f32 %v3735, %v3764
        %v3766 = vand.u32 %v3669, 4294901760
        %v3767 = vsub.f32 %v3669, %v3766
        %3768 = vmatmul.f32.gmra.mxu0 %v3767
        %v3769 = vpop.f32.mrf.mxu0
        %v3770 = vadd.f32 %v3739, %v3769
        %3771 = vdwg.mxu0
        %3772 = vmatpush.msra.mxu0 0.0
        %3773 = vmatpush.msra.mxu0 0.0
        %3774 = vmatpush.msra.mxu0 0.0
        %3775 = vmatpush.msra.mxu0 0.0
        %3776 = vmatpush.msra.mxu0 0.0
        %3777 = vmatpush.msra.mxu0 0.0
        %3778 = vmatpush.msra.mxu0 0.0
        %3779 = vmatpush.msra.mxu0 0.0
        %3780 = vmatpush.msra.mxu0 0.0
        %3781 = vmatpush.msra.mxu0 0.0
        %3782 = vmatpush.msra.mxu0 0.0
        %3783 = vmatpush.msra.mxu0 0.0
        %3784 = vmatpush.msra.mxu0 0.0
        %3785 = vmatpush.msra.mxu0 0.0
        %v3786 = vand.u32 %v299, 4294901760
        %3787 = vmatpush.msra.mxu0 %v3786
        %v3788 = vand.u32 %v298, 4294901760
        %3789 = vmatpush.msra.mxu0 %v3788
        %v3790 = vand.u32 %v3666, 4294901760
        %v3791 = vsub.f32 %v3666, %v3790
        %v3792 = vand.u32 %v3791, 4294901760
        %3793 = vmatmul.f32.gmra.mxu0 %v3792
        %v3794 = vpop.f32.mrf.mxu0
        %v3795 = vadd.f32 %v3765, %v3794
        %v3796 = vand.u32 %v3669, 4294901760
        %v3797 = vsub.f32 %v3669, %v3796
        %v3798 = vand.u32 %v3797, 4294901760
        %3799 = vmatmul.f32.gmra.mxu0 %v3798
        %v3800 = vpop.f32.mrf.mxu0
        %v3801 = vadd.f32 %v3770, %v3800
        %3802 = vdwg.mxu0
        %3803 = vmatpush.msra.mxu0 0.0
        %3804 = vmatpush.msra.mxu0 0.0
        %3805 = vmatpush.msra.mxu0 0.0
        %3806 = vmatpush.msra.mxu0 0.0
        %3807 = vmatpush.msra.mxu0 0.0
        %3808 = vmatpush.msra.mxu0 0.0
        %3809 = vmatpush.msra.mxu0 0.0
        %3810 = vmatpush.msra.mxu0 0.0
        %3811 = vmatpush.msra.mxu0 0.0
        %3812 = vmatpush.msra.mxu0 0.0
        %3813 = vmatpush.msra.mxu0 0.0
        %3814 = vmatpush.msra.mxu0 0.0
        %3815 = vmatpush.msra.mxu0 0.0
        %3816 = vmatpush.msra.mxu0 0.0
        %v3817 = vand.u32 %v299, 4294901760
        %v3818 = vsub.f32 %v299, %v3817
        %v3819 = vand.u32 %v3818, 4294901760
        %3820 = vmatpush.msra.mxu0 %v3819
        %v3821 = vand.u32 %v298, 4294901760
        %v3822 = vsub.f32 %v298, %v3821
        %v3823 = vand.u32 %v3822, 4294901760
        %3824 = vmatpush.msra.mxu0 %v3823
        %v3825 = vand.u32 %v3666, 4294901760
        %3826 = vmatmul.f32.gmra.mxu0 %v3825
        %v3827 = vpop.f32.mrf.mxu0
        %v3828 = vadd.f32 %v3795, %v3827
        %v3829 = vand.u32 %v3669, 4294901760
        %3830 = vmatmul.f32.gmra.mxu0 %v3829
        %v3831 = vpop.f32.mrf.mxu0
        %v3832 = vadd.f32 %v3801, %v3831
        %3833 = vdwg.mxu0
        %3834 = vmatpush.msra.mxu0 0.0
        %3835 = vmatpush.msra.mxu0 0.0
        %3836 = vmatpush.msra.mxu0 0.0
        %3837 = vmatpush.msra.mxu0 0.0
        %3838 = vmatpush.msra.mxu0 0.0
        %3839 = vmatpush.msra.mxu0 0.0
        %3840 = vmatpush.msra.mxu0 0.0
        %3841 = vmatpush.msra.mxu0 0.0
        %3842 = vmatpush.msra.mxu0 0.0
        %3843 = vmatpush.msra.mxu0 0.0
        %3844 = vmatpush.msra.mxu0 0.0
        %3845 = vmatpush.msra.mxu0 0.0
        %3846 = vmatpush.msra.mxu0 0.0
        %3847 = vmatpush.msra.mxu0 0.0
        %v3848 = vand.u32 %v299, 4294901760
        %3849 = vmatpush.msra.mxu0 %v3848
        %v3850 = vand.u32 %v298, 4294901760
        %3851 = vmatpush.msra.mxu0 %v3850
        %v3852 = vand.u32 %v3666, 4294901760
        %3853 = vmatmul.f32.gmra.mxu0 %v3852
        %v3854 = vpop.f32.mrf.mxu0
        %v3855 = vadd.f32 %v3828, %v3854
        %v3856 = vand.u32 %v3669, 4294901760
        %3857 = vmatmul.f32.gmra.mxu0 %v3856
        %v3858 = vpop.f32.mrf.mxu0
        %v3859 = vadd.f32 %v3832, %v3858
        %3860 = vdwg.mxu0
        %3861 = vmatpush.msra.mxu0 0.0
        %3862 = vmatpush.msra.mxu0 0.0
        %3863 = vmatpush.msra.mxu0 0.0
        %3864 = vmatpush.msra.mxu0 0.0
        %3865 = vmatpush.msra.mxu0 0.0
        %3866 = vmatpush.msra.mxu0 0.0
        %3867 = vmatpush.msra.mxu0 0.0
        %3868 = vmatpush.msra.mxu0 0.0
        %3869 = vmatpush.msra.mxu0 0.0
        %3870 = vmatpush.msra.mxu0 0.0
        %3871 = vmatpush.msra.mxu0 0.0
        %3872 = vmatpush.msra.mxu0 0.0
        %3873 = vmatpush.msra.mxu0 0.0
        %3874 = vmatpush.msra.mxu0 0.0
        %v3875 = vand.u32 %v3859, 4294901760
        %3876 = vmatpush.msra.mxu0 %v3875
        %v3877 = vand.u32 %v3855, 4294901760
        %3878 = vmatpush.msra.mxu0 %v3877
        %v3879 = vand.u32 %v504, 4294901760
        %v3880 = vsub.f32 %v504, %v3879
        %v3881 = vand.u32 %v3880, 4294901760
        %v3882 = vsub.f32 %v3880, %v3881
        %v3883 = vand.u32 %v3882, 4294901760
        %3884 = vmatmul.f32.gmra.mxu0 %v3883
        %v3885 = vpop.f32.mrf.mxu0
        %v3886 = vadd.f32 0.0, %v3885
        %v3887 = vand.u32 %v507, 4294901760
        %v3888 = vsub.f32 %v507, %v3887
        %v3889 = vand.u32 %v3888, 4294901760
        %v3890 = vsub.f32 %v3888, %v3889
        %v3891 = vand.u32 %v3890, 4294901760
        %3892 = vmatmul.f32.gmra.mxu0 %v3891
        %v3893 = vpop.f32.mrf.mxu0
        %v3894 = vadd.f32 0.0, %v3893
        %3895 = vdwg.mxu0
        %3896 = vmatpush.msra.mxu0 0.0
        %3897 = vmatpush.msra.mxu0 0.0
        %3898 = vmatpush.msra.mxu0 0.0
        %3899 = vmatpush.msra.mxu0 0.0
        %3900 = vmatpush.msra.mxu0 0.0
        %3901 = vmatpush.msra.mxu0 0.0
        %3902 = vmatpush.msra.mxu0 0.0
        %3903 = vmatpush.msra.mxu0 0.0
        %3904 = vmatpush.msra.mxu0 0.0
        %3905 = vmatpush.msra.mxu0 0.0
        %3906 = vmatpush.msra.mxu0 0.0
        %3907 = vmatpush.msra.mxu0 0.0
        %3908 = vmatpush.msra.mxu0 0.0
        %3909 = vmatpush.msra.mxu0 0.0
        %v3910 = vand.u32 %v3859, 4294901760
        %v3911 = vsub.f32 %v3859, %v3910
        %v3912 = vand.u32 %v3911, 4294901760
        %v3913 = vsub.f32 %v3911, %v3912
        %v3914 = vand.u32 %v3913, 4294901760
        %3915 = vmatpush.msra.mxu0 %v3914
        %v3916 = vand.u32 %v3855, 4294901760
        %v3917 = vsub.f32 %v3855, %v3916
        %v3918 = vand.u32 %v3917, 4294901760
        %v3919 = vsub.f32 %v3917, %v3918
        %v3920 = vand.u32 %v3919, 4294901760
        %3921 = vmatpush.msra.mxu0 %v3920
        %v3922 = vand.u32 %v504, 4294901760
        %3923 = vmatmul.f32.gmra.mxu0 %v3922
        %v3924 = vpop.f32.mrf.mxu0
        %v3925 = vadd.f32 %v3886, %v3924
        %v3926 = vand.u32 %v507, 4294901760
        %3927 = vmatmul.f32.gmra.mxu0 %v3926
        %v3928 = vpop.f32.mrf.mxu0
        %v3929 = vadd.f32 %v3894, %v3928
        %3930 = vdwg.mxu0
        %3931 = vmatpush.msra.mxu0 0.0
        %3932 = vmatpush.msra.mxu0 0.0
        %3933 = vmatpush.msra.mxu0 0.0
        %3934 = vmatpush.msra.mxu0 0.0
        %3935 = vmatpush.msra.mxu0 0.0
        %3936 = vmatpush.msra.mxu0 0.0
        %3937 = vmatpush.msra.mxu0 0.0
        %3938 = vmatpush.msra.mxu0 0.0
        %3939 = vmatpush.msra.mxu0 0.0
        %3940 = vmatpush.msra.mxu0 0.0
        %3941 = vmatpush.msra.mxu0 0.0
        %3942 = vmatpush.msra.mxu0 0.0
        %3943 = vmatpush.msra.mxu0 0.0
        %3944 = vmatpush.msra.mxu0 0.0
        %v3945 = vand.u32 %v3859, 4294901760
        %v3946 = vsub.f32 %v3859, %v3945
        %3947 = vmatpush.msra.mxu0 %v3946
        %v3948 = vand.u32 %v3855, 4294901760
        %v3949 = vsub.f32 %v3855, %v3948
        %3950 = vmatpush.msra.mxu0 %v3949
        %v3951 = vand.u32 %v504, 4294901760
        %v3952 = vsub.f32 %v504, %v3951
        %3953 = vmatmul.f32.gmra.mxu0 %v3952
        %v3954 = vpop.f32.mrf.mxu0
        %v3955 = vadd.f32 %v3925, %v3954
        %v3956 = vand.u32 %v507, 4294901760
        %v3957 = vsub.f32 %v507, %v3956
        %3958 = vmatmul.f32.gmra.mxu0 %v3957
        %v3959 = vpop.f32.mrf.mxu0
        %v3960 = vadd.f32 %v3929, %v3959
        %3961 = vdwg.mxu0
        %3962 = vmatpush.msra.mxu0 0.0
        %3963 = vmatpush.msra.mxu0 0.0
        %3964 = vmatpush.msra.mxu0 0.0
        %3965 = vmatpush.msra.mxu0 0.0
        %3966 = vmatpush.msra.mxu0 0.0
        %3967 = vmatpush.msra.mxu0 0.0
        %3968 = vmatpush.msra.mxu0 0.0
        %3969 = vmatpush.msra.mxu0 0.0
        %3970 = vmatpush.msra.mxu0 0.0
        %3971 = vmatpush.msra.mxu0 0.0
        %3972 = vmatpush.msra.mxu0 0.0
        %3973 = vmatpush.msra.mxu0 0.0
        %3974 = vmatpush.msra.mxu0 0.0
        %3975 = vmatpush.msra.mxu0 0.0
        %v3976 = vand.u32 %v3859, 4294901760
        %3977 = vmatpush.msra.mxu0 %v3976
        %v3978 = vand.u32 %v3855, 4294901760
        %3979 = vmatpush.msra.mxu0 %v3978
        %v3980 = vand.u32 %v504, 4294901760
        %v3981 = vsub.f32 %v504, %v3980
        %v3982 = vand.u32 %v3981, 4294901760
        %3983 = vmatmul.f32.gmra.mxu0 %v3982
        %v3984 = vpop.f32.mrf.mxu0
        %v3985 = vadd.f32 %v3955, %v3984
        %v3986 = vand.u32 %v507, 4294901760
        %v3987 = vsub.f32 %v507, %v3986
        %v3988 = vand.u32 %v3987, 4294901760
        %3989 = vmatmul.f32.gmra.mxu0 %v3988
        %v3990 = vpop.f32.mrf.mxu0
        %v3991 = vadd.f32 %v3960, %v3990
        %3992 = vdwg.mxu0
        %3993 = vmatpush.msra.mxu0 0.0
        %3994 = vmatpush.msra.mxu0 0.0
        %3995 = vmatpush.msra.mxu0 0.0
        %3996 = vmatpush.msra.mxu0 0.0
        %3997 = vmatpush.msra.mxu0 0.0
        %3998 = vmatpush.msra.mxu0 0.0
        %3999 = vmatpush.msra.mxu0 0.0
        %4000 = vmatpush.msra.mxu0 0.0
        %4001 = vmatpush.msra.mxu0 0.0
        %4002 = vmatpush.msra.mxu0 0.0
        %4003 = vmatpush.msra.mxu0 0.0
        %4004 = vmatpush.msra.mxu0 0.0
        %4005 = vmatpush.msra.mxu0 0.0
        %4006 = vmatpush.msra.mxu0 0.0
        %v4007 = vand.u32 %v3859, 4294901760
        %v4008 = vsub.f32 %v3859, %v4007
        %v4009 = vand.u32 %v4008, 4294901760
        %4010 = vmatpush.msra.mxu0 %v4009
        %v4011 = vand.u32 %v3855, 4294901760
        %v4012 = vsub.f32 %v3855, %v4011
        %v4013 = vand.u32 %v4012, 4294901760
        %4014 = vmatpush.msra.mxu0 %v4013
        %v4015 = vand.u32 %v504, 4294901760
        %4016 = vmatmul.f32.gmra.mxu0 %v4015
        %v4017 = vpop.f32.mrf.mxu0
        %v4018 = vadd.f32 %v3985, %v4017
        %v4019 = vand.u32 %v507, 4294901760
        %4020 = vmatmul.f32.gmra.mxu0 %v4019
        %v4021 = vpop.f32.mrf.mxu0
        %v4022 = vadd.f32 %v3991, %v4021
        %4023 = vdwg.mxu0
        %4024 = vmatpush.msra.mxu0 0.0
        %4025 = vmatpush.msra.mxu0 0.0
        %4026 = vmatpush.msra.mxu0 0.0
        %4027 = vmatpush.msra.mxu0 0.0
        %4028 = vmatpush.msra.mxu0 0.0
        %4029 = vmatpush.msra.mxu0 0.0
        %4030 = vmatpush.msra.mxu0 0.0
        %4031 = vmatpush.msra.mxu0 0.0
        %4032 = vmatpush.msra.mxu0 0.0
        %4033 = vmatpush.msra.mxu0 0.0
        %4034 = vmatpush.msra.mxu0 0.0
        %4035 = vmatpush.msra.mxu0 0.0
        %4036 = vmatpush.msra.mxu0 0.0
        %4037 = vmatpush.msra.mxu0 0.0
        %v4038 = vand.u32 %v3859, 4294901760
        %4039 = vmatpush.msra.mxu0 %v4038
        %v4040 = vand.u32 %v3855, 4294901760
        %4041 = vmatpush.msra.mxu0 %v4040
        %v4042 = vand.u32 %v504, 4294901760
        %4043 = vmatmul.f32.gmra.mxu0 %v4042
        %v4044 = vpop.f32.mrf.mxu0
        %v4045 = vadd.f32 %v4018, %v4044
        %v4046 = vand.u32 %v507, 4294901760
        %4047 = vmatmul.f32.gmra.mxu0 %v4046
        %v4048 = vpop.f32.mrf.mxu0
        %v4049 = vadd.f32 %v4022, %v4048
        %4050 = vdwg.mxu0
        %v4051 = vmul.f32 %v2685, %v3071
        %v4052 = vmul.f32 %v2689, %v3075
        %v4053 = vmul.f32 %v2685, %v2685
        %v4054 = vmul.f32 %v2689, %v2689
        %v4055 = vmul.f32 %v3071, %v3071
        %v4056 = vmul.f32 %v3075, %v3075
        %v4057 = vadd.f32 %v4053, %v4055
        %v4058 = vadd.f32 %v4054, %v4056
        %v4059 = vmul.f32 %v4051, 2.0
        %v4060 = vmul.f32 %v4052, 2.0
        %v4061 = vadd.f32 %v4059, 0.0081
        %v4062 = vadd.f32 %v4060, 0.0081
        %v4063 = vmul.f32 %v4045, 18.0
        %v4064 = vmul.f32 %v4049, 18.0
        %v4065 = vsub.f32 %v4063, %v4059
        %v4066 = vsub.f32 %v4064, %v4060
        %v4067 = vadd.f32 %v4065, 0.0729
        %v4068 = vadd.f32 %v4066, 0.0729
        %v4069 = vmul.f32 %v4061, %v4067
        %v4070 = vmul.f32 %v4062, %v4068
        %v4071 = vadd.f32 %v4057, 0.0081
        %v4072 = vadd.f32 %v4058, 0.0081
        %4073 = vmatpush.msra.mxu0 0.0
        %4074 = vmatpush.msra.mxu0 0.0
        %4075 = vmatpush.msra.mxu0 0.0
        %4076 = vmatpush.msra.mxu0 0.0
        %4077 = vmatpush.msra.mxu0 0.0
        %4078 = vmatpush.msra.mxu0 0.0
        %4079 = vmatpush.msra.mxu0 0.0
        %4080 = vmatpush.msra.mxu0 0.0
        %4081 = vmatpush.msra.mxu0 0.0
        %4082 = vmatpush.msra.mxu0 0.0
        %4083 = vmatpush.msra.mxu0 0.0
        %4084 = vmatpush.msra.mxu0 0.0
        %4085 = vmatpush.msra.mxu0 0.0
        %4086 = vmatpush.msra.mxu0 0.0
        %v4087 = vand.u32 %v3273, 4294901760
        %4088 = vmatpush.msra.mxu0 %v4087
        %v4089 = vand.u32 %v3269, 4294901760
        %4090 = vmatpush.msra.mxu0 %v4089
        %v4091 = vand.u32 %v504, 4294901760
        %v4092 = vsub.f32 %v504, %v4091
        %v4093 = vand.u32 %v4092, 4294901760
        %v4094 = vsub.f32 %v4092, %v4093
        %v4095 = vand.u32 %v4094, 4294901760
        %4096 = vmatmul.f32.gmra.mxu0 %v4095
        %v4097 = vpop.f32.mrf.mxu0
        %v4098 = vadd.f32 %v3657, %v4097
        %v4099 = vand.u32 %v507, 4294901760
        %v4100 = vsub.f32 %v507, %v4099
        %v4101 = vand.u32 %v4100, 4294901760
        %v4102 = vsub.f32 %v4100, %v4101
        %v4103 = vand.u32 %v4102, 4294901760
        %4104 = vmatmul.f32.gmra.mxu0 %v4103
        %v4105 = vpop.f32.mrf.mxu0
        %v4106 = vadd.f32 %v3661, %v4105
        %4107 = vdwg.mxu0
        %4108 = vmatpush.msra.mxu0 0.0
        %4109 = vmatpush.msra.mxu0 0.0
        %4110 = vmatpush.msra.mxu0 0.0
        %4111 = vmatpush.msra.mxu0 0.0
        %4112 = vmatpush.msra.mxu0 0.0
        %4113 = vmatpush.msra.mxu0 0.0
        %4114 = vmatpush.msra.mxu0 0.0
        %4115 = vmatpush.msra.mxu0 0.0
        %4116 = vmatpush.msra.mxu0 0.0
        %4117 = vmatpush.msra.mxu0 0.0
        %4118 = vmatpush.msra.mxu0 0.0
        %4119 = vmatpush.msra.mxu0 0.0
        %4120 = vmatpush.msra.mxu0 0.0
        %4121 = vmatpush.msra.mxu0 0.0
        %v4122 = vand.u32 %v3273, 4294901760
        %v4123 = vsub.f32 %v3273, %v4122
        %v4124 = vand.u32 %v4123, 4294901760
        %v4125 = vsub.f32 %v4123, %v4124
        %v4126 = vand.u32 %v4125, 4294901760
        %4127 = vmatpush.msra.mxu0 %v4126
        %v4128 = vand.u32 %v3269, 4294901760
        %v4129 = vsub.f32 %v3269, %v4128
        %v4130 = vand.u32 %v4129, 4294901760
        %v4131 = vsub.f32 %v4129, %v4130
        %v4132 = vand.u32 %v4131, 4294901760
        %4133 = vmatpush.msra.mxu0 %v4132
        %v4134 = vand.u32 %v504, 4294901760
        %4135 = vmatmul.f32.gmra.mxu0 %v4134
        %v4136 = vpop.f32.mrf.mxu0
        %v4137 = vadd.f32 %v4098, %v4136
        %v4138 = vand.u32 %v507, 4294901760
        %4139 = vmatmul.f32.gmra.mxu0 %v4138
        %v4140 = vpop.f32.mrf.mxu0
        %v4141 = vadd.f32 %v4106, %v4140
        %4142 = vdwg.mxu0
        %4143 = vmatpush.msra.mxu0 0.0
        %4144 = vmatpush.msra.mxu0 0.0
        %4145 = vmatpush.msra.mxu0 0.0
        %4146 = vmatpush.msra.mxu0 0.0
        %4147 = vmatpush.msra.mxu0 0.0
        %4148 = vmatpush.msra.mxu0 0.0
        %4149 = vmatpush.msra.mxu0 0.0
        %4150 = vmatpush.msra.mxu0 0.0
        %4151 = vmatpush.msra.mxu0 0.0
        %4152 = vmatpush.msra.mxu0 0.0
        %4153 = vmatpush.msra.mxu0 0.0
        %4154 = vmatpush.msra.mxu0 0.0
        %4155 = vmatpush.msra.mxu0 0.0
        %4156 = vmatpush.msra.mxu0 0.0
        %v4157 = vand.u32 %v3273, 4294901760
        %v4158 = vsub.f32 %v3273, %v4157
        %4159 = vmatpush.msra.mxu0 %v4158
        %v4160 = vand.u32 %v3269, 4294901760
        %v4161 = vsub.f32 %v3269, %v4160
        %4162 = vmatpush.msra.mxu0 %v4161
        %v4163 = vand.u32 %v504, 4294901760
        %v4164 = vsub.f32 %v504, %v4163
        %4165 = vmatmul.f32.gmra.mxu0 %v4164
        %v4166 = vpop.f32.mrf.mxu0
        %v4167 = vadd.f32 %v4137, %v4166
        %v4168 = vand.u32 %v507, 4294901760
        %v4169 = vsub.f32 %v507, %v4168
        %4170 = vmatmul.f32.gmra.mxu0 %v4169
        %v4171 = vpop.f32.mrf.mxu0
        %v4172 = vadd.f32 %v4141, %v4171
        %4173 = vdwg.mxu0
        %4174 = vmatpush.msra.mxu0 0.0
        %4175 = vmatpush.msra.mxu0 0.0
        %4176 = vmatpush.msra.mxu0 0.0
        %4177 = vmatpush.msra.mxu0 0.0
        %4178 = vmatpush.msra.mxu0 0.0
        %4179 = vmatpush.msra.mxu0 0.0
        %4180 = vmatpush.msra.mxu0 0.0
        %4181 = vmatpush.msra.mxu0 0.0
        %4182 = vmatpush.msra.mxu0 0.0
        %4183 = vmatpush.msra.mxu0 0.0
        %4184 = vmatpush.msra.mxu0 0.0
        %4185 = vmatpush.msra.mxu0 0.0
        %4186 = vmatpush.msra.mxu0 0.0
        %4187 = vmatpush.msra.mxu0 0.0
        %v4188 = vand.u32 %v3273, 4294901760
        %4189 = vmatpush.msra.mxu0 %v4188
        %v4190 = vand.u32 %v3269, 4294901760
        %4191 = vmatpush.msra.mxu0 %v4190
        %v4192 = vand.u32 %v504, 4294901760
        %v4193 = vsub.f32 %v504, %v4192
        %v4194 = vand.u32 %v4193, 4294901760
        %4195 = vmatmul.f32.gmra.mxu0 %v4194
        %v4196 = vpop.f32.mrf.mxu0
        %v4197 = vadd.f32 %v4167, %v4196
        %v4198 = vand.u32 %v507, 4294901760
        %v4199 = vsub.f32 %v507, %v4198
        %v4200 = vand.u32 %v4199, 4294901760
        %4201 = vmatmul.f32.gmra.mxu0 %v4200
        %v4202 = vpop.f32.mrf.mxu0
        %v4203 = vadd.f32 %v4172, %v4202
        %4204 = vdwg.mxu0
        %4205 = vmatpush.msra.mxu0 0.0
        %4206 = vmatpush.msra.mxu0 0.0
        %4207 = vmatpush.msra.mxu0 0.0
        %4208 = vmatpush.msra.mxu0 0.0
        %4209 = vmatpush.msra.mxu0 0.0
        %4210 = vmatpush.msra.mxu0 0.0
        %4211 = vmatpush.msra.mxu0 0.0
        %4212 = vmatpush.msra.mxu0 0.0
        %4213 = vmatpush.msra.mxu0 0.0
        %4214 = vmatpush.msra.mxu0 0.0
        %4215 = vmatpush.msra.mxu0 0.0
        %4216 = vmatpush.msra.mxu0 0.0
        %4217 = vmatpush.msra.mxu0 0.0
        %4218 = vmatpush.msra.mxu0 0.0
        %v4219 = vand.u32 %v3273, 4294901760
        %v4220 = vsub.f32 %v3273, %v4219
        %v4221 = vand.u32 %v4220, 4294901760
        %4222 = vmatpush.msra.mxu0 %v4221
        %v4223 = vand.u32 %v3269, 4294901760
        %v4224 = vsub.f32 %v3269, %v4223
        %v4225 = vand.u32 %v4224, 4294901760
        %4226 = vmatpush.msra.mxu0 %v4225
        %v4227 = vand.u32 %v504, 4294901760
        %4228 = vmatmul.f32.gmra.mxu0 %v4227
        %v4229 = vpop.f32.mrf.mxu0
        %v4230 = vadd.f32 %v4197, %v4229
        %v4231 = vand.u32 %v507, 4294901760
        %4232 = vmatmul.f32.gmra.mxu0 %v4231
        %v4233 = vpop.f32.mrf.mxu0
        %v4234 = vadd.f32 %v4203, %v4233
        %4235 = vdwg.mxu0
        %4236 = vmatpush.msra.mxu0 0.0
        %4237 = vmatpush.msra.mxu0 0.0
        %4238 = vmatpush.msra.mxu0 0.0
        %4239 = vmatpush.msra.mxu0 0.0
        %4240 = vmatpush.msra.mxu0 0.0
        %4241 = vmatpush.msra.mxu0 0.0
        %4242 = vmatpush.msra.mxu0 0.0
        %4243 = vmatpush.msra.mxu0 0.0
        %4244 = vmatpush.msra.mxu0 0.0
        %4245 = vmatpush.msra.mxu0 0.0
        %4246 = vmatpush.msra.mxu0 0.0
        %4247 = vmatpush.msra.mxu0 0.0
        %4248 = vmatpush.msra.mxu0 0.0
        %4249 = vmatpush.msra.mxu0 0.0
        %v4250 = vand.u32 %v3273, 4294901760
        %4251 = vmatpush.msra.mxu0 %v4250
        %v4252 = vand.u32 %v3269, 4294901760
        %4253 = vmatpush.msra.mxu0 %v4252
        %v4254 = vand.u32 %v504, 4294901760
        %4255 = vmatmul.f32.gmra.mxu0 %v4254
        %v4256 = vpop.f32.mrf.mxu0
        %v4257 = vadd.f32 %v4230, %v4256
        %v4258 = vand.u32 %v507, 4294901760
        %4259 = vmatmul.f32.gmra.mxu0 %v4258
        %v4260 = vpop.f32.mrf.mxu0
        %v4261 = vadd.f32 %v4234, %v4260
        %4262 = vdwg.mxu0
        %v4263 = vmul.f32 %v4257, 9.0
        %v4264 = vmul.f32 %v4261, 9.0
        %v4265 = vsub.f32 %v4263, %v4057
        %v4266 = vsub.f32 %v4264, %v4058
        %v4267 = vadd.f32 %v4265, 0.0729
        %v4268 = vadd.f32 %v4266, 0.0729
        %v4269 = vmul.f32 %v4071, %v4267
        %v4270 = vmul.f32 %v4072, %v4268
        %v4271 = vrcp.pop %v4269
        %v4272 = vrcp.pop %v4270
        %v4273 = vmul.f32 %v4269, %v4271
        %v4274 = vmul.f32 %v4270, %v4272
        %v4275 = vsub.f32 2.0, %v4273
        %v4276 = vsub.f32 2.0, %v4274
        %v4277 = vmul.f32 %v4271, %v4275
        %v4278 = vmul.f32 %v4272, %v4276
        %v4279 = vmul.f32 %v4069, %v4277
        %v4280 = vmul.f32 %v4070, %v4278
        %v4281 = vsub.f32 1.0, %v4279
        %v4282 = vsub.f32 1.0, %v4280
        %v4283 = vmul.f32 %v4281, 0.5
        %v4284 = vmul.f32 %v4282, 0.5
        %v4285 = vmax.f32 %v4283, 0.0
        %v4286 = vmax.f32 %v4284, 0.0
        %v4287 = vmin.f32 %v4285, 1.0
        %v4288 = vmin.f32 %v4286, 1.0
        %s4289 = scalar_lea.vmem %s294, 16 [#allocation10]
        %4290 = vst.msk [vmem:[%s4289] sm:$0xff] %vm306, %v4287
        %4291 = vst.msk [vmem:[%s4289 + $0x8] sm:$0xff] %vm306, %v4288
        %s4292 = scalar_lea.vmem %s244, 32 [#allocation2]
        %v4293 = vld [vmem:[%s4292] sm:$0xff]
        %v4294 = vld [vmem:[%s4292 + $0x8] sm:$0xff]
        %s4295 = scalar_lea.vmem %s254, 32 [#allocation5]
        %v4296 = vld [vmem:[%s4295] sm:$0xff]
        %v4297 = vld [vmem:[%s4295 + $0x8] sm:$0xff]
        %v4299 = vsel %vm306, %v4293, 0
        %v4302 = vsel %vm306, %v4294, 0
        %4304 = vmatpush.msra.mxu0 0.0
        %4305 = vmatpush.msra.mxu0 0.0
        %4306 = vmatpush.msra.mxu0 0.0
        %4307 = vmatpush.msra.mxu0 0.0
        %4308 = vmatpush.msra.mxu0 0.0
        %4309 = vmatpush.msra.mxu0 0.0
        %4310 = vmatpush.msra.mxu0 0.0
        %4311 = vmatpush.msra.mxu0 0.0
        %4312 = vmatpush.msra.mxu0 0.0
        %4313 = vmatpush.msra.mxu0 0.0
        %4314 = vmatpush.msra.mxu0 0.0
        %4315 = vmatpush.msra.mxu0 0.0
        %4316 = vmatpush.msra.mxu0 0.0
        %4317 = vmatpush.msra.mxu0 0.0
        %v4318 = vand.u32 %v299, 4294901760
        %4319 = vmatpush.msra.mxu0 %v4318
        %v4320 = vand.u32 %v298, 4294901760
        %4321 = vmatpush.msra.mxu0 %v4320
        %v4322 = vand.u32 %v4299, 4294901760
        %v4323 = vsub.f32 %v4299, %v4322
        %v4324 = vand.u32 %v4323, 4294901760
        %v4325 = vsub.f32 %v4323, %v4324
        %v4326 = vand.u32 %v4325, 4294901760
        %4327 = vmatmul.f32.gmra.mxu0 %v4326
        %v4328 = vpop.f32.mrf.mxu0
        %v4329 = vadd.f32 0.0, %v4328
        %v4330 = vand.u32 %v4302, 4294901760
        %v4331 = vsub.f32 %v4302, %v4330
        %v4332 = vand.u32 %v4331, 4294901760
        %v4333 = vsub.f32 %v4331, %v4332
        %v4334 = vand.u32 %v4333, 4294901760
        %4335 = vmatmul.f32.gmra.mxu0 %v4334
        %v4336 = vpop.f32.mrf.mxu0
        %v4337 = vadd.f32 0.0, %v4336
        %4338 = vdwg.mxu0
        %4339 = vmatpush.msra.mxu0 0.0
        %4340 = vmatpush.msra.mxu0 0.0
        %4341 = vmatpush.msra.mxu0 0.0
        %4342 = vmatpush.msra.mxu0 0.0
        %4343 = vmatpush.msra.mxu0 0.0
        %4344 = vmatpush.msra.mxu0 0.0
        %4345 = vmatpush.msra.mxu0 0.0
        %4346 = vmatpush.msra.mxu0 0.0
        %4347 = vmatpush.msra.mxu0 0.0
        %4348 = vmatpush.msra.mxu0 0.0
        %4349 = vmatpush.msra.mxu0 0.0
        %4350 = vmatpush.msra.mxu0 0.0
        %4351 = vmatpush.msra.mxu0 0.0
        %4352 = vmatpush.msra.mxu0 0.0
        %v4353 = vand.u32 %v299, 4294901760
        %v4354 = vsub.f32 %v299, %v4353
        %v4355 = vand.u32 %v4354, 4294901760
        %v4356 = vsub.f32 %v4354, %v4355
        %v4357 = vand.u32 %v4356, 4294901760
        %4358 = vmatpush.msra.mxu0 %v4357
        %v4359 = vand.u32 %v298, 4294901760
        %v4360 = vsub.f32 %v298, %v4359
        %v4361 = vand.u32 %v4360, 4294901760
        %v4362 = vsub.f32 %v4360, %v4361
        %v4363 = vand.u32 %v4362, 4294901760
        %4364 = vmatpush.msra.mxu0 %v4363
        %v4365 = vand.u32 %v4299, 4294901760
        %4366 = vmatmul.f32.gmra.mxu0 %v4365
        %v4367 = vpop.f32.mrf.mxu0
        %v4368 = vadd.f32 %v4329, %v4367
        %v4369 = vand.u32 %v4302, 4294901760
        %4370 = vmatmul.f32.gmra.mxu0 %v4369
        %v4371 = vpop.f32.mrf.mxu0
        %v4372 = vadd.f32 %v4337, %v4371
        %4373 = vdwg.mxu0
        %4374 = vmatpush.msra.mxu0 0.0
        %4375 = vmatpush.msra.mxu0 0.0
        %4376 = vmatpush.msra.mxu0 0.0
        %4377 = vmatpush.msra.mxu0 0.0
        %4378 = vmatpush.msra.mxu0 0.0
        %4379 = vmatpush.msra.mxu0 0.0
        %4380 = vmatpush.msra.mxu0 0.0
        %4381 = vmatpush.msra.mxu0 0.0
        %4382 = vmatpush.msra.mxu0 0.0
        %4383 = vmatpush.msra.mxu0 0.0
        %4384 = vmatpush.msra.mxu0 0.0
        %4385 = vmatpush.msra.mxu0 0.0
        %4386 = vmatpush.msra.mxu0 0.0
        %4387 = vmatpush.msra.mxu0 0.0
        %v4388 = vand.u32 %v299, 4294901760
        %v4389 = vsub.f32 %v299, %v4388
        %4390 = vmatpush.msra.mxu0 %v4389
        %v4391 = vand.u32 %v298, 4294901760
        %v4392 = vsub.f32 %v298, %v4391
        %4393 = vmatpush.msra.mxu0 %v4392
        %v4394 = vand.u32 %v4299, 4294901760
        %v4395 = vsub.f32 %v4299, %v4394
        %4396 = vmatmul.f32.gmra.mxu0 %v4395
        %v4397 = vpop.f32.mrf.mxu0
        %v4398 = vadd.f32 %v4368, %v4397
        %v4399 = vand.u32 %v4302, 4294901760
        %v4400 = vsub.f32 %v4302, %v4399
        %4401 = vmatmul.f32.gmra.mxu0 %v4400
        %v4402 = vpop.f32.mrf.mxu0
        %v4403 = vadd.f32 %v4372, %v4402
        %4404 = vdwg.mxu0
        %4405 = vmatpush.msra.mxu0 0.0
        %4406 = vmatpush.msra.mxu0 0.0
        %4407 = vmatpush.msra.mxu0 0.0
        %4408 = vmatpush.msra.mxu0 0.0
        %4409 = vmatpush.msra.mxu0 0.0
        %4410 = vmatpush.msra.mxu0 0.0
        %4411 = vmatpush.msra.mxu0 0.0
        %4412 = vmatpush.msra.mxu0 0.0
        %4413 = vmatpush.msra.mxu0 0.0
        %4414 = vmatpush.msra.mxu0 0.0
        %4415 = vmatpush.msra.mxu0 0.0
        %4416 = vmatpush.msra.mxu0 0.0
        %4417 = vmatpush.msra.mxu0 0.0
        %4418 = vmatpush.msra.mxu0 0.0
        %v4419 = vand.u32 %v299, 4294901760
        %4420 = vmatpush.msra.mxu0 %v4419
        %v4421 = vand.u32 %v298, 4294901760
        %4422 = vmatpush.msra.mxu0 %v4421
        %v4423 = vand.u32 %v4299, 4294901760
        %v4424 = vsub.f32 %v4299, %v4423
        %v4425 = vand.u32 %v4424, 4294901760
        %4426 = vmatmul.f32.gmra.mxu0 %v4425
        %v4427 = vpop.f32.mrf.mxu0
        %v4428 = vadd.f32 %v4398, %v4427
        %v4429 = vand.u32 %v4302, 4294901760
        %v4430 = vsub.f32 %v4302, %v4429
        %v4431 = vand.u32 %v4430, 4294901760
        %4432 = vmatmul.f32.gmra.mxu0 %v4431
        %v4433 = vpop.f32.mrf.mxu0
        %v4434 = vadd.f32 %v4403, %v4433
        %4435 = vdwg.mxu0
        %4436 = vmatpush.msra.mxu0 0.0
        %4437 = vmatpush.msra.mxu0 0.0
        %4438 = vmatpush.msra.mxu0 0.0
        %4439 = vmatpush.msra.mxu0 0.0
        %4440 = vmatpush.msra.mxu0 0.0
        %4441 = vmatpush.msra.mxu0 0.0
        %4442 = vmatpush.msra.mxu0 0.0
        %4443 = vmatpush.msra.mxu0 0.0
        %4444 = vmatpush.msra.mxu0 0.0
        %4445 = vmatpush.msra.mxu0 0.0
        %4446 = vmatpush.msra.mxu0 0.0
        %4447 = vmatpush.msra.mxu0 0.0
        %4448 = vmatpush.msra.mxu0 0.0
        %4449 = vmatpush.msra.mxu0 0.0
        %v4450 = vand.u32 %v299, 4294901760
        %v4451 = vsub.f32 %v299, %v4450
        %v4452 = vand.u32 %v4451, 4294901760
        %4453 = vmatpush.msra.mxu0 %v4452
        %v4454 = vand.u32 %v298, 4294901760
        %v4455 = vsub.f32 %v298, %v4454
        %v4456 = vand.u32 %v4455, 4294901760
        %4457 = vmatpush.msra.mxu0 %v4456
        %v4458 = vand.u32 %v4299, 4294901760
        %4459 = vmatmul.f32.gmra.mxu0 %v4458
        %v4460 = vpop.f32.mrf.mxu0
        %v4461 = vadd.f32 %v4428, %v4460
        %v4462 = vand.u32 %v4302, 4294901760
        %4463 = vmatmul.f32.gmra.mxu0 %v4462
        %v4464 = vpop.f32.mrf.mxu0
        %v4465 = vadd.f32 %v4434, %v4464
        %4466 = vdwg.mxu0
        %4467 = vmatpush.msra.mxu0 0.0
        %4468 = vmatpush.msra.mxu0 0.0
        %4469 = vmatpush.msra.mxu0 0.0
        %4470 = vmatpush.msra.mxu0 0.0
        %4471 = vmatpush.msra.mxu0 0.0
        %4472 = vmatpush.msra.mxu0 0.0
        %4473 = vmatpush.msra.mxu0 0.0
        %4474 = vmatpush.msra.mxu0 0.0
        %4475 = vmatpush.msra.mxu0 0.0
        %4476 = vmatpush.msra.mxu0 0.0
        %4477 = vmatpush.msra.mxu0 0.0
        %4478 = vmatpush.msra.mxu0 0.0
        %4479 = vmatpush.msra.mxu0 0.0
        %4480 = vmatpush.msra.mxu0 0.0
        %v4481 = vand.u32 %v299, 4294901760
        %4482 = vmatpush.msra.mxu0 %v4481
        %v4483 = vand.u32 %v298, 4294901760
        %4484 = vmatpush.msra.mxu0 %v4483
        %v4485 = vand.u32 %v4299, 4294901760
        %4486 = vmatmul.f32.gmra.mxu0 %v4485
        %v4487 = vpop.f32.mrf.mxu0
        %v4488 = vadd.f32 %v4461, %v4487
        %v4489 = vand.u32 %v4302, 4294901760
        %4490 = vmatmul.f32.gmra.mxu0 %v4489
        %v4491 = vpop.f32.mrf.mxu0
        %v4492 = vadd.f32 %v4465, %v4491
        %4493 = vdwg.mxu0
        %4494 = vmatpush.msra.mxu0 0.0
        %4495 = vmatpush.msra.mxu0 0.0
        %4496 = vmatpush.msra.mxu0 0.0
        %4497 = vmatpush.msra.mxu0 0.0
        %4498 = vmatpush.msra.mxu0 0.0
        %4499 = vmatpush.msra.mxu0 0.0
        %4500 = vmatpush.msra.mxu0 0.0
        %4501 = vmatpush.msra.mxu0 0.0
        %4502 = vmatpush.msra.mxu0 0.0
        %4503 = vmatpush.msra.mxu0 0.0
        %4504 = vmatpush.msra.mxu0 0.0
        %4505 = vmatpush.msra.mxu0 0.0
        %4506 = vmatpush.msra.mxu0 0.0
        %4507 = vmatpush.msra.mxu0 0.0
        %v4508 = vand.u32 %v4492, 4294901760
        %4509 = vmatpush.msra.mxu0 %v4508
        %v4510 = vand.u32 %v4488, 4294901760
        %4511 = vmatpush.msra.mxu0 %v4510
        %v4512 = vand.u32 %v504, 4294901760
        %v4513 = vsub.f32 %v504, %v4512
        %v4514 = vand.u32 %v4513, 4294901760
        %v4515 = vsub.f32 %v4513, %v4514
        %v4516 = vand.u32 %v4515, 4294901760
        %4517 = vmatmul.f32.gmra.mxu0 %v4516
        %v4518 = vpop.f32.mrf.mxu0
        %v4519 = vadd.f32 0.0, %v4518
        %v4520 = vand.u32 %v507, 4294901760
        %v4521 = vsub.f32 %v507, %v4520
        %v4522 = vand.u32 %v4521, 4294901760
        %v4523 = vsub.f32 %v4521, %v4522
        %v4524 = vand.u32 %v4523, 4294901760
        %4525 = vmatmul.f32.gmra.mxu0 %v4524
        %v4526 = vpop.f32.mrf.mxu0
        %v4527 = vadd.f32 0.0, %v4526
        %4528 = vdwg.mxu0
        %4529 = vmatpush.msra.mxu0 0.0
        %4530 = vmatpush.msra.mxu0 0.0
        %4531 = vmatpush.msra.mxu0 0.0
        %4532 = vmatpush.msra.mxu0 0.0
        %4533 = vmatpush.msra.mxu0 0.0
        %4534 = vmatpush.msra.mxu0 0.0
        %4535 = vmatpush.msra.mxu0 0.0
        %4536 = vmatpush.msra.mxu0 0.0
        %4537 = vmatpush.msra.mxu0 0.0
        %4538 = vmatpush.msra.mxu0 0.0
        %4539 = vmatpush.msra.mxu0 0.0
        %4540 = vmatpush.msra.mxu0 0.0
        %4541 = vmatpush.msra.mxu0 0.0
        %4542 = vmatpush.msra.mxu0 0.0
        %v4543 = vand.u32 %v4492, 4294901760
        %v4544 = vsub.f32 %v4492, %v4543
        %v4545 = vand.u32 %v4544, 4294901760
        %v4546 = vsub.f32 %v4544, %v4545
        %v4547 = vand.u32 %v4546, 4294901760
        %4548 = vmatpush.msra.mxu0 %v4547
        %v4549 = vand.u32 %v4488, 4294901760
        %v4550 = vsub.f32 %v4488, %v4549
        %v4551 = vand.u32 %v4550, 4294901760
        %v4552 = vsub.f32 %v4550, %v4551
        %v4553 = vand.u32 %v4552, 4294901760
        %4554 = vmatpush.msra.mxu0 %v4553
        %v4555 = vand.u32 %v504, 4294901760
        %4556 = vmatmul.f32.gmra.mxu0 %v4555
        %v4557 = vpop.f32.mrf.mxu0
        %v4558 = vadd.f32 %v4519, %v4557
        %v4559 = vand.u32 %v507, 4294901760
        %4560 = vmatmul.f32.gmra.mxu0 %v4559
        %v4561 = vpop.f32.mrf.mxu0
        %v4562 = vadd.f32 %v4527, %v4561
        %4563 = vdwg.mxu0
        %4564 = vmatpush.msra.mxu0 0.0
        %4565 = vmatpush.msra.mxu0 0.0
        %4566 = vmatpush.msra.mxu0 0.0
        %4567 = vmatpush.msra.mxu0 0.0
        %4568 = vmatpush.msra.mxu0 0.0
        %4569 = vmatpush.msra.mxu0 0.0
        %4570 = vmatpush.msra.mxu0 0.0
        %4571 = vmatpush.msra.mxu0 0.0
        %4572 = vmatpush.msra.mxu0 0.0
        %4573 = vmatpush.msra.mxu0 0.0
        %4574 = vmatpush.msra.mxu0 0.0
        %4575 = vmatpush.msra.mxu0 0.0
        %4576 = vmatpush.msra.mxu0 0.0
        %4577 = vmatpush.msra.mxu0 0.0
        %v4578 = vand.u32 %v4492, 4294901760
        %v4579 = vsub.f32 %v4492, %v4578
        %4580 = vmatpush.msra.mxu0 %v4579
        %v4581 = vand.u32 %v4488, 4294901760
        %v4582 = vsub.f32 %v4488, %v4581
        %4583 = vmatpush.msra.mxu0 %v4582
        %v4584 = vand.u32 %v504, 4294901760
        %v4585 = vsub.f32 %v504, %v4584
        %4586 = vmatmul.f32.gmra.mxu0 %v4585
        %v4587 = vpop.f32.mrf.mxu0
        %v4588 = vadd.f32 %v4558, %v4587
        %v4589 = vand.u32 %v507, 4294901760
        %v4590 = vsub.f32 %v507, %v4589
        %4591 = vmatmul.f32.gmra.mxu0 %v4590
        %v4592 = vpop.f32.mrf.mxu0
        %v4593 = vadd.f32 %v4562, %v4592
        %4594 = vdwg.mxu0
        %4595 = vmatpush.msra.mxu0 0.0
        %4596 = vmatpush.msra.mxu0 0.0
        %4597 = vmatpush.msra.mxu0 0.0
        %4598 = vmatpush.msra.mxu0 0.0
        %4599 = vmatpush.msra.mxu0 0.0
        %4600 = vmatpush.msra.mxu0 0.0
        %4601 = vmatpush.msra.mxu0 0.0
        %4602 = vmatpush.msra.mxu0 0.0
        %4603 = vmatpush.msra.mxu0 0.0
        %4604 = vmatpush.msra.mxu0 0.0
        %4605 = vmatpush.msra.mxu0 0.0
        %4606 = vmatpush.msra.mxu0 0.0
        %4607 = vmatpush.msra.mxu0 0.0
        %4608 = vmatpush.msra.mxu0 0.0
        %v4609 = vand.u32 %v4492, 4294901760
        %4610 = vmatpush.msra.mxu0 %v4609
        %v4611 = vand.u32 %v4488, 4294901760
        %4612 = vmatpush.msra.mxu0 %v4611
        %v4613 = vand.u32 %v504, 4294901760
        %v4614 = vsub.f32 %v504, %v4613
        %v4615 = vand.u32 %v4614, 4294901760
        %4616 = vmatmul.f32.gmra.mxu0 %v4615
        %v4617 = vpop.f32.mrf.mxu0
        %v4618 = vadd.f32 %v4588, %v4617
        %v4619 = vand.u32 %v507, 4294901760
        %v4620 = vsub.f32 %v507, %v4619
        %v4621 = vand.u32 %v4620, 4294901760
        %4622 = vmatmul.f32.gmra.mxu0 %v4621
        %v4623 = vpop.f32.mrf.mxu0
        %v4624 = vadd.f32 %v4593, %v4623
        %4625 = vdwg.mxu0
        %4626 = vmatpush.msra.mxu0 0.0
        %4627 = vmatpush.msra.mxu0 0.0
        %4628 = vmatpush.msra.mxu0 0.0
        %4629 = vmatpush.msra.mxu0 0.0
        %4630 = vmatpush.msra.mxu0 0.0
        %4631 = vmatpush.msra.mxu0 0.0
        %4632 = vmatpush.msra.mxu0 0.0
        %4633 = vmatpush.msra.mxu0 0.0
        %4634 = vmatpush.msra.mxu0 0.0
        %4635 = vmatpush.msra.mxu0 0.0
        %4636 = vmatpush.msra.mxu0 0.0
        %4637 = vmatpush.msra.mxu0 0.0
        %4638 = vmatpush.msra.mxu0 0.0
        %4639 = vmatpush.msra.mxu0 0.0
        %v4640 = vand.u32 %v4492, 4294901760
        %v4641 = vsub.f32 %v4492, %v4640
        %v4642 = vand.u32 %v4641, 4294901760
        %4643 = vmatpush.msra.mxu0 %v4642
        %v4644 = vand.u32 %v4488, 4294901760
        %v4645 = vsub.f32 %v4488, %v4644
        %v4646 = vand.u32 %v4645, 4294901760
        %4647 = vmatpush.msra.mxu0 %v4646
        %v4648 = vand.u32 %v504, 4294901760
        %4649 = vmatmul.f32.gmra.mxu0 %v4648
        %v4650 = vpop.f32.mrf.mxu0
        %v4651 = vadd.f32 %v4618, %v4650
        %v4652 = vand.u32 %v507, 4294901760
        %4653 = vmatmul.f32.gmra.mxu0 %v4652
        %v4654 = vpop.f32.mrf.mxu0
        %v4655 = vadd.f32 %v4624, %v4654
        %4656 = vdwg.mxu0
        %4657 = vmatpush.msra.mxu0 0.0
        %4658 = vmatpush.msra.mxu0 0.0
        %4659 = vmatpush.msra.mxu0 0.0
        %4660 = vmatpush.msra.mxu0 0.0
        %4661 = vmatpush.msra.mxu0 0.0
        %4662 = vmatpush.msra.mxu0 0.0
        %4663 = vmatpush.msra.mxu0 0.0
        %4664 = vmatpush.msra.mxu0 0.0
        %4665 = vmatpush.msra.mxu0 0.0
        %4666 = vmatpush.msra.mxu0 0.0
        %4667 = vmatpush.msra.mxu0 0.0
        %4668 = vmatpush.msra.mxu0 0.0
        %4669 = vmatpush.msra.mxu0 0.0
        %4670 = vmatpush.msra.mxu0 0.0
        %v4671 = vand.u32 %v4492, 4294901760
        %4672 = vmatpush.msra.mxu0 %v4671
        %v4673 = vand.u32 %v4488, 4294901760
        %4674 = vmatpush.msra.mxu0 %v4673
        %v4675 = vand.u32 %v504, 4294901760
        %4676 = vmatmul.f32.gmra.mxu0 %v4675
        %v4677 = vpop.f32.mrf.mxu0
        %v4678 = vadd.f32 %v4651, %v4677
        %v4679 = vand.u32 %v507, 4294901760
        %4680 = vmatmul.f32.gmra.mxu0 %v4679
        %v4681 = vpop.f32.mrf.mxu0
        %v4682 = vadd.f32 %v4655, %v4681
        %4683 = vdwg.mxu0
        %v4685 = vsel %vm306, %v4296, 0
        %v4688 = vsel %vm306, %v4297, 0
        %4690 = vmatpush.msra.mxu0 0.0
        %4691 = vmatpush.msra.mxu0 0.0
        %4692 = vmatpush.msra.mxu0 0.0
        %4693 = vmatpush.msra.mxu0 0.0
        %4694 = vmatpush.msra.mxu0 0.0
        %4695 = vmatpush.msra.mxu0 0.0
        %4696 = vmatpush.msra.mxu0 0.0
        %4697 = vmatpush.msra.mxu0 0.0
        %4698 = vmatpush.msra.mxu0 0.0
        %4699 = vmatpush.msra.mxu0 0.0
        %4700 = vmatpush.msra.mxu0 0.0
        %4701 = vmatpush.msra.mxu0 0.0
        %4702 = vmatpush.msra.mxu0 0.0
        %4703 = vmatpush.msra.mxu0 0.0
        %v4704 = vand.u32 %v299, 4294901760
        %4705 = vmatpush.msra.mxu0 %v4704
        %v4706 = vand.u32 %v298, 4294901760
        %4707 = vmatpush.msra.mxu0 %v4706
        %v4708 = vand.u32 %v4685, 4294901760
        %v4709 = vsub.f32 %v4685, %v4708
        %v4710 = vand.u32 %v4709, 4294901760
        %v4711 = vsub.f32 %v4709, %v4710
        %v4712 = vand.u32 %v4711, 4294901760
        %4713 = vmatmul.f32.gmra.mxu0 %v4712
        %v4714 = vpop.f32.mrf.mxu0
        %v4715 = vadd.f32 0.0, %v4714
        %v4716 = vand.u32 %v4688, 4294901760
        %v4717 = vsub.f32 %v4688, %v4716
        %v4718 = vand.u32 %v4717, 4294901760
        %v4719 = vsub.f32 %v4717, %v4718
        %v4720 = vand.u32 %v4719, 4294901760
        %4721 = vmatmul.f32.gmra.mxu0 %v4720
        %v4722 = vpop.f32.mrf.mxu0
        %v4723 = vadd.f32 0.0, %v4722
        %4724 = vdwg.mxu0
        %4725 = vmatpush.msra.mxu0 0.0
        %4726 = vmatpush.msra.mxu0 0.0
        %4727 = vmatpush.msra.mxu0 0.0
        %4728 = vmatpush.msra.mxu0 0.0
        %4729 = vmatpush.msra.mxu0 0.0
        %4730 = vmatpush.msra.mxu0 0.0
        %4731 = vmatpush.msra.mxu0 0.0
        %4732 = vmatpush.msra.mxu0 0.0
        %4733 = vmatpush.msra.mxu0 0.0
        %4734 = vmatpush.msra.mxu0 0.0
        %4735 = vmatpush.msra.mxu0 0.0
        %4736 = vmatpush.msra.mxu0 0.0
        %4737 = vmatpush.msra.mxu0 0.0
        %4738 = vmatpush.msra.mxu0 0.0
        %v4739 = vand.u32 %v299, 4294901760
        %v4740 = vsub.f32 %v299, %v4739
        %v4741 = vand.u32 %v4740, 4294901760
        %v4742 = vsub.f32 %v4740, %v4741
        %v4743 = vand.u32 %v4742, 4294901760
        %4744 = vmatpush.msra.mxu0 %v4743
        %v4745 = vand.u32 %v298, 4294901760
        %v4746 = vsub.f32 %v298, %v4745
        %v4747 = vand.u32 %v4746, 4294901760
        %v4748 = vsub.f32 %v4746, %v4747
        %v4749 = vand.u32 %v4748, 4294901760
        %4750 = vmatpush.msra.mxu0 %v4749
        %v4751 = vand.u32 %v4685, 4294901760
        %4752 = vmatmul.f32.gmra.mxu0 %v4751
        %v4753 = vpop.f32.mrf.mxu0
        %v4754 = vadd.f32 %v4715, %v4753
        %v4755 = vand.u32 %v4688, 4294901760
        %4756 = vmatmul.f32.gmra.mxu0 %v4755
        %v4757 = vpop.f32.mrf.mxu0
        %v4758 = vadd.f32 %v4723, %v4757
        %4759 = vdwg.mxu0
        %4760 = vmatpush.msra.mxu0 0.0
        %4761 = vmatpush.msra.mxu0 0.0
        %4762 = vmatpush.msra.mxu0 0.0
        %4763 = vmatpush.msra.mxu0 0.0
        %4764 = vmatpush.msra.mxu0 0.0
        %4765 = vmatpush.msra.mxu0 0.0
        %4766 = vmatpush.msra.mxu0 0.0
        %4767 = vmatpush.msra.mxu0 0.0
        %4768 = vmatpush.msra.mxu0 0.0
        %4769 = vmatpush.msra.mxu0 0.0
        %4770 = vmatpush.msra.mxu0 0.0
        %4771 = vmatpush.msra.mxu0 0.0
        %4772 = vmatpush.msra.mxu0 0.0
        %4773 = vmatpush.msra.mxu0 0.0
        %v4774 = vand.u32 %v299, 4294901760
        %v4775 = vsub.f32 %v299, %v4774
        %4776 = vmatpush.msra.mxu0 %v4775
        %v4777 = vand.u32 %v298, 4294901760
        %v4778 = vsub.f32 %v298, %v4777
        %4779 = vmatpush.msra.mxu0 %v4778
        %v4780 = vand.u32 %v4685, 4294901760
        %v4781 = vsub.f32 %v4685, %v4780
        %4782 = vmatmul.f32.gmra.mxu0 %v4781
        %v4783 = vpop.f32.mrf.mxu0
        %v4784 = vadd.f32 %v4754, %v4783
        %v4785 = vand.u32 %v4688, 4294901760
        %v4786 = vsub.f32 %v4688, %v4785
        %4787 = vmatmul.f32.gmra.mxu0 %v4786
        %v4788 = vpop.f32.mrf.mxu0
        %v4789 = vadd.f32 %v4758, %v4788
        %4790 = vdwg.mxu0
        %4791 = vmatpush.msra.mxu0 0.0
        %4792 = vmatpush.msra.mxu0 0.0
        %4793 = vmatpush.msra.mxu0 0.0
        %4794 = vmatpush.msra.mxu0 0.0
        %4795 = vmatpush.msra.mxu0 0.0
        %4796 = vmatpush.msra.mxu0 0.0
        %4797 = vmatpush.msra.mxu0 0.0
        %4798 = vmatpush.msra.mxu0 0.0
        %4799 = vmatpush.msra.mxu0 0.0
        %4800 = vmatpush.msra.mxu0 0.0
        %4801 = vmatpush.msra.mxu0 0.0
        %4802 = vmatpush.msra.mxu0 0.0
        %4803 = vmatpush.msra.mxu0 0.0
        %4804 = vmatpush.msra.mxu0 0.0
        %v4805 = vand.u32 %v299, 4294901760
        %4806 = vmatpush.msra.mxu0 %v4805
        %v4807 = vand.u32 %v298, 4294901760
        %4808 = vmatpush.msra.mxu0 %v4807
        %v4809 = vand.u32 %v4685, 4294901760
        %v4810 = vsub.f32 %v4685, %v4809
        %v4811 = vand.u32 %v4810, 4294901760
        %4812 = vmatmul.f32.gmra.mxu0 %v4811
        %v4813 = vpop.f32.mrf.mxu0
        %v4814 = vadd.f32 %v4784, %v4813
        %v4815 = vand.u32 %v4688, 4294901760
        %v4816 = vsub.f32 %v4688, %v4815
        %v4817 = vand.u32 %v4816, 4294901760
        %4818 = vmatmul.f32.gmra.mxu0 %v4817
        %v4819 = vpop.f32.mrf.mxu0
        %v4820 = vadd.f32 %v4789, %v4819
        %4821 = vdwg.mxu0
        %4822 = vmatpush.msra.mxu0 0.0
        %4823 = vmatpush.msra.mxu0 0.0
        %4824 = vmatpush.msra.mxu0 0.0
        %4825 = vmatpush.msra.mxu0 0.0
        %4826 = vmatpush.msra.mxu0 0.0
        %4827 = vmatpush.msra.mxu0 0.0
        %4828 = vmatpush.msra.mxu0 0.0
        %4829 = vmatpush.msra.mxu0 0.0
        %4830 = vmatpush.msra.mxu0 0.0
        %4831 = vmatpush.msra.mxu0 0.0
        %4832 = vmatpush.msra.mxu0 0.0
        %4833 = vmatpush.msra.mxu0 0.0
        %4834 = vmatpush.msra.mxu0 0.0
        %4835 = vmatpush.msra.mxu0 0.0
        %v4836 = vand.u32 %v299, 4294901760
        %v4837 = vsub.f32 %v299, %v4836
        %v4838 = vand.u32 %v4837, 4294901760
        %4839 = vmatpush.msra.mxu0 %v4838
        %v4840 = vand.u32 %v298, 4294901760
        %v4841 = vsub.f32 %v298, %v4840
        %v4842 = vand.u32 %v4841, 4294901760
        %4843 = vmatpush.msra.mxu0 %v4842
        %v4844 = vand.u32 %v4685, 4294901760
        %4845 = vmatmul.f32.gmra.mxu0 %v4844
        %v4846 = vpop.f32.mrf.mxu0
        %v4847 = vadd.f32 %v4814, %v4846
        %v4848 = vand.u32 %v4688, 4294901760
        %4849 = vmatmul.f32.gmra.mxu0 %v4848
        %v4850 = vpop.f32.mrf.mxu0
        %v4851 = vadd.f32 %v4820, %v4850
        %4852 = vdwg.mxu0
        %4853 = vmatpush.msra.mxu0 0.0
        %4854 = vmatpush.msra.mxu0 0.0
        %4855 = vmatpush.msra.mxu0 0.0
        %4856 = vmatpush.msra.mxu0 0.0
        %4857 = vmatpush.msra.mxu0 0.0
        %4858 = vmatpush.msra.mxu0 0.0
        %4859 = vmatpush.msra.mxu0 0.0
        %4860 = vmatpush.msra.mxu0 0.0
        %4861 = vmatpush.msra.mxu0 0.0
        %4862 = vmatpush.msra.mxu0 0.0
        %4863 = vmatpush.msra.mxu0 0.0
        %4864 = vmatpush.msra.mxu0 0.0
        %4865 = vmatpush.msra.mxu0 0.0
        %4866 = vmatpush.msra.mxu0 0.0
        %v4867 = vand.u32 %v299, 4294901760
        %4868 = vmatpush.msra.mxu0 %v4867
        %v4869 = vand.u32 %v298, 4294901760
        %4870 = vmatpush.msra.mxu0 %v4869
        %v4871 = vand.u32 %v4685, 4294901760
        %4872 = vmatmul.f32.gmra.mxu0 %v4871
        %v4873 = vpop.f32.mrf.mxu0
        %v4874 = vadd.f32 %v4847, %v4873
        %v4875 = vand.u32 %v4688, 4294901760
        %4876 = vmatmul.f32.gmra.mxu0 %v4875
        %v4877 = vpop.f32.mrf.mxu0
        %v4878 = vadd.f32 %v4851, %v4877
        %4879 = vdwg.mxu0
        %4880 = vmatpush.msra.mxu0 0.0
        %4881 = vmatpush.msra.mxu0 0.0
        %4882 = vmatpush.msra.mxu0 0.0
        %4883 = vmatpush.msra.mxu0 0.0
        %4884 = vmatpush.msra.mxu0 0.0
        %4885 = vmatpush.msra.mxu0 0.0
        %4886 = vmatpush.msra.mxu0 0.0
        %4887 = vmatpush.msra.mxu0 0.0
        %4888 = vmatpush.msra.mxu0 0.0
        %4889 = vmatpush.msra.mxu0 0.0
        %4890 = vmatpush.msra.mxu0 0.0
        %4891 = vmatpush.msra.mxu0 0.0
        %4892 = vmatpush.msra.mxu0 0.0
        %4893 = vmatpush.msra.mxu0 0.0
        %v4894 = vand.u32 %v4878, 4294901760
        %4895 = vmatpush.msra.mxu0 %v4894
        %v4896 = vand.u32 %v4874, 4294901760
        %4897 = vmatpush.msra.mxu0 %v4896
        %v4898 = vand.u32 %v504, 4294901760
        %v4899 = vsub.f32 %v504, %v4898
        %v4900 = vand.u32 %v4899, 4294901760
        %v4901 = vsub.f32 %v4899, %v4900
        %v4902 = vand.u32 %v4901, 4294901760
        %4903 = vmatmul.f32.gmra.mxu0 %v4902
        %v4904 = vpop.f32.mrf.mxu0
        %v4905 = vadd.f32 0.0, %v4904
        %v4906 = vand.u32 %v507, 4294901760
        %v4907 = vsub.f32 %v507, %v4906
        %v4908 = vand.u32 %v4907, 4294901760
        %v4909 = vsub.f32 %v4907, %v4908
        %v4910 = vand.u32 %v4909, 4294901760
        %4911 = vmatmul.f32.gmra.mxu0 %v4910
        %v4912 = vpop.f32.mrf.mxu0
        %v4913 = vadd.f32 0.0, %v4912
        %4914 = vdwg.mxu0
        %4915 = vmatpush.msra.mxu0 0.0
        %4916 = vmatpush.msra.mxu0 0.0
        %4917 = vmatpush.msra.mxu0 0.0
        %4918 = vmatpush.msra.mxu0 0.0
        %4919 = vmatpush.msra.mxu0 0.0
        %4920 = vmatpush.msra.mxu0 0.0
        %4921 = vmatpush.msra.mxu0 0.0
        %4922 = vmatpush.msra.mxu0 0.0
        %4923 = vmatpush.msra.mxu0 0.0
        %4924 = vmatpush.msra.mxu0 0.0
        %4925 = vmatpush.msra.mxu0 0.0
        %4926 = vmatpush.msra.mxu0 0.0
        %4927 = vmatpush.msra.mxu0 0.0
        %4928 = vmatpush.msra.mxu0 0.0
        %v4929 = vand.u32 %v4878, 4294901760
        %v4930 = vsub.f32 %v4878, %v4929
        %v4931 = vand.u32 %v4930, 4294901760
        %v4932 = vsub.f32 %v4930, %v4931
        %v4933 = vand.u32 %v4932, 4294901760
        %4934 = vmatpush.msra.mxu0 %v4933
        %v4935 = vand.u32 %v4874, 4294901760
        %v4936 = vsub.f32 %v4874, %v4935
        %v4937 = vand.u32 %v4936, 4294901760
        %v4938 = vsub.f32 %v4936, %v4937
        %v4939 = vand.u32 %v4938, 4294901760
        %4940 = vmatpush.msra.mxu0 %v4939
        %v4941 = vand.u32 %v504, 4294901760
        %4942 = vmatmul.f32.gmra.mxu0 %v4941
        %v4943 = vpop.f32.mrf.mxu0
        %v4944 = vadd.f32 %v4905, %v4943
        %v4945 = vand.u32 %v507, 4294901760
        %4946 = vmatmul.f32.gmra.mxu0 %v4945
        %v4947 = vpop.f32.mrf.mxu0
        %v4948 = vadd.f32 %v4913, %v4947
        %4949 = vdwg.mxu0
        %4950 = vmatpush.msra.mxu0 0.0
        %4951 = vmatpush.msra.mxu0 0.0
        %4952 = vmatpush.msra.mxu0 0.0
        %4953 = vmatpush.msra.mxu0 0.0
        %4954 = vmatpush.msra.mxu0 0.0
        %4955 = vmatpush.msra.mxu0 0.0
        %4956 = vmatpush.msra.mxu0 0.0
        %4957 = vmatpush.msra.mxu0 0.0
        %4958 = vmatpush.msra.mxu0 0.0
        %4959 = vmatpush.msra.mxu0 0.0
        %4960 = vmatpush.msra.mxu0 0.0
        %4961 = vmatpush.msra.mxu0 0.0
        %4962 = vmatpush.msra.mxu0 0.0
        %4963 = vmatpush.msra.mxu0 0.0
        %v4964 = vand.u32 %v4878, 4294901760
        %v4965 = vsub.f32 %v4878, %v4964
        %4966 = vmatpush.msra.mxu0 %v4965
        %v4967 = vand.u32 %v4874, 4294901760
        %v4968 = vsub.f32 %v4874, %v4967
        %4969 = vmatpush.msra.mxu0 %v4968
        %v4970 = vand.u32 %v504, 4294901760
        %v4971 = vsub.f32 %v504, %v4970
        %4972 = vmatmul.f32.gmra.mxu0 %v4971
        %v4973 = vpop.f32.mrf.mxu0
        %v4974 = vadd.f32 %v4944, %v4973
        %v4975 = vand.u32 %v507, 4294901760
        %v4976 = vsub.f32 %v507, %v4975
        %4977 = vmatmul.f32.gmra.mxu0 %v4976
        %v4978 = vpop.f32.mrf.mxu0
        %v4979 = vadd.f32 %v4948, %v4978
        %4980 = vdwg.mxu0
        %4981 = vmatpush.msra.mxu0 0.0
        %4982 = vmatpush.msra.mxu0 0.0
        %4983 = vmatpush.msra.mxu0 0.0
        %4984 = vmatpush.msra.mxu0 0.0
        %4985 = vmatpush.msra.mxu0 0.0
        %4986 = vmatpush.msra.mxu0 0.0
        %4987 = vmatpush.msra.mxu0 0.0
        %4988 = vmatpush.msra.mxu0 0.0
        %4989 = vmatpush.msra.mxu0 0.0
        %4990 = vmatpush.msra.mxu0 0.0
        %4991 = vmatpush.msra.mxu0 0.0
        %4992 = vmatpush.msra.mxu0 0.0
        %4993 = vmatpush.msra.mxu0 0.0
        %4994 = vmatpush.msra.mxu0 0.0
        %v4995 = vand.u32 %v4878, 4294901760
        %4996 = vmatpush.msra.mxu0 %v4995
        %v4997 = vand.u32 %v4874, 4294901760
        %4998 = vmatpush.msra.mxu0 %v4997
        %v4999 = vand.u32 %v504, 4294901760
        %v5000 = vsub.f32 %v504, %v4999
        %v5001 = vand.u32 %v5000, 4294901760
        %5002 = vmatmul.f32.gmra.mxu0 %v5001
        %v5003 = vpop.f32.mrf.mxu0
        %v5004 = vadd.f32 %v4974, %v5003
        %v5005 = vand.u32 %v507, 4294901760
        %v5006 = vsub.f32 %v507, %v5005
        %v5007 = vand.u32 %v5006, 4294901760
        %5008 = vmatmul.f32.gmra.mxu0 %v5007
        %v5009 = vpop.f32.mrf.mxu0
        %v5010 = vadd.f32 %v4979, %v5009
        %5011 = vdwg.mxu0
        %5012 = vmatpush.msra.mxu0 0.0
        %5013 = vmatpush.msra.mxu0 0.0
        %5014 = vmatpush.msra.mxu0 0.0
        %5015 = vmatpush.msra.mxu0 0.0
        %5016 = vmatpush.msra.mxu0 0.0
        %5017 = vmatpush.msra.mxu0 0.0
        %5018 = vmatpush.msra.mxu0 0.0
        %5019 = vmatpush.msra.mxu0 0.0
        %5020 = vmatpush.msra.mxu0 0.0
        %5021 = vmatpush.msra.mxu0 0.0
        %5022 = vmatpush.msra.mxu0 0.0
        %5023 = vmatpush.msra.mxu0 0.0
        %5024 = vmatpush.msra.mxu0 0.0
        %5025 = vmatpush.msra.mxu0 0.0
        %v5026 = vand.u32 %v4878, 4294901760
        %v5027 = vsub.f32 %v4878, %v5026
        %v5028 = vand.u32 %v5027, 4294901760
        %5029 = vmatpush.msra.mxu0 %v5028
        %v5030 = vand.u32 %v4874, 4294901760
        %v5031 = vsub.f32 %v4874, %v5030
        %v5032 = vand.u32 %v5031, 4294901760
        %5033 = vmatpush.msra.mxu0 %v5032
        %v5034 = vand.u32 %v504, 4294901760
        %5035 = vmatmul.f32.gmra.mxu0 %v5034
        %v5036 = vpop.f32.mrf.mxu0
        %v5037 = vadd.f32 %v5004, %v5036
        %v5038 = vand.u32 %v507, 4294901760
        %5039 = vmatmul.f32.gmra.mxu0 %v5038
        %v5040 = vpop.f32.mrf.mxu0
        %v5041 = vadd.f32 %v5010, %v5040
        %5042 = vdwg.mxu0
        %5043 = vmatpush.msra.mxu0 0.0
        %5044 = vmatpush.msra.mxu0 0.0
        %5045 = vmatpush.msra.mxu0 0.0
        %5046 = vmatpush.msra.mxu0 0.0
        %5047 = vmatpush.msra.mxu0 0.0
        %5048 = vmatpush.msra.mxu0 0.0
        %5049 = vmatpush.msra.mxu0 0.0
        %5050 = vmatpush.msra.mxu0 0.0
        %5051 = vmatpush.msra.mxu0 0.0
        %5052 = vmatpush.msra.mxu0 0.0
        %5053 = vmatpush.msra.mxu0 0.0
        %5054 = vmatpush.msra.mxu0 0.0
        %5055 = vmatpush.msra.mxu0 0.0
        %5056 = vmatpush.msra.mxu0 0.0
        %v5057 = vand.u32 %v4878, 4294901760
        %5058 = vmatpush.msra.mxu0 %v5057
        %v5059 = vand.u32 %v4874, 4294901760
        %5060 = vmatpush.msra.mxu0 %v5059
        %v5061 = vand.u32 %v504, 4294901760
        %5062 = vmatmul.f32.gmra.mxu0 %v5061
        %v5063 = vpop.f32.mrf.mxu0
        %v5064 = vadd.f32 %v5037, %v5063
        %v5065 = vand.u32 %v507, 4294901760
        %5066 = vmatmul.f32.gmra.mxu0 %v5065
        %v5067 = vpop.f32.mrf.mxu0
        %v5068 = vadd.f32 %v5041, %v5067
        %5069 = vdwg.mxu0
        %v5070 = vmul.f32 %v4293, %v4293
        %v5071 = vmul.f32 %v4294, %v4294
        %v5073 = vsel %vm306, %v5070, 0
        %v5076 = vsel %vm306, %v5071, 0
        %5078 = vmatpush.msra.mxu0 0.0
        %5079 = vmatpush.msra.mxu0 0.0
        %5080 = vmatpush.msra.mxu0 0.0
        %5081 = vmatpush.msra.mxu0 0.0
        %5082 = vmatpush.msra.mxu0 0.0
        %5083 = vmatpush.msra.mxu0 0.0
        %5084 = vmatpush.msra.mxu0 0.0
        %5085 = vmatpush.msra.mxu0 0.0
        %5086 = vmatpush.msra.mxu0 0.0
        %5087 = vmatpush.msra.mxu0 0.0
        %5088 = vmatpush.msra.mxu0 0.0
        %5089 = vmatpush.msra.mxu0 0.0
        %5090 = vmatpush.msra.mxu0 0.0
        %5091 = vmatpush.msra.mxu0 0.0
        %v5092 = vand.u32 %v299, 4294901760
        %5093 = vmatpush.msra.mxu0 %v5092
        %v5094 = vand.u32 %v298, 4294901760
        %5095 = vmatpush.msra.mxu0 %v5094
        %v5096 = vand.u32 %v5073, 4294901760
        %v5097 = vsub.f32 %v5073, %v5096
        %v5098 = vand.u32 %v5097, 4294901760
        %v5099 = vsub.f32 %v5097, %v5098
        %v5100 = vand.u32 %v5099, 4294901760
        %5101 = vmatmul.f32.gmra.mxu0 %v5100
        %v5102 = vpop.f32.mrf.mxu0
        %v5103 = vadd.f32 0.0, %v5102
        %v5104 = vand.u32 %v5076, 4294901760
        %v5105 = vsub.f32 %v5076, %v5104
        %v5106 = vand.u32 %v5105, 4294901760
        %v5107 = vsub.f32 %v5105, %v5106
        %v5108 = vand.u32 %v5107, 4294901760
        %5109 = vmatmul.f32.gmra.mxu0 %v5108
        %v5110 = vpop.f32.mrf.mxu0
        %v5111 = vadd.f32 0.0, %v5110
        %5112 = vdwg.mxu0
        %5113 = vmatpush.msra.mxu0 0.0
        %5114 = vmatpush.msra.mxu0 0.0
        %5115 = vmatpush.msra.mxu0 0.0
        %5116 = vmatpush.msra.mxu0 0.0
        %5117 = vmatpush.msra.mxu0 0.0
        %5118 = vmatpush.msra.mxu0 0.0
        %5119 = vmatpush.msra.mxu0 0.0
        %5120 = vmatpush.msra.mxu0 0.0
        %5121 = vmatpush.msra.mxu0 0.0
        %5122 = vmatpush.msra.mxu0 0.0
        %5123 = vmatpush.msra.mxu0 0.0
        %5124 = vmatpush.msra.mxu0 0.0
        %5125 = vmatpush.msra.mxu0 0.0
        %5126 = vmatpush.msra.mxu0 0.0
        %v5127 = vand.u32 %v299, 4294901760
        %v5128 = vsub.f32 %v299, %v5127
        %v5129 = vand.u32 %v5128, 4294901760
        %v5130 = vsub.f32 %v5128, %v5129
        %v5131 = vand.u32 %v5130, 4294901760
        %5132 = vmatpush.msra.mxu0 %v5131
        %v5133 = vand.u32 %v298, 4294901760
        %v5134 = vsub.f32 %v298, %v5133
        %v5135 = vand.u32 %v5134, 4294901760
        %v5136 = vsub.f32 %v5134, %v5135
        %v5137 = vand.u32 %v5136, 4294901760
        %5138 = vmatpush.msra.mxu0 %v5137
        %v5139 = vand.u32 %v5073, 4294901760
        %5140 = vmatmul.f32.gmra.mxu0 %v5139
        %v5141 = vpop.f32.mrf.mxu0
        %v5142 = vadd.f32 %v5103, %v5141
        %v5143 = vand.u32 %v5076, 4294901760
        %5144 = vmatmul.f32.gmra.mxu0 %v5143
        %v5145 = vpop.f32.mrf.mxu0
        %v5146 = vadd.f32 %v5111, %v5145
        %5147 = vdwg.mxu0
        %5148 = vmatpush.msra.mxu0 0.0
        %5149 = vmatpush.msra.mxu0 0.0
        %5150 = vmatpush.msra.mxu0 0.0
        %5151 = vmatpush.msra.mxu0 0.0
        %5152 = vmatpush.msra.mxu0 0.0
        %5153 = vmatpush.msra.mxu0 0.0
        %5154 = vmatpush.msra.mxu0 0.0
        %5155 = vmatpush.msra.mxu0 0.0
        %5156 = vmatpush.msra.mxu0 0.0
        %5157 = vmatpush.msra.mxu0 0.0
        %5158 = vmatpush.msra.mxu0 0.0
        %5159 = vmatpush.msra.mxu0 0.0
        %5160 = vmatpush.msra.mxu0 0.0
        %5161 = vmatpush.msra.mxu0 0.0
        %v5162 = vand.u32 %v299, 4294901760
        %v5163 = vsub.f32 %v299, %v5162
        %5164 = vmatpush.msra.mxu0 %v5163
        %v5165 = vand.u32 %v298, 4294901760
        %v5166 = vsub.f32 %v298, %v5165
        %5167 = vmatpush.msra.mxu0 %v5166
        %v5168 = vand.u32 %v5073, 4294901760
        %v5169 = vsub.f32 %v5073, %v5168
        %5170 = vmatmul.f32.gmra.mxu0 %v5169
        %v5171 = vpop.f32.mrf.mxu0
        %v5172 = vadd.f32 %v5142, %v5171
        %v5173 = vand.u32 %v5076, 4294901760
        %v5174 = vsub.f32 %v5076, %v5173
        %5175 = vmatmul.f32.gmra.mxu0 %v5174
        %v5176 = vpop.f32.mrf.mxu0
        %v5177 = vadd.f32 %v5146, %v5176
        %5178 = vdwg.mxu0
        %5179 = vmatpush.msra.mxu0 0.0
        %5180 = vmatpush.msra.mxu0 0.0
        %5181 = vmatpush.msra.mxu0 0.0
        %5182 = vmatpush.msra.mxu0 0.0
        %5183 = vmatpush.msra.mxu0 0.0
        %5184 = vmatpush.msra.mxu0 0.0
        %5185 = vmatpush.msra.mxu0 0.0
        %5186 = vmatpush.msra.mxu0 0.0
        %5187 = vmatpush.msra.mxu0 0.0
        %5188 = vmatpush.msra.mxu0 0.0
        %5189 = vmatpush.msra.mxu0 0.0
        %5190 = vmatpush.msra.mxu0 0.0
        %5191 = vmatpush.msra.mxu0 0.0
        %5192 = vmatpush.msra.mxu0 0.0
        %v5193 = vand.u32 %v299, 4294901760
        %5194 = vmatpush.msra.mxu0 %v5193
        %v5195 = vand.u32 %v298, 4294901760
        %5196 = vmatpush.msra.mxu0 %v5195
        %v5197 = vand.u32 %v5073, 4294901760
        %v5198 = vsub.f32 %v5073, %v5197
        %v5199 = vand.u32 %v5198, 4294901760
        %5200 = vmatmul.f32.gmra.mxu0 %v5199
        %v5201 = vpop.f32.mrf.mxu0
        %v5202 = vadd.f32 %v5172, %v5201
        %v5203 = vand.u32 %v5076, 4294901760
        %v5204 = vsub.f32 %v5076, %v5203
        %v5205 = vand.u32 %v5204, 4294901760
        %5206 = vmatmul.f32.gmra.mxu0 %v5205
        %v5207 = vpop.f32.mrf.mxu0
        %v5208 = vadd.f32 %v5177, %v5207
        %5209 = vdwg.mxu0
        %5210 = vmatpush.msra.mxu0 0.0
        %5211 = vmatpush.msra.mxu0 0.0
        %5212 = vmatpush.msra.mxu0 0.0
        %5213 = vmatpush.msra.mxu0 0.0
        %5214 = vmatpush.msra.mxu0 0.0
        %5215 = vmatpush.msra.mxu0 0.0
        %5216 = vmatpush.msra.mxu0 0.0
        %5217 = vmatpush.msra.mxu0 0.0
        %5218 = vmatpush.msra.mxu0 0.0
        %5219 = vmatpush.msra.mxu0 0.0
        %5220 = vmatpush.msra.mxu0 0.0
        %5221 = vmatpush.msra.mxu0 0.0
        %5222 = vmatpush.msra.mxu0 0.0
        %5223 = vmatpush.msra.mxu0 0.0
        %v5224 = vand.u32 %v299, 4294901760
        %v5225 = vsub.f32 %v299, %v5224
        %v5226 = vand.u32 %v5225, 4294901760
        %5227 = vmatpush.msra.mxu0 %v5226
        %v5228 = vand.u32 %v298, 4294901760
        %v5229 = vsub.f32 %v298, %v5228
        %v5230 = vand.u32 %v5229, 4294901760
        %5231 = vmatpush.msra.mxu0 %v5230
        %v5232 = vand.u32 %v5073, 4294901760
        %5233 = vmatmul.f32.gmra.mxu0 %v5232
        %v5234 = vpop.f32.mrf.mxu0
        %v5235 = vadd.f32 %v5202, %v5234
        %v5236 = vand.u32 %v5076, 4294901760
        %5237 = vmatmul.f32.gmra.mxu0 %v5236
        %v5238 = vpop.f32.mrf.mxu0
        %v5239 = vadd.f32 %v5208, %v5238
        %5240 = vdwg.mxu0
        %5241 = vmatpush.msra.mxu0 0.0
        %5242 = vmatpush.msra.mxu0 0.0
        %5243 = vmatpush.msra.mxu0 0.0
        %5244 = vmatpush.msra.mxu0 0.0
        %5245 = vmatpush.msra.mxu0 0.0
        %5246 = vmatpush.msra.mxu0 0.0
        %5247 = vmatpush.msra.mxu0 0.0
        %5248 = vmatpush.msra.mxu0 0.0
        %5249 = vmatpush.msra.mxu0 0.0
        %5250 = vmatpush.msra.mxu0 0.0
        %5251 = vmatpush.msra.mxu0 0.0
        %5252 = vmatpush.msra.mxu0 0.0
        %5253 = vmatpush.msra.mxu0 0.0
        %5254 = vmatpush.msra.mxu0 0.0
        %v5255 = vand.u32 %v299, 4294901760
        %5256 = vmatpush.msra.mxu0 %v5255
        %v5257 = vand.u32 %v298, 4294901760
        %5258 = vmatpush.msra.mxu0 %v5257
        %v5259 = vand.u32 %v5073, 4294901760
        %5260 = vmatmul.f32.gmra.mxu0 %v5259
        %v5261 = vpop.f32.mrf.mxu0
        %v5262 = vadd.f32 %v5235, %v5261
        %v5263 = vand.u32 %v5076, 4294901760
        %5264 = vmatmul.f32.gmra.mxu0 %v5263
        %v5265 = vpop.f32.mrf.mxu0
        %v5266 = vadd.f32 %v5239, %v5265
        %5267 = vdwg.mxu0
        %v5268 = vmul.f32 %v4296, %v4296
        %v5269 = vmul.f32 %v4297, %v4297
        %v5271 = vsel %vm306, %v5268, 0
        %v5274 = vsel %vm306, %v5269, 0
        %5276 = vmatpush.msra.mxu0 0.0
        %5277 = vmatpush.msra.mxu0 0.0
        %5278 = vmatpush.msra.mxu0 0.0
        %5279 = vmatpush.msra.mxu0 0.0
        %5280 = vmatpush.msra.mxu0 0.0
        %5281 = vmatpush.msra.mxu0 0.0
        %5282 = vmatpush.msra.mxu0 0.0
        %5283 = vmatpush.msra.mxu0 0.0
        %5284 = vmatpush.msra.mxu0 0.0
        %5285 = vmatpush.msra.mxu0 0.0
        %5286 = vmatpush.msra.mxu0 0.0
        %5287 = vmatpush.msra.mxu0 0.0
        %5288 = vmatpush.msra.mxu0 0.0
        %5289 = vmatpush.msra.mxu0 0.0
        %v5290 = vand.u32 %v299, 4294901760
        %5291 = vmatpush.msra.mxu0 %v5290
        %v5292 = vand.u32 %v298, 4294901760
        %5293 = vmatpush.msra.mxu0 %v5292
        %v5294 = vand.u32 %v5271, 4294901760
        %v5295 = vsub.f32 %v5271, %v5294
        %v5296 = vand.u32 %v5295, 4294901760
        %v5297 = vsub.f32 %v5295, %v5296
        %v5298 = vand.u32 %v5297, 4294901760
        %5299 = vmatmul.f32.gmra.mxu0 %v5298
        %v5300 = vpop.f32.mrf.mxu0
        %v5301 = vadd.f32 0.0, %v5300
        %v5302 = vand.u32 %v5274, 4294901760
        %v5303 = vsub.f32 %v5274, %v5302
        %v5304 = vand.u32 %v5303, 4294901760
        %v5305 = vsub.f32 %v5303, %v5304
        %v5306 = vand.u32 %v5305, 4294901760
        %5307 = vmatmul.f32.gmra.mxu0 %v5306
        %v5308 = vpop.f32.mrf.mxu0
        %v5309 = vadd.f32 0.0, %v5308
        %5310 = vdwg.mxu0
        %5311 = vmatpush.msra.mxu0 0.0
        %5312 = vmatpush.msra.mxu0 0.0
        %5313 = vmatpush.msra.mxu0 0.0
        %5314 = vmatpush.msra.mxu0 0.0
        %5315 = vmatpush.msra.mxu0 0.0
        %5316 = vmatpush.msra.mxu0 0.0
        %5317 = vmatpush.msra.mxu0 0.0
        %5318 = vmatpush.msra.mxu0 0.0
        %5319 = vmatpush.msra.mxu0 0.0
        %5320 = vmatpush.msra.mxu0 0.0
        %5321 = vmatpush.msra.mxu0 0.0
        %5322 = vmatpush.msra.mxu0 0.0
        %5323 = vmatpush.msra.mxu0 0.0
        %5324 = vmatpush.msra.mxu0 0.0
        %v5325 = vand.u32 %v299, 4294901760
        %v5326 = vsub.f32 %v299, %v5325
        %v5327 = vand.u32 %v5326, 4294901760
        %v5328 = vsub.f32 %v5326, %v5327
        %v5329 = vand.u32 %v5328, 4294901760
        %5330 = vmatpush.msra.mxu0 %v5329
        %v5331 = vand.u32 %v298, 4294901760
        %v5332 = vsub.f32 %v298, %v5331
        %v5333 = vand.u32 %v5332, 4294901760
        %v5334 = vsub.f32 %v5332, %v5333
        %v5335 = vand.u32 %v5334, 4294901760
        %5336 = vmatpush.msra.mxu0 %v5335
        %v5337 = vand.u32 %v5271, 4294901760
        %5338 = vmatmul.f32.gmra.mxu0 %v5337
        %v5339 = vpop.f32.mrf.mxu0
        %v5340 = vadd.f32 %v5301, %v5339
        %v5341 = vand.u32 %v5274, 4294901760
        %5342 = vmatmul.f32.gmra.mxu0 %v5341
        %v5343 = vpop.f32.mrf.mxu0
        %v5344 = vadd.f32 %v5309, %v5343
        %5345 = vdwg.mxu0
        %5346 = vmatpush.msra.mxu0 0.0
        %5347 = vmatpush.msra.mxu0 0.0
        %5348 = vmatpush.msra.mxu0 0.0
        %5349 = vmatpush.msra.mxu0 0.0
        %5350 = vmatpush.msra.mxu0 0.0
        %5351 = vmatpush.msra.mxu0 0.0
        %5352 = vmatpush.msra.mxu0 0.0
        %5353 = vmatpush.msra.mxu0 0.0
        %5354 = vmatpush.msra.mxu0 0.0
        %5355 = vmatpush.msra.mxu0 0.0
        %5356 = vmatpush.msra.mxu0 0.0
        %5357 = vmatpush.msra.mxu0 0.0
        %5358 = vmatpush.msra.mxu0 0.0
        %5359 = vmatpush.msra.mxu0 0.0
        %v5360 = vand.u32 %v299, 4294901760
        %v5361 = vsub.f32 %v299, %v5360
        %5362 = vmatpush.msra.mxu0 %v5361
        %v5363 = vand.u32 %v298, 4294901760
        %v5364 = vsub.f32 %v298, %v5363
        %5365 = vmatpush.msra.mxu0 %v5364
        %v5366 = vand.u32 %v5271, 4294901760
        %v5367 = vsub.f32 %v5271, %v5366
        %5368 = vmatmul.f32.gmra.mxu0 %v5367
        %v5369 = vpop.f32.mrf.mxu0
        %v5370 = vadd.f32 %v5340, %v5369
        %v5371 = vand.u32 %v5274, 4294901760
        %v5372 = vsub.f32 %v5274, %v5371
        %5373 = vmatmul.f32.gmra.mxu0 %v5372
        %v5374 = vpop.f32.mrf.mxu0
        %v5375 = vadd.f32 %v5344, %v5374
        %5376 = vdwg.mxu0
        %5377 = vmatpush.msra.mxu0 0.0
        %5378 = vmatpush.msra.mxu0 0.0
        %5379 = vmatpush.msra.mxu0 0.0
        %5380 = vmatpush.msra.mxu0 0.0
        %5381 = vmatpush.msra.mxu0 0.0
        %5382 = vmatpush.msra.mxu0 0.0
        %5383 = vmatpush.msra.mxu0 0.0
        %5384 = vmatpush.msra.mxu0 0.0
        %5385 = vmatpush.msra.mxu0 0.0
        %5386 = vmatpush.msra.mxu0 0.0
        %5387 = vmatpush.msra.mxu0 0.0
        %5388 = vmatpush.msra.mxu0 0.0
        %5389 = vmatpush.msra.mxu0 0.0
        %5390 = vmatpush.msra.mxu0 0.0
        %v5391 = vand.u32 %v299, 4294901760
        %5392 = vmatpush.msra.mxu0 %v5391
        %v5393 = vand.u32 %v298, 4294901760
        %5394 = vmatpush.msra.mxu0 %v5393
        %v5395 = vand.u32 %v5271, 4294901760
        %v5396 = vsub.f32 %v5271, %v5395
        %v5397 = vand.u32 %v5396, 4294901760
        %5398 = vmatmul.f32.gmra.mxu0 %v5397
        %v5399 = vpop.f32.mrf.mxu0
        %v5400 = vadd.f32 %v5370, %v5399
        %v5401 = vand.u32 %v5274, 4294901760
        %v5402 = vsub.f32 %v5274, %v5401
        %v5403 = vand.u32 %v5402, 4294901760
        %5404 = vmatmul.f32.gmra.mxu0 %v5403
        %v5405 = vpop.f32.mrf.mxu0
        %v5406 = vadd.f32 %v5375, %v5405
        %5407 = vdwg.mxu0
        %5408 = vmatpush.msra.mxu0 0.0
        %5409 = vmatpush.msra.mxu0 0.0
        %5410 = vmatpush.msra.mxu0 0.0
        %5411 = vmatpush.msra.mxu0 0.0
        %5412 = vmatpush.msra.mxu0 0.0
        %5413 = vmatpush.msra.mxu0 0.0
        %5414 = vmatpush.msra.mxu0 0.0
        %5415 = vmatpush.msra.mxu0 0.0
        %5416 = vmatpush.msra.mxu0 0.0
        %5417 = vmatpush.msra.mxu0 0.0
        %5418 = vmatpush.msra.mxu0 0.0
        %5419 = vmatpush.msra.mxu0 0.0
        %5420 = vmatpush.msra.mxu0 0.0
        %5421 = vmatpush.msra.mxu0 0.0
        %v5422 = vand.u32 %v299, 4294901760
        %v5423 = vsub.f32 %v299, %v5422
        %v5424 = vand.u32 %v5423, 4294901760
        %5425 = vmatpush.msra.mxu0 %v5424
        %v5426 = vand.u32 %v298, 4294901760
        %v5427 = vsub.f32 %v298, %v5426
        %v5428 = vand.u32 %v5427, 4294901760
        %5429 = vmatpush.msra.mxu0 %v5428
        %v5430 = vand.u32 %v5271, 4294901760
        %5431 = vmatmul.f32.gmra.mxu0 %v5430
        %v5432 = vpop.f32.mrf.mxu0
        %v5433 = vadd.f32 %v5400, %v5432
        %v5434 = vand.u32 %v5274, 4294901760
        %5435 = vmatmul.f32.gmra.mxu0 %v5434
        %v5436 = vpop.f32.mrf.mxu0
        %v5437 = vadd.f32 %v5406, %v5436
        %5438 = vdwg.mxu0
        %5439 = vmatpush.msra.mxu0 0.0
        %5440 = vmatpush.msra.mxu0 0.0
        %5441 = vmatpush.msra.mxu0 0.0
        %5442 = vmatpush.msra.mxu0 0.0
        %5443 = vmatpush.msra.mxu0 0.0
        %5444 = vmatpush.msra.mxu0 0.0
        %5445 = vmatpush.msra.mxu0 0.0
        %5446 = vmatpush.msra.mxu0 0.0
        %5447 = vmatpush.msra.mxu0 0.0
        %5448 = vmatpush.msra.mxu0 0.0
        %5449 = vmatpush.msra.mxu0 0.0
        %5450 = vmatpush.msra.mxu0 0.0
        %5451 = vmatpush.msra.mxu0 0.0
        %5452 = vmatpush.msra.mxu0 0.0
        %v5453 = vand.u32 %v299, 4294901760
        %5454 = vmatpush.msra.mxu0 %v5453
        %v5455 = vand.u32 %v298, 4294901760
        %5456 = vmatpush.msra.mxu0 %v5455
        %v5457 = vand.u32 %v5271, 4294901760
        %5458 = vmatmul.f32.gmra.mxu0 %v5457
        %v5459 = vpop.f32.mrf.mxu0
        %v5460 = vadd.f32 %v5433, %v5459
        %v5461 = vand.u32 %v5274, 4294901760
        %5462 = vmatmul.f32.gmra.mxu0 %v5461
        %v5463 = vpop.f32.mrf.mxu0
        %v5464 = vadd.f32 %v5437, %v5463
        %5465 = vdwg.mxu0
        %5466 = vmatpush.msra.mxu0 0.0
        %5467 = vmatpush.msra.mxu0 0.0
        %5468 = vmatpush.msra.mxu0 0.0
        %5469 = vmatpush.msra.mxu0 0.0
        %5470 = vmatpush.msra.mxu0 0.0
        %5471 = vmatpush.msra.mxu0 0.0
        %5472 = vmatpush.msra.mxu0 0.0
        %5473 = vmatpush.msra.mxu0 0.0
        %5474 = vmatpush.msra.mxu0 0.0
        %5475 = vmatpush.msra.mxu0 0.0
        %5476 = vmatpush.msra.mxu0 0.0
        %5477 = vmatpush.msra.mxu0 0.0
        %5478 = vmatpush.msra.mxu0 0.0
        %5479 = vmatpush.msra.mxu0 0.0
        %v5480 = vand.u32 %v5464, 4294901760
        %5481 = vmatpush.msra.mxu0 %v5480
        %v5482 = vand.u32 %v5460, 4294901760
        %5483 = vmatpush.msra.mxu0 %v5482
        %v5484 = vand.u32 %v504, 4294901760
        %v5485 = vsub.f32 %v504, %v5484
        %v5486 = vand.u32 %v5485, 4294901760
        %v5487 = vsub.f32 %v5485, %v5486
        %v5488 = vand.u32 %v5487, 4294901760
        %5489 = vmatmul.f32.gmra.mxu0 %v5488
        %v5490 = vpop.f32.mrf.mxu0
        %v5491 = vadd.f32 0.0, %v5490
        %v5492 = vand.u32 %v507, 4294901760
        %v5493 = vsub.f32 %v507, %v5492
        %v5494 = vand.u32 %v5493, 4294901760
        %v5495 = vsub.f32 %v5493, %v5494
        %v5496 = vand.u32 %v5495, 4294901760
        %5497 = vmatmul.f32.gmra.mxu0 %v5496
        %v5498 = vpop.f32.mrf.mxu0
        %v5499 = vadd.f32 0.0, %v5498
        %5500 = vdwg.mxu0
        %5501 = vmatpush.msra.mxu0 0.0
        %5502 = vmatpush.msra.mxu0 0.0
        %5503 = vmatpush.msra.mxu0 0.0
        %5504 = vmatpush.msra.mxu0 0.0
        %5505 = vmatpush.msra.mxu0 0.0
        %5506 = vmatpush.msra.mxu0 0.0
        %5507 = vmatpush.msra.mxu0 0.0
        %5508 = vmatpush.msra.mxu0 0.0
        %5509 = vmatpush.msra.mxu0 0.0
        %5510 = vmatpush.msra.mxu0 0.0
        %5511 = vmatpush.msra.mxu0 0.0
        %5512 = vmatpush.msra.mxu0 0.0
        %5513 = vmatpush.msra.mxu0 0.0
        %5514 = vmatpush.msra.mxu0 0.0
        %v5515 = vand.u32 %v5464, 4294901760
        %v5516 = vsub.f32 %v5464, %v5515
        %v5517 = vand.u32 %v5516, 4294901760
        %v5518 = vsub.f32 %v5516, %v5517
        %v5519 = vand.u32 %v5518, 4294901760
        %5520 = vmatpush.msra.mxu0 %v5519
        %v5521 = vand.u32 %v5460, 4294901760
        %v5522 = vsub.f32 %v5460, %v5521
        %v5523 = vand.u32 %v5522, 4294901760
        %v5524 = vsub.f32 %v5522, %v5523
        %v5525 = vand.u32 %v5524, 4294901760
        %5526 = vmatpush.msra.mxu0 %v5525
        %v5527 = vand.u32 %v504, 4294901760
        %5528 = vmatmul.f32.gmra.mxu0 %v5527
        %v5529 = vpop.f32.mrf.mxu0
        %v5530 = vadd.f32 %v5491, %v5529
        %v5531 = vand.u32 %v507, 4294901760
        %5532 = vmatmul.f32.gmra.mxu0 %v5531
        %v5533 = vpop.f32.mrf.mxu0
        %v5534 = vadd.f32 %v5499, %v5533
        %5535 = vdwg.mxu0
        %5536 = vmatpush.msra.mxu0 0.0
        %5537 = vmatpush.msra.mxu0 0.0
        %5538 = vmatpush.msra.mxu0 0.0
        %5539 = vmatpush.msra.mxu0 0.0
        %5540 = vmatpush.msra.mxu0 0.0
        %5541 = vmatpush.msra.mxu0 0.0
        %5542 = vmatpush.msra.mxu0 0.0
        %5543 = vmatpush.msra.mxu0 0.0
        %5544 = vmatpush.msra.mxu0 0.0
        %5545 = vmatpush.msra.mxu0 0.0
        %5546 = vmatpush.msra.mxu0 0.0
        %5547 = vmatpush.msra.mxu0 0.0
        %5548 = vmatpush.msra.mxu0 0.0
        %5549 = vmatpush.msra.mxu0 0.0
        %v5550 = vand.u32 %v5464, 4294901760
        %v5551 = vsub.f32 %v5464, %v5550
        %5552 = vmatpush.msra.mxu0 %v5551
        %v5553 = vand.u32 %v5460, 4294901760
        %v5554 = vsub.f32 %v5460, %v5553
        %5555 = vmatpush.msra.mxu0 %v5554
        %v5556 = vand.u32 %v504, 4294901760
        %v5557 = vsub.f32 %v504, %v5556
        %5558 = vmatmul.f32.gmra.mxu0 %v5557
        %v5559 = vpop.f32.mrf.mxu0
        %v5560 = vadd.f32 %v5530, %v5559
        %v5561 = vand.u32 %v507, 4294901760
        %v5562 = vsub.f32 %v507, %v5561
        %5563 = vmatmul.f32.gmra.mxu0 %v5562
        %v5564 = vpop.f32.mrf.mxu0
        %v5565 = vadd.f32 %v5534, %v5564
        %5566 = vdwg.mxu0
        %5567 = vmatpush.msra.mxu0 0.0
        %5568 = vmatpush.msra.mxu0 0.0
        %5569 = vmatpush.msra.mxu0 0.0
        %5570 = vmatpush.msra.mxu0 0.0
        %5571 = vmatpush.msra.mxu0 0.0
        %5572 = vmatpush.msra.mxu0 0.0
        %5573 = vmatpush.msra.mxu0 0.0
        %5574 = vmatpush.msra.mxu0 0.0
        %5575 = vmatpush.msra.mxu0 0.0
        %5576 = vmatpush.msra.mxu0 0.0
        %5577 = vmatpush.msra.mxu0 0.0
        %5578 = vmatpush.msra.mxu0 0.0
        %5579 = vmatpush.msra.mxu0 0.0
        %5580 = vmatpush.msra.mxu0 0.0
        %v5581 = vand.u32 %v5464, 4294901760
        %5582 = vmatpush.msra.mxu0 %v5581
        %v5583 = vand.u32 %v5460, 4294901760
        %5584 = vmatpush.msra.mxu0 %v5583
        %v5585 = vand.u32 %v504, 4294901760
        %v5586 = vsub.f32 %v504, %v5585
        %v5587 = vand.u32 %v5586, 4294901760
        %5588 = vmatmul.f32.gmra.mxu0 %v5587
        %v5589 = vpop.f32.mrf.mxu0
        %v5590 = vadd.f32 %v5560, %v5589
        %v5591 = vand.u32 %v507, 4294901760
        %v5592 = vsub.f32 %v507, %v5591
        %v5593 = vand.u32 %v5592, 4294901760
        %5594 = vmatmul.f32.gmra.mxu0 %v5593
        %v5595 = vpop.f32.mrf.mxu0
        %v5596 = vadd.f32 %v5565, %v5595
        %5597 = vdwg.mxu0
        %5598 = vmatpush.msra.mxu0 0.0
        %5599 = vmatpush.msra.mxu0 0.0
        %5600 = vmatpush.msra.mxu0 0.0
        %5601 = vmatpush.msra.mxu0 0.0
        %5602 = vmatpush.msra.mxu0 0.0
        %5603 = vmatpush.msra.mxu0 0.0
        %5604 = vmatpush.msra.mxu0 0.0
        %5605 = vmatpush.msra.mxu0 0.0
        %5606 = vmatpush.msra.mxu0 0.0
        %5607 = vmatpush.msra.mxu0 0.0
        %5608 = vmatpush.msra.mxu0 0.0
        %5609 = vmatpush.msra.mxu0 0.0
        %5610 = vmatpush.msra.mxu0 0.0
        %5611 = vmatpush.msra.mxu0 0.0
        %v5612 = vand.u32 %v5464, 4294901760
        %v5613 = vsub.f32 %v5464, %v5612
        %v5614 = vand.u32 %v5613, 4294901760
        %5615 = vmatpush.msra.mxu0 %v5614
        %v5616 = vand.u32 %v5460, 4294901760
        %v5617 = vsub.f32 %v5460, %v5616
        %v5618 = vand.u32 %v5617, 4294901760
        %5619 = vmatpush.msra.mxu0 %v5618
        %v5620 = vand.u32 %v504, 4294901760
        %5621 = vmatmul.f32.gmra.mxu0 %v5620
        %v5622 = vpop.f32.mrf.mxu0
        %v5623 = vadd.f32 %v5590, %v5622
        %v5624 = vand.u32 %v507, 4294901760
        %5625 = vmatmul.f32.gmra.mxu0 %v5624
        %v5626 = vpop.f32.mrf.mxu0
        %v5627 = vadd.f32 %v5596, %v5626
        %5628 = vdwg.mxu0
        %5629 = vmatpush.msra.mxu0 0.0
        %5630 = vmatpush.msra.mxu0 0.0
        %5631 = vmatpush.msra.mxu0 0.0
        %5632 = vmatpush.msra.mxu0 0.0
        %5633 = vmatpush.msra.mxu0 0.0
        %5634 = vmatpush.msra.mxu0 0.0
        %5635 = vmatpush.msra.mxu0 0.0
        %5636 = vmatpush.msra.mxu0 0.0
        %5637 = vmatpush.msra.mxu0 0.0
        %5638 = vmatpush.msra.mxu0 0.0
        %5639 = vmatpush.msra.mxu0 0.0
        %5640 = vmatpush.msra.mxu0 0.0
        %5641 = vmatpush.msra.mxu0 0.0
        %5642 = vmatpush.msra.mxu0 0.0
        %v5643 = vand.u32 %v5464, 4294901760
        %5644 = vmatpush.msra.mxu0 %v5643
        %v5645 = vand.u32 %v5460, 4294901760
        %5646 = vmatpush.msra.mxu0 %v5645
        %v5647 = vand.u32 %v504, 4294901760
        %5648 = vmatmul.f32.gmra.mxu0 %v5647
        %v5649 = vpop.f32.mrf.mxu0
        %v5650 = vadd.f32 %v5623, %v5649
        %v5651 = vand.u32 %v507, 4294901760
        %5652 = vmatmul.f32.gmra.mxu0 %v5651
        %v5653 = vpop.f32.mrf.mxu0
        %v5654 = vadd.f32 %v5627, %v5653
        %5655 = vdwg.mxu0
        %v5656 = vmul.f32 %v4293, %v4296
        %v5657 = vmul.f32 %v4294, %v4297
        %v5659 = vsel %vm306, %v5656, 0
        %v5662 = vsel %vm306, %v5657, 0
        %5664 = vmatpush.msra.mxu0 0.0
        %5665 = vmatpush.msra.mxu0 0.0
        %5666 = vmatpush.msra.mxu0 0.0
        %5667 = vmatpush.msra.mxu0 0.0
        %5668 = vmatpush.msra.mxu0 0.0
        %5669 = vmatpush.msra.mxu0 0.0
        %5670 = vmatpush.msra.mxu0 0.0
        %5671 = vmatpush.msra.mxu0 0.0
        %5672 = vmatpush.msra.mxu0 0.0
        %5673 = vmatpush.msra.mxu0 0.0
        %5674 = vmatpush.msra.mxu0 0.0
        %5675 = vmatpush.msra.mxu0 0.0
        %5676 = vmatpush.msra.mxu0 0.0
        %5677 = vmatpush.msra.mxu0 0.0
        %v5678 = vand.u32 %v299, 4294901760
        %5679 = vmatpush.msra.mxu0 %v5678
        %v5680 = vand.u32 %v298, 4294901760
        %5681 = vmatpush.msra.mxu0 %v5680
        %v5682 = vand.u32 %v5659, 4294901760
        %v5683 = vsub.f32 %v5659, %v5682
        %v5684 = vand.u32 %v5683, 4294901760
        %v5685 = vsub.f32 %v5683, %v5684
        %v5686 = vand.u32 %v5685, 4294901760
        %5687 = vmatmul.f32.gmra.mxu0 %v5686
        %v5688 = vpop.f32.mrf.mxu0
        %v5689 = vadd.f32 0.0, %v5688
        %v5690 = vand.u32 %v5662, 4294901760
        %v5691 = vsub.f32 %v5662, %v5690
        %v5692 = vand.u32 %v5691, 4294901760
        %v5693 = vsub.f32 %v5691, %v5692
        %v5694 = vand.u32 %v5693, 4294901760
        %5695 = vmatmul.f32.gmra.mxu0 %v5694
        %v5696 = vpop.f32.mrf.mxu0
        %v5697 = vadd.f32 0.0, %v5696
        %5698 = vdwg.mxu0
        %5699 = vmatpush.msra.mxu0 0.0
        %5700 = vmatpush.msra.mxu0 0.0
        %5701 = vmatpush.msra.mxu0 0.0
        %5702 = vmatpush.msra.mxu0 0.0
        %5703 = vmatpush.msra.mxu0 0.0
        %5704 = vmatpush.msra.mxu0 0.0
        %5705 = vmatpush.msra.mxu0 0.0
        %5706 = vmatpush.msra.mxu0 0.0
        %5707 = vmatpush.msra.mxu0 0.0
        %5708 = vmatpush.msra.mxu0 0.0
        %5709 = vmatpush.msra.mxu0 0.0
        %5710 = vmatpush.msra.mxu0 0.0
        %5711 = vmatpush.msra.mxu0 0.0
        %5712 = vmatpush.msra.mxu0 0.0
        %v5713 = vand.u32 %v299, 4294901760
        %v5714 = vsub.f32 %v299, %v5713
        %v5715 = vand.u32 %v5714, 4294901760
        %v5716 = vsub.f32 %v5714, %v5715
        %v5717 = vand.u32 %v5716, 4294901760
        %5718 = vmatpush.msra.mxu0 %v5717
        %v5719 = vand.u32 %v298, 4294901760
        %v5720 = vsub.f32 %v298, %v5719
        %v5721 = vand.u32 %v5720, 4294901760
        %v5722 = vsub.f32 %v5720, %v5721
        %v5723 = vand.u32 %v5722, 4294901760
        %5724 = vmatpush.msra.mxu0 %v5723
        %v5725 = vand.u32 %v5659, 4294901760
        %5726 = vmatmul.f32.gmra.mxu0 %v5725
        %v5727 = vpop.f32.mrf.mxu0
        %v5728 = vadd.f32 %v5689, %v5727
        %v5729 = vand.u32 %v5662, 4294901760
        %5730 = vmatmul.f32.gmra.mxu0 %v5729
        %v5731 = vpop.f32.mrf.mxu0
        %v5732 = vadd.f32 %v5697, %v5731
        %5733 = vdwg.mxu0
        %5734 = vmatpush.msra.mxu0 0.0
        %5735 = vmatpush.msra.mxu0 0.0
        %5736 = vmatpush.msra.mxu0 0.0
        %5737 = vmatpush.msra.mxu0 0.0
        %5738 = vmatpush.msra.mxu0 0.0
        %5739 = vmatpush.msra.mxu0 0.0
        %5740 = vmatpush.msra.mxu0 0.0
        %5741 = vmatpush.msra.mxu0 0.0
        %5742 = vmatpush.msra.mxu0 0.0
        %5743 = vmatpush.msra.mxu0 0.0
        %5744 = vmatpush.msra.mxu0 0.0
        %5745 = vmatpush.msra.mxu0 0.0
        %5746 = vmatpush.msra.mxu0 0.0
        %5747 = vmatpush.msra.mxu0 0.0
        %v5748 = vand.u32 %v299, 4294901760
        %v5749 = vsub.f32 %v299, %v5748
        %5750 = vmatpush.msra.mxu0 %v5749
        %v5751 = vand.u32 %v298, 4294901760
        %v5752 = vsub.f32 %v298, %v5751
        %5753 = vmatpush.msra.mxu0 %v5752
        %v5754 = vand.u32 %v5659, 4294901760
        %v5755 = vsub.f32 %v5659, %v5754
        %5756 = vmatmul.f32.gmra.mxu0 %v5755
        %v5757 = vpop.f32.mrf.mxu0
        %v5758 = vadd.f32 %v5728, %v5757
        %v5759 = vand.u32 %v5662, 4294901760
        %v5760 = vsub.f32 %v5662, %v5759
        %5761 = vmatmul.f32.gmra.mxu0 %v5760
        %v5762 = vpop.f32.mrf.mxu0
        %v5763 = vadd.f32 %v5732, %v5762
        %5764 = vdwg.mxu0
        %5765 = vmatpush.msra.mxu0 0.0
        %5766 = vmatpush.msra.mxu0 0.0
        %5767 = vmatpush.msra.mxu0 0.0
        %5768 = vmatpush.msra.mxu0 0.0
        %5769 = vmatpush.msra.mxu0 0.0
        %5770 = vmatpush.msra.mxu0 0.0
        %5771 = vmatpush.msra.mxu0 0.0
        %5772 = vmatpush.msra.mxu0 0.0
        %5773 = vmatpush.msra.mxu0 0.0
        %5774 = vmatpush.msra.mxu0 0.0
        %5775 = vmatpush.msra.mxu0 0.0
        %5776 = vmatpush.msra.mxu0 0.0
        %5777 = vmatpush.msra.mxu0 0.0
        %5778 = vmatpush.msra.mxu0 0.0
        %v5779 = vand.u32 %v299, 4294901760
        %5780 = vmatpush.msra.mxu0 %v5779
        %v5781 = vand.u32 %v298, 4294901760
        %5782 = vmatpush.msra.mxu0 %v5781
        %v5783 = vand.u32 %v5659, 4294901760
        %v5784 = vsub.f32 %v5659, %v5783
        %v5785 = vand.u32 %v5784, 4294901760
        %5786 = vmatmul.f32.gmra.mxu0 %v5785
        %v5787 = vpop.f32.mrf.mxu0
        %v5788 = vadd.f32 %v5758, %v5787
        %v5789 = vand.u32 %v5662, 4294901760
        %v5790 = vsub.f32 %v5662, %v5789
        %v5791 = vand.u32 %v5790, 4294901760
        %5792 = vmatmul.f32.gmra.mxu0 %v5791
        %v5793 = vpop.f32.mrf.mxu0
        %v5794 = vadd.f32 %v5763, %v5793
        %5795 = vdwg.mxu0
        %5796 = vmatpush.msra.mxu0 0.0
        %5797 = vmatpush.msra.mxu0 0.0
        %5798 = vmatpush.msra.mxu0 0.0
        %5799 = vmatpush.msra.mxu0 0.0
        %5800 = vmatpush.msra.mxu0 0.0
        %5801 = vmatpush.msra.mxu0 0.0
        %5802 = vmatpush.msra.mxu0 0.0
        %5803 = vmatpush.msra.mxu0 0.0
        %5804 = vmatpush.msra.mxu0 0.0
        %5805 = vmatpush.msra.mxu0 0.0
        %5806 = vmatpush.msra.mxu0 0.0
        %5807 = vmatpush.msra.mxu0 0.0
        %5808 = vmatpush.msra.mxu0 0.0
        %5809 = vmatpush.msra.mxu0 0.0
        %v5810 = vand.u32 %v299, 4294901760
        %v5811 = vsub.f32 %v299, %v5810
        %v5812 = vand.u32 %v5811, 4294901760
        %5813 = vmatpush.msra.mxu0 %v5812
        %v5814 = vand.u32 %v298, 4294901760
        %v5815 = vsub.f32 %v298, %v5814
        %v5816 = vand.u32 %v5815, 4294901760
        %5817 = vmatpush.msra.mxu0 %v5816
        %v5818 = vand.u32 %v5659, 4294901760
        %5819 = vmatmul.f32.gmra.mxu0 %v5818
        %v5820 = vpop.f32.mrf.mxu0
        %v5821 = vadd.f32 %v5788, %v5820
        %v5822 = vand.u32 %v5662, 4294901760
        %5823 = vmatmul.f32.gmra.mxu0 %v5822
        %v5824 = vpop.f32.mrf.mxu0
        %v5825 = vadd.f32 %v5794, %v5824
        %5826 = vdwg.mxu0
        %5827 = vmatpush.msra.mxu0 0.0
        %5828 = vmatpush.msra.mxu0 0.0
        %5829 = vmatpush.msra.mxu0 0.0
        %5830 = vmatpush.msra.mxu0 0.0
        %5831 = vmatpush.msra.mxu0 0.0
        %5832 = vmatpush.msra.mxu0 0.0
        %5833 = vmatpush.msra.mxu0 0.0
        %5834 = vmatpush.msra.mxu0 0.0
        %5835 = vmatpush.msra.mxu0 0.0
        %5836 = vmatpush.msra.mxu0 0.0
        %5837 = vmatpush.msra.mxu0 0.0
        %5838 = vmatpush.msra.mxu0 0.0
        %5839 = vmatpush.msra.mxu0 0.0
        %5840 = vmatpush.msra.mxu0 0.0
        %v5841 = vand.u32 %v299, 4294901760
        %5842 = vmatpush.msra.mxu0 %v5841
        %v5843 = vand.u32 %v298, 4294901760
        %5844 = vmatpush.msra.mxu0 %v5843
        %v5845 = vand.u32 %v5659, 4294901760
        %5846 = vmatmul.f32.gmra.mxu0 %v5845
        %v5847 = vpop.f32.mrf.mxu0
        %v5848 = vadd.f32 %v5821, %v5847
        %v5849 = vand.u32 %v5662, 4294901760
        %5850 = vmatmul.f32.gmra.mxu0 %v5849
        %v5851 = vpop.f32.mrf.mxu0
        %v5852 = vadd.f32 %v5825, %v5851
        %5853 = vdwg.mxu0
        %5854 = vmatpush.msra.mxu0 0.0
        %5855 = vmatpush.msra.mxu0 0.0
        %5856 = vmatpush.msra.mxu0 0.0
        %5857 = vmatpush.msra.mxu0 0.0
        %5858 = vmatpush.msra.mxu0 0.0
        %5859 = vmatpush.msra.mxu0 0.0
        %5860 = vmatpush.msra.mxu0 0.0
        %5861 = vmatpush.msra.mxu0 0.0
        %5862 = vmatpush.msra.mxu0 0.0
        %5863 = vmatpush.msra.mxu0 0.0
        %5864 = vmatpush.msra.mxu0 0.0
        %5865 = vmatpush.msra.mxu0 0.0
        %5866 = vmatpush.msra.mxu0 0.0
        %5867 = vmatpush.msra.mxu0 0.0
        %v5868 = vand.u32 %v5852, 4294901760
        %5869 = vmatpush.msra.mxu0 %v5868
        %v5870 = vand.u32 %v5848, 4294901760
        %5871 = vmatpush.msra.mxu0 %v5870
        %v5872 = vand.u32 %v504, 4294901760
        %v5873 = vsub.f32 %v504, %v5872
        %v5874 = vand.u32 %v5873, 4294901760
        %v5875 = vsub.f32 %v5873, %v5874
        %v5876 = vand.u32 %v5875, 4294901760
        %5877 = vmatmul.f32.gmra.mxu0 %v5876
        %v5878 = vpop.f32.mrf.mxu0
        %v5879 = vadd.f32 0.0, %v5878
        %v5880 = vand.u32 %v507, 4294901760
        %v5881 = vsub.f32 %v507, %v5880
        %v5882 = vand.u32 %v5881, 4294901760
        %v5883 = vsub.f32 %v5881, %v5882
        %v5884 = vand.u32 %v5883, 4294901760
        %5885 = vmatmul.f32.gmra.mxu0 %v5884
        %v5886 = vpop.f32.mrf.mxu0
        %v5887 = vadd.f32 0.0, %v5886
        %5888 = vdwg.mxu0
        %5889 = vmatpush.msra.mxu0 0.0
        %5890 = vmatpush.msra.mxu0 0.0
        %5891 = vmatpush.msra.mxu0 0.0
        %5892 = vmatpush.msra.mxu0 0.0
        %5893 = vmatpush.msra.mxu0 0.0
        %5894 = vmatpush.msra.mxu0 0.0
        %5895 = vmatpush.msra.mxu0 0.0
        %5896 = vmatpush.msra.mxu0 0.0
        %5897 = vmatpush.msra.mxu0 0.0
        %5898 = vmatpush.msra.mxu0 0.0
        %5899 = vmatpush.msra.mxu0 0.0
        %5900 = vmatpush.msra.mxu0 0.0
        %5901 = vmatpush.msra.mxu0 0.0
        %5902 = vmatpush.msra.mxu0 0.0
        %v5903 = vand.u32 %v5852, 4294901760
        %v5904 = vsub.f32 %v5852, %v5903
        %v5905 = vand.u32 %v5904, 4294901760
        %v5906 = vsub.f32 %v5904, %v5905
        %v5907 = vand.u32 %v5906, 4294901760
        %5908 = vmatpush.msra.mxu0 %v5907
        %v5909 = vand.u32 %v5848, 4294901760
        %v5910 = vsub.f32 %v5848, %v5909
        %v5911 = vand.u32 %v5910, 4294901760
        %v5912 = vsub.f32 %v5910, %v5911
        %v5913 = vand.u32 %v5912, 4294901760
        %5914 = vmatpush.msra.mxu0 %v5913
        %v5915 = vand.u32 %v504, 4294901760
        %5916 = vmatmul.f32.gmra.mxu0 %v5915
        %v5917 = vpop.f32.mrf.mxu0
        %v5918 = vadd.f32 %v5879, %v5917
        %v5919 = vand.u32 %v507, 4294901760
        %5920 = vmatmul.f32.gmra.mxu0 %v5919
        %v5921 = vpop.f32.mrf.mxu0
        %v5922 = vadd.f32 %v5887, %v5921
        %5923 = vdwg.mxu0
        %5924 = vmatpush.msra.mxu0 0.0
        %5925 = vmatpush.msra.mxu0 0.0
        %5926 = vmatpush.msra.mxu0 0.0
        %5927 = vmatpush.msra.mxu0 0.0
        %5928 = vmatpush.msra.mxu0 0.0
        %5929 = vmatpush.msra.mxu0 0.0
        %5930 = vmatpush.msra.mxu0 0.0
        %5931 = vmatpush.msra.mxu0 0.0
        %5932 = vmatpush.msra.mxu0 0.0
        %5933 = vmatpush.msra.mxu0 0.0
        %5934 = vmatpush.msra.mxu0 0.0
        %5935 = vmatpush.msra.mxu0 0.0
        %5936 = vmatpush.msra.mxu0 0.0
        %5937 = vmatpush.msra.mxu0 0.0
        %v5938 = vand.u32 %v5852, 4294901760
        %v5939 = vsub.f32 %v5852, %v5938
        %5940 = vmatpush.msra.mxu0 %v5939
        %v5941 = vand.u32 %v5848, 4294901760
        %v5942 = vsub.f32 %v5848, %v5941
        %5943 = vmatpush.msra.mxu0 %v5942
        %v5944 = vand.u32 %v504, 4294901760
        %v5945 = vsub.f32 %v504, %v5944
        %5946 = vmatmul.f32.gmra.mxu0 %v5945
        %v5947 = vpop.f32.mrf.mxu0
        %v5948 = vadd.f32 %v5918, %v5947
        %v5949 = vand.u32 %v507, 4294901760
        %v5950 = vsub.f32 %v507, %v5949
        %5951 = vmatmul.f32.gmra.mxu0 %v5950
        %v5952 = vpop.f32.mrf.mxu0
        %v5953 = vadd.f32 %v5922, %v5952
        %5954 = vdwg.mxu0
        %5955 = vmatpush.msra.mxu0 0.0
        %5956 = vmatpush.msra.mxu0 0.0
        %5957 = vmatpush.msra.mxu0 0.0
        %5958 = vmatpush.msra.mxu0 0.0
        %5959 = vmatpush.msra.mxu0 0.0
        %5960 = vmatpush.msra.mxu0 0.0
        %5961 = vmatpush.msra.mxu0 0.0
        %5962 = vmatpush.msra.mxu0 0.0
        %5963 = vmatpush.msra.mxu0 0.0
        %5964 = vmatpush.msra.mxu0 0.0
        %5965 = vmatpush.msra.mxu0 0.0
        %5966 = vmatpush.msra.mxu0 0.0
        %5967 = vmatpush.msra.mxu0 0.0
        %5968 = vmatpush.msra.mxu0 0.0
        %v5969 = vand.u32 %v5852, 4294901760
        %5970 = vmatpush.msra.mxu0 %v5969
        %v5971 = vand.u32 %v5848, 4294901760
        %5972 = vmatpush.msra.mxu0 %v5971
        %v5973 = vand.u32 %v504, 4294901760
        %v5974 = vsub.f32 %v504, %v5973
        %v5975 = vand.u32 %v5974, 4294901760
        %5976 = vmatmul.f32.gmra.mxu0 %v5975
        %v5977 = vpop.f32.mrf.mxu0
        %v5978 = vadd.f32 %v5948, %v5977
        %v5979 = vand.u32 %v507, 4294901760
        %v5980 = vsub.f32 %v507, %v5979
        %v5981 = vand.u32 %v5980, 4294901760
        %5982 = vmatmul.f32.gmra.mxu0 %v5981
        %v5983 = vpop.f32.mrf.mxu0
        %v5984 = vadd.f32 %v5953, %v5983
        %5985 = vdwg.mxu0
        %5986 = vmatpush.msra.mxu0 0.0
        %5987 = vmatpush.msra.mxu0 0.0
        %5988 = vmatpush.msra.mxu0 0.0
        %5989 = vmatpush.msra.mxu0 0.0
        %5990 = vmatpush.msra.mxu0 0.0
        %5991 = vmatpush.msra.mxu0 0.0
        %5992 = vmatpush.msra.mxu0 0.0
        %5993 = vmatpush.msra.mxu0 0.0
        %5994 = vmatpush.msra.mxu0 0.0
        %5995 = vmatpush.msra.mxu0 0.0
        %5996 = vmatpush.msra.mxu0 0.0
        %5997 = vmatpush.msra.mxu0 0.0
        %5998 = vmatpush.msra.mxu0 0.0
        %5999 = vmatpush.msra.mxu0 0.0
        %v6000 = vand.u32 %v5852, 4294901760
        %v6001 = vsub.f32 %v5852, %v6000
        %v6002 = vand.u32 %v6001, 4294901760
        %6003 = vmatpush.msra.mxu0 %v6002
        %v6004 = vand.u32 %v5848, 4294901760
        %v6005 = vsub.f32 %v5848, %v6004
        %v6006 = vand.u32 %v6005, 4294901760
        %6007 = vmatpush.msra.mxu0 %v6006
        %v6008 = vand.u32 %v504, 4294901760
        %6009 = vmatmul.f32.gmra.mxu0 %v6008
        %v6010 = vpop.f32.mrf.mxu0
        %v6011 = vadd.f32 %v5978, %v6010
        %v6012 = vand.u32 %v507, 4294901760
        %6013 = vmatmul.f32.gmra.mxu0 %v6012
        %v6014 = vpop.f32.mrf.mxu0
        %v6015 = vadd.f32 %v5984, %v6014
        %6016 = vdwg.mxu0
        %6017 = vmatpush.msra.mxu0 0.0
        %6018 = vmatpush.msra.mxu0 0.0
        %6019 = vmatpush.msra.mxu0 0.0
        %6020 = vmatpush.msra.mxu0 0.0
        %6021 = vmatpush.msra.mxu0 0.0
        %6022 = vmatpush.msra.mxu0 0.0
        %6023 = vmatpush.msra.mxu0 0.0
        %6024 = vmatpush.msra.mxu0 0.0
        %6025 = vmatpush.msra.mxu0 0.0
        %6026 = vmatpush.msra.mxu0 0.0
        %6027 = vmatpush.msra.mxu0 0.0
        %6028 = vmatpush.msra.mxu0 0.0
        %6029 = vmatpush.msra.mxu0 0.0
        %6030 = vmatpush.msra.mxu0 0.0
        %v6031 = vand.u32 %v5852, 4294901760
        %6032 = vmatpush.msra.mxu0 %v6031
        %v6033 = vand.u32 %v5848, 4294901760
        %6034 = vmatpush.msra.mxu0 %v6033
        %v6035 = vand.u32 %v504, 4294901760
        %6036 = vmatmul.f32.gmra.mxu0 %v6035
        %v6037 = vpop.f32.mrf.mxu0
        %v6038 = vadd.f32 %v6011, %v6037
        %v6039 = vand.u32 %v507, 4294901760
        %6040 = vmatmul.f32.gmra.mxu0 %v6039
        %v6041 = vpop.f32.mrf.mxu0
        %v6042 = vadd.f32 %v6015, %v6041
        %6043 = vdwg.mxu0
        %v6044 = vmul.f32 %v4678, %v5064
        %v6045 = vmul.f32 %v4682, %v5068
        %v6046 = vmul.f32 %v4678, %v4678
        %v6047 = vmul.f32 %v4682, %v4682
        %v6048 = vmul.f32 %v5064, %v5064
        %v6049 = vmul.f32 %v5068, %v5068
        %v6050 = vadd.f32 %v6046, %v6048
        %v6051 = vadd.f32 %v6047, %v6049
        %v6052 = vmul.f32 %v6044, 2.0
        %v6053 = vmul.f32 %v6045, 2.0
        %v6054 = vadd.f32 %v6052, 0.0081
        %v6055 = vadd.f32 %v6053, 0.0081
        %v6056 = vmul.f32 %v6038, 18.0
        %v6057 = vmul.f32 %v6042, 18.0
        %v6058 = vsub.f32 %v6056, %v6052
        %v6059 = vsub.f32 %v6057, %v6053
        %v6060 = vadd.f32 %v6058, 0.0729
        %v6061 = vadd.f32 %v6059, 0.0729
        %v6062 = vmul.f32 %v6054, %v6060
        %v6063 = vmul.f32 %v6055, %v6061
        %v6064 = vadd.f32 %v6050, 0.0081
        %v6065 = vadd.f32 %v6051, 0.0081
        %6066 = vmatpush.msra.mxu0 0.0
        %6067 = vmatpush.msra.mxu0 0.0
        %6068 = vmatpush.msra.mxu0 0.0
        %6069 = vmatpush.msra.mxu0 0.0
        %6070 = vmatpush.msra.mxu0 0.0
        %6071 = vmatpush.msra.mxu0 0.0
        %6072 = vmatpush.msra.mxu0 0.0
        %6073 = vmatpush.msra.mxu0 0.0
        %6074 = vmatpush.msra.mxu0 0.0
        %6075 = vmatpush.msra.mxu0 0.0
        %6076 = vmatpush.msra.mxu0 0.0
        %6077 = vmatpush.msra.mxu0 0.0
        %6078 = vmatpush.msra.mxu0 0.0
        %6079 = vmatpush.msra.mxu0 0.0
        %v6080 = vand.u32 %v5266, 4294901760
        %6081 = vmatpush.msra.mxu0 %v6080
        %v6082 = vand.u32 %v5262, 4294901760
        %6083 = vmatpush.msra.mxu0 %v6082
        %v6084 = vand.u32 %v504, 4294901760
        %v6085 = vsub.f32 %v504, %v6084
        %v6086 = vand.u32 %v6085, 4294901760
        %v6087 = vsub.f32 %v6085, %v6086
        %v6088 = vand.u32 %v6087, 4294901760
        %6089 = vmatmul.f32.gmra.mxu0 %v6088
        %v6090 = vpop.f32.mrf.mxu0
        %v6091 = vadd.f32 %v5650, %v6090
        %v6092 = vand.u32 %v507, 4294901760
        %v6093 = vsub.f32 %v507, %v6092
        %v6094 = vand.u32 %v6093, 4294901760
        %v6095 = vsub.f32 %v6093, %v6094
        %v6096 = vand.u32 %v6095, 4294901760
        %6097 = vmatmul.f32.gmra.mxu0 %v6096
        %v6098 = vpop.f32.mrf.mxu0
        %v6099 = vadd.f32 %v5654, %v6098
        %6100 = vdwg.mxu0
        %6101 = vmatpush.msra.mxu0 0.0
        %6102 = vmatpush.msra.mxu0 0.0
        %6103 = vmatpush.msra.mxu0 0.0
        %6104 = vmatpush.msra.mxu0 0.0
        %6105 = vmatpush.msra.mxu0 0.0
        %6106 = vmatpush.msra.mxu0 0.0
        %6107 = vmatpush.msra.mxu0 0.0
        %6108 = vmatpush.msra.mxu0 0.0
        %6109 = vmatpush.msra.mxu0 0.0
        %6110 = vmatpush.msra.mxu0 0.0
        %6111 = vmatpush.msra.mxu0 0.0
        %6112 = vmatpush.msra.mxu0 0.0
        %6113 = vmatpush.msra.mxu0 0.0
        %6114 = vmatpush.msra.mxu0 0.0
        %v6115 = vand.u32 %v5266, 4294901760
        %v6116 = vsub.f32 %v5266, %v6115
        %v6117 = vand.u32 %v6116, 4294901760
        %v6118 = vsub.f32 %v6116, %v6117
        %v6119 = vand.u32 %v6118, 4294901760
        %6120 = vmatpush.msra.mxu0 %v6119
        %v6121 = vand.u32 %v5262, 4294901760
        %v6122 = vsub.f32 %v5262, %v6121
        %v6123 = vand.u32 %v6122, 4294901760
        %v6124 = vsub.f32 %v6122, %v6123
        %v6125 = vand.u32 %v6124, 4294901760
        %6126 = vmatpush.msra.mxu0 %v6125
        %v6127 = vand.u32 %v504, 4294901760
        %6128 = vmatmul.f32.gmra.mxu0 %v6127
        %v6129 = vpop.f32.mrf.mxu0
        %v6130 = vadd.f32 %v6091, %v6129
        %v6131 = vand.u32 %v507, 4294901760
        %6132 = vmatmul.f32.gmra.mxu0 %v6131
        %v6133 = vpop.f32.mrf.mxu0
        %v6134 = vadd.f32 %v6099, %v6133
        %6135 = vdwg.mxu0
        %6136 = vmatpush.msra.mxu0 0.0
        %6137 = vmatpush.msra.mxu0 0.0
        %6138 = vmatpush.msra.mxu0 0.0
        %6139 = vmatpush.msra.mxu0 0.0
        %6140 = vmatpush.msra.mxu0 0.0
        %6141 = vmatpush.msra.mxu0 0.0
        %6142 = vmatpush.msra.mxu0 0.0
        %6143 = vmatpush.msra.mxu0 0.0
        %6144 = vmatpush.msra.mxu0 0.0
        %6145 = vmatpush.msra.mxu0 0.0
        %6146 = vmatpush.msra.mxu0 0.0
        %6147 = vmatpush.msra.mxu0 0.0
        %6148 = vmatpush.msra.mxu0 0.0
        %6149 = vmatpush.msra.mxu0 0.0
        %v6150 = vand.u32 %v5266, 4294901760
        %v6151 = vsub.f32 %v5266, %v6150
        %6152 = vmatpush.msra.mxu0 %v6151
        %v6153 = vand.u32 %v5262, 4294901760
        %v6154 = vsub.f32 %v5262, %v6153
        %6155 = vmatpush.msra.mxu0 %v6154
        %v6156 = vand.u32 %v504, 4294901760
        %v6157 = vsub.f32 %v504, %v6156
        %6158 = vmatmul.f32.gmra.mxu0 %v6157
        %v6159 = vpop.f32.mrf.mxu0
        %v6160 = vadd.f32 %v6130, %v6159
        %v6161 = vand.u32 %v507, 4294901760
        %v6162 = vsub.f32 %v507, %v6161
        %6163 = vmatmul.f32.gmra.mxu0 %v6162
        %v6164 = vpop.f32.mrf.mxu0
        %v6165 = vadd.f32 %v6134, %v6164
        %6166 = vdwg.mxu0
        %6167 = vmatpush.msra.mxu0 0.0
        %6168 = vmatpush.msra.mxu0 0.0
        %6169 = vmatpush.msra.mxu0 0.0
        %6170 = vmatpush.msra.mxu0 0.0
        %6171 = vmatpush.msra.mxu0 0.0
        %6172 = vmatpush.msra.mxu0 0.0
        %6173 = vmatpush.msra.mxu0 0.0
        %6174 = vmatpush.msra.mxu0 0.0
        %6175 = vmatpush.msra.mxu0 0.0
        %6176 = vmatpush.msra.mxu0 0.0
        %6177 = vmatpush.msra.mxu0 0.0
        %6178 = vmatpush.msra.mxu0 0.0
        %6179 = vmatpush.msra.mxu0 0.0
        %6180 = vmatpush.msra.mxu0 0.0
        %v6181 = vand.u32 %v5266, 4294901760
        %6182 = vmatpush.msra.mxu0 %v6181
        %v6183 = vand.u32 %v5262, 4294901760
        %6184 = vmatpush.msra.mxu0 %v6183
        %v6185 = vand.u32 %v504, 4294901760
        %v6186 = vsub.f32 %v504, %v6185
        %v6187 = vand.u32 %v6186, 4294901760
        %6188 = vmatmul.f32.gmra.mxu0 %v6187
        %v6189 = vpop.f32.mrf.mxu0
        %v6190 = vadd.f32 %v6160, %v6189
        %v6191 = vand.u32 %v507, 4294901760
        %v6192 = vsub.f32 %v507, %v6191
        %v6193 = vand.u32 %v6192, 4294901760
        %6194 = vmatmul.f32.gmra.mxu0 %v6193
        %v6195 = vpop.f32.mrf.mxu0
        %v6196 = vadd.f32 %v6165, %v6195
        %6197 = vdwg.mxu0
        %6198 = vmatpush.msra.mxu0 0.0
        %6199 = vmatpush.msra.mxu0 0.0
        %6200 = vmatpush.msra.mxu0 0.0
        %6201 = vmatpush.msra.mxu0 0.0
        %6202 = vmatpush.msra.mxu0 0.0
        %6203 = vmatpush.msra.mxu0 0.0
        %6204 = vmatpush.msra.mxu0 0.0
        %6205 = vmatpush.msra.mxu0 0.0
        %6206 = vmatpush.msra.mxu0 0.0
        %6207 = vmatpush.msra.mxu0 0.0
        %6208 = vmatpush.msra.mxu0 0.0
        %6209 = vmatpush.msra.mxu0 0.0
        %6210 = vmatpush.msra.mxu0 0.0
        %6211 = vmatpush.msra.mxu0 0.0
        %v6212 = vand.u32 %v5266, 4294901760
        %v6213 = vsub.f32 %v5266, %v6212
        %v6214 = vand.u32 %v6213, 4294901760
        %6215 = vmatpush.msra.mxu0 %v6214
        %v6216 = vand.u32 %v5262, 4294901760
        %v6217 = vsub.f32 %v5262, %v6216
        %v6218 = vand.u32 %v6217, 4294901760
        %6219 = vmatpush.msra.mxu0 %v6218
        %v6220 = vand.u32 %v504, 4294901760
        %6221 = vmatmul.f32.gmra.mxu0 %v6220
        %v6222 = vpop.f32.mrf.mxu0
        %v6223 = vadd.f32 %v6190, %v6222
        %v6224 = vand.u32 %v507, 4294901760
        %6225 = vmatmul.f32.gmra.mxu0 %v6224
        %v6226 = vpop.f32.mrf.mxu0
        %v6227 = vadd.f32 %v6196, %v6226
        %6228 = vdwg.mxu0
        %6229 = vmatpush.msra.mxu0 0.0
        %6230 = vmatpush.msra.mxu0 0.0
        %6231 = vmatpush.msra.mxu0 0.0
        %6232 = vmatpush.msra.mxu0 0.0
        %6233 = vmatpush.msra.mxu0 0.0
        %6234 = vmatpush.msra.mxu0 0.0
        %6235 = vmatpush.msra.mxu0 0.0
        %6236 = vmatpush.msra.mxu0 0.0
        %6237 = vmatpush.msra.mxu0 0.0
        %6238 = vmatpush.msra.mxu0 0.0
        %6239 = vmatpush.msra.mxu0 0.0
        %6240 = vmatpush.msra.mxu0 0.0
        %6241 = vmatpush.msra.mxu0 0.0
        %6242 = vmatpush.msra.mxu0 0.0
        %v6243 = vand.u32 %v5266, 4294901760
        %6244 = vmatpush.msra.mxu0 %v6243
        %v6245 = vand.u32 %v5262, 4294901760
        %6246 = vmatpush.msra.mxu0 %v6245
        %v6247 = vand.u32 %v504, 4294901760
        %6248 = vmatmul.f32.gmra.mxu0 %v6247
        %v6249 = vpop.f32.mrf.mxu0
        %v6250 = vadd.f32 %v6223, %v6249
        %v6251 = vand.u32 %v507, 4294901760
        %6252 = vmatmul.f32.gmra.mxu0 %v6251
        %v6253 = vpop.f32.mrf.mxu0
        %v6254 = vadd.f32 %v6227, %v6253
        %6255 = vdwg.mxu0
        %v6256 = vmul.f32 %v6250, 9.0
        %v6257 = vmul.f32 %v6254, 9.0
        %v6258 = vsub.f32 %v6256, %v6050
        %v6259 = vsub.f32 %v6257, %v6051
        %v6260 = vadd.f32 %v6258, 0.0729
        %v6261 = vadd.f32 %v6259, 0.0729
        %v6262 = vmul.f32 %v6064, %v6260
        %v6263 = vmul.f32 %v6065, %v6261
        %v6264 = vrcp.pop %v6262
        %v6265 = vrcp.pop %v6263
        %v6266 = vmul.f32 %v6262, %v6264
        %v6267 = vmul.f32 %v6263, %v6265
        %v6268 = vsub.f32 2.0, %v6266
        %v6269 = vsub.f32 2.0, %v6267
        %v6270 = vmul.f32 %v6264, %v6268
        %v6271 = vmul.f32 %v6265, %v6269
        %v6272 = vmul.f32 %v6062, %v6270
        %v6273 = vmul.f32 %v6063, %v6271
        %v6274 = vsub.f32 1.0, %v6272
        %v6275 = vsub.f32 1.0, %v6273
        %v6276 = vmul.f32 %v6274, 0.5
        %v6277 = vmul.f32 %v6275, 0.5
        %v6278 = vmax.f32 %v6276, 0.0
        %v6279 = vmax.f32 %v6277, 0.0
        %v6280 = vmin.f32 %v6278, 1.0
        %v6281 = vmin.f32 %v6279, 1.0
        %s6282 = scalar_lea.vmem %s294, 32 [#allocation10]
        %6283 = vst.msk [vmem:[%s6282] sm:$0xff] %vm306, %v6280
        %6284 = vst.msk [vmem:[%s6282 + $0x8] sm:$0xff] %vm306, %v6281
        %s6285 = scalar_lea.vmem %s244, 48 [#allocation2]
        %v6286 = vld [vmem:[%s6285] sm:$0xff]
        %v6287 = vld [vmem:[%s6285 + $0x8] sm:$0xff]
        %s6288 = scalar_lea.vmem %s254, 48 [#allocation5]
        %v6289 = vld [vmem:[%s6288] sm:$0xff]
        %v6290 = vld [vmem:[%s6288 + $0x8] sm:$0xff]
        %v6292 = vsel %vm306, %v6286, 0
        %v6295 = vsel %vm306, %v6287, 0
        %6297 = vmatpush.msra.mxu0 0.0
        %6298 = vmatpush.msra.mxu0 0.0
        %6299 = vmatpush.msra.mxu0 0.0
        %6300 = vmatpush.msra.mxu0 0.0
        %6301 = vmatpush.msra.mxu0 0.0
        %6302 = vmatpush.msra.mxu0 0.0
        %6303 = vmatpush.msra.mxu0 0.0
        %6304 = vmatpush.msra.mxu0 0.0
        %6305 = vmatpush.msra.mxu0 0.0
        %6306 = vmatpush.msra.mxu0 0.0
        %6307 = vmatpush.msra.mxu0 0.0
        %6308 = vmatpush.msra.mxu0 0.0
        %6309 = vmatpush.msra.mxu0 0.0
        %6310 = vmatpush.msra.mxu0 0.0
        %v6311 = vand.u32 %v299, 4294901760
        %6312 = vmatpush.msra.mxu0 %v6311
        %v6313 = vand.u32 %v298, 4294901760
        %6314 = vmatpush.msra.mxu0 %v6313
        %v6315 = vand.u32 %v6292, 4294901760
        %v6316 = vsub.f32 %v6292, %v6315
        %v6317 = vand.u32 %v6316, 4294901760
        %v6318 = vsub.f32 %v6316, %v6317
        %v6319 = vand.u32 %v6318, 4294901760
        %6320 = vmatmul.f32.gmra.mxu0 %v6319
        %v6321 = vpop.f32.mrf.mxu0
        %v6322 = vadd.f32 0.0, %v6321
        %v6323 = vand.u32 %v6295, 4294901760
        %v6324 = vsub.f32 %v6295, %v6323
        %v6325 = vand.u32 %v6324, 4294901760
        %v6326 = vsub.f32 %v6324, %v6325
        %v6327 = vand.u32 %v6326, 4294901760
        %6328 = vmatmul.f32.gmra.mxu0 %v6327
        %v6329 = vpop.f32.mrf.mxu0
        %v6330 = vadd.f32 0.0, %v6329
        %6331 = vdwg.mxu0
        %6332 = vmatpush.msra.mxu0 0.0
        %6333 = vmatpush.msra.mxu0 0.0
        %6334 = vmatpush.msra.mxu0 0.0
        %6335 = vmatpush.msra.mxu0 0.0
        %6336 = vmatpush.msra.mxu0 0.0
        %6337 = vmatpush.msra.mxu0 0.0
        %6338 = vmatpush.msra.mxu0 0.0
        %6339 = vmatpush.msra.mxu0 0.0
        %6340 = vmatpush.msra.mxu0 0.0
        %6341 = vmatpush.msra.mxu0 0.0
        %6342 = vmatpush.msra.mxu0 0.0
        %6343 = vmatpush.msra.mxu0 0.0
        %6344 = vmatpush.msra.mxu0 0.0
        %6345 = vmatpush.msra.mxu0 0.0
        %v6346 = vand.u32 %v299, 4294901760
        %v6347 = vsub.f32 %v299, %v6346
        %v6348 = vand.u32 %v6347, 4294901760
        %v6349 = vsub.f32 %v6347, %v6348
        %v6350 = vand.u32 %v6349, 4294901760
        %6351 = vmatpush.msra.mxu0 %v6350
        %v6352 = vand.u32 %v298, 4294901760
        %v6353 = vsub.f32 %v298, %v6352
        %v6354 = vand.u32 %v6353, 4294901760
        %v6355 = vsub.f32 %v6353, %v6354
        %v6356 = vand.u32 %v6355, 4294901760
        %6357 = vmatpush.msra.mxu0 %v6356
        %v6358 = vand.u32 %v6292, 4294901760
        %6359 = vmatmul.f32.gmra.mxu0 %v6358
        %v6360 = vpop.f32.mrf.mxu0
        %v6361 = vadd.f32 %v6322, %v6360
        %v6362 = vand.u32 %v6295, 4294901760
        %6363 = vmatmul.f32.gmra.mxu0 %v6362
        %v6364 = vpop.f32.mrf.mxu0
        %v6365 = vadd.f32 %v6330, %v6364
        %6366 = vdwg.mxu0
        %6367 = vmatpush.msra.mxu0 0.0
        %6368 = vmatpush.msra.mxu0 0.0
        %6369 = vmatpush.msra.mxu0 0.0
        %6370 = vmatpush.msra.mxu0 0.0
        %6371 = vmatpush.msra.mxu0 0.0
        %6372 = vmatpush.msra.mxu0 0.0
        %6373 = vmatpush.msra.mxu0 0.0
        %6374 = vmatpush.msra.mxu0 0.0
        %6375 = vmatpush.msra.mxu0 0.0
        %6376 = vmatpush.msra.mxu0 0.0
        %6377 = vmatpush.msra.mxu0 0.0
        %6378 = vmatpush.msra.mxu0 0.0
        %6379 = vmatpush.msra.mxu0 0.0
        %6380 = vmatpush.msra.mxu0 0.0
        %v6381 = vand.u32 %v299, 4294901760
        %v6382 = vsub.f32 %v299, %v6381
        %6383 = vmatpush.msra.mxu0 %v6382
        %v6384 = vand.u32 %v298, 4294901760
        %v6385 = vsub.f32 %v298, %v6384
        %6386 = vmatpush.msra.mxu0 %v6385
        %v6387 = vand.u32 %v6292, 4294901760
        %v6388 = vsub.f32 %v6292, %v6387
        %6389 = vmatmul.f32.gmra.mxu0 %v6388
        %v6390 = vpop.f32.mrf.mxu0
        %v6391 = vadd.f32 %v6361, %v6390
        %v6392 = vand.u32 %v6295, 4294901760
        %v6393 = vsub.f32 %v6295, %v6392
        %6394 = vmatmul.f32.gmra.mxu0 %v6393
        %v6395 = vpop.f32.mrf.mxu0
        %v6396 = vadd.f32 %v6365, %v6395
        %6397 = vdwg.mxu0
        %6398 = vmatpush.msra.mxu0 0.0
        %6399 = vmatpush.msra.mxu0 0.0
        %6400 = vmatpush.msra.mxu0 0.0
        %6401 = vmatpush.msra.mxu0 0.0
        %6402 = vmatpush.msra.mxu0 0.0
        %6403 = vmatpush.msra.mxu0 0.0
        %6404 = vmatpush.msra.mxu0 0.0
        %6405 = vmatpush.msra.mxu0 0.0
        %6406 = vmatpush.msra.mxu0 0.0
        %6407 = vmatpush.msra.mxu0 0.0
        %6408 = vmatpush.msra.mxu0 0.0
        %6409 = vmatpush.msra.mxu0 0.0
        %6410 = vmatpush.msra.mxu0 0.0
        %6411 = vmatpush.msra.mxu0 0.0
        %v6412 = vand.u32 %v299, 4294901760
        %6413 = vmatpush.msra.mxu0 %v6412
        %v6414 = vand.u32 %v298, 4294901760
        %6415 = vmatpush.msra.mxu0 %v6414
        %v6416 = vand.u32 %v6292, 4294901760
        %v6417 = vsub.f32 %v6292, %v6416
        %v6418 = vand.u32 %v6417, 4294901760
        %6419 = vmatmul.f32.gmra.mxu0 %v6418
        %v6420 = vpop.f32.mrf.mxu0
        %v6421 = vadd.f32 %v6391, %v6420
        %v6422 = vand.u32 %v6295, 4294901760
        %v6423 = vsub.f32 %v6295, %v6422
        %v6424 = vand.u32 %v6423, 4294901760
        %6425 = vmatmul.f32.gmra.mxu0 %v6424
        %v6426 = vpop.f32.mrf.mxu0
        %v6427 = vadd.f32 %v6396, %v6426
        %6428 = vdwg.mxu0
        %6429 = vmatpush.msra.mxu0 0.0
        %6430 = vmatpush.msra.mxu0 0.0
        %6431 = vmatpush.msra.mxu0 0.0
        %6432 = vmatpush.msra.mxu0 0.0
        %6433 = vmatpush.msra.mxu0 0.0
        %6434 = vmatpush.msra.mxu0 0.0
        %6435 = vmatpush.msra.mxu0 0.0
        %6436 = vmatpush.msra.mxu0 0.0
        %6437 = vmatpush.msra.mxu0 0.0
        %6438 = vmatpush.msra.mxu0 0.0
        %6439 = vmatpush.msra.mxu0 0.0
        %6440 = vmatpush.msra.mxu0 0.0
        %6441 = vmatpush.msra.mxu0 0.0
        %6442 = vmatpush.msra.mxu0 0.0
        %v6443 = vand.u32 %v299, 4294901760
        %v6444 = vsub.f32 %v299, %v6443
        %v6445 = vand.u32 %v6444, 4294901760
        %6446 = vmatpush.msra.mxu0 %v6445
        %v6447 = vand.u32 %v298, 4294901760
        %v6448 = vsub.f32 %v298, %v6447
        %v6449 = vand.u32 %v6448, 4294901760
        %6450 = vmatpush.msra.mxu0 %v6449
        %v6451 = vand.u32 %v6292, 4294901760
        %6452 = vmatmul.f32.gmra.mxu0 %v6451
        %v6453 = vpop.f32.mrf.mxu0
        %v6454 = vadd.f32 %v6421, %v6453
        %v6455 = vand.u32 %v6295, 4294901760
        %6456 = vmatmul.f32.gmra.mxu0 %v6455
        %v6457 = vpop.f32.mrf.mxu0
        %v6458 = vadd.f32 %v6427, %v6457
        %6459 = vdwg.mxu0
        %6460 = vmatpush.msra.mxu0 0.0
        %6461 = vmatpush.msra.mxu0 0.0
        %6462 = vmatpush.msra.mxu0 0.0
        %6463 = vmatpush.msra.mxu0 0.0
        %6464 = vmatpush.msra.mxu0 0.0
        %6465 = vmatpush.msra.mxu0 0.0
        %6466 = vmatpush.msra.mxu0 0.0
        %6467 = vmatpush.msra.mxu0 0.0
        %6468 = vmatpush.msra.mxu0 0.0
        %6469 = vmatpush.msra.mxu0 0.0
        %6470 = vmatpush.msra.mxu0 0.0
        %6471 = vmatpush.msra.mxu0 0.0
        %6472 = vmatpush.msra.mxu0 0.0
        %6473 = vmatpush.msra.mxu0 0.0
        %v6474 = vand.u32 %v299, 4294901760
        %6475 = vmatpush.msra.mxu0 %v6474
        %v6476 = vand.u32 %v298, 4294901760
        %6477 = vmatpush.msra.mxu0 %v6476
        %v6478 = vand.u32 %v6292, 4294901760
        %6479 = vmatmul.f32.gmra.mxu0 %v6478
        %v6480 = vpop.f32.mrf.mxu0
        %v6481 = vadd.f32 %v6454, %v6480
        %v6482 = vand.u32 %v6295, 4294901760
        %6483 = vmatmul.f32.gmra.mxu0 %v6482
        %v6484 = vpop.f32.mrf.mxu0
        %v6485 = vadd.f32 %v6458, %v6484
        %6486 = vdwg.mxu0
        %6487 = vmatpush.msra.mxu0 0.0
        %6488 = vmatpush.msra.mxu0 0.0
        %6489 = vmatpush.msra.mxu0 0.0
        %6490 = vmatpush.msra.mxu0 0.0
        %6491 = vmatpush.msra.mxu0 0.0
        %6492 = vmatpush.msra.mxu0 0.0
        %6493 = vmatpush.msra.mxu0 0.0
        %6494 = vmatpush.msra.mxu0 0.0
        %6495 = vmatpush.msra.mxu0 0.0
        %6496 = vmatpush.msra.mxu0 0.0
        %6497 = vmatpush.msra.mxu0 0.0
        %6498 = vmatpush.msra.mxu0 0.0
        %6499 = vmatpush.msra.mxu0 0.0
        %6500 = vmatpush.msra.mxu0 0.0
        %v6501 = vand.u32 %v6485, 4294901760
        %6502 = vmatpush.msra.mxu0 %v6501
        %v6503 = vand.u32 %v6481, 4294901760
        %6504 = vmatpush.msra.mxu0 %v6503
        %v6505 = vand.u32 %v504, 4294901760
        %v6506 = vsub.f32 %v504, %v6505
        %v6507 = vand.u32 %v6506, 4294901760
        %v6508 = vsub.f32 %v6506, %v6507
        %v6509 = vand.u32 %v6508, 4294901760
        %6510 = vmatmul.f32.gmra.mxu0 %v6509
        %v6511 = vpop.f32.mrf.mxu0
        %v6512 = vadd.f32 0.0, %v6511
        %v6513 = vand.u32 %v507, 4294901760
        %v6514 = vsub.f32 %v507, %v6513
        %v6515 = vand.u32 %v6514, 4294901760
        %v6516 = vsub.f32 %v6514, %v6515
        %v6517 = vand.u32 %v6516, 4294901760
        %6518 = vmatmul.f32.gmra.mxu0 %v6517
        %v6519 = vpop.f32.mrf.mxu0
        %v6520 = vadd.f32 0.0, %v6519
        %6521 = vdwg.mxu0
        %6522 = vmatpush.msra.mxu0 0.0
        %6523 = vmatpush.msra.mxu0 0.0
        %6524 = vmatpush.msra.mxu0 0.0
        %6525 = vmatpush.msra.mxu0 0.0
        %6526 = vmatpush.msra.mxu0 0.0
        %6527 = vmatpush.msra.mxu0 0.0
        %6528 = vmatpush.msra.mxu0 0.0
        %6529 = vmatpush.msra.mxu0 0.0
        %6530 = vmatpush.msra.mxu0 0.0
        %6531 = vmatpush.msra.mxu0 0.0
        %6532 = vmatpush.msra.mxu0 0.0
        %6533 = vmatpush.msra.mxu0 0.0
        %6534 = vmatpush.msra.mxu0 0.0
        %6535 = vmatpush.msra.mxu0 0.0
        %v6536 = vand.u32 %v6485, 4294901760
        %v6537 = vsub.f32 %v6485, %v6536
        %v6538 = vand.u32 %v6537, 4294901760
        %v6539 = vsub.f32 %v6537, %v6538
        %v6540 = vand.u32 %v6539, 4294901760
        %6541 = vmatpush.msra.mxu0 %v6540
        %v6542 = vand.u32 %v6481, 4294901760
        %v6543 = vsub.f32 %v6481, %v6542
        %v6544 = vand.u32 %v6543, 4294901760
        %v6545 = vsub.f32 %v6543, %v6544
        %v6546 = vand.u32 %v6545, 4294901760
        %6547 = vmatpush.msra.mxu0 %v6546
        %v6548 = vand.u32 %v504, 4294901760
        %6549 = vmatmul.f32.gmra.mxu0 %v6548
        %v6550 = vpop.f32.mrf.mxu0
        %v6551 = vadd.f32 %v6512, %v6550
        %v6552 = vand.u32 %v507, 4294901760
        %6553 = vmatmul.f32.gmra.mxu0 %v6552
        %v6554 = vpop.f32.mrf.mxu0
        %v6555 = vadd.f32 %v6520, %v6554
        %6556 = vdwg.mxu0
        %6557 = vmatpush.msra.mxu0 0.0
        %6558 = vmatpush.msra.mxu0 0.0
        %6559 = vmatpush.msra.mxu0 0.0
        %6560 = vmatpush.msra.mxu0 0.0
        %6561 = vmatpush.msra.mxu0 0.0
        %6562 = vmatpush.msra.mxu0 0.0
        %6563 = vmatpush.msra.mxu0 0.0
        %6564 = vmatpush.msra.mxu0 0.0
        %6565 = vmatpush.msra.mxu0 0.0
        %6566 = vmatpush.msra.mxu0 0.0
        %6567 = vmatpush.msra.mxu0 0.0
        %6568 = vmatpush.msra.mxu0 0.0
        %6569 = vmatpush.msra.mxu0 0.0
        %6570 = vmatpush.msra.mxu0 0.0
        %v6571 = vand.u32 %v6485, 4294901760
        %v6572 = vsub.f32 %v6485, %v6571
        %6573 = vmatpush.msra.mxu0 %v6572
        %v6574 = vand.u32 %v6481, 4294901760
        %v6575 = vsub.f32 %v6481, %v6574
        %6576 = vmatpush.msra.mxu0 %v6575
        %v6577 = vand.u32 %v504, 4294901760
        %v6578 = vsub.f32 %v504, %v6577
        %6579 = vmatmul.f32.gmra.mxu0 %v6578
        %v6580 = vpop.f32.mrf.mxu0
        %v6581 = vadd.f32 %v6551, %v6580
        %v6582 = vand.u32 %v507, 4294901760
        %v6583 = vsub.f32 %v507, %v6582
        %6584 = vmatmul.f32.gmra.mxu0 %v6583
        %v6585 = vpop.f32.mrf.mxu0
        %v6586 = vadd.f32 %v6555, %v6585
        %6587 = vdwg.mxu0
        %6588 = vmatpush.msra.mxu0 0.0
        %6589 = vmatpush.msra.mxu0 0.0
        %6590 = vmatpush.msra.mxu0 0.0
        %6591 = vmatpush.msra.mxu0 0.0
        %6592 = vmatpush.msra.mxu0 0.0
        %6593 = vmatpush.msra.mxu0 0.0
        %6594 = vmatpush.msra.mxu0 0.0
        %6595 = vmatpush.msra.mxu0 0.0
        %6596 = vmatpush.msra.mxu0 0.0
        %6597 = vmatpush.msra.mxu0 0.0
        %6598 = vmatpush.msra.mxu0 0.0
        %6599 = vmatpush.msra.mxu0 0.0
        %6600 = vmatpush.msra.mxu0 0.0
        %6601 = vmatpush.msra.mxu0 0.0
        %v6602 = vand.u32 %v6485, 4294901760
        %6603 = vmatpush.msra.mxu0 %v6602
        %v6604 = vand.u32 %v6481, 4294901760
        %6605 = vmatpush.msra.mxu0 %v6604
        %v6606 = vand.u32 %v504, 4294901760
        %v6607 = vsub.f32 %v504, %v6606
        %v6608 = vand.u32 %v6607, 4294901760
        %6609 = vmatmul.f32.gmra.mxu0 %v6608
        %v6610 = vpop.f32.mrf.mxu0
        %v6611 = vadd.f32 %v6581, %v6610
        %v6612 = vand.u32 %v507, 4294901760
        %v6613 = vsub.f32 %v507, %v6612
        %v6614 = vand.u32 %v6613, 4294901760
        %6615 = vmatmul.f32.gmra.mxu0 %v6614
        %v6616 = vpop.f32.mrf.mxu0
        %v6617 = vadd.f32 %v6586, %v6616
        %6618 = vdwg.mxu0
        %6619 = vmatpush.msra.mxu0 0.0
        %6620 = vmatpush.msra.mxu0 0.0
        %6621 = vmatpush.msra.mxu0 0.0
        %6622 = vmatpush.msra.mxu0 0.0
        %6623 = vmatpush.msra.mxu0 0.0
        %6624 = vmatpush.msra.mxu0 0.0
        %6625 = vmatpush.msra.mxu0 0.0
        %6626 = vmatpush.msra.mxu0 0.0
        %6627 = vmatpush.msra.mxu0 0.0
        %6628 = vmatpush.msra.mxu0 0.0
        %6629 = vmatpush.msra.mxu0 0.0
        %6630 = vmatpush.msra.mxu0 0.0
        %6631 = vmatpush.msra.mxu0 0.0
        %6632 = vmatpush.msra.mxu0 0.0
        %v6633 = vand.u32 %v6485, 4294901760
        %v6634 = vsub.f32 %v6485, %v6633
        %v6635 = vand.u32 %v6634, 4294901760
        %6636 = vmatpush.msra.mxu0 %v6635
        %v6637 = vand.u32 %v6481, 4294901760
        %v6638 = vsub.f32 %v6481, %v6637
        %v6639 = vand.u32 %v6638, 4294901760
        %6640 = vmatpush.msra.mxu0 %v6639
        %v6641 = vand.u32 %v504, 4294901760
        %6642 = vmatmul.f32.gmra.mxu0 %v6641
        %v6643 = vpop.f32.mrf.mxu0
        %v6644 = vadd.f32 %v6611, %v6643
        %v6645 = vand.u32 %v507, 4294901760
        %6646 = vmatmul.f32.gmra.mxu0 %v6645
        %v6647 = vpop.f32.mrf.mxu0
        %v6648 = vadd.f32 %v6617, %v6647
        %6649 = vdwg.mxu0
        %6650 = vmatpush.msra.mxu0 0.0
        %6651 = vmatpush.msra.mxu0 0.0
        %6652 = vmatpush.msra.mxu0 0.0
        %6653 = vmatpush.msra.mxu0 0.0
        %6654 = vmatpush.msra.mxu0 0.0
        %6655 = vmatpush.msra.mxu0 0.0
        %6656 = vmatpush.msra.mxu0 0.0
        %6657 = vmatpush.msra.mxu0 0.0
        %6658 = vmatpush.msra.mxu0 0.0
        %6659 = vmatpush.msra.mxu0 0.0
        %6660 = vmatpush.msra.mxu0 0.0
        %6661 = vmatpush.msra.mxu0 0.0
        %6662 = vmatpush.msra.mxu0 0.0
        %6663 = vmatpush.msra.mxu0 0.0
        %v6664 = vand.u32 %v6485, 4294901760
        %6665 = vmatpush.msra.mxu0 %v6664
        %v6666 = vand.u32 %v6481, 4294901760
        %6667 = vmatpush.msra.mxu0 %v6666
        %v6668 = vand.u32 %v504, 4294901760
        %6669 = vmatmul.f32.gmra.mxu0 %v6668
        %v6670 = vpop.f32.mrf.mxu0
        %v6671 = vadd.f32 %v6644, %v6670
        %v6672 = vand.u32 %v507, 4294901760
        %6673 = vmatmul.f32.gmra.mxu0 %v6672
        %v6674 = vpop.f32.mrf.mxu0
        %v6675 = vadd.f32 %v6648, %v6674
        %6676 = vdwg.mxu0
        %v6678 = vsel %vm306, %v6289, 0
        %v6681 = vsel %vm306, %v6290, 0
        %6683 = vmatpush.msra.mxu0 0.0
        %6684 = vmatpush.msra.mxu0 0.0
        %6685 = vmatpush.msra.mxu0 0.0
        %6686 = vmatpush.msra.mxu0 0.0
        %6687 = vmatpush.msra.mxu0 0.0
        %6688 = vmatpush.msra.mxu0 0.0
        %6689 = vmatpush.msra.mxu0 0.0
        %6690 = vmatpush.msra.mxu0 0.0
        %6691 = vmatpush.msra.mxu0 0.0
        %6692 = vmatpush.msra.mxu0 0.0
        %6693 = vmatpush.msra.mxu0 0.0
        %6694 = vmatpush.msra.mxu0 0.0
        %6695 = vmatpush.msra.mxu0 0.0
        %6696 = vmatpush.msra.mxu0 0.0
        %v6697 = vand.u32 %v299, 4294901760
        %6698 = vmatpush.msra.mxu0 %v6697
        %v6699 = vand.u32 %v298, 4294901760
        %6700 = vmatpush.msra.mxu0 %v6699
        %v6701 = vand.u32 %v6678, 4294901760
        %v6702 = vsub.f32 %v6678, %v6701
        %v6703 = vand.u32 %v6702, 4294901760
        %v6704 = vsub.f32 %v6702, %v6703
        %v6705 = vand.u32 %v6704, 4294901760
        %6706 = vmatmul.f32.gmra.mxu0 %v6705
        %v6707 = vpop.f32.mrf.mxu0
        %v6708 = vadd.f32 0.0, %v6707
        %v6709 = vand.u32 %v6681, 4294901760
        %v6710 = vsub.f32 %v6681, %v6709
        %v6711 = vand.u32 %v6710, 4294901760
        %v6712 = vsub.f32 %v6710, %v6711
        %v6713 = vand.u32 %v6712, 4294901760
        %6714 = vmatmul.f32.gmra.mxu0 %v6713
        %v6715 = vpop.f32.mrf.mxu0
        %v6716 = vadd.f32 0.0, %v6715
        %6717 = vdwg.mxu0
        %6718 = vmatpush.msra.mxu0 0.0
        %6719 = vmatpush.msra.mxu0 0.0
        %6720 = vmatpush.msra.mxu0 0.0
        %6721 = vmatpush.msra.mxu0 0.0
        %6722 = vmatpush.msra.mxu0 0.0
        %6723 = vmatpush.msra.mxu0 0.0
        %6724 = vmatpush.msra.mxu0 0.0
        %6725 = vmatpush.msra.mxu0 0.0
        %6726 = vmatpush.msra.mxu0 0.0
        %6727 = vmatpush.msra.mxu0 0.0
        %6728 = vmatpush.msra.mxu0 0.0
        %6729 = vmatpush.msra.mxu0 0.0
        %6730 = vmatpush.msra.mxu0 0.0
        %6731 = vmatpush.msra.mxu0 0.0
        %v6732 = vand.u32 %v299, 4294901760
        %v6733 = vsub.f32 %v299, %v6732
        %v6734 = vand.u32 %v6733, 4294901760
        %v6735 = vsub.f32 %v6733, %v6734
        %v6736 = vand.u32 %v6735, 4294901760
        %6737 = vmatpush.msra.mxu0 %v6736
        %v6738 = vand.u32 %v298, 4294901760
        %v6739 = vsub.f32 %v298, %v6738
        %v6740 = vand.u32 %v6739, 4294901760
        %v6741 = vsub.f32 %v6739, %v6740
        %v6742 = vand.u32 %v6741, 4294901760
        %6743 = vmatpush.msra.mxu0 %v6742
        %v6744 = vand.u32 %v6678, 4294901760
        %6745 = vmatmul.f32.gmra.mxu0 %v6744
        %v6746 = vpop.f32.mrf.mxu0
        %v6747 = vadd.f32 %v6708, %v6746
        %v6748 = vand.u32 %v6681, 4294901760
        %6749 = vmatmul.f32.gmra.mxu0 %v6748
        %v6750 = vpop.f32.mrf.mxu0
        %v6751 = vadd.f32 %v6716, %v6750
        %6752 = vdwg.mxu0
        %6753 = vmatpush.msra.mxu0 0.0
        %6754 = vmatpush.msra.mxu0 0.0
        %6755 = vmatpush.msra.mxu0 0.0
        %6756 = vmatpush.msra.mxu0 0.0
        %6757 = vmatpush.msra.mxu0 0.0
        %6758 = vmatpush.msra.mxu0 0.0
        %6759 = vmatpush.msra.mxu0 0.0
        %6760 = vmatpush.msra.mxu0 0.0
        %6761 = vmatpush.msra.mxu0 0.0
        %6762 = vmatpush.msra.mxu0 0.0
        %6763 = vmatpush.msra.mxu0 0.0
        %6764 = vmatpush.msra.mxu0 0.0
        %6765 = vmatpush.msra.mxu0 0.0
        %6766 = vmatpush.msra.mxu0 0.0
        %v6767 = vand.u32 %v299, 4294901760
        %v6768 = vsub.f32 %v299, %v6767
        %6769 = vmatpush.msra.mxu0 %v6768
        %v6770 = vand.u32 %v298, 4294901760
        %v6771 = vsub.f32 %v298, %v6770
        %6772 = vmatpush.msra.mxu0 %v6771
        %v6773 = vand.u32 %v6678, 4294901760
        %v6774 = vsub.f32 %v6678, %v6773
        %6775 = vmatmul.f32.gmra.mxu0 %v6774
        %v6776 = vpop.f32.mrf.mxu0
        %v6777 = vadd.f32 %v6747, %v6776
        %v6778 = vand.u32 %v6681, 4294901760
        %v6779 = vsub.f32 %v6681, %v6778
        %6780 = vmatmul.f32.gmra.mxu0 %v6779
        %v6781 = vpop.f32.mrf.mxu0
        %v6782 = vadd.f32 %v6751, %v6781
        %6783 = vdwg.mxu0
        %6784 = vmatpush.msra.mxu0 0.0
        %6785 = vmatpush.msra.mxu0 0.0
        %6786 = vmatpush.msra.mxu0 0.0
        %6787 = vmatpush.msra.mxu0 0.0
        %6788 = vmatpush.msra.mxu0 0.0
        %6789 = vmatpush.msra.mxu0 0.0
        %6790 = vmatpush.msra.mxu0 0.0
        %6791 = vmatpush.msra.mxu0 0.0
        %6792 = vmatpush.msra.mxu0 0.0
        %6793 = vmatpush.msra.mxu0 0.0
        %6794 = vmatpush.msra.mxu0 0.0
        %6795 = vmatpush.msra.mxu0 0.0
        %6796 = vmatpush.msra.mxu0 0.0
        %6797 = vmatpush.msra.mxu0 0.0
        %v6798 = vand.u32 %v299, 4294901760
        %6799 = vmatpush.msra.mxu0 %v6798
        %v6800 = vand.u32 %v298, 4294901760
        %6801 = vmatpush.msra.mxu0 %v6800
        %v6802 = vand.u32 %v6678, 4294901760
        %v6803 = vsub.f32 %v6678, %v6802
        %v6804 = vand.u32 %v6803, 4294901760
        %6805 = vmatmul.f32.gmra.mxu0 %v6804
        %v6806 = vpop.f32.mrf.mxu0
        %v6807 = vadd.f32 %v6777, %v6806
        %v6808 = vand.u32 %v6681, 4294901760
        %v6809 = vsub.f32 %v6681, %v6808
        %v6810 = vand.u32 %v6809, 4294901760
        %6811 = vmatmul.f32.gmra.mxu0 %v6810
        %v6812 = vpop.f32.mrf.mxu0
        %v6813 = vadd.f32 %v6782, %v6812
        %6814 = vdwg.mxu0
        %6815 = vmatpush.msra.mxu0 0.0
        %6816 = vmatpush.msra.mxu0 0.0
        %6817 = vmatpush.msra.mxu0 0.0
        %6818 = vmatpush.msra.mxu0 0.0
        %6819 = vmatpush.msra.mxu0 0.0
        %6820 = vmatpush.msra.mxu0 0.0
        %6821 = vmatpush.msra.mxu0 0.0
        %6822 = vmatpush.msra.mxu0 0.0
        %6823 = vmatpush.msra.mxu0 0.0
        %6824 = vmatpush.msra.mxu0 0.0
        %6825 = vmatpush.msra.mxu0 0.0
        %6826 = vmatpush.msra.mxu0 0.0
        %6827 = vmatpush.msra.mxu0 0.0
        %6828 = vmatpush.msra.mxu0 0.0
        %v6829 = vand.u32 %v299, 4294901760
        %v6830 = vsub.f32 %v299, %v6829
        %v6831 = vand.u32 %v6830, 4294901760
        %6832 = vmatpush.msra.mxu0 %v6831
        %v6833 = vand.u32 %v298, 4294901760
        %v6834 = vsub.f32 %v298, %v6833
        %v6835 = vand.u32 %v6834, 4294901760
        %6836 = vmatpush.msra.mxu0 %v6835
        %v6837 = vand.u32 %v6678, 4294901760
        %6838 = vmatmul.f32.gmra.mxu0 %v6837
        %v6839 = vpop.f32.mrf.mxu0
        %v6840 = vadd.f32 %v6807, %v6839
        %v6841 = vand.u32 %v6681, 4294901760
        %6842 = vmatmul.f32.gmra.mxu0 %v6841
        %v6843 = vpop.f32.mrf.mxu0
        %v6844 = vadd.f32 %v6813, %v6843
        %6845 = vdwg.mxu0
        %6846 = vmatpush.msra.mxu0 0.0
        %6847 = vmatpush.msra.mxu0 0.0
        %6848 = vmatpush.msra.mxu0 0.0
        %6849 = vmatpush.msra.mxu0 0.0
        %6850 = vmatpush.msra.mxu0 0.0
        %6851 = vmatpush.msra.mxu0 0.0
        %6852 = vmatpush.msra.mxu0 0.0
        %6853 = vmatpush.msra.mxu0 0.0
        %6854 = vmatpush.msra.mxu0 0.0
        %6855 = vmatpush.msra.mxu0 0.0
        %6856 = vmatpush.msra.mxu0 0.0
        %6857 = vmatpush.msra.mxu0 0.0
        %6858 = vmatpush.msra.mxu0 0.0
        %6859 = vmatpush.msra.mxu0 0.0
        %v6860 = vand.u32 %v299, 4294901760
        %6861 = vmatpush.msra.mxu0 %v6860
        %v6862 = vand.u32 %v298, 4294901760
        %6863 = vmatpush.msra.mxu0 %v6862
        %v6864 = vand.u32 %v6678, 4294901760
        %6865 = vmatmul.f32.gmra.mxu0 %v6864
        %v6866 = vpop.f32.mrf.mxu0
        %v6867 = vadd.f32 %v6840, %v6866
        %v6868 = vand.u32 %v6681, 4294901760
        %6869 = vmatmul.f32.gmra.mxu0 %v6868
        %v6870 = vpop.f32.mrf.mxu0
        %v6871 = vadd.f32 %v6844, %v6870
        %6872 = vdwg.mxu0
        %6873 = vmatpush.msra.mxu0 0.0
        %6874 = vmatpush.msra.mxu0 0.0
        %6875 = vmatpush.msra.mxu0 0.0
        %6876 = vmatpush.msra.mxu0 0.0
        %6877 = vmatpush.msra.mxu0 0.0
        %6878 = vmatpush.msra.mxu0 0.0
        %6879 = vmatpush.msra.mxu0 0.0
        %6880 = vmatpush.msra.mxu0 0.0
        %6881 = vmatpush.msra.mxu0 0.0
        %6882 = vmatpush.msra.mxu0 0.0
        %6883 = vmatpush.msra.mxu0 0.0
        %6884 = vmatpush.msra.mxu0 0.0
        %6885 = vmatpush.msra.mxu0 0.0
        %6886 = vmatpush.msra.mxu0 0.0
        %v6887 = vand.u32 %v6871, 4294901760
        %6888 = vmatpush.msra.mxu0 %v6887
        %v6889 = vand.u32 %v6867, 4294901760
        %6890 = vmatpush.msra.mxu0 %v6889
        %v6891 = vand.u32 %v504, 4294901760
        %v6892 = vsub.f32 %v504, %v6891
        %v6893 = vand.u32 %v6892, 4294901760
        %v6894 = vsub.f32 %v6892, %v6893
        %v6895 = vand.u32 %v6894, 4294901760
        %6896 = vmatmul.f32.gmra.mxu0 %v6895
        %v6897 = vpop.f32.mrf.mxu0
        %v6898 = vadd.f32 0.0, %v6897
        %v6899 = vand.u32 %v507, 4294901760
        %v6900 = vsub.f32 %v507, %v6899
        %v6901 = vand.u32 %v6900, 4294901760
        %v6902 = vsub.f32 %v6900, %v6901
        %v6903 = vand.u32 %v6902, 4294901760
        %6904 = vmatmul.f32.gmra.mxu0 %v6903
        %v6905 = vpop.f32.mrf.mxu0
        %v6906 = vadd.f32 0.0, %v6905
        %6907 = vdwg.mxu0
        %6908 = vmatpush.msra.mxu0 0.0
        %6909 = vmatpush.msra.mxu0 0.0
        %6910 = vmatpush.msra.mxu0 0.0
        %6911 = vmatpush.msra.mxu0 0.0
        %6912 = vmatpush.msra.mxu0 0.0
        %6913 = vmatpush.msra.mxu0 0.0
        %6914 = vmatpush.msra.mxu0 0.0
        %6915 = vmatpush.msra.mxu0 0.0
        %6916 = vmatpush.msra.mxu0 0.0
        %6917 = vmatpush.msra.mxu0 0.0
        %6918 = vmatpush.msra.mxu0 0.0
        %6919 = vmatpush.msra.mxu0 0.0
        %6920 = vmatpush.msra.mxu0 0.0
        %6921 = vmatpush.msra.mxu0 0.0
        %v6922 = vand.u32 %v6871, 4294901760
        %v6923 = vsub.f32 %v6871, %v6922
        %v6924 = vand.u32 %v6923, 4294901760
        %v6925 = vsub.f32 %v6923, %v6924
        %v6926 = vand.u32 %v6925, 4294901760
        %6927 = vmatpush.msra.mxu0 %v6926
        %v6928 = vand.u32 %v6867, 4294901760
        %v6929 = vsub.f32 %v6867, %v6928
        %v6930 = vand.u32 %v6929, 4294901760
        %v6931 = vsub.f32 %v6929, %v6930
        %v6932 = vand.u32 %v6931, 4294901760
        %6933 = vmatpush.msra.mxu0 %v6932
        %v6934 = vand.u32 %v504, 4294901760
        %6935 = vmatmul.f32.gmra.mxu0 %v6934
        %v6936 = vpop.f32.mrf.mxu0
        %v6937 = vadd.f32 %v6898, %v6936
        %v6938 = vand.u32 %v507, 4294901760
        %6939 = vmatmul.f32.gmra.mxu0 %v6938
        %v6940 = vpop.f32.mrf.mxu0
        %v6941 = vadd.f32 %v6906, %v6940
        %6942 = vdwg.mxu0
        %6943 = vmatpush.msra.mxu0 0.0
        %6944 = vmatpush.msra.mxu0 0.0
        %6945 = vmatpush.msra.mxu0 0.0
        %6946 = vmatpush.msra.mxu0 0.0
        %6947 = vmatpush.msra.mxu0 0.0
        %6948 = vmatpush.msra.mxu0 0.0
        %6949 = vmatpush.msra.mxu0 0.0
        %6950 = vmatpush.msra.mxu0 0.0
        %6951 = vmatpush.msra.mxu0 0.0
        %6952 = vmatpush.msra.mxu0 0.0
        %6953 = vmatpush.msra.mxu0 0.0
        %6954 = vmatpush.msra.mxu0 0.0
        %6955 = vmatpush.msra.mxu0 0.0
        %6956 = vmatpush.msra.mxu0 0.0
        %v6957 = vand.u32 %v6871, 4294901760
        %v6958 = vsub.f32 %v6871, %v6957
        %6959 = vmatpush.msra.mxu0 %v6958
        %v6960 = vand.u32 %v6867, 4294901760
        %v6961 = vsub.f32 %v6867, %v6960
        %6962 = vmatpush.msra.mxu0 %v6961
        %v6963 = vand.u32 %v504, 4294901760
        %v6964 = vsub.f32 %v504, %v6963
        %6965 = vmatmul.f32.gmra.mxu0 %v6964
        %v6966 = vpop.f32.mrf.mxu0
        %v6967 = vadd.f32 %v6937, %v6966
        %v6968 = vand.u32 %v507, 4294901760
        %v6969 = vsub.f32 %v507, %v6968
        %6970 = vmatmul.f32.gmra.mxu0 %v6969
        %v6971 = vpop.f32.mrf.mxu0
        %v6972 = vadd.f32 %v6941, %v6971
        %6973 = vdwg.mxu0
        %6974 = vmatpush.msra.mxu0 0.0
        %6975 = vmatpush.msra.mxu0 0.0
        %6976 = vmatpush.msra.mxu0 0.0
        %6977 = vmatpush.msra.mxu0 0.0
        %6978 = vmatpush.msra.mxu0 0.0
        %6979 = vmatpush.msra.mxu0 0.0
        %6980 = vmatpush.msra.mxu0 0.0
        %6981 = vmatpush.msra.mxu0 0.0
        %6982 = vmatpush.msra.mxu0 0.0
        %6983 = vmatpush.msra.mxu0 0.0
        %6984 = vmatpush.msra.mxu0 0.0
        %6985 = vmatpush.msra.mxu0 0.0
        %6986 = vmatpush.msra.mxu0 0.0
        %6987 = vmatpush.msra.mxu0 0.0
        %v6988 = vand.u32 %v6871, 4294901760
        %6989 = vmatpush.msra.mxu0 %v6988
        %v6990 = vand.u32 %v6867, 4294901760
        %6991 = vmatpush.msra.mxu0 %v6990
        %v6992 = vand.u32 %v504, 4294901760
        %v6993 = vsub.f32 %v504, %v6992
        %v6994 = vand.u32 %v6993, 4294901760
        %6995 = vmatmul.f32.gmra.mxu0 %v6994
        %v6996 = vpop.f32.mrf.mxu0
        %v6997 = vadd.f32 %v6967, %v6996
        %v6998 = vand.u32 %v507, 4294901760
        %v6999 = vsub.f32 %v507, %v6998
        %v7000 = vand.u32 %v6999, 4294901760
        %7001 = vmatmul.f32.gmra.mxu0 %v7000
        %v7002 = vpop.f32.mrf.mxu0
        %v7003 = vadd.f32 %v6972, %v7002
        %7004 = vdwg.mxu0
        %7005 = vmatpush.msra.mxu0 0.0
        %7006 = vmatpush.msra.mxu0 0.0
        %7007 = vmatpush.msra.mxu0 0.0
        %7008 = vmatpush.msra.mxu0 0.0
        %7009 = vmatpush.msra.mxu0 0.0
        %7010 = vmatpush.msra.mxu0 0.0
        %7011 = vmatpush.msra.mxu0 0.0
        %7012 = vmatpush.msra.mxu0 0.0
        %7013 = vmatpush.msra.mxu0 0.0
        %7014 = vmatpush.msra.mxu0 0.0
        %7015 = vmatpush.msra.mxu0 0.0
        %7016 = vmatpush.msra.mxu0 0.0
        %7017 = vmatpush.msra.mxu0 0.0
        %7018 = vmatpush.msra.mxu0 0.0
        %v7019 = vand.u32 %v6871, 4294901760
        %v7020 = vsub.f32 %v6871, %v7019
        %v7021 = vand.u32 %v7020, 4294901760
        %7022 = vmatpush.msra.mxu0 %v7021
        %v7023 = vand.u32 %v6867, 4294901760
        %v7024 = vsub.f32 %v6867, %v7023
        %v7025 = vand.u32 %v7024, 4294901760
        %7026 = vmatpush.msra.mxu0 %v7025
        %v7027 = vand.u32 %v504, 4294901760
        %7028 = vmatmul.f32.gmra.mxu0 %v7027
        %v7029 = vpop.f32.mrf.mxu0
        %v7030 = vadd.f32 %v6997, %v7029
        %v7031 = vand.u32 %v507, 4294901760
        %7032 = vmatmul.f32.gmra.mxu0 %v7031
        %v7033 = vpop.f32.mrf.mxu0
        %v7034 = vadd.f32 %v7003, %v7033
        %7035 = vdwg.mxu0
        %7036 = vmatpush.msra.mxu0 0.0
        %7037 = vmatpush.msra.mxu0 0.0
        %7038 = vmatpush.msra.mxu0 0.0
        %7039 = vmatpush.msra.mxu0 0.0
        %7040 = vmatpush.msra.mxu0 0.0
        %7041 = vmatpush.msra.mxu0 0.0
        %7042 = vmatpush.msra.mxu0 0.0
        %7043 = vmatpush.msra.mxu0 0.0
        %7044 = vmatpush.msra.mxu0 0.0
        %7045 = vmatpush.msra.mxu0 0.0
        %7046 = vmatpush.msra.mxu0 0.0
        %7047 = vmatpush.msra.mxu0 0.0
        %7048 = vmatpush.msra.mxu0 0.0
        %7049 = vmatpush.msra.mxu0 0.0
        %v7050 = vand.u32 %v6871, 4294901760
        %7051 = vmatpush.msra.mxu0 %v7050
        %v7052 = vand.u32 %v6867, 4294901760
        %7053 = vmatpush.msra.mxu0 %v7052
        %v7054 = vand.u32 %v504, 4294901760
        %7055 = vmatmul.f32.gmra.mxu0 %v7054
        %v7056 = vpop.f32.mrf.mxu0
        %v7057 = vadd.f32 %v7030, %v7056
        %v7058 = vand.u32 %v507, 4294901760
        %7059 = vmatmul.f32.gmra.mxu0 %v7058
        %v7060 = vpop.f32.mrf.mxu0
        %v7061 = vadd.f32 %v7034, %v7060
        %7062 = vdwg.mxu0
        %v7063 = vmul.f32 %v6286, %v6286
        %v7064 = vmul.f32 %v6287, %v6287
        %v7066 = vsel %vm306, %v7063, 0
        %v7069 = vsel %vm306, %v7064, 0
        %7071 = vmatpush.msra.mxu0 0.0
        %7072 = vmatpush.msra.mxu0 0.0
        %7073 = vmatpush.msra.mxu0 0.0
        %7074 = vmatpush.msra.mxu0 0.0
        %7075 = vmatpush.msra.mxu0 0.0
        %7076 = vmatpush.msra.mxu0 0.0
        %7077 = vmatpush.msra.mxu0 0.0
        %7078 = vmatpush.msra.mxu0 0.0
        %7079 = vmatpush.msra.mxu0 0.0
        %7080 = vmatpush.msra.mxu0 0.0
        %7081 = vmatpush.msra.mxu0 0.0
        %7082 = vmatpush.msra.mxu0 0.0
        %7083 = vmatpush.msra.mxu0 0.0
        %7084 = vmatpush.msra.mxu0 0.0
        %v7085 = vand.u32 %v299, 4294901760
        %7086 = vmatpush.msra.mxu0 %v7085
        %v7087 = vand.u32 %v298, 4294901760
        %7088 = vmatpush.msra.mxu0 %v7087
        %v7089 = vand.u32 %v7066, 4294901760
        %v7090 = vsub.f32 %v7066, %v7089
        %v7091 = vand.u32 %v7090, 4294901760
        %v7092 = vsub.f32 %v7090, %v7091
        %v7093 = vand.u32 %v7092, 4294901760
        %7094 = vmatmul.f32.gmra.mxu0 %v7093
        %v7095 = vpop.f32.mrf.mxu0
        %v7096 = vadd.f32 0.0, %v7095
        %v7097 = vand.u32 %v7069, 4294901760
        %v7098 = vsub.f32 %v7069, %v7097
        %v7099 = vand.u32 %v7098, 4294901760
        %v7100 = vsub.f32 %v7098, %v7099
        %v7101 = vand.u32 %v7100, 4294901760
        %7102 = vmatmul.f32.gmra.mxu0 %v7101
        %v7103 = vpop.f32.mrf.mxu0
        %v7104 = vadd.f32 0.0, %v7103
        %7105 = vdwg.mxu0
        %7106 = vmatpush.msra.mxu0 0.0
        %7107 = vmatpush.msra.mxu0 0.0
        %7108 = vmatpush.msra.mxu0 0.0
        %7109 = vmatpush.msra.mxu0 0.0
        %7110 = vmatpush.msra.mxu0 0.0
        %7111 = vmatpush.msra.mxu0 0.0
        %7112 = vmatpush.msra.mxu0 0.0
        %7113 = vmatpush.msra.mxu0 0.0
        %7114 = vmatpush.msra.mxu0 0.0
        %7115 = vmatpush.msra.mxu0 0.0
        %7116 = vmatpush.msra.mxu0 0.0
        %7117 = vmatpush.msra.mxu0 0.0
        %7118 = vmatpush.msra.mxu0 0.0
        %7119 = vmatpush.msra.mxu0 0.0
        %v7120 = vand.u32 %v299, 4294901760
        %v7121 = vsub.f32 %v299, %v7120
        %v7122 = vand.u32 %v7121, 4294901760
        %v7123 = vsub.f32 %v7121, %v7122
        %v7124 = vand.u32 %v7123, 4294901760
        %7125 = vmatpush.msra.mxu0 %v7124
        %v7126 = vand.u32 %v298, 4294901760
        %v7127 = vsub.f32 %v298, %v7126
        %v7128 = vand.u32 %v7127, 4294901760
        %v7129 = vsub.f32 %v7127, %v7128
        %v7130 = vand.u32 %v7129, 4294901760
        %7131 = vmatpush.msra.mxu0 %v7130
        %v7132 = vand.u32 %v7066, 4294901760
        %7133 = vmatmul.f32.gmra.mxu0 %v7132
        %v7134 = vpop.f32.mrf.mxu0
        %v7135 = vadd.f32 %v7096, %v7134
        %v7136 = vand.u32 %v7069, 4294901760
        %7137 = vmatmul.f32.gmra.mxu0 %v7136
        %v7138 = vpop.f32.mrf.mxu0
        %v7139 = vadd.f32 %v7104, %v7138
        %7140 = vdwg.mxu0
        %7141 = vmatpush.msra.mxu0 0.0
        %7142 = vmatpush.msra.mxu0 0.0
        %7143 = vmatpush.msra.mxu0 0.0
        %7144 = vmatpush.msra.mxu0 0.0
        %7145 = vmatpush.msra.mxu0 0.0
        %7146 = vmatpush.msra.mxu0 0.0
        %7147 = vmatpush.msra.mxu0 0.0
        %7148 = vmatpush.msra.mxu0 0.0
        %7149 = vmatpush.msra.mxu0 0.0
        %7150 = vmatpush.msra.mxu0 0.0
        %7151 = vmatpush.msra.mxu0 0.0
        %7152 = vmatpush.msra.mxu0 0.0
        %7153 = vmatpush.msra.mxu0 0.0
        %7154 = vmatpush.msra.mxu0 0.0
        %v7155 = vand.u32 %v299, 4294901760
        %v7156 = vsub.f32 %v299, %v7155
        %7157 = vmatpush.msra.mxu0 %v7156
        %v7158 = vand.u32 %v298, 4294901760
        %v7159 = vsub.f32 %v298, %v7158
        %7160 = vmatpush.msra.mxu0 %v7159
        %v7161 = vand.u32 %v7066, 4294901760
        %v7162 = vsub.f32 %v7066, %v7161
        %7163 = vmatmul.f32.gmra.mxu0 %v7162
        %v7164 = vpop.f32.mrf.mxu0
        %v7165 = vadd.f32 %v7135, %v7164
        %v7166 = vand.u32 %v7069, 4294901760
        %v7167 = vsub.f32 %v7069, %v7166
        %7168 = vmatmul.f32.gmra.mxu0 %v7167
        %v7169 = vpop.f32.mrf.mxu0
        %v7170 = vadd.f32 %v7139, %v7169
        %7171 = vdwg.mxu0
        %7172 = vmatpush.msra.mxu0 0.0
        %7173 = vmatpush.msra.mxu0 0.0
        %7174 = vmatpush.msra.mxu0 0.0
        %7175 = vmatpush.msra.mxu0 0.0
        %7176 = vmatpush.msra.mxu0 0.0
        %7177 = vmatpush.msra.mxu0 0.0
        %7178 = vmatpush.msra.mxu0 0.0
        %7179 = vmatpush.msra.mxu0 0.0
        %7180 = vmatpush.msra.mxu0 0.0
        %7181 = vmatpush.msra.mxu0 0.0
        %7182 = vmatpush.msra.mxu0 0.0
        %7183 = vmatpush.msra.mxu0 0.0
        %7184 = vmatpush.msra.mxu0 0.0
        %7185 = vmatpush.msra.mxu0 0.0
        %v7186 = vand.u32 %v299, 4294901760
        %7187 = vmatpush.msra.mxu0 %v7186
        %v7188 = vand.u32 %v298, 4294901760
        %7189 = vmatpush.msra.mxu0 %v7188
        %v7190 = vand.u32 %v7066, 4294901760
        %v7191 = vsub.f32 %v7066, %v7190
        %v7192 = vand.u32 %v7191, 4294901760
        %7193 = vmatmul.f32.gmra.mxu0 %v7192
        %v7194 = vpop.f32.mrf.mxu0
        %v7195 = vadd.f32 %v7165, %v7194
        %v7196 = vand.u32 %v7069, 4294901760
        %v7197 = vsub.f32 %v7069, %v7196
        %v7198 = vand.u32 %v7197, 4294901760
        %7199 = vmatmul.f32.gmra.mxu0 %v7198
        %v7200 = vpop.f32.mrf.mxu0
        %v7201 = vadd.f32 %v7170, %v7200
        %7202 = vdwg.mxu0
        %7203 = vmatpush.msra.mxu0 0.0
        %7204 = vmatpush.msra.mxu0 0.0
        %7205 = vmatpush.msra.mxu0 0.0
        %7206 = vmatpush.msra.mxu0 0.0
        %7207 = vmatpush.msra.mxu0 0.0
        %7208 = vmatpush.msra.mxu0 0.0
        %7209 = vmatpush.msra.mxu0 0.0
        %7210 = vmatpush.msra.mxu0 0.0
        %7211 = vmatpush.msra.mxu0 0.0
        %7212 = vmatpush.msra.mxu0 0.0
        %7213 = vmatpush.msra.mxu0 0.0
        %7214 = vmatpush.msra.mxu0 0.0
        %7215 = vmatpush.msra.mxu0 0.0
        %7216 = vmatpush.msra.mxu0 0.0
        %v7217 = vand.u32 %v299, 4294901760
        %v7218 = vsub.f32 %v299, %v7217
        %v7219 = vand.u32 %v7218, 4294901760
        %7220 = vmatpush.msra.mxu0 %v7219
        %v7221 = vand.u32 %v298, 4294901760
        %v7222 = vsub.f32 %v298, %v7221
        %v7223 = vand.u32 %v7222, 4294901760
        %7224 = vmatpush.msra.mxu0 %v7223
        %v7225 = vand.u32 %v7066, 4294901760
        %7226 = vmatmul.f32.gmra.mxu0 %v7225
        %v7227 = vpop.f32.mrf.mxu0
        %v7228 = vadd.f32 %v7195, %v7227
        %v7229 = vand.u32 %v7069, 4294901760
        %7230 = vmatmul.f32.gmra.mxu0 %v7229
        %v7231 = vpop.f32.mrf.mxu0
        %v7232 = vadd.f32 %v7201, %v7231
        %7233 = vdwg.mxu0
        %7234 = vmatpush.msra.mxu0 0.0
        %7235 = vmatpush.msra.mxu0 0.0
        %7236 = vmatpush.msra.mxu0 0.0
        %7237 = vmatpush.msra.mxu0 0.0
        %7238 = vmatpush.msra.mxu0 0.0
        %7239 = vmatpush.msra.mxu0 0.0
        %7240 = vmatpush.msra.mxu0 0.0
        %7241 = vmatpush.msra.mxu0 0.0
        %7242 = vmatpush.msra.mxu0 0.0
        %7243 = vmatpush.msra.mxu0 0.0
        %7244 = vmatpush.msra.mxu0 0.0
        %7245 = vmatpush.msra.mxu0 0.0
        %7246 = vmatpush.msra.mxu0 0.0
        %7247 = vmatpush.msra.mxu0 0.0
        %v7248 = vand.u32 %v299, 4294901760
        %7249 = vmatpush.msra.mxu0 %v7248
        %v7250 = vand.u32 %v298, 4294901760
        %7251 = vmatpush.msra.mxu0 %v7250
        %v7252 = vand.u32 %v7066, 4294901760
        %7253 = vmatmul.f32.gmra.mxu0 %v7252
        %v7254 = vpop.f32.mrf.mxu0
        %v7255 = vadd.f32 %v7228, %v7254
        %v7256 = vand.u32 %v7069, 4294901760
        %7257 = vmatmul.f32.gmra.mxu0 %v7256
        %v7258 = vpop.f32.mrf.mxu0
        %v7259 = vadd.f32 %v7232, %v7258
        %7260 = vdwg.mxu0
        %v7261 = vmul.f32 %v6289, %v6289
        %v7262 = vmul.f32 %v6290, %v6290
        %v7264 = vsel %vm306, %v7261, 0
        %v7267 = vsel %vm306, %v7262, 0
        %7269 = vmatpush.msra.mxu0 0.0
        %7270 = vmatpush.msra.mxu0 0.0
        %7271 = vmatpush.msra.mxu0 0.0
        %7272 = vmatpush.msra.mxu0 0.0
        %7273 = vmatpush.msra.mxu0 0.0
        %7274 = vmatpush.msra.mxu0 0.0
        %7275 = vmatpush.msra.mxu0 0.0
        %7276 = vmatpush.msra.mxu0 0.0
        %7277 = vmatpush.msra.mxu0 0.0
        %7278 = vmatpush.msra.mxu0 0.0
        %7279 = vmatpush.msra.mxu0 0.0
        %7280 = vmatpush.msra.mxu0 0.0
        %7281 = vmatpush.msra.mxu0 0.0
        %7282 = vmatpush.msra.mxu0 0.0
        %v7283 = vand.u32 %v299, 4294901760
        %7284 = vmatpush.msra.mxu0 %v7283
        %v7285 = vand.u32 %v298, 4294901760
        %7286 = vmatpush.msra.mxu0 %v7285
        %v7287 = vand.u32 %v7264, 4294901760
        %v7288 = vsub.f32 %v7264, %v7287
        %v7289 = vand.u32 %v7288, 4294901760
        %v7290 = vsub.f32 %v7288, %v7289
        %v7291 = vand.u32 %v7290, 4294901760
        %7292 = vmatmul.f32.gmra.mxu0 %v7291
        %v7293 = vpop.f32.mrf.mxu0
        %v7294 = vadd.f32 0.0, %v7293
        %v7295 = vand.u32 %v7267, 4294901760
        %v7296 = vsub.f32 %v7267, %v7295
        %v7297 = vand.u32 %v7296, 4294901760
        %v7298 = vsub.f32 %v7296, %v7297
        %v7299 = vand.u32 %v7298, 4294901760
        %7300 = vmatmul.f32.gmra.mxu0 %v7299
        %v7301 = vpop.f32.mrf.mxu0
        %v7302 = vadd.f32 0.0, %v7301
        %7303 = vdwg.mxu0
        %7304 = vmatpush.msra.mxu0 0.0
        %7305 = vmatpush.msra.mxu0 0.0
        %7306 = vmatpush.msra.mxu0 0.0
        %7307 = vmatpush.msra.mxu0 0.0
        %7308 = vmatpush.msra.mxu0 0.0
        %7309 = vmatpush.msra.mxu0 0.0
        %7310 = vmatpush.msra.mxu0 0.0
        %7311 = vmatpush.msra.mxu0 0.0
        %7312 = vmatpush.msra.mxu0 0.0
        %7313 = vmatpush.msra.mxu0 0.0
        %7314 = vmatpush.msra.mxu0 0.0
        %7315 = vmatpush.msra.mxu0 0.0
        %7316 = vmatpush.msra.mxu0 0.0
        %7317 = vmatpush.msra.mxu0 0.0
        %v7318 = vand.u32 %v299, 4294901760
        %v7319 = vsub.f32 %v299, %v7318
        %v7320 = vand.u32 %v7319, 4294901760
        %v7321 = vsub.f32 %v7319, %v7320
        %v7322 = vand.u32 %v7321, 4294901760
        %7323 = vmatpush.msra.mxu0 %v7322
        %v7324 = vand.u32 %v298, 4294901760
        %v7325 = vsub.f32 %v298, %v7324
        %v7326 = vand.u32 %v7325, 4294901760
        %v7327 = vsub.f32 %v7325, %v7326
        %v7328 = vand.u32 %v7327, 4294901760
        %7329 = vmatpush.msra.mxu0 %v7328
        %v7330 = vand.u32 %v7264, 4294901760
        %7331 = vmatmul.f32.gmra.mxu0 %v7330
        %v7332 = vpop.f32.mrf.mxu0
        %v7333 = vadd.f32 %v7294, %v7332
        %v7334 = vand.u32 %v7267, 4294901760
        %7335 = vmatmul.f32.gmra.mxu0 %v7334
        %v7336 = vpop.f32.mrf.mxu0
        %v7337 = vadd.f32 %v7302, %v7336
        %7338 = vdwg.mxu0
        %7339 = vmatpush.msra.mxu0 0.0
        %7340 = vmatpush.msra.mxu0 0.0
        %7341 = vmatpush.msra.mxu0 0.0
        %7342 = vmatpush.msra.mxu0 0.0
        %7343 = vmatpush.msra.mxu0 0.0
        %7344 = vmatpush.msra.mxu0 0.0
        %7345 = vmatpush.msra.mxu0 0.0
        %7346 = vmatpush.msra.mxu0 0.0
        %7347 = vmatpush.msra.mxu0 0.0
        %7348 = vmatpush.msra.mxu0 0.0
        %7349 = vmatpush.msra.mxu0 0.0
        %7350 = vmatpush.msra.mxu0 0.0
        %7351 = vmatpush.msra.mxu0 0.0
        %7352 = vmatpush.msra.mxu0 0.0
        %v7353 = vand.u32 %v299, 4294901760
        %v7354 = vsub.f32 %v299, %v7353
        %7355 = vmatpush.msra.mxu0 %v7354
        %v7356 = vand.u32 %v298, 4294901760
        %v7357 = vsub.f32 %v298, %v7356
        %7358 = vmatpush.msra.mxu0 %v7357
        %v7359 = vand.u32 %v7264, 4294901760
        %v7360 = vsub.f32 %v7264, %v7359
        %7361 = vmatmul.f32.gmra.mxu0 %v7360
        %v7362 = vpop.f32.mrf.mxu0
        %v7363 = vadd.f32 %v7333, %v7362
        %v7364 = vand.u32 %v7267, 4294901760
        %v7365 = vsub.f32 %v7267, %v7364
        %7366 = vmatmul.f32.gmra.mxu0 %v7365
        %v7367 = vpop.f32.mrf.mxu0
        %v7368 = vadd.f32 %v7337, %v7367
        %7369 = vdwg.mxu0
        %7370 = vmatpush.msra.mxu0 0.0
        %7371 = vmatpush.msra.mxu0 0.0
        %7372 = vmatpush.msra.mxu0 0.0
        %7373 = vmatpush.msra.mxu0 0.0
        %7374 = vmatpush.msra.mxu0 0.0
        %7375 = vmatpush.msra.mxu0 0.0
        %7376 = vmatpush.msra.mxu0 0.0
        %7377 = vmatpush.msra.mxu0 0.0
        %7378 = vmatpush.msra.mxu0 0.0
        %7379 = vmatpush.msra.mxu0 0.0
        %7380 = vmatpush.msra.mxu0 0.0
        %7381 = vmatpush.msra.mxu0 0.0
        %7382 = vmatpush.msra.mxu0 0.0
        %7383 = vmatpush.msra.mxu0 0.0
        %v7384 = vand.u32 %v299, 4294901760
        %7385 = vmatpush.msra.mxu0 %v7384
        %v7386 = vand.u32 %v298, 4294901760
        %7387 = vmatpush.msra.mxu0 %v7386
        %v7388 = vand.u32 %v7264, 4294901760
        %v7389 = vsub.f32 %v7264, %v7388
        %v7390 = vand.u32 %v7389, 4294901760
        %7391 = vmatmul.f32.gmra.mxu0 %v7390
        %v7392 = vpop.f32.mrf.mxu0
        %v7393 = vadd.f32 %v7363, %v7392
        %v7394 = vand.u32 %v7267, 4294901760
        %v7395 = vsub.f32 %v7267, %v7394
        %v7396 = vand.u32 %v7395, 4294901760
        %7397 = vmatmul.f32.gmra.mxu0 %v7396
        %v7398 = vpop.f32.mrf.mxu0
        %v7399 = vadd.f32 %v7368, %v7398
        %7400 = vdwg.mxu0
        %7401 = vmatpush.msra.mxu0 0.0
        %7402 = vmatpush.msra.mxu0 0.0
        %7403 = vmatpush.msra.mxu0 0.0
        %7404 = vmatpush.msra.mxu0 0.0
        %7405 = vmatpush.msra.mxu0 0.0
        %7406 = vmatpush.msra.mxu0 0.0
        %7407 = vmatpush.msra.mxu0 0.0
        %7408 = vmatpush.msra.mxu0 0.0
        %7409 = vmatpush.msra.mxu0 0.0
        %7410 = vmatpush.msra.mxu0 0.0
        %7411 = vmatpush.msra.mxu0 0.0
        %7412 = vmatpush.msra.mxu0 0.0
        %7413 = vmatpush.msra.mxu0 0.0
        %7414 = vmatpush.msra.mxu0 0.0
        %v7415 = vand.u32 %v299, 4294901760
        %v7416 = vsub.f32 %v299, %v7415
        %v7417 = vand.u32 %v7416, 4294901760
        %7418 = vmatpush.msra.mxu0 %v7417
        %v7419 = vand.u32 %v298, 4294901760
        %v7420 = vsub.f32 %v298, %v7419
        %v7421 = vand.u32 %v7420, 4294901760
        %7422 = vmatpush.msra.mxu0 %v7421
        %v7423 = vand.u32 %v7264, 4294901760
        %7424 = vmatmul.f32.gmra.mxu0 %v7423
        %v7425 = vpop.f32.mrf.mxu0
        %v7426 = vadd.f32 %v7393, %v7425
        %v7427 = vand.u32 %v7267, 4294901760
        %7428 = vmatmul.f32.gmra.mxu0 %v7427
        %v7429 = vpop.f32.mrf.mxu0
        %v7430 = vadd.f32 %v7399, %v7429
        %7431 = vdwg.mxu0
        %7432 = vmatpush.msra.mxu0 0.0
        %7433 = vmatpush.msra.mxu0 0.0
        %7434 = vmatpush.msra.mxu0 0.0
        %7435 = vmatpush.msra.mxu0 0.0
        %7436 = vmatpush.msra.mxu0 0.0
        %7437 = vmatpush.msra.mxu0 0.0
        %7438 = vmatpush.msra.mxu0 0.0
        %7439 = vmatpush.msra.mxu0 0.0
        %7440 = vmatpush.msra.mxu0 0.0
        %7441 = vmatpush.msra.mxu0 0.0
        %7442 = vmatpush.msra.mxu0 0.0
        %7443 = vmatpush.msra.mxu0 0.0
        %7444 = vmatpush.msra.mxu0 0.0
        %7445 = vmatpush.msra.mxu0 0.0
        %v7446 = vand.u32 %v299, 4294901760
        %7447 = vmatpush.msra.mxu0 %v7446
        %v7448 = vand.u32 %v298, 4294901760
        %7449 = vmatpush.msra.mxu0 %v7448
        %v7450 = vand.u32 %v7264, 4294901760
        %7451 = vmatmul.f32.gmra.mxu0 %v7450
        %v7452 = vpop.f32.mrf.mxu0
        %v7453 = vadd.f32 %v7426, %v7452
        %v7454 = vand.u32 %v7267, 4294901760
        %7455 = vmatmul.f32.gmra.mxu0 %v7454
        %v7456 = vpop.f32.mrf.mxu0
        %v7457 = vadd.f32 %v7430, %v7456
        %7458 = vdwg.mxu0
        %7459 = vmatpush.msra.mxu0 0.0
        %7460 = vmatpush.msra.mxu0 0.0
        %7461 = vmatpush.msra.mxu0 0.0
        %7462 = vmatpush.msra.mxu0 0.0
        %7463 = vmatpush.msra.mxu0 0.0
        %7464 = vmatpush.msra.mxu0 0.0
        %7465 = vmatpush.msra.mxu0 0.0
        %7466 = vmatpush.msra.mxu0 0.0
        %7467 = vmatpush.msra.mxu0 0.0
        %7468 = vmatpush.msra.mxu0 0.0
        %7469 = vmatpush.msra.mxu0 0.0
        %7470 = vmatpush.msra.mxu0 0.0
        %7471 = vmatpush.msra.mxu0 0.0
        %7472 = vmatpush.msra.mxu0 0.0
        %v7473 = vand.u32 %v7457, 4294901760
        %7474 = vmatpush.msra.mxu0 %v7473
        %v7475 = vand.u32 %v7453, 4294901760
        %7476 = vmatpush.msra.mxu0 %v7475
        %v7477 = vand.u32 %v504, 4294901760
        %v7478 = vsub.f32 %v504, %v7477
        %v7479 = vand.u32 %v7478, 4294901760
        %v7480 = vsub.f32 %v7478, %v7479
        %v7481 = vand.u32 %v7480, 4294901760
        %7482 = vmatmul.f32.gmra.mxu0 %v7481
        %v7483 = vpop.f32.mrf.mxu0
        %v7484 = vadd.f32 0.0, %v7483
        %v7485 = vand.u32 %v507, 4294901760
        %v7486 = vsub.f32 %v507, %v7485
        %v7487 = vand.u32 %v7486, 4294901760
        %v7488 = vsub.f32 %v7486, %v7487
        %v7489 = vand.u32 %v7488, 4294901760
        %7490 = vmatmul.f32.gmra.mxu0 %v7489
        %v7491 = vpop.f32.mrf.mxu0
        %v7492 = vadd.f32 0.0, %v7491
        %7493 = vdwg.mxu0
        %7494 = vmatpush.msra.mxu0 0.0
        %7495 = vmatpush.msra.mxu0 0.0
        %7496 = vmatpush.msra.mxu0 0.0
        %7497 = vmatpush.msra.mxu0 0.0
        %7498 = vmatpush.msra.mxu0 0.0
        %7499 = vmatpush.msra.mxu0 0.0
        %7500 = vmatpush.msra.mxu0 0.0
        %7501 = vmatpush.msra.mxu0 0.0
        %7502 = vmatpush.msra.mxu0 0.0
        %7503 = vmatpush.msra.mxu0 0.0
        %7504 = vmatpush.msra.mxu0 0.0
        %7505 = vmatpush.msra.mxu0 0.0
        %7506 = vmatpush.msra.mxu0 0.0
        %7507 = vmatpush.msra.mxu0 0.0
        %v7508 = vand.u32 %v7457, 4294901760
        %v7509 = vsub.f32 %v7457, %v7508
        %v7510 = vand.u32 %v7509, 4294901760
        %v7511 = vsub.f32 %v7509, %v7510
        %v7512 = vand.u32 %v7511, 4294901760
        %7513 = vmatpush.msra.mxu0 %v7512
        %v7514 = vand.u32 %v7453, 4294901760
        %v7515 = vsub.f32 %v7453, %v7514
        %v7516 = vand.u32 %v7515, 4294901760
        %v7517 = vsub.f32 %v7515, %v7516
        %v7518 = vand.u32 %v7517, 4294901760
        %7519 = vmatpush.msra.mxu0 %v7518
        %v7520 = vand.u32 %v504, 4294901760
        %7521 = vmatmul.f32.gmra.mxu0 %v7520
        %v7522 = vpop.f32.mrf.mxu0
        %v7523 = vadd.f32 %v7484, %v7522
        %v7524 = vand.u32 %v507, 4294901760
        %7525 = vmatmul.f32.gmra.mxu0 %v7524
        %v7526 = vpop.f32.mrf.mxu0
        %v7527 = vadd.f32 %v7492, %v7526
        %7528 = vdwg.mxu0
        %7529 = vmatpush.msra.mxu0 0.0
        %7530 = vmatpush.msra.mxu0 0.0
        %7531 = vmatpush.msra.mxu0 0.0
        %7532 = vmatpush.msra.mxu0 0.0
        %7533 = vmatpush.msra.mxu0 0.0
        %7534 = vmatpush.msra.mxu0 0.0
        %7535 = vmatpush.msra.mxu0 0.0
        %7536 = vmatpush.msra.mxu0 0.0
        %7537 = vmatpush.msra.mxu0 0.0
        %7538 = vmatpush.msra.mxu0 0.0
        %7539 = vmatpush.msra.mxu0 0.0
        %7540 = vmatpush.msra.mxu0 0.0
        %7541 = vmatpush.msra.mxu0 0.0
        %7542 = vmatpush.msra.mxu0 0.0
        %v7543 = vand.u32 %v7457, 4294901760
        %v7544 = vsub.f32 %v7457, %v7543
        %7545 = vmatpush.msra.mxu0 %v7544
        %v7546 = vand.u32 %v7453, 4294901760
        %v7547 = vsub.f32 %v7453, %v7546
        %7548 = vmatpush.msra.mxu0 %v7547
        %v7549 = vand.u32 %v504, 4294901760
        %v7550 = vsub.f32 %v504, %v7549
        %7551 = vmatmul.f32.gmra.mxu0 %v7550
        %v7552 = vpop.f32.mrf.mxu0
        %v7553 = vadd.f32 %v7523, %v7552
        %v7554 = vand.u32 %v507, 4294901760
        %v7555 = vsub.f32 %v507, %v7554
        %7556 = vmatmul.f32.gmra.mxu0 %v7555
        %v7557 = vpop.f32.mrf.mxu0
        %v7558 = vadd.f32 %v7527, %v7557
        %7559 = vdwg.mxu0
        %7560 = vmatpush.msra.mxu0 0.0
        %7561 = vmatpush.msra.mxu0 0.0
        %7562 = vmatpush.msra.mxu0 0.0
        %7563 = vmatpush.msra.mxu0 0.0
        %7564 = vmatpush.msra.mxu0 0.0
        %7565 = vmatpush.msra.mxu0 0.0
        %7566 = vmatpush.msra.mxu0 0.0
        %7567 = vmatpush.msra.mxu0 0.0
        %7568 = vmatpush.msra.mxu0 0.0
        %7569 = vmatpush.msra.mxu0 0.0
        %7570 = vmatpush.msra.mxu0 0.0
        %7571 = vmatpush.msra.mxu0 0.0
        %7572 = vmatpush.msra.mxu0 0.0
        %7573 = vmatpush.msra.mxu0 0.0
        %v7574 = vand.u32 %v7457, 4294901760
        %7575 = vmatpush.msra.mxu0 %v7574
        %v7576 = vand.u32 %v7453, 4294901760
        %7577 = vmatpush.msra.mxu0 %v7576
        %v7578 = vand.u32 %v504, 4294901760
        %v7579 = vsub.f32 %v504, %v7578
        %v7580 = vand.u32 %v7579, 4294901760
        %7581 = vmatmul.f32.gmra.mxu0 %v7580
        %v7582 = vpop.f32.mrf.mxu0
        %v7583 = vadd.f32 %v7553, %v7582
        %v7584 = vand.u32 %v507, 4294901760
        %v7585 = vsub.f32 %v507, %v7584
        %v7586 = vand.u32 %v7585, 4294901760
        %7587 = vmatmul.f32.gmra.mxu0 %v7586
        %v7588 = vpop.f32.mrf.mxu0
        %v7589 = vadd.f32 %v7558, %v7588
        %7590 = vdwg.mxu0
        %7591 = vmatpush.msra.mxu0 0.0
        %7592 = vmatpush.msra.mxu0 0.0
        %7593 = vmatpush.msra.mxu0 0.0
        %7594 = vmatpush.msra.mxu0 0.0
        %7595 = vmatpush.msra.mxu0 0.0
        %7596 = vmatpush.msra.mxu0 0.0
        %7597 = vmatpush.msra.mxu0 0.0
        %7598 = vmatpush.msra.mxu0 0.0
        %7599 = vmatpush.msra.mxu0 0.0
        %7600 = vmatpush.msra.mxu0 0.0
        %7601 = vmatpush.msra.mxu0 0.0
        %7602 = vmatpush.msra.mxu0 0.0
        %7603 = vmatpush.msra.mxu0 0.0
        %7604 = vmatpush.msra.mxu0 0.0
        %v7605 = vand.u32 %v7457, 4294901760
        %v7606 = vsub.f32 %v7457, %v7605
        %v7607 = vand.u32 %v7606, 4294901760
        %7608 = vmatpush.msra.mxu0 %v7607
        %v7609 = vand.u32 %v7453, 4294901760
        %v7610 = vsub.f32 %v7453, %v7609
        %v7611 = vand.u32 %v7610, 4294901760
        %7612 = vmatpush.msra.mxu0 %v7611
        %v7613 = vand.u32 %v504, 4294901760
        %7614 = vmatmul.f32.gmra.mxu0 %v7613
        %v7615 = vpop.f32.mrf.mxu0
        %v7616 = vadd.f32 %v7583, %v7615
        %v7617 = vand.u32 %v507, 4294901760
        %7618 = vmatmul.f32.gmra.mxu0 %v7617
        %v7619 = vpop.f32.mrf.mxu0
        %v7620 = vadd.f32 %v7589, %v7619
        %7621 = vdwg.mxu0
        %7622 = vmatpush.msra.mxu0 0.0
        %7623 = vmatpush.msra.mxu0 0.0
        %7624 = vmatpush.msra.mxu0 0.0
        %7625 = vmatpush.msra.mxu0 0.0
        %7626 = vmatpush.msra.mxu0 0.0
        %7627 = vmatpush.msra.mxu0 0.0
        %7628 = vmatpush.msra.mxu0 0.0
        %7629 = vmatpush.msra.mxu0 0.0
        %7630 = vmatpush.msra.mxu0 0.0
        %7631 = vmatpush.msra.mxu0 0.0
        %7632 = vmatpush.msra.mxu0 0.0
        %7633 = vmatpush.msra.mxu0 0.0
        %7634 = vmatpush.msra.mxu0 0.0
        %7635 = vmatpush.msra.mxu0 0.0
        %v7636 = vand.u32 %v7457, 4294901760
        %7637 = vmatpush.msra.mxu0 %v7636
        %v7638 = vand.u32 %v7453, 4294901760
        %7639 = vmatpush.msra.mxu0 %v7638
        %v7640 = vand.u32 %v504, 4294901760
        %7641 = vmatmul.f32.gmra.mxu0 %v7640
        %v7642 = vpop.f32.mrf.mxu0
        %v7643 = vadd.f32 %v7616, %v7642
        %v7644 = vand.u32 %v507, 4294901760
        %7645 = vmatmul.f32.gmra.mxu0 %v7644
        %v7646 = vpop.f32.mrf.mxu0
        %v7647 = vadd.f32 %v7620, %v7646
        %7648 = vdwg.mxu0
        %v7649 = vmul.f32 %v6286, %v6289
        %v7650 = vmul.f32 %v6287, %v6290
        %v7652 = vsel %vm306, %v7649, 0
        %v7655 = vsel %vm306, %v7650, 0
        %7657 = vmatpush.msra.mxu0 0.0
        %7658 = vmatpush.msra.mxu0 0.0
        %7659 = vmatpush.msra.mxu0 0.0
        %7660 = vmatpush.msra.mxu0 0.0
        %7661 = vmatpush.msra.mxu0 0.0
        %7662 = vmatpush.msra.mxu0 0.0
        %7663 = vmatpush.msra.mxu0 0.0
        %7664 = vmatpush.msra.mxu0 0.0
        %7665 = vmatpush.msra.mxu0 0.0
        %7666 = vmatpush.msra.mxu0 0.0
        %7667 = vmatpush.msra.mxu0 0.0
        %7668 = vmatpush.msra.mxu0 0.0
        %7669 = vmatpush.msra.mxu0 0.0
        %7670 = vmatpush.msra.mxu0 0.0
        %v7671 = vand.u32 %v299, 4294901760
        %7672 = vmatpush.msra.mxu0 %v7671
        %v7673 = vand.u32 %v298, 4294901760
        %7674 = vmatpush.msra.mxu0 %v7673
        %v7675 = vand.u32 %v7652, 4294901760
        %v7676 = vsub.f32 %v7652, %v7675
        %v7677 = vand.u32 %v7676, 4294901760
        %v7678 = vsub.f32 %v7676, %v7677
        %v7679 = vand.u32 %v7678, 4294901760
        %7680 = vmatmul.f32.gmra.mxu0 %v7679
        %v7681 = vpop.f32.mrf.mxu0
        %v7682 = vadd.f32 0.0, %v7681
        %v7683 = vand.u32 %v7655, 4294901760
        %v7684 = vsub.f32 %v7655, %v7683
        %v7685 = vand.u32 %v7684, 4294901760
        %v7686 = vsub.f32 %v7684, %v7685
        %v7687 = vand.u32 %v7686, 4294901760
        %7688 = vmatmul.f32.gmra.mxu0 %v7687
        %v7689 = vpop.f32.mrf.mxu0
        %v7690 = vadd.f32 0.0, %v7689
        %7691 = vdwg.mxu0
        %7692 = vmatpush.msra.mxu0 0.0
        %7693 = vmatpush.msra.mxu0 0.0
        %7694 = vmatpush.msra.mxu0 0.0
        %7695 = vmatpush.msra.mxu0 0.0
        %7696 = vmatpush.msra.mxu0 0.0
        %7697 = vmatpush.msra.mxu0 0.0
        %7698 = vmatpush.msra.mxu0 0.0
        %7699 = vmatpush.msra.mxu0 0.0
        %7700 = vmatpush.msra.mxu0 0.0
        %7701 = vmatpush.msra.mxu0 0.0
        %7702 = vmatpush.msra.mxu0 0.0
        %7703 = vmatpush.msra.mxu0 0.0
        %7704 = vmatpush.msra.mxu0 0.0
        %7705 = vmatpush.msra.mxu0 0.0
        %v7706 = vand.u32 %v299, 4294901760
        %v7707 = vsub.f32 %v299, %v7706
        %v7708 = vand.u32 %v7707, 4294901760
        %v7709 = vsub.f32 %v7707, %v7708
        %v7710 = vand.u32 %v7709, 4294901760
        %7711 = vmatpush.msra.mxu0 %v7710
        %v7712 = vand.u32 %v298, 4294901760
        %v7713 = vsub.f32 %v298, %v7712
        %v7714 = vand.u32 %v7713, 4294901760
        %v7715 = vsub.f32 %v7713, %v7714
        %v7716 = vand.u32 %v7715, 4294901760
        %7717 = vmatpush.msra.mxu0 %v7716
        %v7718 = vand.u32 %v7652, 4294901760
        %7719 = vmatmul.f32.gmra.mxu0 %v7718
        %v7720 = vpop.f32.mrf.mxu0
        %v7721 = vadd.f32 %v7682, %v7720
        %v7722 = vand.u32 %v7655, 4294901760
        %7723 = vmatmul.f32.gmra.mxu0 %v7722
        %v7724 = vpop.f32.mrf.mxu0
        %v7725 = vadd.f32 %v7690, %v7724
        %7726 = vdwg.mxu0
        %7727 = vmatpush.msra.mxu0 0.0
        %7728 = vmatpush.msra.mxu0 0.0
        %7729 = vmatpush.msra.mxu0 0.0
        %7730 = vmatpush.msra.mxu0 0.0
        %7731 = vmatpush.msra.mxu0 0.0
        %7732 = vmatpush.msra.mxu0 0.0
        %7733 = vmatpush.msra.mxu0 0.0
        %7734 = vmatpush.msra.mxu0 0.0
        %7735 = vmatpush.msra.mxu0 0.0
        %7736 = vmatpush.msra.mxu0 0.0
        %7737 = vmatpush.msra.mxu0 0.0
        %7738 = vmatpush.msra.mxu0 0.0
        %7739 = vmatpush.msra.mxu0 0.0
        %7740 = vmatpush.msra.mxu0 0.0
        %v7741 = vand.u32 %v299, 4294901760
        %v7742 = vsub.f32 %v299, %v7741
        %7743 = vmatpush.msra.mxu0 %v7742
        %v7744 = vand.u32 %v298, 4294901760
        %v7745 = vsub.f32 %v298, %v7744
        %7746 = vmatpush.msra.mxu0 %v7745
        %v7747 = vand.u32 %v7652, 4294901760
        %v7748 = vsub.f32 %v7652, %v7747
        %7749 = vmatmul.f32.gmra.mxu0 %v7748
        %v7750 = vpop.f32.mrf.mxu0
        %v7751 = vadd.f32 %v7721, %v7750
        %v7752 = vand.u32 %v7655, 4294901760
        %v7753 = vsub.f32 %v7655, %v7752
        %7754 = vmatmul.f32.gmra.mxu0 %v7753
        %v7755 = vpop.f32.mrf.mxu0
        %v7756 = vadd.f32 %v7725, %v7755
        %7757 = vdwg.mxu0
        %7758 = vmatpush.msra.mxu0 0.0
        %7759 = vmatpush.msra.mxu0 0.0
        %7760 = vmatpush.msra.mxu0 0.0
        %7761 = vmatpush.msra.mxu0 0.0
        %7762 = vmatpush.msra.mxu0 0.0
        %7763 = vmatpush.msra.mxu0 0.0
        %7764 = vmatpush.msra.mxu0 0.0
        %7765 = vmatpush.msra.mxu0 0.0
        %7766 = vmatpush.msra.mxu0 0.0
        %7767 = vmatpush.msra.mxu0 0.0
        %7768 = vmatpush.msra.mxu0 0.0
        %7769 = vmatpush.msra.mxu0 0.0
        %7770 = vmatpush.msra.mxu0 0.0
        %7771 = vmatpush.msra.mxu0 0.0
        %v7772 = vand.u32 %v299, 4294901760
        %7773 = vmatpush.msra.mxu0 %v7772
        %v7774 = vand.u32 %v298, 4294901760
        %7775 = vmatpush.msra.mxu0 %v7774
        %v7776 = vand.u32 %v7652, 4294901760
        %v7777 = vsub.f32 %v7652, %v7776
        %v7778 = vand.u32 %v7777, 4294901760
        %7779 = vmatmul.f32.gmra.mxu0 %v7778
        %v7780 = vpop.f32.mrf.mxu0
        %v7781 = vadd.f32 %v7751, %v7780
        %v7782 = vand.u32 %v7655, 4294901760
        %v7783 = vsub.f32 %v7655, %v7782
        %v7784 = vand.u32 %v7783, 4294901760
        %7785 = vmatmul.f32.gmra.mxu0 %v7784
        %v7786 = vpop.f32.mrf.mxu0
        %v7787 = vadd.f32 %v7756, %v7786
        %7788 = vdwg.mxu0
        %7789 = vmatpush.msra.mxu0 0.0
        %7790 = vmatpush.msra.mxu0 0.0
        %7791 = vmatpush.msra.mxu0 0.0
        %7792 = vmatpush.msra.mxu0 0.0
        %7793 = vmatpush.msra.mxu0 0.0
        %7794 = vmatpush.msra.mxu0 0.0
        %7795 = vmatpush.msra.mxu0 0.0
        %7796 = vmatpush.msra.mxu0 0.0
        %7797 = vmatpush.msra.mxu0 0.0
        %7798 = vmatpush.msra.mxu0 0.0
        %7799 = vmatpush.msra.mxu0 0.0
        %7800 = vmatpush.msra.mxu0 0.0
        %7801 = vmatpush.msra.mxu0 0.0
        %7802 = vmatpush.msra.mxu0 0.0
        %v7803 = vand.u32 %v299, 4294901760
        %v7804 = vsub.f32 %v299, %v7803
        %v7805 = vand.u32 %v7804, 4294901760
        %7806 = vmatpush.msra.mxu0 %v7805
        %v7807 = vand.u32 %v298, 4294901760
        %v7808 = vsub.f32 %v298, %v7807
        %v7809 = vand.u32 %v7808, 4294901760
        %7810 = vmatpush.msra.mxu0 %v7809
        %v7811 = vand.u32 %v7652, 4294901760
        %7812 = vmatmul.f32.gmra.mxu0 %v7811
        %v7813 = vpop.f32.mrf.mxu0
        %v7814 = vadd.f32 %v7781, %v7813
        %v7815 = vand.u32 %v7655, 4294901760
        %7816 = vmatmul.f32.gmra.mxu0 %v7815
        %v7817 = vpop.f32.mrf.mxu0
        %v7818 = vadd.f32 %v7787, %v7817
        %7819 = vdwg.mxu0
        %7820 = vmatpush.msra.mxu0 0.0
        %7821 = vmatpush.msra.mxu0 0.0
        %7822 = vmatpush.msra.mxu0 0.0
        %7823 = vmatpush.msra.mxu0 0.0
        %7824 = vmatpush.msra.mxu0 0.0
        %7825 = vmatpush.msra.mxu0 0.0
        %7826 = vmatpush.msra.mxu0 0.0
        %7827 = vmatpush.msra.mxu0 0.0
        %7828 = vmatpush.msra.mxu0 0.0
        %7829 = vmatpush.msra.mxu0 0.0
        %7830 = vmatpush.msra.mxu0 0.0
        %7831 = vmatpush.msra.mxu0 0.0
        %7832 = vmatpush.msra.mxu0 0.0
        %7833 = vmatpush.msra.mxu0 0.0
        %v7834 = vand.u32 %v299, 4294901760
        %7835 = vmatpush.msra.mxu0 %v7834
        %v7836 = vand.u32 %v298, 4294901760
        %7837 = vmatpush.msra.mxu0 %v7836
        %v7838 = vand.u32 %v7652, 4294901760
        %7839 = vmatmul.f32.gmra.mxu0 %v7838
        %v7840 = vpop.f32.mrf.mxu0
        %v7841 = vadd.f32 %v7814, %v7840
        %v7842 = vand.u32 %v7655, 4294901760
        %7843 = vmatmul.f32.gmra.mxu0 %v7842
        %v7844 = vpop.f32.mrf.mxu0
        %v7845 = vadd.f32 %v7818, %v7844
        %7846 = vdwg.mxu0
        %7847 = vmatpush.msra.mxu0 0.0
        %7848 = vmatpush.msra.mxu0 0.0
        %7849 = vmatpush.msra.mxu0 0.0
        %7850 = vmatpush.msra.mxu0 0.0
        %7851 = vmatpush.msra.mxu0 0.0
        %7852 = vmatpush.msra.mxu0 0.0
        %7853 = vmatpush.msra.mxu0 0.0
        %7854 = vmatpush.msra.mxu0 0.0
        %7855 = vmatpush.msra.mxu0 0.0
        %7856 = vmatpush.msra.mxu0 0.0
        %7857 = vmatpush.msra.mxu0 0.0
        %7858 = vmatpush.msra.mxu0 0.0
        %7859 = vmatpush.msra.mxu0 0.0
        %7860 = vmatpush.msra.mxu0 0.0
        %v7861 = vand.u32 %v7845, 4294901760
        %7862 = vmatpush.msra.mxu0 %v7861
        %v7863 = vand.u32 %v7841, 4294901760
        %7864 = vmatpush.msra.mxu0 %v7863
        %v7865 = vand.u32 %v504, 4294901760
        %v7866 = vsub.f32 %v504, %v7865
        %v7867 = vand.u32 %v7866, 4294901760
        %v7868 = vsub.f32 %v7866, %v7867
        %v7869 = vand.u32 %v7868, 4294901760
        %7870 = vmatmul.f32.gmra.mxu0 %v7869
        %v7871 = vpop.f32.mrf.mxu0
        %v7872 = vadd.f32 0.0, %v7871
        %v7873 = vand.u32 %v507, 4294901760
        %v7874 = vsub.f32 %v507, %v7873
        %v7875 = vand.u32 %v7874, 4294901760
        %v7876 = vsub.f32 %v7874, %v7875
        %v7877 = vand.u32 %v7876, 4294901760
        %7878 = vmatmul.f32.gmra.mxu0 %v7877
        %v7879 = vpop.f32.mrf.mxu0
        %v7880 = vadd.f32 0.0, %v7879
        %7881 = vdwg.mxu0
        %7882 = vmatpush.msra.mxu0 0.0
        %7883 = vmatpush.msra.mxu0 0.0
        %7884 = vmatpush.msra.mxu0 0.0
        %7885 = vmatpush.msra.mxu0 0.0
        %7886 = vmatpush.msra.mxu0 0.0
        %7887 = vmatpush.msra.mxu0 0.0
        %7888 = vmatpush.msra.mxu0 0.0
        %7889 = vmatpush.msra.mxu0 0.0
        %7890 = vmatpush.msra.mxu0 0.0
        %7891 = vmatpush.msra.mxu0 0.0
        %7892 = vmatpush.msra.mxu0 0.0
        %7893 = vmatpush.msra.mxu0 0.0
        %7894 = vmatpush.msra.mxu0 0.0
        %7895 = vmatpush.msra.mxu0 0.0
        %v7896 = vand.u32 %v7845, 4294901760
        %v7897 = vsub.f32 %v7845, %v7896
        %v7898 = vand.u32 %v7897, 4294901760
        %v7899 = vsub.f32 %v7897, %v7898
        %v7900 = vand.u32 %v7899, 4294901760
        %7901 = vmatpush.msra.mxu0 %v7900
        %v7902 = vand.u32 %v7841, 4294901760
        %v7903 = vsub.f32 %v7841, %v7902
        %v7904 = vand.u32 %v7903, 4294901760
        %v7905 = vsub.f32 %v7903, %v7904
        %v7906 = vand.u32 %v7905, 4294901760
        %7907 = vmatpush.msra.mxu0 %v7906
        %v7908 = vand.u32 %v504, 4294901760
        %7909 = vmatmul.f32.gmra.mxu0 %v7908
        %v7910 = vpop.f32.mrf.mxu0
        %v7911 = vadd.f32 %v7872, %v7910
        %v7912 = vand.u32 %v507, 4294901760
        %7913 = vmatmul.f32.gmra.mxu0 %v7912
        %v7914 = vpop.f32.mrf.mxu0
        %v7915 = vadd.f32 %v7880, %v7914
        %7916 = vdwg.mxu0
        %7917 = vmatpush.msra.mxu0 0.0
        %7918 = vmatpush.msra.mxu0 0.0
        %7919 = vmatpush.msra.mxu0 0.0
        %7920 = vmatpush.msra.mxu0 0.0
        %7921 = vmatpush.msra.mxu0 0.0
        %7922 = vmatpush.msra.mxu0 0.0
        %7923 = vmatpush.msra.mxu0 0.0
        %7924 = vmatpush.msra.mxu0 0.0
        %7925 = vmatpush.msra.mxu0 0.0
        %7926 = vmatpush.msra.mxu0 0.0
        %7927 = vmatpush.msra.mxu0 0.0
        %7928 = vmatpush.msra.mxu0 0.0
        %7929 = vmatpush.msra.mxu0 0.0
        %7930 = vmatpush.msra.mxu0 0.0
        %v7931 = vand.u32 %v7845, 4294901760
        %v7932 = vsub.f32 %v7845, %v7931
        %7933 = vmatpush.msra.mxu0 %v7932
        %v7934 = vand.u32 %v7841, 4294901760
        %v7935 = vsub.f32 %v7841, %v7934
        %7936 = vmatpush.msra.mxu0 %v7935
        %v7937 = vand.u32 %v504, 4294901760
        %v7938 = vsub.f32 %v504, %v7937
        %7939 = vmatmul.f32.gmra.mxu0 %v7938
        %v7940 = vpop.f32.mrf.mxu0
        %v7941 = vadd.f32 %v7911, %v7940
        %v7942 = vand.u32 %v507, 4294901760
        %v7943 = vsub.f32 %v507, %v7942
        %7944 = vmatmul.f32.gmra.mxu0 %v7943
        %v7945 = vpop.f32.mrf.mxu0
        %v7946 = vadd.f32 %v7915, %v7945
        %7947 = vdwg.mxu0
        %7948 = vmatpush.msra.mxu0 0.0
        %7949 = vmatpush.msra.mxu0 0.0
        %7950 = vmatpush.msra.mxu0 0.0
        %7951 = vmatpush.msra.mxu0 0.0
        %7952 = vmatpush.msra.mxu0 0.0
        %7953 = vmatpush.msra.mxu0 0.0
        %7954 = vmatpush.msra.mxu0 0.0
        %7955 = vmatpush.msra.mxu0 0.0
        %7956 = vmatpush.msra.mxu0 0.0
        %7957 = vmatpush.msra.mxu0 0.0
        %7958 = vmatpush.msra.mxu0 0.0
        %7959 = vmatpush.msra.mxu0 0.0
        %7960 = vmatpush.msra.mxu0 0.0
        %7961 = vmatpush.msra.mxu0 0.0
        %v7962 = vand.u32 %v7845, 4294901760
        %7963 = vmatpush.msra.mxu0 %v7962
        %v7964 = vand.u32 %v7841, 4294901760
        %7965 = vmatpush.msra.mxu0 %v7964
        %v7966 = vand.u32 %v504, 4294901760
        %v7967 = vsub.f32 %v504, %v7966
        %v7968 = vand.u32 %v7967, 4294901760
        %7969 = vmatmul.f32.gmra.mxu0 %v7968
        %v7970 = vpop.f32.mrf.mxu0
        %v7971 = vadd.f32 %v7941, %v7970
        %v7972 = vand.u32 %v507, 4294901760
        %v7973 = vsub.f32 %v507, %v7972
        %v7974 = vand.u32 %v7973, 4294901760
        %7975 = vmatmul.f32.gmra.mxu0 %v7974
        %v7976 = vpop.f32.mrf.mxu0
        %v7977 = vadd.f32 %v7946, %v7976
        %7978 = vdwg.mxu0
        %7979 = vmatpush.msra.mxu0 0.0
        %7980 = vmatpush.msra.mxu0 0.0
        %7981 = vmatpush.msra.mxu0 0.0
        %7982 = vmatpush.msra.mxu0 0.0
        %7983 = vmatpush.msra.mxu0 0.0
        %7984 = vmatpush.msra.mxu0 0.0
        %7985 = vmatpush.msra.mxu0 0.0
        %7986 = vmatpush.msra.mxu0 0.0
        %7987 = vmatpush.msra.mxu0 0.0
        %7988 = vmatpush.msra.mxu0 0.0
        %7989 = vmatpush.msra.mxu0 0.0
        %7990 = vmatpush.msra.mxu0 0.0
        %7991 = vmatpush.msra.mxu0 0.0
        %7992 = vmatpush.msra.mxu0 0.0
        %v7993 = vand.u32 %v7845, 4294901760
        %v7994 = vsub.f32 %v7845, %v7993
        %v7995 = vand.u32 %v7994, 4294901760
        %7996 = vmatpush.msra.mxu0 %v7995
        %v7997 = vand.u32 %v7841, 4294901760
        %v7998 = vsub.f32 %v7841, %v7997
        %v7999 = vand.u32 %v7998, 4294901760
        %8000 = vmatpush.msra.mxu0 %v7999
        %v8001 = vand.u32 %v504, 4294901760
        %8002 = vmatmul.f32.gmra.mxu0 %v8001
        %v8003 = vpop.f32.mrf.mxu0
        %v8004 = vadd.f32 %v7971, %v8003
        %v8005 = vand.u32 %v507, 4294901760
        %8006 = vmatmul.f32.gmra.mxu0 %v8005
        %v8007 = vpop.f32.mrf.mxu0
        %v8008 = vadd.f32 %v7977, %v8007
        %8009 = vdwg.mxu0
        %8010 = vmatpush.msra.mxu0 0.0
        %8011 = vmatpush.msra.mxu0 0.0
        %8012 = vmatpush.msra.mxu0 0.0
        %8013 = vmatpush.msra.mxu0 0.0
        %8014 = vmatpush.msra.mxu0 0.0
        %8015 = vmatpush.msra.mxu0 0.0
        %8016 = vmatpush.msra.mxu0 0.0
        %8017 = vmatpush.msra.mxu0 0.0
        %8018 = vmatpush.msra.mxu0 0.0
        %8019 = vmatpush.msra.mxu0 0.0
        %8020 = vmatpush.msra.mxu0 0.0
        %8021 = vmatpush.msra.mxu0 0.0
        %8022 = vmatpush.msra.mxu0 0.0
        %8023 = vmatpush.msra.mxu0 0.0
        %v8024 = vand.u32 %v7845, 4294901760
        %8025 = vmatpush.msra.mxu0 %v8024
        %v8026 = vand.u32 %v7841, 4294901760
        %8027 = vmatpush.msra.mxu0 %v8026
        %v8028 = vand.u32 %v504, 4294901760
        %8029 = vmatmul.f32.gmra.mxu0 %v8028
        %v8030 = vpop.f32.mrf.mxu0
        %v8031 = vadd.f32 %v8004, %v8030
        %v8032 = vand.u32 %v507, 4294901760
        %8033 = vmatmul.f32.gmra.mxu0 %v8032
        %v8034 = vpop.f32.mrf.mxu0
        %v8035 = vadd.f32 %v8008, %v8034
        %8036 = vdwg.mxu0
        %v8037 = vmul.f32 %v6671, %v7057
        %v8038 = vmul.f32 %v6675, %v7061
        %v8039 = vmul.f32 %v6671, %v6671
        %v8040 = vmul.f32 %v6675, %v6675
        %v8041 = vmul.f32 %v7057, %v7057
        %v8042 = vmul.f32 %v7061, %v7061
        %v8043 = vadd.f32 %v8039, %v8041
        %v8044 = vadd.f32 %v8040, %v8042
        %v8045 = vmul.f32 %v8037, 2.0
        %v8046 = vmul.f32 %v8038, 2.0
        %v8047 = vadd.f32 %v8045, 0.0081
        %v8048 = vadd.f32 %v8046, 0.0081
        %v8049 = vmul.f32 %v8031, 18.0
        %v8050 = vmul.f32 %v8035, 18.0
        %v8051 = vsub.f32 %v8049, %v8045
        %v8052 = vsub.f32 %v8050, %v8046
        %v8053 = vadd.f32 %v8051, 0.0729
        %v8054 = vadd.f32 %v8052, 0.0729
        %v8055 = vmul.f32 %v8047, %v8053
        %v8056 = vmul.f32 %v8048, %v8054
        %v8057 = vadd.f32 %v8043, 0.0081
        %v8058 = vadd.f32 %v8044, 0.0081
        %8059 = vmatpush.msra.mxu0 0.0
        %8060 = vmatpush.msra.mxu0 0.0
        %8061 = vmatpush.msra.mxu0 0.0
        %8062 = vmatpush.msra.mxu0 0.0
        %8063 = vmatpush.msra.mxu0 0.0
        %8064 = vmatpush.msra.mxu0 0.0
        %8065 = vmatpush.msra.mxu0 0.0
        %8066 = vmatpush.msra.mxu0 0.0
        %8067 = vmatpush.msra.mxu0 0.0
        %8068 = vmatpush.msra.mxu0 0.0
        %8069 = vmatpush.msra.mxu0 0.0
        %8070 = vmatpush.msra.mxu0 0.0
        %8071 = vmatpush.msra.mxu0 0.0
        %8072 = vmatpush.msra.mxu0 0.0
        %v8073 = vand.u32 %v7259, 4294901760
        %8074 = vmatpush.msra.mxu0 %v8073
        %v8075 = vand.u32 %v7255, 4294901760
        %8076 = vmatpush.msra.mxu0 %v8075
        %v8077 = vand.u32 %v504, 4294901760
        %v8078 = vsub.f32 %v504, %v8077
        %v8079 = vand.u32 %v8078, 4294901760
        %v8080 = vsub.f32 %v8078, %v8079
        %v8081 = vand.u32 %v8080, 4294901760
        %8082 = vmatmul.f32.gmra.mxu0 %v8081
        %v8083 = vpop.f32.mrf.mxu0
        %v8084 = vadd.f32 %v7643, %v8083
        %v8085 = vand.u32 %v507, 4294901760
        %v8086 = vsub.f32 %v507, %v8085
        %v8087 = vand.u32 %v8086, 4294901760
        %v8088 = vsub.f32 %v8086, %v8087
        %v8089 = vand.u32 %v8088, 4294901760
        %8090 = vmatmul.f32.gmra.mxu0 %v8089
        %v8091 = vpop.f32.mrf.mxu0
        %v8092 = vadd.f32 %v7647, %v8091
        %8093 = vdwg.mxu0
        %8094 = vmatpush.msra.mxu0 0.0
        %8095 = vmatpush.msra.mxu0 0.0
        %8096 = vmatpush.msra.mxu0 0.0
        %8097 = vmatpush.msra.mxu0 0.0
        %8098 = vmatpush.msra.mxu0 0.0
        %8099 = vmatpush.msra.mxu0 0.0
        %8100 = vmatpush.msra.mxu0 0.0
        %8101 = vmatpush.msra.mxu0 0.0
        %8102 = vmatpush.msra.mxu0 0.0
        %8103 = vmatpush.msra.mxu0 0.0
        %8104 = vmatpush.msra.mxu0 0.0
        %8105 = vmatpush.msra.mxu0 0.0
        %8106 = vmatpush.msra.mxu0 0.0
        %8107 = vmatpush.msra.mxu0 0.0
        %v8108 = vand.u32 %v7259, 4294901760
        %v8109 = vsub.f32 %v7259, %v8108
        %v8110 = vand.u32 %v8109, 4294901760
        %v8111 = vsub.f32 %v8109, %v8110
        %v8112 = vand.u32 %v8111, 4294901760
        %8113 = vmatpush.msra.mxu0 %v8112
        %v8114 = vand.u32 %v7255, 4294901760
        %v8115 = vsub.f32 %v7255, %v8114
        %v8116 = vand.u32 %v8115, 4294901760
        %v8117 = vsub.f32 %v8115, %v8116
        %v8118 = vand.u32 %v8117, 4294901760
        %8119 = vmatpush.msra.mxu0 %v8118
        %v8120 = vand.u32 %v504, 4294901760
        %8121 = vmatmul.f32.gmra.mxu0 %v8120
        %v8122 = vpop.f32.mrf.mxu0
        %v8123 = vadd.f32 %v8084, %v8122
        %v8124 = vand.u32 %v507, 4294901760
        %8125 = vmatmul.f32.gmra.mxu0 %v8124
        %v8126 = vpop.f32.mrf.mxu0
        %v8127 = vadd.f32 %v8092, %v8126
        %8128 = vdwg.mxu0
        %8129 = vmatpush.msra.mxu0 0.0
        %8130 = vmatpush.msra.mxu0 0.0
        %8131 = vmatpush.msra.mxu0 0.0
        %8132 = vmatpush.msra.mxu0 0.0
        %8133 = vmatpush.msra.mxu0 0.0
        %8134 = vmatpush.msra.mxu0 0.0
        %8135 = vmatpush.msra.mxu0 0.0
        %8136 = vmatpush.msra.mxu0 0.0
        %8137 = vmatpush.msra.mxu0 0.0
        %8138 = vmatpush.msra.mxu0 0.0
        %8139 = vmatpush.msra.mxu0 0.0
        %8140 = vmatpush.msra.mxu0 0.0
        %8141 = vmatpush.msra.mxu0 0.0
        %8142 = vmatpush.msra.mxu0 0.0
        %v8143 = vand.u32 %v7259, 4294901760
        %v8144 = vsub.f32 %v7259, %v8143
        %8145 = vmatpush.msra.mxu0 %v8144
        %v8146 = vand.u32 %v7255, 4294901760
        %v8147 = vsub.f32 %v7255, %v8146
        %8148 = vmatpush.msra.mxu0 %v8147
        %v8149 = vand.u32 %v504, 4294901760
        %v8150 = vsub.f32 %v504, %v8149
        %8151 = vmatmul.f32.gmra.mxu0 %v8150
        %v8152 = vpop.f32.mrf.mxu0
        %v8153 = vadd.f32 %v8123, %v8152
        %v8154 = vand.u32 %v507, 4294901760
        %v8155 = vsub.f32 %v507, %v8154
        %8156 = vmatmul.f32.gmra.mxu0 %v8155
        %v8157 = vpop.f32.mrf.mxu0
        %v8158 = vadd.f32 %v8127, %v8157
        %8159 = vdwg.mxu0
        %8160 = vmatpush.msra.mxu0 0.0
        %8161 = vmatpush.msra.mxu0 0.0
        %8162 = vmatpush.msra.mxu0 0.0
        %8163 = vmatpush.msra.mxu0 0.0
        %8164 = vmatpush.msra.mxu0 0.0
        %8165 = vmatpush.msra.mxu0 0.0
        %8166 = vmatpush.msra.mxu0 0.0
        %8167 = vmatpush.msra.mxu0 0.0
        %8168 = vmatpush.msra.mxu0 0.0
        %8169 = vmatpush.msra.mxu0 0.0
        %8170 = vmatpush.msra.mxu0 0.0
        %8171 = vmatpush.msra.mxu0 0.0
        %8172 = vmatpush.msra.mxu0 0.0
        %8173 = vmatpush.msra.mxu0 0.0
        %v8174 = vand.u32 %v7259, 4294901760
        %8175 = vmatpush.msra.mxu0 %v8174
        %v8176 = vand.u32 %v7255, 4294901760
        %8177 = vmatpush.msra.mxu0 %v8176
        %v8178 = vand.u32 %v504, 4294901760
        %v8179 = vsub.f32 %v504, %v8178
        %v8180 = vand.u32 %v8179, 4294901760
        %8181 = vmatmul.f32.gmra.mxu0 %v8180
        %v8182 = vpop.f32.mrf.mxu0
        %v8183 = vadd.f32 %v8153, %v8182
        %v8184 = vand.u32 %v507, 4294901760
        %v8185 = vsub.f32 %v507, %v8184
        %v8186 = vand.u32 %v8185, 4294901760
        %8187 = vmatmul.f32.gmra.mxu0 %v8186
        %v8188 = vpop.f32.mrf.mxu0
        %v8189 = vadd.f32 %v8158, %v8188
        %8190 = vdwg.mxu0
        %8191 = vmatpush.msra.mxu0 0.0
        %8192 = vmatpush.msra.mxu0 0.0
        %8193 = vmatpush.msra.mxu0 0.0
        %8194 = vmatpush.msra.mxu0 0.0
        %8195 = vmatpush.msra.mxu0 0.0
        %8196 = vmatpush.msra.mxu0 0.0
        %8197 = vmatpush.msra.mxu0 0.0
        %8198 = vmatpush.msra.mxu0 0.0
        %8199 = vmatpush.msra.mxu0 0.0
        %8200 = vmatpush.msra.mxu0 0.0
        %8201 = vmatpush.msra.mxu0 0.0
        %8202 = vmatpush.msra.mxu0 0.0
        %8203 = vmatpush.msra.mxu0 0.0
        %8204 = vmatpush.msra.mxu0 0.0
        %v8205 = vand.u32 %v7259, 4294901760
        %v8206 = vsub.f32 %v7259, %v8205
        %v8207 = vand.u32 %v8206, 4294901760
        %8208 = vmatpush.msra.mxu0 %v8207
        %v8209 = vand.u32 %v7255, 4294901760
        %v8210 = vsub.f32 %v7255, %v8209
        %v8211 = vand.u32 %v8210, 4294901760
        %8212 = vmatpush.msra.mxu0 %v8211
        %v8213 = vand.u32 %v504, 4294901760
        %8214 = vmatmul.f32.gmra.mxu0 %v8213
        %v8215 = vpop.f32.mrf.mxu0
        %v8216 = vadd.f32 %v8183, %v8215
        %v8217 = vand.u32 %v507, 4294901760
        %8218 = vmatmul.f32.gmra.mxu0 %v8217
        %v8219 = vpop.f32.mrf.mxu0
        %v8220 = vadd.f32 %v8189, %v8219
        %8221 = vdwg.mxu0
        %8222 = vmatpush.msra.mxu0 0.0
        %8223 = vmatpush.msra.mxu0 0.0
        %8224 = vmatpush.msra.mxu0 0.0
        %8225 = vmatpush.msra.mxu0 0.0
        %8226 = vmatpush.msra.mxu0 0.0
        %8227 = vmatpush.msra.mxu0 0.0
        %8228 = vmatpush.msra.mxu0 0.0
        %8229 = vmatpush.msra.mxu0 0.0
        %8230 = vmatpush.msra.mxu0 0.0
        %8231 = vmatpush.msra.mxu0 0.0
        %8232 = vmatpush.msra.mxu0 0.0
        %8233 = vmatpush.msra.mxu0 0.0
        %8234 = vmatpush.msra.mxu0 0.0
        %8235 = vmatpush.msra.mxu0 0.0
        %v8236 = vand.u32 %v7259, 4294901760
        %8237 = vmatpush.msra.mxu0 %v8236
        %v8238 = vand.u32 %v7255, 4294901760
        %8239 = vmatpush.msra.mxu0 %v8238
        %v8240 = vand.u32 %v504, 4294901760
        %8241 = vmatmul.f32.gmra.mxu0 %v8240
        %v8242 = vpop.f32.mrf.mxu0
        %v8243 = vadd.f32 %v8216, %v8242
        %v8244 = vand.u32 %v507, 4294901760
        %8245 = vmatmul.f32.gmra.mxu0 %v8244
        %v8246 = vpop.f32.mrf.mxu0
        %v8247 = vadd.f32 %v8220, %v8246
        %8248 = vdwg.mxu0
        %v8249 = vmul.f32 %v8243, 9.0
        %v8250 = vmul.f32 %v8247, 9.0
        %v8251 = vsub.f32 %v8249, %v8043
        %v8252 = vsub.f32 %v8250, %v8044
        %v8253 = vadd.f32 %v8251, 0.0729
        %v8254 = vadd.f32 %v8252, 0.0729
        %v8255 = vmul.f32 %v8057, %v8253
        %v8256 = vmul.f32 %v8058, %v8254
        %v8257 = vrcp.pop %v8255
        %v8258 = vrcp.pop %v8256
        %v8259 = vmul.f32 %v8255, %v8257
        %v8260 = vmul.f32 %v8256, %v8258
        %v8261 = vsub.f32 2.0, %v8259
        %v8262 = vsub.f32 2.0, %v8260
        %v8263 = vmul.f32 %v8257, %v8261
        %v8264 = vmul.f32 %v8258, %v8262
        %v8265 = vmul.f32 %v8055, %v8263
        %v8266 = vmul.f32 %v8056, %v8264
        %v8267 = vsub.f32 1.0, %v8265
        %v8268 = vsub.f32 1.0, %v8266
        %v8269 = vmul.f32 %v8267, 0.5
        %v8270 = vmul.f32 %v8268, 0.5
        %v8271 = vmax.f32 %v8269, 0.0
        %v8272 = vmax.f32 %v8270, 0.0
        %v8273 = vmin.f32 %v8271, 1.0
        %v8274 = vmin.f32 %v8272, 1.0
        %s8275 = scalar_lea.vmem %s294, 48 [#allocation10]
        %8276 = vst.msk [vmem:[%s8275] sm:$0xff] %vm306, %v8273
        %8277 = vst.msk [vmem:[%s8275 + $0x8] sm:$0xff] %vm306, %v8274
        %s8278 = sand.u32 %s127, 1
        %s8279 = scalar_lea.sflag [#allocation4], %s8278
        %s8280 = sand.u32 %s127, 1
        %s8281 = smul.addr %s8280, 64
        %s8282 = scalar_lea.vmem [#allocation10], %s8281
        // Predicated region
        $region53: #{tpu_custom_call.1} parent=35 // pred_check
          %p8283 = pneg %p137
        $region54: #{tpu_custom_call.1} parent=35 // pred_check_branch
          %8285 = sbr.rel (%p8283) target = $region56
        $region55: #{tpu_custom_call.1} parent=35 // pred_region
          %s8286 = smul.u32 4, %s25
          %8288 = vsyncadd %s8279, 0
          %s8289 = smul.addr %s8286, 2
          %s8290 = smul.addr %s8289, 8
          %s8291 = scalar_lea.hbm %s4, %s8290
          %s8292 = sshll.u32 %s8282, 4
          %s8293 = int_to_ptr.vmem [resolvable:$true] %s8292
          %s8294 = sshll.u32 %s8291, 4
          %s8295 = int_to_ptr.hbm [resolvable:$true] %s8294
          %8300 = dma.vmem_to_hbm [thread:$0]  %s8293, 1024, %s8295, %s8279, 128, 128, 8
        $region56: #{tpu_custom_call.1} parent=35 // pred_fallthru
          _
      $region36: #{tpu_custom_call.1} parent=5 // pred_fallthru
        _
      %p8301 = scmp.le.s32.totalorder 2, %s20
      // Predicated region
      $region57: #{tpu_custom_call.1} parent=5 // pred_check
        %p8302 = pneg %p8301
      $region58: #{tpu_custom_call.1} parent=5 // pred_check_branch
        %8304 = sbr.rel (%p8302) target = $region60
      $region59: #{tpu_custom_call.1} parent=5 // pred_region
        %s8305 = ssub.s32 %s20, 2
        // Predicated region
        $region61: #{tpu_custom_call.1} parent=59 // pred_check
          %p8306 = pneg %p143
        $region62: #{tpu_custom_call.1} parent=59 // pred_check_branch
          %8308 = sbr.rel (%p8306) target = $region64
        $region63: #{tpu_custom_call.1} parent=59 // pred_region
          %s8309 = sand.u32 %s128, 1
          %s8310 = scalar_lea.sflag [#allocation4], %s8309
          %s8311 = sand.u32 %s128, 1
          %s8312 = smul.addr %s8311, 64
          %s8313 = scalar_lea.vmem [#allocation10], %s8312
          %8315 = dma.done %s8310, 1024
        $region64: #{tpu_custom_call.1} parent=59 // pred_fallthru
          _
      $region60: #{tpu_custom_call.1} parent=5 // pred_fallthru
        _
    $region6: #{tpu_custom_call.1} parent=1 // loop_footer
      %s24 = sadd.s32 1, %s20
    $region7: #{tpu_custom_call.1} parent=1 // loop_footer_branch
      %19 = sbr.rel target = $region3
    $region8: #{tpu_custom_call.1} parent=1 // loop_exit
      _
    %8316 = vsyncpa [#allocation3], 1
    %s8317 = scalar_lea.sflag [#allocation3], 1
    %8318 = vsyncpa %s8317, 1
    %8319 = vsyncpa [#allocation6], 1
    %s8320 = scalar_lea.sflag [#allocation6], 1
    %8321 = vsyncpa %s8320, 1
    %8322 = vsyncpa [#allocation9], 1
    %8323 = vsyncpa [#allocation4], 1
    %s8324 = scalar_lea.sflag [#allocation4], 1
    %8325 = vsyncpa %s8324, 1

</llo_original>
